<compile_context>
chip_gen: v6e
topology: v6e:2x2x1
jax: 0.10.0
libtpu: 0.0.40
codegen_flags: <defaults>
</compile_context>

<pallas_src>
import functools

import jax
import jax.numpy as jnp
import numpy as np
from jax import lax
from jax.experimental import pallas as pl
from jax.experimental.pallas import tpu as pltpu

C = 64          # channels (fixed by the module)
RED = 16        # SE reduction -> hidden = C // RED = 4
EPS = 1e-5      # InstanceNorm eps (PyTorch default)
PAD = 2         # padding for kernel=3, dilation=2 (keeps spatial size)
KK = 9          # number of real 3x3 taps
KKP = 10        # taps padded to an even count -> K = 640 (lane-dense column writes)


def _residual_block_kernel(H, W, SH, Bblk, x_ref, w1_ref, g1_ref, b1_ref,
                           w2_ref, g2_ref, b2_ref, wse1_ref, wse2_ref, o_ref,
                           pad_ref, col_ref, y_ref):
    HW = H * W
    Wp = W + 2 * PAD
    rows = SH * W                      # rows per im2col strip (SH divides H)

    # ---- zero only the 2-wide halo border strips, once per grid step (amortized over
    #      the Bblk samples; the interior is fully overwritten before each conv and the
    #      halo is never written).  Keep this per-step: do NOT gate on program_id == 0.
    zrow = jnp.zeros((PAD, Wp, C), jnp.bfloat16)
    zcol = jnp.zeros((H, PAD, C), jnp.bfloat16)
    pad_ref[0:PAD, :, :] = zrow
    pad_ref[H + PAD:H + 2 * PAD, :, :] = zrow
    pad_ref[PAD:PAD + H, 0:PAD, :] = zcol
    pad_ref[PAD:PAD + H, W + PAD:W + 2 * PAD, :] = zcol

    def conv(w_ref):
        # strip-mined im2col + one deep-K (K = 640) MXU matmul per strip.
        for r0 in range(0, H, SH):                        # static, unrolled
            for j in range(KKP // 2):                     # tap pairs -> 128-lane writes
                k0, k1 = 2 * j, 2 * j + 1
                ky0, kx0 = divmod(k0, 3)
                t0 = pad_ref[2 * ky0 + r0:2 * ky0 + r0 + SH,
                             2 * kx0:2 * kx0 + W, :].reshape(rows, C)
                if k1 < KK:
                    ky1, kx1 = divmod(k1, 3)
                    t1 = pad_ref[2 * ky1 + r0:2 * ky1 + r0 + SH,
                                 2 * kx1:2 * kx1 + W, :].reshape(rows, C)
                else:
                    # padded 10th tap: must be a defined value (its weight rows are 0)
                    t1 = jnp.zeros((rows, C), jnp.bfloat16)
                col_ref[:, 128 * j:128 * (j + 1)] = jnp.concatenate([t0, t1], axis=-1)
            y_ref[r0 * W:(r0 + SH) * W, :] = jnp.dot(
                col_ref[...], w_ref[...], preferred_element_type=jnp.float32)

    def stats_scale_bias(g, b):
        # fused single-pass InstanceNorm stats (f32); affine folded into scale/bias.
        inv_n = jnp.float32(1.0 / HW)
        a = y_ref[...]
        mu = jnp.sum(a, axis=0, keepdims=True) * inv_n
        var = jnp.maximum(jnp.sum(a * a, axis=0, keepdims=True) * inv_n - mu * mu, 0.0)
        s = g * lax.rsqrt(var + EPS)
        return mu, s, b - mu * s

    for b in range(Bblk):                                 # static, unrolled
        # ---- conv1 (bf16 operands, f32 accumulation) + IN1 + ReLU ----
        pad_ref[PAD:PAD + H, PAD:PAD + W, :] = (
            x_ref[b].astype(jnp.bfloat16).reshape(H, W, C))
        conv(w1_ref)
        _, s1, t1 = stats_scale_bias(g1_ref[...], b1_ref[...])
        pad_ref[PAD:PAD + H, PAD:PAD + W, :] = (
            jnp.maximum(y_ref[...] * s1 + t1, 0.0).astype(jnp.bfloat16).reshape(H, W, C))

        # ---- conv2 + IN2 (stats only; affine folded into the output write) ----
        conv(w2_ref)
        mu2, s2, t2 = stats_scale_bias(g2_ref[...], b2_ref[...])

        # ---- SE on the VPU: global-avg-pool of the IN2 output over HW is exactly
        #      mu2*s2 + t2 (per-channel), so the gate comes straight from the stats. ----
        pooled = mu2 * s2 + t2                                                    # (1, C)
        h = jnp.maximum(jnp.sum(pooled * wse1_ref[...], axis=1, keepdims=True), 0.0)
        gate = jax.nn.sigmoid(jnp.sum(h * wse2_ref[...], axis=0, keepdims=True))  # (1, C)

        # ---- IN2 affine + SE scale folded into one scale/bias; residual add in f32 ----
        o_ref[b] = (y_ref[...] * (s2 * gate) + t2 * gate
                    + x_ref[b].astype(jnp.float32)).astype(o_ref.dtype)


def _pick_strip_height(H, W, target_rows=512):
    # largest divisor of H whose strip (SH*W rows) stays within ~target_rows
    sh = 1
    for d in range(1, H + 1):
        if H % d == 0 and d * W <= target_rows:
            sh = d
    return sh


def _pick_batch_block(B, HW, target_rows=2048):
    # largest divisor of B with Bblk*HW <= target_rows, keeping >= 2 grid steps if B >= 2
    max_blk = max(1, target_rows // HW)
    blk = 1
    for d in range(1, B + 1):
        if B % d == 0 and d <= max_blk and B // d >= min(2, B):
            blk = d
    return blk


def residual_block_nhwc(x_nhwc, params):
    """Core entry point: NHWC in / NHWC out (no layout transposes around the kernel)."""
    B, H, W, c = x_nhwc.shape
    assert c == C
    HW = H * W
    SH = _pick_strip_height(H, W)
    Bblk = _pick_batch_block(B, HW)

    x = x_nhwc.reshape(B, HW, C)           # (B, HW, C): rows = pixels, lanes = channels

    def conv_w(w):
        # (Cout, Cin, 3, 3) -> tap-major (9*Cin, Cout), padded with 64 zero rows -> (640, 64)
        w = jnp.transpose(w, (2, 3, 1, 0)).reshape(KK * C, C)
        return jnp.concatenate(
            [w, jnp.zeros(((KKP - KK) * C, C), w.dtype)], axis=0).astype(jnp.bfloat16)

    w1 = conv_w(params["conv1"])
    w2 = conv_w(params["conv2"])
    g1 = params["in1_w"].reshape(1, C).astype(jnp.float32)
    b1 = params["in1_b"].reshape(1, C).astype(jnp.float32)
    g2 = params["in2_w"].reshape(1, C).astype(jnp.float32)
    b2 = params["in2_b"].reshape(1, C).astype(jnp.float32)
    wse1 = params["fc1"].astype(jnp.float32)          # (C//RED, C)
    wse2 = params["fc2"].T.astype(jnp.float32)        # (C//RED, C)

    # explicit VMEM budget with headroom below physical capacity (~48 MiB on v7x).
    itemsize = jnp.dtype(x_nhwc.dtype).itemsize
    est = (2 * 2 * Bblk * HW * C * itemsize           # in + out blocks, double-buffered
           + 2 * 2 * KKP * C * C * 2                  # bf16 conv weights, double-buffered
           + (H + 2 * PAD) * (W + 2 * PAD) * C * 2    # bf16 padded-image scratch
           + SH * W * KKP * C * 2                     # bf16 strip im2col scratch
           + HW * C * 4                               # f32 conv-result scratch
           + 4 * HW * C * 4)                          # live f32 intermediates headroom
    try:
        cap = getattr(pltpu.get_tpu_info(), "vmem_capacity_bytes", 128 << 20)
    except Exception:
        cap = 128 << 20
    budget = min(cap * 3 // 4, cap - (12 << 20))
    vmem_limit = int(min(max(2 * est, 32 << 20), budget))

    kernel = functools.partial(_residual_block_kernel, H, W, SH, Bblk)

    # NOTE: weight/param BlockSpecs have constant index_maps; pl.Buffered(1) would save a
    # second ~160 KB buffer per conv weight but is skipped here for compile safety.
    out = pl.pallas_call(
        kernel,
        out_shape=jax.ShapeDtypeStruct((B, HW, C), x_nhwc.dtype),
        grid_spec=pltpu.PrefetchScalarGridSpec(
            num_scalar_prefetch=0,
            grid=(B // Bblk,),
            in_specs=[
                pl.BlockSpec((Bblk, HW, C), lambda b: (b, 0, 0)),   # x
                pl.BlockSpec((KKP * C, C), lambda b: (0, 0)),       # w1 (bf16, K padded)
                pl.BlockSpec((1, C), lambda b: (0, 0)),             # gamma1
                pl.BlockSpec((1, C), lambda b: (0, 0)),             # beta1
                pl.BlockSpec((KKP * C, C), lambda b: (0, 0)),       # w2 (bf16, K padded)
                pl.BlockSpec((1, C), lambda b: (0, 0)),             # gamma2
                pl.BlockSpec((1, C), lambda b: (0, 0)),             # beta2
                pl.BlockSpec((C // RED, C), lambda b: (0, 0)),      # SE fc1
                pl.BlockSpec((C // RED, C), lambda b: (0, 0)),      # SE fc2^T
            ],
            out_specs=pl.BlockSpec((Bblk, HW, C), lambda b: (b, 0, 0)),
            scratch_shapes=[
                pltpu.VMEM((H + 2 * PAD, W + 2 * PAD, C), jnp.bfloat16),  # padded image
                pltpu.VMEM((SH * W, KKP * C), jnp.bfloat16),              # strip columns
                pltpu.VMEM((HW, C), jnp.float32),                         # f32 conv result
            ],
        ),
        compiler_params=pltpu.CompilerParams(
            dimension_semantics=("parallel",),        # batch blocks independent -> megacore
            vmem_limit_bytes=vmem_limit),
    )(x, w1, g1, b1, w2, g2, b2, wse1, wse2)

    return out.reshape(B, H, W, C)
    # TODO(synk): for very large H*W add a grid axis over H row-strips with a 2*PAD halo
    # so the f32 result scratch / in-out blocks also stop scaling with HW (v7x 64 MiB VMEM).


def residual_block(x_nchw, params):
    # NCHW interface matching the PyTorch module.  In an NHWC model, call
    # residual_block_nhwc directly and drop these two full-tensor HBM transposes.
    B, c, H, W = x_nchw.shape
    assert c == C
    y = residual_block_nhwc(jnp.transpose(x_nchw, (0, 2, 3, 1)), params)
    return jnp.transpose(y, (0, 3, 1, 2))


# ---------------- pure-JAX reference (for correctness check) ----------------
def residual_block_ref(x, params):
    dn = lax.conv_dimension_numbers(x.shape, params["conv1"].shape,
                                    ('NCHW', 'OIHW', 'NCHW'))

    def conv(z, w):
        return lax.conv_general_dilated(z, w, window_strides=(1, 1),
                                        padding=((PAD, PAD), (PAD, PAD)),
                                        rhs_dilation=(2, 2),
                                        dimension_numbers=dn)

    def inorm(z, g, b):
        mu = z.mean(axis=(2, 3), keepdims=True)
        var = ((z - mu) ** 2).mean(axis=(2, 3), keepdims=True)
        return ((z - mu) * lax.rsqrt(var + EPS)
                * g.reshape(1, -1, 1, 1) + b.reshape(1, -1, 1, 1))

    y = jax.nn.relu(inorm(conv(x, params["conv1"]),
                          params["in1_w"], params["in1_b"]))
    y = inorm(conv(y, params["conv2"]), params["in2_w"], params["in2_b"])
    s = y.mean(axis=(2, 3))
    h = jax.nn.relu(s @ params["fc1"].T)
    gate = jax.nn.sigmoid(h @ params["fc2"].T)
    return y * gate[:, :, None, None] + x


if __name__ == "__main__":
    key = jax.random.PRNGKey(0)
    ks = jax.random.split(key, 8)

    B, H, W = 2, 16, 16
    x = jax.random.normal(ks[0], (B, C, H, W), jnp.float32)

    params = {
        "conv1": jax.random.normal(ks[1], (C, C, 3, 3), jnp.float32) * 0.05,
        "conv2": jax.random.normal(ks[2], (C, C, 3, 3), jnp.float32) * 0.05,
        "in1_w": 1.0 + 0.1 * jax.random.normal(ks[3], (C,), jnp.float32),
        "in1_b": 0.1 * jax.random.normal(ks[4], (C,), jnp.float32),
        "in2_w": 1.0 + 0.1 * jax.random.normal(ks[5], (C,), jnp.float32),
        "in2_b": 0.1 * jax.random.normal(ks[6], (C,), jnp.float32),
        "fc1": jax.random.normal(ks[7], (C // RED, C), jnp.float32) * 0.3,
        "fc2": jax.random.normal(jax.random.fold_in(key, 99),
                                 (C, C // RED), jnp.float32) * 0.3,
    }

    out = jax.block_until_ready(residual_block(x, params))
    ref = jax.block_until_ready(residual_block_ref(x, params))

    # conv matmul operands are bf16 (f32 accumulation); everything else is f32,
    # so 2e-2 abs/rel is the appropriate tolerance against the all-f32 reference.
    np.testing.assert_allclose(np.asarray(out), np.asarray(ref),
                               rtol=2e-2, atol=2e-2)
    print("KERNEL_OK")
</pallas_src>

<mosaic_0001>
module attributes {stable_mosaic.version = 11 : i64} {
  func.func @_residual_block_kernel(%arg0: i32, %arg1: memref<1x256x64xf32, #tpu.memory_space<vmem>>, %arg2: memref<640x64xbf16, #tpu.memory_space<vmem>>, %arg3: memref<1x64xf32, #tpu.memory_space<vmem>>, %arg4: memref<1x64xf32, #tpu.memory_space<vmem>>, %arg5: memref<640x64xbf16, #tpu.memory_space<vmem>>, %arg6: memref<1x64xf32, #tpu.memory_space<vmem>>, %arg7: memref<1x64xf32, #tpu.memory_space<vmem>>, %arg8: memref<4x64xf32, #tpu.memory_space<vmem>>, %arg9: memref<4x64xf32, #tpu.memory_space<vmem>>, %arg10: memref<1x256x64xf32, #tpu.memory_space<vmem>>, %arg11: memref<20x20x64xbf16, #tpu.memory_space<vmem>>, %arg12: memref<256x640xbf16, #tpu.memory_space<vmem>>, %arg13: memref<256x64xf32, #tpu.memory_space<vmem>>) attributes {dimension_semantics = [#tpu.dimension_semantics<parallel>], iteration_bounds = array<i64: 2>, scalar_prefetch = 0 : i64, scratch_operands = 3 : i64, tpu.core_type = #tpu.core_type<tc>, window_params = [{transform_indices = @transform_0, window_bounds = array<i64: 1, 256, 64>}, {pipeline_mode = #tpu.pipeline_mode<synchronous>, transform_indices = @transform_1, window_bounds = array<i64: 640, 64>}, {pipeline_mode = #tpu.pipeline_mode<synchronous>, transform_indices = @transform_2, window_bounds = array<i64: 1, 64>}, {pipeline_mode = #tpu.pipeline_mode<synchronous>, transform_indices = @transform_3, window_bounds = array<i64: 1, 64>}, {pipeline_mode = #tpu.pipeline_mode<synchronous>, transform_indices = @transform_4, window_bounds = array<i64: 640, 64>}, {pipeline_mode = #tpu.pipeline_mode<synchronous>, transform_indices = @transform_5, window_bounds = array<i64: 1, 64>}, {pipeline_mode = #tpu.pipeline_mode<synchronous>, transform_indices = @transform_6, window_bounds = array<i64: 1, 64>}, {pipeline_mode = #tpu.pipeline_mode<synchronous>, transform_indices = @transform_7, window_bounds = array<i64: 4, 64>}, {pipeline_mode = #tpu.pipeline_mode<synchronous>, transform_indices = @transform_8, window_bounds = array<i64: 4, 64>}, {transform_indices = @transform_9, window_bounds = array<i64: 1, 256, 64>}]} {
    %cst = arith.constant 0.000000e+00 : bf16
    %0 = vector.broadcast %cst : bf16 to vector<2x20x64xbf16>
    %cst_0 = arith.constant 0.000000e+00 : bf16
    %1 = vector.broadcast %cst_0 : bf16 to vector<16x2x64xbf16>
    %c0 = arith.constant 0 : index
    %c0_1 = arith.constant 0 : index
    %c0_2 = arith.constant 0 : index
    %2 = vector.load %arg11[%c0, %c0_1, %c0_2] : memref<20x20x64xbf16, #tpu.memory_space<vmem>>, vector<2x20x64xbf16>
    tpu.vector_store %arg11[%c0, %c0_1, %c0_2], %0 {strides = array<i32>} : memref<20x20x64xbf16, #tpu.memory_space<vmem>>, vector<2x20x64xbf16>,
    %c18 = arith.constant 18 : index
    %c0_3 = arith.constant 0 : index
    %c0_4 = arith.constant 0 : index
    %3 = vector.load %arg11[%c18, %c0_3, %c0_4] : memref<20x20x64xbf16, #tpu.memory_space<vmem>>, vector<2x20x64xbf16>
    tpu.vector_store %arg11[%c18, %c0_3, %c0_4], %0 {strides = array<i32>} : memref<20x20x64xbf16, #tpu.memory_space<vmem>>, vector<2x20x64xbf16>,
    %c2 = arith.constant 2 : index
    %c0_5 = arith.constant 0 : index
    %c0_6 = arith.constant 0 : index
    %4 = vector.load %arg11[%c2, %c0_5, %c0_6] : memref<20x20x64xbf16, #tpu.memory_space<vmem>>, vector<16x2x64xbf16>
    tpu.vector_store %arg11[%c2, %c0_5, %c0_6], %1 {strides = array<i32>} : memref<20x20x64xbf16, #tpu.memory_space<vmem>>, vector<16x2x64xbf16>,
    %c2_7 = arith.constant 2 : index
    %c18_8 = arith.constant 18 : index
    %c0_9 = arith.constant 0 : index
    %5 = vector.load %arg11[%c2_7, %c18_8, %c0_9] : memref<20x20x64xbf16, #tpu.memory_space<vmem>>, vector<16x2x64xbf16>
    tpu.vector_store %arg11[%c2_7, %c18_8, %c0_9], %1 {strides = array<i32>} : memref<20x20x64xbf16, #tpu.memory_space<vmem>>, vector<16x2x64xbf16>,
    %c0_10 = arith.constant 0 : index
    %c0_11 = arith.constant 0 : index
    %c0_12 = arith.constant 0 : index
    %6 = vector.load %arg1[%c0_10, %c0_11, %c0_12] : memref<1x256x64xf32, #tpu.memory_space<vmem>>, vector<1x256x64xf32>
    %7 = vector.shape_cast %6 : vector<1x256x64xf32> to vector<256x64xf32>
    %8 = arith.truncf %7 : vector<256x64xf32> to vector<256x64xbf16>
    %9 = vector.shape_cast %8 : vector<256x64xbf16> to vector<16x16x64xbf16>
    %c2_13 = arith.constant 2 : index
    %c2_14 = arith.constant 2 : index
    %c0_15 = arith.constant 0 : index
    %10 = vector.load %arg11[%c2_13, %c2_14, %c0_15] : memref<20x20x64xbf16, #tpu.memory_space<vmem>>, vector<16x16x64xbf16>
    tpu.vector_store %arg11[%c2_13, %c2_14, %c0_15], %9 {strides = array<i32>} : memref<20x20x64xbf16, #tpu.memory_space<vmem>>, vector<16x16x64xbf16>,
    %c0_16 = arith.constant 0 : index
    %c0_17 = arith.constant 0 : index
    %c0_18 = arith.constant 0 : index
    %11 = vector.load %arg11[%c0_16, %c0_17, %c0_18] : memref<20x20x64xbf16, #tpu.memory_space<vmem>>, vector<16x16x64xbf16>
    %12 = vector.shape_cast %11 : vector<16x16x64xbf16> to vector<256x64xbf16>
    %c0_19 = arith.constant 0 : index
    %c2_20 = arith.constant 2 : index
    %c0_21 = arith.constant 0 : index
    %13 = vector.load %arg11[%c0_19, %c2_20, %c0_21] : memref<20x20x64xbf16, #tpu.memory_space<vmem>>, vector<16x16x64xbf16>
    %14 = vector.shape_cast %13 : vector<16x16x64xbf16> to vector<256x64xbf16>
    %15 = tpu.concatenate %12, %14 in 1 : vector<256x64xbf16>, vector<256x64xbf16> -> vector<256x128xbf16>
    %c0_22 = arith.constant 0 : index
    %c0_23 = arith.constant 0 : index
    %16 = vector.load %arg12[%c0_22, %c0_23] : memref<256x640xbf16, #tpu.memory_space<vmem>>, vector<256x128xbf16>
    tpu.vector_store %arg12[%c0_22, %c0_23], %15 {strides = array<i32>} : memref<256x640xbf16, #tpu.memory_space<vmem>>, vector<256x128xbf16>,
    %c0_24 = arith.constant 0 : index
    %c4 = arith.constant 4 : index
    %c0_25 = arith.constant 0 : index
    %17 = vector.load %arg11[%c0_24, %c4, %c0_25] : memref<20x20x64xbf16, #tpu.memory_space<vmem>>, vector<16x16x64xbf16>
    %18 = vector.shape_cast %17 : vector<16x16x64xbf16> to vector<256x64xbf16>
    %c2_26 = arith.constant 2 : index
    %c0_27 = arith.constant 0 : index
    %c0_28 = arith.constant 0 : index
    %19 = vector.load %arg11[%c2_26, %c0_27, %c0_28] : memref<20x20x64xbf16, #tpu.memory_space<vmem>>, vector<16x16x64xbf16>
    %20 = vector.shape_cast %19 : vector<16x16x64xbf16> to vector<256x64xbf16>
    %21 = tpu.concatenate %18, %20 in 1 : vector<256x64xbf16>, vector<256x64xbf16> -> vector<256x128xbf16>
    %c0_29 = arith.constant 0 : index
    %c128 = arith.constant 128 : index
    %22 = vector.load %arg12[%c0_29, %c128] : memref<256x640xbf16, #tpu.memory_space<vmem>>, vector<256x128xbf16>
    tpu.vector_store %arg12[%c0_29, %c128], %21 {strides = array<i32>} : memref<256x640xbf16, #tpu.memory_space<vmem>>, vector<256x128xbf16>,
    %c2_30 = arith.constant 2 : index
    %c2_31 = arith.constant 2 : index
    %c0_32 = arith.constant 0 : index
    %23 = vector.load %arg11[%c2_30, %c2_31, %c0_32] : memref<20x20x64xbf16, #tpu.memory_space<vmem>>, vector<16x16x64xbf16>
    %24 = vector.shape_cast %23 : vector<16x16x64xbf16> to vector<256x64xbf16>
    %c2_33 = arith.constant 2 : index
    %c4_34 = arith.constant 4 : index
    %c0_35 = arith.constant 0 : index
    %25 = vector.load %arg11[%c2_33, %c4_34, %c0_35] : memref<20x20x64xbf16, #tpu.memory_space<vmem>>, vector<16x16x64xbf16>
    %26 = vector.shape_cast %25 : vector<16x16x64xbf16> to vector<256x64xbf16>
    %27 = tpu.concatenate %24, %26 in 1 : vector<256x64xbf16>, vector<256x64xbf16> -> vector<256x128xbf16>
    %c0_36 = arith.constant 0 : index
    %c256 = arith.constant 256 : index
    %28 = vector.load %arg12[%c0_36, %c256] : memref<256x640xbf16, #tpu.memory_space<vmem>>, vector<256x128xbf16>
    tpu.vector_store %arg12[%c0_36, %c256], %27 {strides = array<i32>} : memref<256x640xbf16, #tpu.memory_space<vmem>>, vector<256x128xbf16>,
    %c4_37 = arith.constant 4 : index
    %c0_38 = arith.constant 0 : index
    %c0_39 = arith.constant 0 : index
    %29 = vector.load %arg11[%c4_37, %c0_38, %c0_39] : memref<20x20x64xbf16, #tpu.memory_space<vmem>>, vector<16x16x64xbf16>
    %30 = vector.shape_cast %29 : vector<16x16x64xbf16> to vector<256x64xbf16>
    %c4_40 = arith.constant 4 : index
    %c2_41 = arith.constant 2 : index
    %c0_42 = arith.constant 0 : index
    %31 = vector.load %arg11[%c4_40, %c2_41, %c0_42] : memref<20x20x64xbf16, #tpu.memory_space<vmem>>, vector<16x16x64xbf16>
    %32 = vector.shape_cast %31 : vector<16x16x64xbf16> to vector<256x64xbf16>
    %33 = tpu.concatenate %30, %32 in 1 : vector<256x64xbf16>, vector<256x64xbf16> -> vector<256x128xbf16>
    %c0_43 = arith.constant 0 : index
    %c384 = arith.constant 384 : index
    %34 = vector.load %arg12[%c0_43, %c384] : memref<256x640xbf16, #tpu.memory_space<vmem>>, vector<256x128xbf16>
    tpu.vector_store %arg12[%c0_43, %c384], %33 {strides = array<i32>} : memref<256x640xbf16, #tpu.memory_space<vmem>>, vector<256x128xbf16>,
    %c4_44 = arith.constant 4 : index
    %c4_45 = arith.constant 4 : index
    %c0_46 = arith.constant 0 : index
    %35 = vector.load %arg11[%c4_44, %c4_45, %c0_46] : memref<20x20x64xbf16, #tpu.memory_space<vmem>>, vector<16x16x64xbf16>
    %36 = vector.shape_cast %35 : vector<16x16x64xbf16> to vector<256x64xbf16>
    %cst_47 = arith.constant 0.000000e+00 : bf16
    %37 = vector.broadcast %cst_47 : bf16 to vector<256x64xbf16>
    %38 = tpu.concatenate %36, %37 in 1 : vector<256x64xbf16>, vector<256x64xbf16> -> vector<256x128xbf16>
    %c0_48 = arith.constant 0 : index
    %c512 = arith.constant 512 : index
    %39 = vector.load %arg12[%c0_48, %c512] : memref<256x640xbf16, #tpu.memory_space<vmem>>, vector<256x128xbf16>
    tpu.vector_store %arg12[%c0_48, %c512], %38 {strides = array<i32>} : memref<256x640xbf16, #tpu.memory_space<vmem>>, vector<256x128xbf16>,
    %c0_49 = arith.constant 0 : index
    %c0_50 = arith.constant 0 : index
    %40 = vector.load %arg12[%c0_49, %c0_50] : memref<256x640xbf16, #tpu.memory_space<vmem>>, vector<256x640xbf16>
    %c0_51 = arith.constant 0 : index
    %c0_52 = arith.constant 0 : index
    %41 = vector.load %arg2[%c0_51, %c0_52] : memref<640x64xbf16, #tpu.memory_space<vmem>>, vector<640x64xbf16>
    %cst_53 = arith.constant dense<0.000000e+00> : vector<256x64xf32>
    %42 = tpu.matmul %40, %41, %cst_53 {dimension_numbers = #tpu.dot_dimension_numbers<[1], [0], [0], [1], [0, 0, 1, 1], [], []>} : vector<256x640xbf16>, vector<640x64xbf16>, vector<256x64xf32> -> vector<256x64xf32>
    %c0_54 = arith.constant 0 : index
    %c0_55 = arith.constant 0 : index
    %43 = vector.load %arg13[%c0_54, %c0_55] : memref<256x64xf32, #tpu.memory_space<vmem>>, vector<256x64xf32>
    tpu.vector_store %arg13[%c0_54, %c0_55], %42 {strides = array<i32>} : memref<256x64xf32, #tpu.memory_space<vmem>>, vector<256x64xf32>,
    %c0_56 = arith.constant 0 : index
    %c0_57 = arith.constant 0 : index
    %44 = vector.load %arg3[%c0_56, %c0_57] : memref<1x64xf32, #tpu.memory_space<vmem>>, vector<1x64xf32>
    %c0_58 = arith.constant 0 : index
    %c0_59 = arith.constant 0 : index
    %45 = vector.load %arg4[%c0_58, %c0_59] : memref<1x64xf32, #tpu.memory_space<vmem>>, vector<1x64xf32>
    %c0_60 = arith.constant 0 : index
    %c0_61 = arith.constant 0 : index
    %46 = vector.load %arg13[%c0_60, %c0_61] : memref<256x64xf32, #tpu.memory_space<vmem>>, vector<256x64xf32>
    %cst_62 = arith.constant dense<0.000000e+00> : vector<64xf32>
    %47 = vector.multi_reduction <add>, %46, %cst_62 [0] : vector<256x64xf32> to vector<64xf32>
    %48 = vector.shape_cast %47 : vector<64xf32> to vector<1x64xf32>
    %cst_63 = arith.constant 3.906250e-03 : f32
    %49 = vector.broadcast %cst_63 : f32 to vector<1x64xf32>
    %50 = arith.mulf %48, %49 : vector<1x64xf32>
    %51 = arith.mulf %46, %46 : vector<256x64xf32>
    %cst_64 = arith.constant dense<0.000000e+00> : vector<64xf32>
    %52 = vector.multi_reduction <add>, %51, %cst_64 [0] : vector<256x64xf32> to vector<64xf32>
    %53 = vector.shape_cast %52 : vector<64xf32> to vector<1x64xf32>
    %cst_65 = arith.constant 3.906250e-03 : f32
    %54 = vector.broadcast %cst_65 : f32 to vector<1x64xf32>
    %55 = arith.mulf %53, %54 : vector<1x64xf32>
    %56 = arith.mulf %50, %50 : vector<1x64xf32>
    %57 = arith.subf %55, %56 : vector<1x64xf32>
    %cst_66 = arith.constant 0.000000e+00 : f32
    %58 = vector.broadcast %cst_66 : f32 to vector<1x64xf32>
    %59 = arith.maximumf %57, %58 : vector<1x64xf32>
    %cst_67 = arith.constant 9.99999974E-6 : f32
    %60 = vector.broadcast %cst_67 : f32 to vector<1x64xf32>
    %61 = arith.addf %59, %60 : vector<1x64xf32>
    %62 = math.rsqrt %61 : vector<1x64xf32>
    %63 = arith.mulf %44, %62 : vector<1x64xf32>
    %64 = arith.mulf %50, %63 : vector<1x64xf32>
    %65 = arith.subf %45, %64 : vector<1x64xf32>
    %c0_68 = arith.constant 0 : index
    %c0_69 = arith.constant 0 : index
    %66 = vector.load %arg13[%c0_68, %c0_69] : memref<256x64xf32, #tpu.memory_space<vmem>>, vector<256x64xf32>
    %67 = vector.broadcast %63 : vector<1x64xf32> to vector<256x64xf32>
    %68 = arith.mulf %66, %67 : vector<256x64xf32>
    %69 = vector.broadcast %65 : vector<1x64xf32> to vector<256x64xf32>
    %70 = arith.addf %68, %69 : vector<256x64xf32>
    %cst_70 = arith.constant 0.000000e+00 : f32
    %71 = vector.broadcast %cst_70 : f32 to vector<256x64xf32>
    %72 = arith.maximumf %70, %71 : vector<256x64xf32>
    %73 = arith.truncf %72 : vector<256x64xf32> to vector<256x64xbf16>
    %74 = vector.shape_cast %73 : vector<256x64xbf16> to vector<16x16x64xbf16>
    %c2_71 = arith.constant 2 : index
    %c2_72 = arith.constant 2 : index
    %c0_73 = arith.constant 0 : index
    %75 = vector.load %arg11[%c2_71, %c2_72, %c0_73] : memref<20x20x64xbf16, #tpu.memory_space<vmem>>, vector<16x16x64xbf16>
    tpu.vector_store %arg11[%c2_71, %c2_72, %c0_73], %74 {strides = array<i32>} : memref<20x20x64xbf16, #tpu.memory_space<vmem>>, vector<16x16x64xbf16>,
    %c0_74 = arith.constant 0 : index
    %c0_75 = arith.constant 0 : index
    %c0_76 = arith.constant 0 : index
    %76 = vector.load %arg11[%c0_74, %c0_75, %c0_76] : memref<20x20x64xbf16, #tpu.memory_space<vmem>>, vector<16x16x64xbf16>
    %77 = vector.shape_cast %76 : vector<16x16x64xbf16> to vector<256x64xbf16>
    %c0_77 = arith.constant 0 : index
    %c2_78 = arith.constant 2 : index
    %c0_79 = arith.constant 0 : index
    %78 = vector.load %arg11[%c0_77, %c2_78, %c0_79] : memref<20x20x64xbf16, #tpu.memory_space<vmem>>, vector<16x16x64xbf16>
    %79 = vector.shape_cast %78 : vector<16x16x64xbf16> to vector<256x64xbf16>
    %80 = tpu.concatenate %77, %79 in 1 : vector<256x64xbf16>, vector<256x64xbf16> -> vector<256x128xbf16>
    %c0_80 = arith.constant 0 : index
    %c0_81 = arith.constant 0 : index
    %81 = vector.load %arg12[%c0_80, %c0_81] : memref<256x640xbf16, #tpu.memory_space<vmem>>, vector<256x128xbf16>
    tpu.vector_store %arg12[%c0_80, %c0_81], %80 {strides = array<i32>} : memref<256x640xbf16, #tpu.memory_space<vmem>>, vector<256x128xbf16>,
    %c0_82 = arith.constant 0 : index
    %c4_83 = arith.constant 4 : index
    %c0_84 = arith.constant 0 : index
    %82 = vector.load %arg11[%c0_82, %c4_83, %c0_84] : memref<20x20x64xbf16, #tpu.memory_space<vmem>>, vector<16x16x64xbf16>
    %83 = vector.shape_cast %82 : vector<16x16x64xbf16> to vector<256x64xbf16>
    %c2_85 = arith.constant 2 : index
    %c0_86 = arith.constant 0 : index
    %c0_87 = arith.constant 0 : index
    %84 = vector.load %arg11[%c2_85, %c0_86, %c0_87] : memref<20x20x64xbf16, #tpu.memory_space<vmem>>, vector<16x16x64xbf16>
    %85 = vector.shape_cast %84 : vector<16x16x64xbf16> to vector<256x64xbf16>
    %86 = tpu.concatenate %83, %85 in 1 : vector<256x64xbf16>, vector<256x64xbf16> -> vector<256x128xbf16>
    %c0_88 = arith.constant 0 : index
    %c128_89 = arith.constant 128 : index
    %87 = vector.load %arg12[%c0_88, %c128_89] : memref<256x640xbf16, #tpu.memory_space<vmem>>, vector<256x128xbf16>
    tpu.vector_store %arg12[%c0_88, %c128_89], %86 {strides = array<i32>} : memref<256x640xbf16, #tpu.memory_space<vmem>>, vector<256x128xbf16>,
    %c2_90 = arith.constant 2 : index
    %c2_91 = arith.constant 2 : index
    %c0_92 = arith.constant 0 : index
    %88 = vector.load %arg11[%c2_90, %c2_91, %c0_92] : memref<20x20x64xbf16, #tpu.memory_space<vmem>>, vector<16x16x64xbf16>
    %89 = vector.shape_cast %88 : vector<16x16x64xbf16> to vector<256x64xbf16>
    %c2_93 = arith.constant 2 : index
    %c4_94 = arith.constant 4 : index
    %c0_95 = arith.constant 0 : index
    %90 = vector.load %arg11[%c2_93, %c4_94, %c0_95] : memref<20x20x64xbf16, #tpu.memory_space<vmem>>, vector<16x16x64xbf16>
    %91 = vector.shape_cast %90 : vector<16x16x64xbf16> to vector<256x64xbf16>
    %92 = tpu.concatenate %89, %91 in 1 : vector<256x64xbf16>, vector<256x64xbf16> -> vector<256x128xbf16>
    %c0_96 = arith.constant 0 : index
    %c256_97 = arith.constant 256 : index
    %93 = vector.load %arg12[%c0_96, %c256_97] : memref<256x640xbf16, #tpu.memory_space<vmem>>, vector<256x128xbf16>
    tpu.vector_store %arg12[%c0_96, %c256_97], %92 {strides = array<i32>} : memref<256x640xbf16, #tpu.memory_space<vmem>>, vector<256x128xbf16>,
    %c4_98 = arith.constant 4 : index
    %c0_99 = arith.constant 0 : index
    %c0_100 = arith.constant 0 : index
    %94 = vector.load %arg11[%c4_98, %c0_99, %c0_100] : memref<20x20x64xbf16, #tpu.memory_space<vmem>>, vector<16x16x64xbf16>
    %95 = vector.shape_cast %94 : vector<16x16x64xbf16> to vector<256x64xbf16>
    %c4_101 = arith.constant 4 : index
    %c2_102 = arith.constant 2 : index
    %c0_103 = arith.constant 0 : index
    %96 = vector.load %arg11[%c4_101, %c2_102, %c0_103] : memref<20x20x64xbf16, #tpu.memory_space<vmem>>, vector<16x16x64xbf16>
    %97 = vector.shape_cast %96 : vector<16x16x64xbf16> to vector<256x64xbf16>
    %98 = tpu.concatenate %95, %97 in 1 : vector<256x64xbf16>, vector<256x64xbf16> -> vector<256x128xbf16>
    %c0_104 = arith.constant 0 : index
    %c384_105 = arith.constant 384 : index
    %99 = vector.load %arg12[%c0_104, %c384_105] : memref<256x640xbf16, #tpu.memory_space<vmem>>, vector<256x128xbf16>
    tpu.vector_store %arg12[%c0_104, %c384_105], %98 {strides = array<i32>} : memref<256x640xbf16, #tpu.memory_space<vmem>>, vector<256x128xbf16>,
    %c4_106 = arith.constant 4 : index
    %c4_107 = arith.constant 4 : index
    %c0_108 = arith.constant 0 : index
    %100 = vector.load %arg11[%c4_106, %c4_107, %c0_108] : memref<20x20x64xbf16, #tpu.memory_space<vmem>>, vector<16x16x64xbf16>
    %101 = vector.shape_cast %100 : vector<16x16x64xbf16> to vector<256x64xbf16>
    %cst_109 = arith.constant 0.000000e+00 : bf16
    %102 = vector.broadcast %cst_109 : bf16 to vector<256x64xbf16>
    %103 = tpu.concatenate %101, %102 in 1 : vector<256x64xbf16>, vector<256x64xbf16> -> vector<256x128xbf16>
    %c0_110 = arith.constant 0 : index
    %c512_111 = arith.constant 512 : index
    %104 = vector.load %arg12[%c0_110, %c512_111] : memref<256x640xbf16, #tpu.memory_space<vmem>>, vector<256x128xbf16>
    tpu.vector_store %arg12[%c0_110, %c512_111], %103 {strides = array<i32>} : memref<256x640xbf16, #tpu.memory_space<vmem>>, vector<256x128xbf16>,
    %c0_112 = arith.constant 0 : index
    %c0_113 = arith.constant 0 : index
    %105 = vector.load %arg12[%c0_112, %c0_113] : memref<256x640xbf16, #tpu.memory_space<vmem>>, vector<256x640xbf16>
    %c0_114 = arith.constant 0 : index
    %c0_115 = arith.constant 0 : index
    %106 = vector.load %arg5[%c0_114, %c0_115] : memref<640x64xbf16, #tpu.memory_space<vmem>>, vector<640x64xbf16>
    %cst_116 = arith.constant dense<0.000000e+00> : vector<256x64xf32>
    %107 = tpu.matmul %105, %106, %cst_116 {dimension_numbers = #tpu.dot_dimension_numbers<[1], [0], [0], [1], [0, 0, 1, 1], [], []>} : vector<256x640xbf16>, vector<640x64xbf16>, vector<256x64xf32> -> vector<256x64xf32>
    %c0_117 = arith.constant 0 : index
    %c0_118 = arith.constant 0 : index
    %108 = vector.load %arg13[%c0_117, %c0_118] : memref<256x64xf32, #tpu.memory_space<vmem>>, vector<256x64xf32>
    tpu.vector_store %arg13[%c0_117, %c0_118], %107 {strides = array<i32>} : memref<256x64xf32, #tpu.memory_space<vmem>>, vector<256x64xf32>,
    %c0_119 = arith.constant 0 : index
    %c0_120 = arith.constant 0 : index
    %109 = vector.load %arg6[%c0_119, %c0_120] : memref<1x64xf32, #tpu.memory_space<vmem>>, vector<1x64xf32>
    %c0_121 = arith.constant 0 : index
    %c0_122 = arith.constant 0 : index
    %110 = vector.load %arg7[%c0_121, %c0_122] : memref<1x64xf32, #tpu.memory_space<vmem>>, vector<1x64xf32>
    %c0_123 = arith.constant 0 : index
    %c0_124 = arith.constant 0 : index
    %111 = vector.load %arg13[%c0_123, %c0_124] : memref<256x64xf32, #tpu.memory_space<vmem>>, vector<256x64xf32>
    %cst_125 = arith.constant dense<0.000000e+00> : vector<64xf32>
    %112 = vector.multi_reduction <add>, %111, %cst_125 [0] : vector<256x64xf32> to vector<64xf32>
    %113 = vector.shape_cast %112 : vector<64xf32> to vector<1x64xf32>
    %cst_126 = arith.constant 3.906250e-03 : f32
    %114 = vector.broadcast %cst_126 : f32 to vector<1x64xf32>
    %115 = arith.mulf %113, %114 : vector<1x64xf32>
    %116 = arith.mulf %111, %111 : vector<256x64xf32>
    %cst_127 = arith.constant dense<0.000000e+00> : vector<64xf32>
    %117 = vector.multi_reduction <add>, %116, %cst_127 [0] : vector<256x64xf32> to vector<64xf32>
    %118 = vector.shape_cast %117 : vector<64xf32> to vector<1x64xf32>
    %cst_128 = arith.constant 3.906250e-03 : f32
    %119 = vector.broadcast %cst_128 : f32 to vector<1x64xf32>
    %120 = arith.mulf %118, %119 : vector<1x64xf32>
    %121 = arith.mulf %115, %115 : vector<1x64xf32>
    %122 = arith.subf %120, %121 : vector<1x64xf32>
    %cst_129 = arith.constant 0.000000e+00 : f32
    %123 = vector.broadcast %cst_129 : f32 to vector<1x64xf32>
    %124 = arith.maximumf %122, %123 : vector<1x64xf32>
    %cst_130 = arith.constant 9.99999974E-6 : f32
    %125 = vector.broadcast %cst_130 : f32 to vector<1x64xf32>
    %126 = arith.addf %124, %125 : vector<1x64xf32>
    %127 = math.rsqrt %126 : vector<1x64xf32>
    %128 = arith.mulf %109, %127 : vector<1x64xf32>
    %129 = arith.mulf %115, %128 : vector<1x64xf32>
    %130 = arith.subf %110, %129 : vector<1x64xf32>
    %131 = arith.mulf %115, %128 : vector<1x64xf32>
    %132 = arith.addf %131, %130 : vector<1x64xf32>
    %c0_131 = arith.constant 0 : index
    %c0_132 = arith.constant 0 : index
    %133 = vector.load %arg8[%c0_131, %c0_132] : memref<4x64xf32, #tpu.memory_space<vmem>>, vector<4x64xf32>
    %134 = vector.broadcast %132 : vector<1x64xf32> to vector<4x64xf32>
    %135 = arith.mulf %134, %133 : vector<4x64xf32>
    %cst_133 = arith.constant dense<0.000000e+00> : vector<4xf32>
    %136 = vector.multi_reduction <add>, %135, %cst_133 [1] : vector<4x64xf32> to vector<4xf32>
    %137 = vector.shape_cast %136 : vector<4xf32> to vector<4x1xf32>
    %cst_134 = arith.constant 0.000000e+00 : f32
    %138 = vector.broadcast %cst_134 : f32 to vector<4x1xf32>
    %139 = arith.maximumf %137, %138 : vector<4x1xf32>
    %c0_135 = arith.constant 0 : index
    %c0_136 = arith.constant 0 : index
    %140 = vector.load %arg9[%c0_135, %c0_136] : memref<4x64xf32, #tpu.memory_space<vmem>>, vector<4x64xf32>
    %141 = vector.broadcast %139 : vector<4x1xf32> to vector<4x64xf32>
    %142 = arith.mulf %141, %140 : vector<4x64xf32>
    %cst_137 = arith.constant dense<0.000000e+00> : vector<64xf32>
    %143 = vector.multi_reduction <add>, %142, %cst_137 [0] : vector<4x64xf32> to vector<64xf32>
    %144 = vector.shape_cast %143 : vector<64xf32> to vector<1x64xf32>
    %145 = arith.negf %144 : vector<1x64xf32>
    %146 = math.exp %145 : vector<1x64xf32>
    %cst_138 = arith.constant 1.000000e+00 : f32
    %147 = vector.broadcast %cst_138 : f32 to vector<1x64xf32>
    %148 = arith.addf %147, %146 : vector<1x64xf32>
    %149 = arith.divf %147, %148 : vector<1x64xf32>
    %c0_139 = arith.constant 0 : index
    %c0_140 = arith.constant 0 : index
    %150 = vector.load %arg13[%c0_139, %c0_140] : memref<256x64xf32, #tpu.memory_space<vmem>>, vector<256x64xf32>
    %151 = arith.mulf %128, %149 : vector<1x64xf32>
    %152 = vector.broadcast %151 : vector<1x64xf32> to vector<256x64xf32>
    %153 = arith.mulf %150, %152 : vector<256x64xf32>
    %154 = arith.mulf %130, %149 : vector<1x64xf32>
    %155 = vector.broadcast %154 : vector<1x64xf32> to vector<256x64xf32>
    %156 = arith.addf %153, %155 : vector<256x64xf32>
    %c0_141 = arith.constant 0 : index
    %c0_142 = arith.constant 0 : index
    %c0_143 = arith.constant 0 : index
    %157 = vector.load %arg1[%c0_141, %c0_142, %c0_143] : memref<1x256x64xf32, #tpu.memory_space<vmem>>, vector<1x256x64xf32>
    %158 = vector.shape_cast %157 : vector<1x256x64xf32> to vector<256x64xf32>
    %159 = arith.addf %156, %158 : vector<256x64xf32>
    %c0_144 = arith.constant 0 : index
    %c0_145 = arith.constant 0 : index
    %c0_146 = arith.constant 0 : index
    %160 = vector.load %arg10[%c0_144, %c0_145, %c0_146] : memref<1x256x64xf32, #tpu.memory_space<vmem>>, vector<1x256x64xf32>
    %161 = vector.shape_cast %160 : vector<1x256x64xf32> to vector<256x64xf32>
    %162 = vector.shape_cast %159 : vector<256x64xf32> to vector<1x256x64xf32>
    tpu.vector_store %arg10[%c0_144, %c0_145, %c0_146], %162 {strides = array<i32>} : memref<1x256x64xf32, #tpu.memory_space<vmem>>, vector<1x256x64xf32>,
    return
  }
  func.func @transform_0(%arg0: i32) -> (i32, i32, i32) {
    %c0_i32 = arith.constant 0 : i32
    %c0_i32_0 = arith.constant 0 : i32
    %c0_i32_1 = arith.constant 0 : i32
    return %arg0, %c0_i32, %c0_i32_0 : i32, i32, i32
  }
  func.func @transform_1(%arg0: i32) -> (i32, i32) {
    %c0_i32 = arith.constant 0 : i32
    %c0_i32_0 = arith.constant 0 : i32
    %c0_i32_1 = arith.constant 0 : i32
    return %c0_i32, %c0_i32_0 : i32, i32
  }
  func.func @transform_2(%arg0: i32) -> (i32, i32) {
    %c0_i32 = arith.constant 0 : i32
    %c0_i32_0 = arith.constant 0 : i32
    %c0_i32_1 = arith.constant 0 : i32
    return %c0_i32, %c0_i32_0 : i32, i32
  }
  func.func @transform_3(%arg0: i32) -> (i32, i32) {
    %c0_i32 = arith.constant 0 : i32
    %c0_i32_0 = arith.constant 0 : i32
    %c0_i32_1 = arith.constant 0 : i32
    return %c0_i32, %c0_i32_0 : i32, i32
  }
  func.func @transform_4(%arg0: i32) -> (i32, i32) {
    %c0_i32 = arith.constant 0 : i32
    %c0_i32_0 = arith.constant 0 : i32
    %c0_i32_1 = arith.constant 0 : i32
    return %c0_i32, %c0_i32_0 : i32, i32
  }
  func.func @transform_5(%arg0: i32) -> (i32, i32) {
    %c0_i32 = arith.constant 0 : i32
    %c0_i32_0 = arith.constant 0 : i32
    %c0_i32_1 = arith.constant 0 : i32
    return %c0_i32, %c0_i32_0 : i32, i32
  }
  func.func @transform_6(%arg0: i32) -> (i32, i32) {
    %c0_i32 = arith.constant 0 : i32
    %c0_i32_0 = arith.constant 0 : i32
    %c0_i32_1 = arith.constant 0 : i32
    return %c0_i32, %c0_i32_0 : i32, i32
  }
  func.func @transform_7(%arg0: i32) -> (i32, i32) {
    %c0_i32 = arith.constant 0 : i32
    %c0_i32_0 = arith.constant 0 : i32
    %c0_i32_1 = arith.constant 0 : i32
    return %c0_i32, %c0_i32_0 : i32, i32
  }
  func.func @transform_8(%arg0: i32) -> (i32, i32) {
    %c0_i32 = arith.constant 0 : i32
    %c0_i32_0 = arith.constant 0 : i32
    %c0_i32_1 = arith.constant 0 : i32
    return %c0_i32, %c0_i32_0 : i32, i32
  }
  func.func @transform_9(%arg0: i32) -> (i32, i32, i32) {
    %c0_i32 = arith.constant 0 : i32
    %c0_i32_0 = arith.constant 0 : i32
    %c0_i32_1 = arith.constant 0 : i32
    return %arg0, %c0_i32, %c0_i32_0 : i32, i32, i32
  }
}

</mosaic_0001>

<llo_original>
// kernel: tpu_custom_call.1
$region0: #{tpu_custom_call.1}
  #allocation0 [shape = 'u32[]', space=smem, size = 0x4, offset = 0x4, fixed_abs, tag = 'smem constant byte address 0x4 - core index']
  #allocation1 [shape = 'u32[144,128]{1,0:T(1,128)}', space=vmem, size = 0x12000, scoped, tag = 'internal scratch']
  #allocation2 [shape = 'bf16[20,20,64]{2,1,0:T(8,128)(2,1)}', space=vmem, size = 0x1e000, scoped, tag = 'scratch operand']
  #allocation3 [shape = 'bf16[256,640]{1,0:T(8,128)(2,1)}', space=vmem, size = 0x50000, scoped, tag = 'scratch operand']
  #allocation4 [shape = 'f32[256,64]{1,0:T(8,128)}', space=vmem, size = 0x20000, scoped, tag = 'scratch operand']
  %s0 = inlined_call_operand.vmem [shape: f32[2,256,64], index: 0, kind: input, shape index: {}]
  %s1 = inlined_call_operand.vmem [shape: bf16[640,64], index: 1, kind: input, shape index: {}]
  %s2 = inlined_call_operand.vmem [shape: f32[1,64], index: 2, kind: input, shape index: {}]
  %s3 = inlined_call_operand.vmem [shape: f32[1,64], index: 3, kind: input, shape index: {}]
  %s4 = inlined_call_operand.vmem [shape: bf16[640,64], index: 4, kind: input, shape index: {}]
  %s5 = inlined_call_operand.vmem [shape: f32[1,64], index: 5, kind: input, shape index: {}]
  %s6 = inlined_call_operand.vmem [shape: f32[1,64], index: 6, kind: input, shape index: {}]
  %s7 = inlined_call_operand.vmem [shape: f32[4,64], index: 7, kind: input, shape index: {}]
  %s8 = inlined_call_operand.vmem [shape: f32[4,64], index: 8, kind: input, shape index: {}]
  %s9 = inlined_call_operand.vmem [shape: f32[2,256,64], index: 9, kind: output, shape index: {}]
  %s10 = sld [smem:[#allocation0]]
  $region69: #{tpu_custom_call.1} parent=0
    _
  %s12 = ssub.s32 1, %s10
  %s13 = scalar_select 0, %s12, %s10
  loop: start=0, step=1, limit=4
  $region2: #{tpu_custom_call.1} parent=0 // loop_pre_header
    _
  $region3: #{tpu_custom_call.1} parent=0 // loop_header
    %s15 = sphi 0, %s19
    %p16 = scmp.ge.s32.totalorder %s15, 4
    %s25 = sphi 0, %s27
    %s28 = sphi 0, %s25
    %s29 = sphi 0, %s28
    %s45 = sphi 0, %s29
    %s49 = sphi 0, %s49
    %s51 = sphi 0, %s49
    %s52 = sphi 0, %s51
    %s66 = sphi 0, %s52
    %s70 = sphi 0, %s70
    %s72 = sphi 0, %s70
    %s73 = sphi 0, %s72
    %s87 = sphi 0, %s73
    %s91 = sphi 0, %s91
    %s93 = sphi 0, %s91
    %s94 = sphi 0, %s93
    %s108 = sphi 0, %s94
    %s112 = sphi 0, %s112
    %s114 = sphi 0, %s112
    %s115 = sphi 0, %s114
    %s129 = sphi 0, %s115
    %s133 = sphi 0, %s133
    %s135 = sphi 0, %s133
    %s136 = sphi 0, %s135
    %s150 = sphi 0, %s136
    %s154 = sphi 0, %s154
    %s156 = sphi 0, %s154
    %s157 = sphi 0, %s156
    %s171 = sphi 0, %s157
    %s175 = sphi 0, %s175
    %s177 = sphi 0, %s175
    %s178 = sphi 0, %s177
    %s192 = sphi 0, %s178
    %s196 = sphi 0, %s196
    %s198 = sphi 0, %s196
    %s199 = sphi 0, %s198
    %s213 = sphi 0, %s199
    %s219 = sphi 0, %s221
    %s222 = sphi 0, %s219
    %s223 = sphi 0, %s222
    %s239 = sphi 0, %s223
  $region4: #{tpu_custom_call.1} parent=0 // loop_header_branch
    %18 = sbr.rel (%p16) target = $region8
  $region5: #{tpu_custom_call.1} parent=0 // loop_body
    %s20 = ssub.s32 %s15, 1
    %s21 = ssub.s32 %s15, 2
    %s22 = sadd.s32 %s15, 1
    %s23 = ssub.s32 %s15, %s22
    %p24 = scmp.eq.s32.totalorder %s23, 0
    %s26 = sadd.s32 %s25, 1
    %s27 = scalar_select %p24, %s25, %s26
    %p30 = pneg %p24
    %p31 = scmp.eq.s32.totalorder %s15, 1
    %p32 = por %p30, %p31
    %p33 = scmp.ne.s32.totalorder %s25, %s28
    %p34 = scmp.eq.s32.totalorder %s15, 0
    %p35 = por %p33, %p34
    %p36 = scmp.ne.s32.totalorder %s25, %s28
    %p37 = scmp.eq.s32.totalorder %s20, 1
    %p38 = por %p36, %p37
    %p39 = scmp.ne.s32.totalorder %s28, %s29
    %p40 = scmp.eq.s32.totalorder %s20, 0
    %p41 = por %p39, %p40
    %p42 = scmp.ne.s32.totalorder %s28, %s29
    %p43 = scmp.eq.s32.totalorder %s21, 1
    %p44 = por %p42, %p43
    %p46 = scmp.ne.s32.totalorder %s29, %s45
    %p47 = scmp.eq.s32.totalorder %s21, 0
    %p48 = por %p46, %p47
    %s50 = sadd.s32 %s49, 1
    %p53 = scmp.eq.s32.totalorder %s15, 1
    %p54 = scmp.ne.s32.totalorder %s49, %s51
    %p55 = scmp.eq.s32.totalorder %s15, 0
    %p56 = por %p54, %p55
    %p57 = scmp.ne.s32.totalorder %s49, %s51
    %p58 = scmp.eq.s32.totalorder %s20, 1
    %p59 = por %p57, %p58
    %p60 = scmp.ne.s32.totalorder %s51, %s52
    %p61 = scmp.eq.s32.totalorder %s20, 0
    %p62 = por %p60, %p61
    %p63 = scmp.ne.s32.totalorder %s51, %s52
    %p64 = scmp.eq.s32.totalorder %s21, 1
    %p65 = por %p63, %p64
    %p67 = scmp.ne.s32.totalorder %s52, %s66
    %p68 = scmp.eq.s32.totalorder %s21, 0
    %p69 = por %p67, %p68
    %s71 = sadd.s32 %s70, 1
    %p74 = scmp.eq.s32.totalorder %s15, 1
    %p75 = scmp.ne.s32.totalorder %s70, %s72
    %p76 = scmp.eq.s32.totalorder %s15, 0
    %p77 = por %p75, %p76
    %p78 = scmp.ne.s32.totalorder %s70, %s72
    %p79 = scmp.eq.s32.totalorder %s20, 1
    %p80 = por %p78, %p79
    %p81 = scmp.ne.s32.totalorder %s72, %s73
    %p82 = scmp.eq.s32.totalorder %s20, 0
    %p83 = por %p81, %p82
    %p84 = scmp.ne.s32.totalorder %s72, %s73
    %p85 = scmp.eq.s32.totalorder %s21, 1
    %p86 = por %p84, %p85
    %p88 = scmp.ne.s32.totalorder %s73, %s87
    %p89 = scmp.eq.s32.totalorder %s21, 0
    %p90 = por %p88, %p89
    %s92 = sadd.s32 %s91, 1
    %p95 = scmp.eq.s32.totalorder %s15, 1
    %p96 = scmp.ne.s32.totalorder %s91, %s93
    %p97 = scmp.eq.s32.totalorder %s15, 0
    %p98 = por %p96, %p97
    %p99 = scmp.ne.s32.totalorder %s91, %s93
    %p100 = scmp.eq.s32.totalorder %s20, 1
    %p101 = por %p99, %p100
    %p102 = scmp.ne.s32.totalorder %s93, %s94
    %p103 = scmp.eq.s32.totalorder %s20, 0
    %p104 = por %p102, %p103
    %p105 = scmp.ne.s32.totalorder %s93, %s94
    %p106 = scmp.eq.s32.totalorder %s21, 1
    %p107 = por %p105, %p106
    %p109 = scmp.ne.s32.totalorder %s94, %s108
    %p110 = scmp.eq.s32.totalorder %s21, 0
    %p111 = por %p109, %p110
    %s113 = sadd.s32 %s112, 1
    %p116 = scmp.eq.s32.totalorder %s15, 1
    %p117 = scmp.ne.s32.totalorder %s112, %s114
    %p118 = scmp.eq.s32.totalorder %s15, 0
    %p119 = por %p117, %p118
    %p120 = scmp.ne.s32.totalorder %s112, %s114
    %p121 = scmp.eq.s32.totalorder %s20, 1
    %p122 = por %p120, %p121
    %p123 = scmp.ne.s32.totalorder %s114, %s115
    %p124 = scmp.eq.s32.totalorder %s20, 0
    %p125 = por %p123, %p124
    %p126 = scmp.ne.s32.totalorder %s114, %s115
    %p127 = scmp.eq.s32.totalorder %s21, 1
    %p128 = por %p126, %p127
    %p130 = scmp.ne.s32.totalorder %s115, %s129
    %p131 = scmp.eq.s32.totalorder %s21, 0
    %p132 = por %p130, %p131
    %s134 = sadd.s32 %s133, 1
    %p137 = scmp.eq.s32.totalorder %s15, 1
    %p138 = scmp.ne.s32.totalorder %s133, %s135
    %p139 = scmp.eq.s32.totalorder %s15, 0
    %p140 = por %p138, %p139
    %p141 = scmp.ne.s32.totalorder %s133, %s135
    %p142 = scmp.eq.s32.totalorder %s20, 1
    %p143 = por %p141, %p142
    %p144 = scmp.ne.s32.totalorder %s135, %s136
    %p145 = scmp.eq.s32.totalorder %s20, 0
    %p146 = por %p144, %p145
    %p147 = scmp.ne.s32.totalorder %s135, %s136
    %p148 = scmp.eq.s32.totalorder %s21, 1
    %p149 = por %p147, %p148
    %p151 = scmp.ne.s32.totalorder %s136, %s150
    %p152 = scmp.eq.s32.totalorder %s21, 0
    %p153 = por %p151, %p152
    %s155 = sadd.s32 %s154, 1
    %p158 = scmp.eq.s32.totalorder %s15, 1
    %p159 = scmp.ne.s32.totalorder %s154, %s156
    %p160 = scmp.eq.s32.totalorder %s15, 0
    %p161 = por %p159, %p160
    %p162 = scmp.ne.s32.totalorder %s154, %s156
    %p163 = scmp.eq.s32.totalorder %s20, 1
    %p164 = por %p162, %p163
    %p165 = scmp.ne.s32.totalorder %s156, %s157
    %p166 = scmp.eq.s32.totalorder %s20, 0
    %p167 = por %p165, %p166
    %p168 = scmp.ne.s32.totalorder %s156, %s157
    %p169 = scmp.eq.s32.totalorder %s21, 1
    %p170 = por %p168, %p169
    %p172 = scmp.ne.s32.totalorder %s157, %s171
    %p173 = scmp.eq.s32.totalorder %s21, 0
    %p174 = por %p172, %p173
    %s176 = sadd.s32 %s175, 1
    %p179 = scmp.eq.s32.totalorder %s15, 1
    %p180 = scmp.ne.s32.totalorder %s175, %s177
    %p181 = scmp.eq.s32.totalorder %s15, 0
    %p182 = por %p180, %p181
    %p183 = scmp.ne.s32.totalorder %s175, %s177
    %p184 = scmp.eq.s32.totalorder %s20, 1
    %p185 = por %p183, %p184
    %p186 = scmp.ne.s32.totalorder %s177, %s178
    %p187 = scmp.eq.s32.totalorder %s20, 0
    %p188 = por %p186, %p187
    %p189 = scmp.ne.s32.totalorder %s177, %s178
    %p190 = scmp.eq.s32.totalorder %s21, 1
    %p191 = por %p189, %p190
    %p193 = scmp.ne.s32.totalorder %s178, %s192
    %p194 = scmp.eq.s32.totalorder %s21, 0
    %p195 = por %p193, %p194
    %s197 = sadd.s32 %s196, 1
    %p200 = scmp.eq.s32.totalorder %s15, 1
    %p201 = scmp.ne.s32.totalorder %s196, %s198
    %p202 = scmp.eq.s32.totalorder %s15, 0
    %p203 = por %p201, %p202
    %p204 = scmp.ne.s32.totalorder %s196, %s198
    %p205 = scmp.eq.s32.totalorder %s20, 1
    %p206 = por %p204, %p205
    %p207 = scmp.ne.s32.totalorder %s198, %s199
    %p208 = scmp.eq.s32.totalorder %s20, 0
    %p209 = por %p207, %p208
    %p210 = scmp.ne.s32.totalorder %s198, %s199
    %p211 = scmp.eq.s32.totalorder %s21, 1
    %p212 = por %p210, %p211
    %p214 = scmp.ne.s32.totalorder %s199, %s213
    %p215 = scmp.eq.s32.totalorder %s21, 0
    %p216 = por %p214, %p215
    %s217 = ssub.s32 %s15, %s22
    %p218 = scmp.eq.s32.totalorder %s217, 0
    %s220 = sadd.s32 %s219, 1
    %s221 = scalar_select %p218, %s219, %s220
    %p224 = pneg %p218
    %p225 = scmp.eq.s32.totalorder %s15, 1
    %p226 = por %p224, %p225
    %p227 = scmp.ne.s32.totalorder %s219, %s222
    %p228 = scmp.eq.s32.totalorder %s15, 0
    %p229 = por %p227, %p228
    %p230 = scmp.ne.s32.totalorder %s219, %s222
    %p231 = scmp.eq.s32.totalorder %s20, 1
    %p232 = por %p230, %p231
    %p233 = scmp.ne.s32.totalorder %s222, %s223
    %p234 = scmp.eq.s32.totalorder %s20, 0
    %p235 = por %p233, %p234
    %p236 = scmp.ne.s32.totalorder %s222, %s223
    %p237 = scmp.eq.s32.totalorder %s21, 1
    %p238 = por %p236, %p237
    %p240 = scmp.ne.s32.totalorder %s223, %s239
    %p241 = scmp.eq.s32.totalorder %s21, 0
    %p242 = por %p240, %p241
    %p243 = scmp.le.s32.totalorder 1, %s15
    %p244 = scmp.lt.s32.totalorder %s15, 3
    %p245 = pnand %p243, %p244
    %p246 = pneg %p245
    // Predicated region
    $region9: #{tpu_custom_call.1} parent=5 // pred_check
      _
    $region10: #{tpu_custom_call.1} parent=5 // pred_check_branch
      %248 = sbr.rel (%p245) target = $region12
    $region11: #{tpu_custom_call.1} parent=5 // pred_region
      %s249 = ssub.s32 %s15, 1
      // Predicated region
      $region13: #{tpu_custom_call.1} parent=11 // pred_check
        %p250 = pneg %p62
      $region14: #{tpu_custom_call.1} parent=11 // pred_check_branch
        %252 = sbr.rel (%p250) target = $region16
      $region15: #{tpu_custom_call.1} parent=11 // pred_region
        _
      $region16: #{tpu_custom_call.1} parent=11 // pred_fallthru
        _
      // Predicated region
      $region17: #{tpu_custom_call.1} parent=11 // pred_check
        %p253 = pneg %p83
      $region18: #{tpu_custom_call.1} parent=11 // pred_check_branch
        %255 = sbr.rel (%p253) target = $region20
      $region19: #{tpu_custom_call.1} parent=11 // pred_region
        _
      $region20: #{tpu_custom_call.1} parent=11 // pred_fallthru
        _
      // Predicated region
      $region21: #{tpu_custom_call.1} parent=11 // pred_check
        %p256 = pneg %p104
      $region22: #{tpu_custom_call.1} parent=11 // pred_check_branch
        %258 = sbr.rel (%p256) target = $region24
      $region23: #{tpu_custom_call.1} parent=11 // pred_region
        _
      $region24: #{tpu_custom_call.1} parent=11 // pred_fallthru
        _
      // Predicated region
      $region25: #{tpu_custom_call.1} parent=11 // pred_check
        %p259 = pneg %p125
      $region26: #{tpu_custom_call.1} parent=11 // pred_check_branch
        %261 = sbr.rel (%p259) target = $region28
      $region27: #{tpu_custom_call.1} parent=11 // pred_region
        _
      $region28: #{tpu_custom_call.1} parent=11 // pred_fallthru
        _
      // Predicated region
      $region29: #{tpu_custom_call.1} parent=11 // pred_check
        %p262 = pneg %p146
      $region30: #{tpu_custom_call.1} parent=11 // pred_check_branch
        %264 = sbr.rel (%p262) target = $region32
      $region31: #{tpu_custom_call.1} parent=11 // pred_region
        _
      $region32: #{tpu_custom_call.1} parent=11 // pred_fallthru
        _
      // Predicated region
      $region33: #{tpu_custom_call.1} parent=11 // pred_check
        %p265 = pneg %p167
      $region34: #{tpu_custom_call.1} parent=11 // pred_check_branch
        %267 = sbr.rel (%p265) target = $region36
      $region35: #{tpu_custom_call.1} parent=11 // pred_region
        _
      $region36: #{tpu_custom_call.1} parent=11 // pred_fallthru
        _
      // Predicated region
      $region37: #{tpu_custom_call.1} parent=11 // pred_check
        %p268 = pneg %p188
      $region38: #{tpu_custom_call.1} parent=11 // pred_check_branch
        %270 = sbr.rel (%p268) target = $region40
      $region39: #{tpu_custom_call.1} parent=11 // pred_region
        _
      $region40: #{tpu_custom_call.1} parent=11 // pred_fallthru
        _
      // Predicated region
      $region41: #{tpu_custom_call.1} parent=11 // pred_check
        %p271 = pneg %p209
      $region42: #{tpu_custom_call.1} parent=11 // pred_check_branch
        %273 = sbr.rel (%p271) target = $region44
      $region43: #{tpu_custom_call.1} parent=11 // pred_region
        _
      $region44: #{tpu_custom_call.1} parent=11 // pred_fallthru
        _
    $region12: #{tpu_custom_call.1} parent=5 // pred_fallthru
      _
    %p274 = scmp.lt.s32.totalorder %s15, 2
    // Predicated region
    $region45: #{tpu_custom_call.1} parent=5 // pred_check
      %p275 = pneg %p274
    $region46: #{tpu_custom_call.1} parent=5 // pred_check_branch
      %277 = sbr.rel (%p275) target = $region48
    $region47: #{tpu_custom_call.1} parent=5 // pred_region
      // Predicated region
      $region49: #{tpu_custom_call.1} parent=47 // pred_check
        %p278 = pneg %p35
      $region50: #{tpu_custom_call.1} parent=47 // pred_check_branch
        %280 = sbr.rel (%p278) target = $region52
      $region51: #{tpu_custom_call.1} parent=47 // pred_region
        %p281 = scmp.lt.s32.totalorder %s15, 1
        %s282 = scalar_select %p281, %s15, 1
        %s283 = smul.addr %s282, 32
        %s284 = smul.addr %s283, 8
        %s285 = scalar_lea.vmem %s0, %s284
      $region52: #{tpu_custom_call.1} parent=47 // pred_fallthru
        _
    $region48: #{tpu_custom_call.1} parent=5 // pred_fallthru
      _
    %p286 = scmp.le.s32.totalorder 1, %s15
    %p287 = scmp.lt.s32.totalorder %s15, 3
    %p288 = pnand %p286, %p287
    %p289 = pneg %p288
    // Predicated region
    $region53: #{tpu_custom_call.1} parent=5 // pred_check
      _
    $region54: #{tpu_custom_call.1} parent=5 // pred_check_branch
      %291 = sbr.rel (%p288) target = $region56
    $region55: #{tpu_custom_call.1} parent=5 // pred_region
      %s292 = ssub.s32 %s15, 1
      %p293 = scmp.lt.s32.totalorder %s20, 1
      %s294 = scalar_select %p293, %s20, 1
      %s295 = smul.addr %s294, 32
      %s296 = smul.addr %s295, 8
      %s297 = scalar_lea.vmem %s0, %s296
      %p298 = pneg %p41
      %p299 = pneg %p38
      %p300 = pneg %p62
      %p301 = pneg %p59
      %p302 = pneg %p83
      %p303 = pneg %p80
      %p304 = pneg %p104
      %p305 = pneg %p101
      %p306 = pneg %p125
      %p307 = pneg %p122
      %p308 = pneg %p146
      %p309 = pneg %p143
      %p310 = pneg %p167
      %p311 = pneg %p164
      %p312 = pneg %p188
      %p313 = pneg %p185
      %p314 = pneg %p209
      %p315 = pneg %p206
      %p316 = pneg %p235
      %p317 = pneg %p232
      %p318 = scmp.lt.s32.totalorder %s20, 1
      %s319 = scalar_select %p318, %s20, 1
      %s320 = smul.addr %s319, 32
      %s321 = smul.addr %s320, 8
      %s322 = scalar_lea.vmem %s9, %s321
      %p323 = scmp.lt.s32.totalorder %s20, 1
      %s324 = scalar_select %p323, %s20, 1
      %s325 = smul.addr %s324, 32
      %s326 = smul.addr %s325, 8
      %s327 = scalar_lea.vmem %s0, %s326
      %p328 = scmp.lt.s32.totalorder %s20, 1
      %s329 = scalar_select %p328, %s20, 1
      %s330 = smul.addr %s329, 32
      %s331 = smul.addr %s330, 8
      %s332 = scalar_lea.vmem %s9, %s331
      %vm334 = vcmask 519168
      %335 = vst.msk [vmem:[#allocation2] sm:$0xf] %vm334, 0
      %336 = vst.msk [vmem:[#allocation2 + $0x4] sm:$0xf] %vm334, 0
      %vm337 = vcmask 517120
      %338 = vst.msk [vmem:[#allocation2 + $0x8] sm:$0x3] %vm337, 0
      %339 = vst.msk [vmem:[#allocation2 + $0xc] sm:$0xf] %vm334, 0
      %340 = vst.msk [vmem:[#allocation2 + $0x10] sm:$0xf] %vm334, 0
      %341 = vst.msk [vmem:[#allocation2 + $0x14] sm:$0x3] %vm337, 0
      %s342 = scalar_lea.vmem [#allocation2], 216
      %343 = vst.msk [vmem:[%s342] sm:$0xf] %vm334, 0
      %344 = vst.msk [vmem:[%s342 + $0x4] sm:$0xf] %vm334, 0
      %345 = vst.msk [vmem:[%s342 + $0x8] sm:$0x3] %vm337, 0
      %346 = vst.msk [vmem:[%s342 + $0xc] sm:$0xf] %vm334, 0
      %347 = vst.msk [vmem:[%s342 + $0x10] sm:$0xf] %vm334, 0
      %348 = vst.msk [vmem:[%s342 + $0x14] sm:$0x3] %vm337, 0
      %s349 = scalar_lea.vmem [#allocation2], 24
      %vm350 = vcmask 516096
      %351 = vst.msk [vmem:[%s349] sm:$0x1] %vm350, 0
      %352 = vst.msk [vmem:[%s349 + $0xc] sm:$0x1] %vm350, 0
      %353 = vst.msk [vmem:[%s349 + $0x18] sm:$0x1] %vm350, 0
      %354 = vst.msk [vmem:[%s349 + $0x24] sm:$0x1] %vm350, 0
      %355 = vst.msk [vmem:[%s349 + $0x30] sm:$0x1] %vm350, 0
      %356 = vst.msk [vmem:[%s349 + $0x3c] sm:$0x1] %vm350, 0
      %357 = vst.msk [vmem:[%s349 + $0x48] sm:$0x1] %vm350, 0
      %358 = vst.msk [vmem:[%s349 + $0x54] sm:$0x1] %vm350, 0
      %359 = vst.msk [vmem:[%s349 + $0x60] sm:$0x1] %vm350, 0
      %360 = vst.msk [vmem:[%s349 + $0x6c] sm:$0x1] %vm350, 0
      %361 = vst.msk [vmem:[%s349 + $0x78] sm:$0x1] %vm350, 0
      %362 = vst.msk [vmem:[%s349 + $0x84] sm:$0x1] %vm350, 0
      %363 = vst.msk [vmem:[%s349 + $0x90] sm:$0x1] %vm350, 0
      %364 = vst.msk [vmem:[%s349 + $0x9c] sm:$0x1] %vm350, 0
      %365 = vst.msk [vmem:[%s349 + $0xa8] sm:$0x1] %vm350, 0
      %366 = vst.msk [vmem:[%s349 + $0xb4] sm:$0x1] %vm350, 0
      %vm367 = vcmask 517121
      %368 = vst.msk [vmem:[%s349 + $0x8] sm:$0x2] %vm367, 0
      %369 = vst.msk [vmem:[%s349 + $0x14] sm:$0x2] %vm367, 0
      %370 = vst.msk [vmem:[%s349 + $0x20] sm:$0x2] %vm367, 0
      %371 = vst.msk [vmem:[%s349 + $0x2c] sm:$0x2] %vm367, 0
      %372 = vst.msk [vmem:[%s349 + $0x38] sm:$0x2] %vm367, 0
      %373 = vst.msk [vmem:[%s349 + $0x44] sm:$0x2] %vm367, 0
      %374 = vst.msk [vmem:[%s349 + $0x50] sm:$0x2] %vm367, 0
      %375 = vst.msk [vmem:[%s349 + $0x5c] sm:$0x2] %vm367, 0
      %376 = vst.msk [vmem:[%s349 + $0x68] sm:$0x2] %vm367, 0
      %377 = vst.msk [vmem:[%s349 + $0x74] sm:$0x2] %vm367, 0
      %378 = vst.msk [vmem:[%s349 + $0x80] sm:$0x2] %vm367, 0
      %379 = vst.msk [vmem:[%s349 + $0x8c] sm:$0x2] %vm367, 0
      %380 = vst.msk [vmem:[%s349 + $0x98] sm:$0x2] %vm367, 0
      %381 = vst.msk [vmem:[%s349 + $0xa4] sm:$0x2] %vm367, 0
      %382 = vst.msk [vmem:[%s349 + $0xb0] sm:$0x2] %vm367, 0
      %383 = vst.msk [vmem:[%s349 + $0xbc] sm:$0x2] %vm367, 0
      %v384 = vld [vmem:[%s327] sm:$0xff]
      %v385 = vld [vmem:[%s327 + $0x8] sm:$0xff]
      %v386 = vld [vmem:[%s327 + $0x10] sm:$0xff]
      %v387 = vld [vmem:[%s327 + $0x18] sm:$0xff]
      %v388 = vld [vmem:[%s327 + $0x20] sm:$0xff]
      %v389 = vld [vmem:[%s327 + $0x28] sm:$0xff]
      %v390 = vld [vmem:[%s327 + $0x30] sm:$0xff]
      %v391 = vld [vmem:[%s327 + $0x38] sm:$0xff]
      %v392 = vld [vmem:[%s327 + $0x40] sm:$0xff]
      %v393 = vld [vmem:[%s327 + $0x48] sm:$0xff]
      %v394 = vld [vmem:[%s327 + $0x50] sm:$0xff]
      %v395 = vld [vmem:[%s327 + $0x58] sm:$0xff]
      %v396 = vld [vmem:[%s327 + $0x60] sm:$0xff]
      %v397 = vld [vmem:[%s327 + $0x68] sm:$0xff]
      %v398 = vld [vmem:[%s327 + $0x70] sm:$0xff]
      %v399 = vld [vmem:[%s327 + $0x78] sm:$0xff]
      %v400 = vld [vmem:[%s327 + $0x80] sm:$0xff]
      %v401 = vld [vmem:[%s327 + $0x88] sm:$0xff]
      %v402 = vld [vmem:[%s327 + $0x90] sm:$0xff]
      %v403 = vld [vmem:[%s327 + $0x98] sm:$0xff]
      %v404 = vld [vmem:[%s327 + $0xa0] sm:$0xff]
      %v405 = vld [vmem:[%s327 + $0xa8] sm:$0xff]
      %v406 = vld [vmem:[%s327 + $0xb0] sm:$0xff]
      %v407 = vld [vmem:[%s327 + $0xb8] sm:$0xff]
      %v408 = vld [vmem:[%s327 + $0xc0] sm:$0xff]
      %v409 = vld [vmem:[%s327 + $0xc8] sm:$0xff]
      %v410 = vld [vmem:[%s327 + $0xd0] sm:$0xff]
      %v411 = vld [vmem:[%s327 + $0xd8] sm:$0xff]
      %v412 = vld [vmem:[%s327 + $0xe0] sm:$0xff]
      %v413 = vld [vmem:[%s327 + $0xe8] sm:$0xff]
      %v414 = vld [vmem:[%s327 + $0xf0] sm:$0xff]
      %v415 = vld [vmem:[%s327 + $0xf8] sm:$0xff]
      %v416 = vpack.c.bf16 %v385, %v384
      %v417 = vpack.c.bf16 %v387, %v386
      %v418 = vpack.c.bf16 %v389, %v388
      %v419 = vpack.c.bf16 %v391, %v390
      %v420 = vpack.c.bf16 %v393, %v392
      %v421 = vpack.c.bf16 %v395, %v394
      %v422 = vpack.c.bf16 %v397, %v396
      %v423 = vpack.c.bf16 %v399, %v398
      %v424 = vpack.c.bf16 %v401, %v400
      %v425 = vpack.c.bf16 %v403, %v402
      %v426 = vpack.c.bf16 %v405, %v404
      %v427 = vpack.c.bf16 %v407, %v406
      %v428 = vpack.c.bf16 %v409, %v408
      %v429 = vpack.c.bf16 %v411, %v410
      %v430 = vpack.c.bf16 %v413, %v412
      %v431 = vpack.c.bf16 %v415, %v414
      %v448 = vunpack.c.l.b16 %v416
      %v449 = vunpack.c.h.b16 %v416
      %v450 = vunpack.c.l.b16 %v417
      %v451 = vunpack.c.h.b16 %v417
      %v452 = vunpack.c.l.b16 %v418
      %v453 = vunpack.c.h.b16 %v418
      %v454 = vunpack.c.l.b16 %v419
      %v455 = vunpack.c.h.b16 %v419
      %v456 = vunpack.c.l.b16 %v420
      %v457 = vunpack.c.h.b16 %v420
      %v458 = vunpack.c.l.b16 %v421
      %v459 = vunpack.c.h.b16 %v421
      %v460 = vunpack.c.l.b16 %v422
      %v461 = vunpack.c.h.b16 %v422
      %v462 = vunpack.c.l.b16 %v423
      %v463 = vunpack.c.h.b16 %v423
      %v464 = vunpack.c.l.b16 %v424
      %v465 = vunpack.c.h.b16 %v424
      %v466 = vunpack.c.l.b16 %v425
      %v467 = vunpack.c.h.b16 %v425
      %v468 = vunpack.c.l.b16 %v426
      %v469 = vunpack.c.h.b16 %v426
      %v470 = vunpack.c.l.b16 %v427
      %v471 = vunpack.c.h.b16 %v427
      %v472 = vunpack.c.l.b16 %v428
      %v473 = vunpack.c.h.b16 %v428
      %v474 = vunpack.c.l.b16 %v429
      %v475 = vunpack.c.h.b16 %v429
      %v476 = vunpack.c.l.b16 %v430
      %v477 = vunpack.c.h.b16 %v430
      %v478 = vunpack.c.l.b16 %v431
      %v479 = vunpack.c.h.b16 %v431
      %v480 = vpack.c.b16 %v448, %v448
      %v481 = vpack.c.b16 %v449, %v449
      %v482 = vpack.c.b16 %v450, %v450
      %v483 = vpack.c.b16 %v451, %v451
      %v484 = vpack.c.b16 %v452, %v452
      %v485 = vpack.c.b16 %v453, %v453
      %v486 = vpack.c.b16 %v454, %v454
      %v487 = vpack.c.b16 %v455, %v455
      %v488 = vpack.c.b16 %v456, %v456
      %v489 = vpack.c.b16 %v457, %v457
      %v490 = vpack.c.b16 %v458, %v458
      %v491 = vpack.c.b16 %v459, %v459
      %v492 = vpack.c.b16 %v460, %v460
      %v493 = vpack.c.b16 %v461, %v461
      %v494 = vpack.c.b16 %v462, %v462
      %v495 = vpack.c.b16 %v463, %v463
      %v496 = vpack.c.b16 %v464, %v464
      %v497 = vpack.c.b16 %v465, %v465
      %v498 = vpack.c.b16 %v466, %v466
      %v499 = vpack.c.b16 %v467, %v467
      %v500 = vpack.c.b16 %v468, %v468
      %v501 = vpack.c.b16 %v469, %v469
      %v502 = vpack.c.b16 %v470, %v470
      %v503 = vpack.c.b16 %v471, %v471
      %v504 = vpack.c.b16 %v472, %v472
      %v505 = vpack.c.b16 %v473, %v473
      %v506 = vpack.c.b16 %v474, %v474
      %v507 = vpack.c.b16 %v475, %v475
      %v508 = vpack.c.b16 %v476, %v476
      %v509 = vpack.c.b16 %v477, %v477
      %v510 = vpack.c.b16 %v478, %v478
      %v511 = vpack.c.b16 %v479, %v479
      %vm512 = vcmask 1040384
      %vm513 = vcmask 1044484
      %vm514 = vmor %vm512, %vm513
      %v515 = vrot.slane %v480, 7
      %v516 = vrot.slane %v515, 4
      %v517 = vrot.slane %v481, 7
      %v518 = vsel %vm514, %v516, %v517
      %v519 = vrot.slane %v517, 4
      %v520 = vrot.slane %v482, 7
      %v521 = vrot.slane %v520, 4
      %v522 = vrot.slane %v483, 7
      %v523 = vsel %vm514, %v521, %v522
      %v524 = vrot.slane %v522, 4
      %v525 = vrot.slane %v484, 7
      %v526 = vrot.slane %v525, 4
      %v527 = vrot.slane %v485, 7
      %v528 = vsel %vm514, %v526, %v527
      %v529 = vrot.slane %v527, 4
      %v530 = vrot.slane %v486, 7
      %v531 = vrot.slane %v530, 4
      %v532 = vrot.slane %v487, 7
      %v533 = vsel %vm514, %v531, %v532
      %v534 = vrot.slane %v532, 4
      %v535 = vrot.slane %v488, 7
      %v536 = vrot.slane %v535, 4
      %v537 = vrot.slane %v489, 7
      %v538 = vsel %vm514, %v536, %v537
      %v539 = vrot.slane %v537, 4
      %v540 = vrot.slane %v490, 7
      %v541 = vrot.slane %v540, 4
      %v542 = vrot.slane %v491, 7
      %v543 = vsel %vm514, %v541, %v542
      %v544 = vrot.slane %v542, 4
      %v545 = vrot.slane %v492, 7
      %v546 = vrot.slane %v545, 4
      %v547 = vrot.slane %v493, 7
      %v548 = vsel %vm514, %v546, %v547
      %v549 = vrot.slane %v547, 4
      %v550 = vrot.slane %v494, 7
      %v551 = vrot.slane %v550, 4
      %v552 = vrot.slane %v495, 7
      %v553 = vsel %vm514, %v551, %v552
      %v554 = vrot.slane %v552, 4
      %v555 = vrot.slane %v496, 7
      %v556 = vrot.slane %v555, 4
      %v557 = vrot.slane %v497, 7
      %v558 = vsel %vm514, %v556, %v557
      %v559 = vrot.slane %v557, 4
      %v560 = vrot.slane %v498, 7
      %v561 = vrot.slane %v560, 4
      %v562 = vrot.slane %v499, 7
      %v563 = vsel %vm514, %v561, %v562
      %v564 = vrot.slane %v562, 4
      %v565 = vrot.slane %v500, 7
      %v566 = vrot.slane %v565, 4
      %v567 = vrot.slane %v501, 7
      %v568 = vsel %vm514, %v566, %v567
      %v569 = vrot.slane %v567, 4
      %v570 = vrot.slane %v502, 7
      %v571 = vrot.slane %v570, 4
      %v572 = vrot.slane %v503, 7
      %v573 = vsel %vm514, %v571, %v572
      %v574 = vrot.slane %v572, 4
      %v575 = vrot.slane %v504, 7
      %v576 = vrot.slane %v575, 4
      %v577 = vrot.slane %v505, 7
      %v578 = vsel %vm514, %v576, %v577
      %v579 = vrot.slane %v577, 4
      %v580 = vrot.slane %v506, 7
      %v581 = vrot.slane %v580, 4
      %v582 = vrot.slane %v507, 7
      %v583 = vsel %vm514, %v581, %v582
      %v584 = vrot.slane %v582, 4
      %v585 = vrot.slane %v508, 7
      %v586 = vrot.slane %v585, 4
      %v587 = vrot.slane %v509, 7
      %v588 = vsel %vm514, %v586, %v587
      %v589 = vrot.slane %v587, 4
      %v590 = vrot.slane %v510, 7
      %v591 = vrot.slane %v590, 4
      %v592 = vrot.slane %v511, 7
      %v593 = vsel %vm514, %v591, %v592
      %v594 = vrot.slane %v592, 4
      %vm643 = vcmask 519169
      %644 = vst.msk [vmem:[%s349] sm:$0xe] %vm643, %v515
      %645 = vst.msk [vmem:[%s349 + $0x4] sm:$0xf] %vm334, %v518
      %646 = vst.msk [vmem:[%s349 + $0x8] sm:$0x1] %vm350, %v519
      %647 = vst.msk [vmem:[%s349 + $0xc] sm:$0xe] %vm643, %v520
      %648 = vst.msk [vmem:[%s349 + $0x10] sm:$0xf] %vm334, %v523
      %649 = vst.msk [vmem:[%s349 + $0x14] sm:$0x1] %vm350, %v524
      %650 = vst.msk [vmem:[%s349 + $0x18] sm:$0xe] %vm643, %v525
      %651 = vst.msk [vmem:[%s349 + $0x1c] sm:$0xf] %vm334, %v528
      %652 = vst.msk [vmem:[%s349 + $0x20] sm:$0x1] %vm350, %v529
      %653 = vst.msk [vmem:[%s349 + $0x24] sm:$0xe] %vm643, %v530
      %654 = vst.msk [vmem:[%s349 + $0x28] sm:$0xf] %vm334, %v533
      %655 = vst.msk [vmem:[%s349 + $0x2c] sm:$0x1] %vm350, %v534
      %656 = vst.msk [vmem:[%s349 + $0x30] sm:$0xe] %vm643, %v535
      %657 = vst.msk [vmem:[%s349 + $0x34] sm:$0xf] %vm334, %v538
      %658 = vst.msk [vmem:[%s349 + $0x38] sm:$0x1] %vm350, %v539
      %659 = vst.msk [vmem:[%s349 + $0x3c] sm:$0xe] %vm643, %v540
      %660 = vst.msk [vmem:[%s349 + $0x40] sm:$0xf] %vm334, %v543
      %661 = vst.msk [vmem:[%s349 + $0x44] sm:$0x1] %vm350, %v544
      %662 = vst.msk [vmem:[%s349 + $0x48] sm:$0xe] %vm643, %v545
      %663 = vst.msk [vmem:[%s349 + $0x4c] sm:$0xf] %vm334, %v548
      %664 = vst.msk [vmem:[%s349 + $0x50] sm:$0x1] %vm350, %v549
      %665 = vst.msk [vmem:[%s349 + $0x54] sm:$0xe] %vm643, %v550
      %666 = vst.msk [vmem:[%s349 + $0x58] sm:$0xf] %vm334, %v553
      %667 = vst.msk [vmem:[%s349 + $0x5c] sm:$0x1] %vm350, %v554
      %668 = vst.msk [vmem:[%s349 + $0x60] sm:$0xe] %vm643, %v555
      %669 = vst.msk [vmem:[%s349 + $0x64] sm:$0xf] %vm334, %v558
      %670 = vst.msk [vmem:[%s349 + $0x68] sm:$0x1] %vm350, %v559
      %671 = vst.msk [vmem:[%s349 + $0x6c] sm:$0xe] %vm643, %v560
      %672 = vst.msk [vmem:[%s349 + $0x70] sm:$0xf] %vm334, %v563
      %673 = vst.msk [vmem:[%s349 + $0x74] sm:$0x1] %vm350, %v564
      %674 = vst.msk [vmem:[%s349 + $0x78] sm:$0xe] %vm643, %v565
      %675 = vst.msk [vmem:[%s349 + $0x7c] sm:$0xf] %vm334, %v568
      %676 = vst.msk [vmem:[%s349 + $0x80] sm:$0x1] %vm350, %v569
      %677 = vst.msk [vmem:[%s349 + $0x84] sm:$0xe] %vm643, %v570
      %678 = vst.msk [vmem:[%s349 + $0x88] sm:$0xf] %vm334, %v573
      %679 = vst.msk [vmem:[%s349 + $0x8c] sm:$0x1] %vm350, %v574
      %680 = vst.msk [vmem:[%s349 + $0x90] sm:$0xe] %vm643, %v575
      %681 = vst.msk [vmem:[%s349 + $0x94] sm:$0xf] %vm334, %v578
      %682 = vst.msk [vmem:[%s349 + $0x98] sm:$0x1] %vm350, %v579
      %683 = vst.msk [vmem:[%s349 + $0x9c] sm:$0xe] %vm643, %v580
      %684 = vst.msk [vmem:[%s349 + $0xa0] sm:$0xf] %vm334, %v583
      %685 = vst.msk [vmem:[%s349 + $0xa4] sm:$0x1] %vm350, %v584
      %686 = vst.msk [vmem:[%s349 + $0xa8] sm:$0xe] %vm643, %v585
      %687 = vst.msk [vmem:[%s349 + $0xac] sm:$0xf] %vm334, %v588
      %688 = vst.msk [vmem:[%s349 + $0xb0] sm:$0x1] %vm350, %v589
      %689 = vst.msk [vmem:[%s349 + $0xb4] sm:$0xe] %vm643, %v590
      %690 = vst.msk [vmem:[%s349 + $0xb8] sm:$0xf] %vm334, %v593
      %691 = vst.msk [vmem:[%s349 + $0xbc] sm:$0x1] %vm350, %v594
      %v692 = vld [vmem:[#allocation2] sm:$0xf]
      %v693 = vld [vmem:[#allocation2 + $0x4] sm:$0xf]
      %v694 = vld [vmem:[#allocation2 + $0xc] sm:$0xf]
      %v695 = vld [vmem:[#allocation2 + $0x10] sm:$0xf]
      %v696 = vld [vmem:[#allocation2 + $0x18] sm:$0xf]
      %v697 = vld [vmem:[#allocation2 + $0x1c] sm:$0xf]
      %v698 = vld [vmem:[#allocation2 + $0x24] sm:$0xf]
      %v699 = vld [vmem:[#allocation2 + $0x28] sm:$0xf]
      %v700 = vld [vmem:[#allocation2 + $0x30] sm:$0xf]
      %v701 = vld [vmem:[#allocation2 + $0x34] sm:$0xf]
      %v702 = vld [vmem:[#allocation2 + $0x3c] sm:$0xf]
      %v703 = vld [vmem:[#allocation2 + $0x40] sm:$0xf]
      %v704 = vld [vmem:[#allocation2 + $0x48] sm:$0xf]
      %v705 = vld [vmem:[#allocation2 + $0x4c] sm:$0xf]
      %v706 = vld [vmem:[#allocation2 + $0x54] sm:$0xf]
      %v707 = vld [vmem:[#allocation2 + $0x58] sm:$0xf]
      %v708 = vld [vmem:[#allocation2 + $0x60] sm:$0xf]
      %v709 = vld [vmem:[#allocation2 + $0x64] sm:$0xf]
      %v710 = vld [vmem:[#allocation2 + $0x6c] sm:$0xf]
      %v711 = vld [vmem:[#allocation2 + $0x70] sm:$0xf]
      %v712 = vld [vmem:[#allocation2 + $0x78] sm:$0xf]
      %v713 = vld [vmem:[#allocation2 + $0x7c] sm:$0xf]
      %v714 = vld [vmem:[#allocation2 + $0x84] sm:$0xf]
      %v715 = vld [vmem:[#allocation2 + $0x88] sm:$0xf]
      %v716 = vld [vmem:[#allocation2 + $0x90] sm:$0xf]
      %v717 = vld [vmem:[#allocation2 + $0x94] sm:$0xf]
      %v718 = vld [vmem:[#allocation2 + $0x9c] sm:$0xf]
      %v719 = vld [vmem:[#allocation2 + $0xa0] sm:$0xf]
      %v720 = vld [vmem:[#allocation2 + $0xa8] sm:$0xf]
      %v721 = vld [vmem:[#allocation2 + $0xac] sm:$0xf]
      %v722 = vld [vmem:[#allocation2 + $0xb4] sm:$0xf]
      %v723 = vld [vmem:[#allocation2 + $0xb8] sm:$0xf]
      %v724 = vld [vmem:[#allocation2] sm:$0xe]
      %v725 = vld [vmem:[#allocation2 + $0x8] sm:$0x1]
      %v726 = vld [vmem:[#allocation2 + $0xc] sm:$0xe]
      %v727 = vld [vmem:[#allocation2 + $0x14] sm:$0x1]
      %v728 = vld [vmem:[#allocation2 + $0x18] sm:$0xe]
      %v729 = vld [vmem:[#allocation2 + $0x20] sm:$0x1]
      %v730 = vld [vmem:[#allocation2 + $0x24] sm:$0xe]
      %v731 = vld [vmem:[#allocation2 + $0x2c] sm:$0x1]
      %v732 = vld [vmem:[#allocation2 + $0x30] sm:$0xe]
      %v733 = vld [vmem:[#allocation2 + $0x38] sm:$0x1]
      %v734 = vld [vmem:[#allocation2 + $0x3c] sm:$0xe]
      %v735 = vld [vmem:[#allocation2 + $0x44] sm:$0x1]
      %v736 = vld [vmem:[#allocation2 + $0x48] sm:$0xe]
      %v737 = vld [vmem:[#allocation2 + $0x50] sm:$0x1]
      %v738 = vld [vmem:[#allocation2 + $0x54] sm:$0xe]
      %v739 = vld [vmem:[#allocation2 + $0x5c] sm:$0x1]
      %v740 = vld [vmem:[#allocation2 + $0x60] sm:$0xe]
      %v741 = vld [vmem:[#allocation2 + $0x68] sm:$0x1]
      %v742 = vld [vmem:[#allocation2 + $0x6c] sm:$0xe]
      %v743 = vld [vmem:[#allocation2 + $0x74] sm:$0x1]
      %v744 = vld [vmem:[#allocation2 + $0x78] sm:$0xe]
      %v745 = vld [vmem:[#allocation2 + $0x80] sm:$0x1]
      %v746 = vld [vmem:[#allocation2 + $0x84] sm:$0xe]
      %v747 = vld [vmem:[#allocation2 + $0x8c] sm:$0x1]
      %v748 = vld [vmem:[#allocation2 + $0x90] sm:$0xe]
      %v749 = vld [vmem:[#allocation2 + $0x98] sm:$0x1]
      %v750 = vld [vmem:[#allocation2 + $0x9c] sm:$0xe]
      %v751 = vld [vmem:[#allocation2 + $0xa4] sm:$0x1]
      %v752 = vld [vmem:[#allocation2 + $0xa8] sm:$0xe]
      %v753 = vld [vmem:[#allocation2 + $0xb0] sm:$0x1]
      %v754 = vld [vmem:[#allocation2 + $0xb4] sm:$0xe]
      %v755 = vld [vmem:[#allocation2 + $0xbc] sm:$0x1]
      %vm804 = vcmask 1042432
      %vm805 = vcmask 1046532
      %vm806 = vmor %vm804, %vm805
      %v807 = vrot.slane %v724, 5
      %v808 = vrot.slane %v807, 4
      %v809 = vrot.slane %v693, 5
      %v810 = vsel %vm806, %v808, %v809
      %v811 = vrot.slane %v809, 4
      %v812 = vrot.slane %v725, 5
      %v813 = vsel %vm806, %v811, %v812
      %v814 = vrot.slane %v726, 5
      %v815 = vrot.slane %v814, 4
      %v816 = vrot.slane %v695, 5
      %v817 = vsel %vm806, %v815, %v816
      %v818 = vrot.slane %v816, 4
      %v819 = vrot.slane %v727, 5
      %v820 = vsel %vm806, %v818, %v819
      %v821 = vrot.slane %v728, 5
      %v822 = vrot.slane %v821, 4
      %v823 = vrot.slane %v697, 5
      %v824 = vsel %vm806, %v822, %v823
      %v825 = vrot.slane %v823, 4
      %v826 = vrot.slane %v729, 5
      %v827 = vsel %vm806, %v825, %v826
      %v828 = vrot.slane %v730, 5
      %v829 = vrot.slane %v828, 4
      %v830 = vrot.slane %v699, 5
      %v831 = vsel %vm806, %v829, %v830
      %v832 = vrot.slane %v830, 4
      %v833 = vrot.slane %v731, 5
      %v834 = vsel %vm806, %v832, %v833
      %v835 = vrot.slane %v732, 5
      %v836 = vrot.slane %v835, 4
      %v837 = vrot.slane %v701, 5
      %v838 = vsel %vm806, %v836, %v837
      %v839 = vrot.slane %v837, 4
      %v840 = vrot.slane %v733, 5
      %v841 = vsel %vm806, %v839, %v840
      %v842 = vrot.slane %v734, 5
      %v843 = vrot.slane %v842, 4
      %v844 = vrot.slane %v703, 5
      %v845 = vsel %vm806, %v843, %v844
      %v846 = vrot.slane %v844, 4
      %v847 = vrot.slane %v735, 5
      %v848 = vsel %vm806, %v846, %v847
      %v849 = vrot.slane %v736, 5
      %v850 = vrot.slane %v849, 4
      %v851 = vrot.slane %v705, 5
      %v852 = vsel %vm806, %v850, %v851
      %v853 = vrot.slane %v851, 4
      %v854 = vrot.slane %v737, 5
      %v855 = vsel %vm806, %v853, %v854
      %v856 = vrot.slane %v738, 5
      %v857 = vrot.slane %v856, 4
      %v858 = vrot.slane %v707, 5
      %v859 = vsel %vm806, %v857, %v858
      %v860 = vrot.slane %v858, 4
      %v861 = vrot.slane %v739, 5
      %v862 = vsel %vm806, %v860, %v861
      %v863 = vrot.slane %v740, 5
      %v864 = vrot.slane %v863, 4
      %v865 = vrot.slane %v709, 5
      %v866 = vsel %vm806, %v864, %v865
      %v867 = vrot.slane %v865, 4
      %v868 = vrot.slane %v741, 5
      %v869 = vsel %vm806, %v867, %v868
      %v870 = vrot.slane %v742, 5
      %v871 = vrot.slane %v870, 4
      %v872 = vrot.slane %v711, 5
      %v873 = vsel %vm806, %v871, %v872
      %v874 = vrot.slane %v872, 4
      %v875 = vrot.slane %v743, 5
      %v876 = vsel %vm806, %v874, %v875
      %v877 = vrot.slane %v744, 5
      %v878 = vrot.slane %v877, 4
      %v879 = vrot.slane %v713, 5
      %v880 = vsel %vm806, %v878, %v879
      %v881 = vrot.slane %v879, 4
      %v882 = vrot.slane %v745, 5
      %v883 = vsel %vm806, %v881, %v882
      %v884 = vrot.slane %v746, 5
      %v885 = vrot.slane %v884, 4
      %v886 = vrot.slane %v715, 5
      %v887 = vsel %vm806, %v885, %v886
      %v888 = vrot.slane %v886, 4
      %v889 = vrot.slane %v747, 5
      %v890 = vsel %vm806, %v888, %v889
      %v891 = vrot.slane %v748, 5
      %v892 = vrot.slane %v891, 4
      %v893 = vrot.slane %v717, 5
      %v894 = vsel %vm806, %v892, %v893
      %v895 = vrot.slane %v893, 4
      %v896 = vrot.slane %v749, 5
      %v897 = vsel %vm806, %v895, %v896
      %v898 = vrot.slane %v750, 5
      %v899 = vrot.slane %v898, 4
      %v900 = vrot.slane %v719, 5
      %v901 = vsel %vm806, %v899, %v900
      %v902 = vrot.slane %v900, 4
      %v903 = vrot.slane %v751, 5
      %v904 = vsel %vm806, %v902, %v903
      %v905 = vrot.slane %v752, 5
      %v906 = vrot.slane %v905, 4
      %v907 = vrot.slane %v721, 5
      %v908 = vsel %vm806, %v906, %v907
      %v909 = vrot.slane %v907, 4
      %v910 = vrot.slane %v753, 5
      %v911 = vsel %vm806, %v909, %v910
      %v912 = vrot.slane %v754, 5
      %v913 = vrot.slane %v912, 4
      %v914 = vrot.slane %v723, 5
      %v915 = vsel %vm806, %v913, %v914
      %v916 = vrot.slane %v914, 4
      %v917 = vrot.slane %v755, 5
      %v918 = vsel %vm806, %v916, %v917
      %v935 = vunpack.c.l.b16 %v692
      %v936 = vunpack.c.l.b16 %v693
      %v937 = vunpack.c.l.b16 %v694
      %v938 = vunpack.c.l.b16 %v695
      %v939 = vunpack.c.l.b16 %v696
      %v940 = vunpack.c.l.b16 %v697
      %v941 = vunpack.c.l.b16 %v698
      %v942 = vunpack.c.l.b16 %v699
      %v943 = vunpack.c.l.b16 %v700
      %v944 = vunpack.c.l.b16 %v701
      %v945 = vunpack.c.l.b16 %v702
      %v946 = vunpack.c.l.b16 %v703
      %v947 = vunpack.c.l.b16 %v704
      %v948 = vunpack.c.l.b16 %v705
      %v949 = vunpack.c.l.b16 %v706
      %v950 = vunpack.c.l.b16 %v707
      %v951 = vunpack.c.l.b16 %v708
      %v952 = vunpack.c.l.b16 %v709
      %v953 = vunpack.c.l.b16 %v710
      %v954 = vunpack.c.l.b16 %v711
      %v955 = vunpack.c.l.b16 %v712
      %v956 = vunpack.c.l.b16 %v713
      %v957 = vunpack.c.l.b16 %v714
      %v958 = vunpack.c.l.b16 %v715
      %v959 = vunpack.c.l.b16 %v716
      %v960 = vunpack.c.l.b16 %v717
      %v961 = vunpack.c.l.b16 %v718
      %v962 = vunpack.c.l.b16 %v719
      %v963 = vunpack.c.l.b16 %v720
      %v964 = vunpack.c.l.b16 %v721
      %v965 = vunpack.c.l.b16 %v722
      %v966 = vunpack.c.l.b16 %v723
      %v967 = vpack.c.b16 %v936, %v935
      %v968 = vpack.c.b16 %v938, %v937
      %v969 = vpack.c.b16 %v940, %v939
      %v970 = vpack.c.b16 %v942, %v941
      %v971 = vpack.c.b16 %v944, %v943
      %v972 = vpack.c.b16 %v946, %v945
      %v973 = vpack.c.b16 %v948, %v947
      %v974 = vpack.c.b16 %v950, %v949
      %v975 = vpack.c.b16 %v952, %v951
      %v976 = vpack.c.b16 %v954, %v953
      %v977 = vpack.c.b16 %v956, %v955
      %v978 = vpack.c.b16 %v958, %v957
      %v979 = vpack.c.b16 %v960, %v959
      %v980 = vpack.c.b16 %v962, %v961
      %v981 = vpack.c.b16 %v964, %v963
      %v982 = vpack.c.b16 %v966, %v965
      %v983 = vunpack.c.l.b16 %v810
      %v984 = vunpack.c.l.b16 %v813
      %v985 = vunpack.c.l.b16 %v817
      %v986 = vunpack.c.l.b16 %v820
      %v987 = vunpack.c.l.b16 %v824
      %v988 = vunpack.c.l.b16 %v827
      %v989 = vunpack.c.l.b16 %v831
      %v990 = vunpack.c.l.b16 %v834
      %v991 = vunpack.c.l.b16 %v838
      %v992 = vunpack.c.l.b16 %v841
      %v993 = vunpack.c.l.b16 %v845
      %v994 = vunpack.c.l.b16 %v848
      %v995 = vunpack.c.l.b16 %v852
      %v996 = vunpack.c.l.b16 %v855
      %v997 = vunpack.c.l.b16 %v859
      %v998 = vunpack.c.l.b16 %v862
      %v999 = vunpack.c.l.b16 %v866
      %v1000 = vunpack.c.l.b16 %v869
      %v1001 = vunpack.c.l.b16 %v873
      %v1002 = vunpack.c.l.b16 %v876
      %v1003 = vunpack.c.l.b16 %v880
      %v1004 = vunpack.c.l.b16 %v883
      %v1005 = vunpack.c.l.b16 %v887
      %v1006 = vunpack.c.l.b16 %v890
      %v1007 = vunpack.c.l.b16 %v894
      %v1008 = vunpack.c.l.b16 %v897
      %v1009 = vunpack.c.l.b16 %v901
      %v1010 = vunpack.c.l.b16 %v904
      %v1011 = vunpack.c.l.b16 %v908
      %v1012 = vunpack.c.l.b16 %v911
      %v1013 = vunpack.c.l.b16 %v915
      %v1014 = vunpack.c.l.b16 %v918
      %v1015 = vpack.c.b16 %v984, %v983
      %v1016 = vpack.c.b16 %v986, %v985
      %v1017 = vpack.c.b16 %v988, %v987
      %v1018 = vpack.c.b16 %v990, %v989
      %v1019 = vpack.c.b16 %v992, %v991
      %v1020 = vpack.c.b16 %v994, %v993
      %v1021 = vpack.c.b16 %v996, %v995
      %v1022 = vpack.c.b16 %v998, %v997
      %v1023 = vpack.c.b16 %v1000, %v999
      %v1024 = vpack.c.b16 %v1002, %v1001
      %v1025 = vpack.c.b16 %v1004, %v1003
      %v1026 = vpack.c.b16 %v1006, %v1005
      %v1027 = vpack.c.b16 %v1008, %v1007
      %v1028 = vpack.c.b16 %v1010, %v1009
      %v1029 = vpack.c.b16 %v1012, %v1011
      %v1030 = vpack.c.b16 %v1014, %v1013
      %1031 = vrot.lane.b32.xlu0 %v1015, 64
      %v1032 = vpop.permute.xlu0 %1031
      %1033 = vrot.lane.b32.xlu0 %v1016, 64
      %v1034 = vpop.permute.xlu0 %1033
      %1035 = vrot.lane.b32.xlu0 %v1017, 64
      %v1036 = vpop.permute.xlu0 %1035
      %1037 = vrot.lane.b32.xlu0 %v1018, 64
      %v1038 = vpop.permute.xlu0 %1037
      %1039 = vrot.lane.b32.xlu0 %v1019, 64
      %v1040 = vpop.permute.xlu0 %1039
      %1041 = vrot.lane.b32.xlu0 %v1020, 64
      %v1042 = vpop.permute.xlu0 %1041
      %1043 = vrot.lane.b32.xlu0 %v1021, 64
      %v1044 = vpop.permute.xlu0 %1043
      %1045 = vrot.lane.b32.xlu0 %v1022, 64
      %v1046 = vpop.permute.xlu0 %1045
      %1047 = vrot.lane.b32.xlu0 %v1023, 64
      %v1048 = vpop.permute.xlu0 %1047
      %1049 = vrot.lane.b32.xlu0 %v1024, 64
      %v1050 = vpop.permute.xlu0 %1049
      %1051 = vrot.lane.b32.xlu0 %v1025, 64
      %v1052 = vpop.permute.xlu0 %1051
      %1053 = vrot.lane.b32.xlu0 %v1026, 64
      %v1054 = vpop.permute.xlu0 %1053
      %1055 = vrot.lane.b32.xlu0 %v1027, 64
      %v1056 = vpop.permute.xlu0 %1055
      %1057 = vrot.lane.b32.xlu0 %v1028, 64
      %v1058 = vpop.permute.xlu0 %1057
      %1059 = vrot.lane.b32.xlu0 %v1029, 64
      %v1060 = vpop.permute.xlu0 %1059
      %1061 = vrot.lane.b32.xlu0 %v1030, 64
      %v1062 = vpop.permute.xlu0 %1061
      %vm1063 = vcmask 523264
      %v1066 = vsel %vm1063, %v967, %v1032
      %v1069 = vsel %vm1063, %v968, %v1034
      %v1072 = vsel %vm1063, %v969, %v1036
      %v1075 = vsel %vm1063, %v970, %v1038
      %v1078 = vsel %vm1063, %v971, %v1040
      %v1081 = vsel %vm1063, %v972, %v1042
      %v1084 = vsel %vm1063, %v973, %v1044
      %v1087 = vsel %vm1063, %v974, %v1046
      %v1090 = vsel %vm1063, %v975, %v1048
      %v1093 = vsel %vm1063, %v976, %v1050
      %v1096 = vsel %vm1063, %v977, %v1052
      %v1099 = vsel %vm1063, %v978, %v1054
      %v1102 = vsel %vm1063, %v979, %v1056
      %v1105 = vsel %vm1063, %v980, %v1058
      %v1108 = vsel %vm1063, %v981, %v1060
      %v1111 = vsel %vm1063, %v982, %v1062
      %v1128 = vunpack.c.l.b16 %v1066
      %v1129 = vunpack.c.h.b16 %v1066
      %v1130 = vunpack.c.l.b16 %v1069
      %v1131 = vunpack.c.h.b16 %v1069
      %v1132 = vunpack.c.l.b16 %v1072
      %v1133 = vunpack.c.h.b16 %v1072
      %v1134 = vunpack.c.l.b16 %v1075
      %v1135 = vunpack.c.h.b16 %v1075
      %v1136 = vunpack.c.l.b16 %v1078
      %v1137 = vunpack.c.h.b16 %v1078
      %v1138 = vunpack.c.l.b16 %v1081
      %v1139 = vunpack.c.h.b16 %v1081
      %v1140 = vunpack.c.l.b16 %v1084
      %v1141 = vunpack.c.h.b16 %v1084
      %v1142 = vunpack.c.l.b16 %v1087
      %v1143 = vunpack.c.h.b16 %v1087
      %v1144 = vunpack.c.l.b16 %v1090
      %v1145 = vunpack.c.h.b16 %v1090
      %v1146 = vunpack.c.l.b16 %v1093
      %v1147 = vunpack.c.h.b16 %v1093
      %v1148 = vunpack.c.l.b16 %v1096
      %v1149 = vunpack.c.h.b16 %v1096
      %v1150 = vunpack.c.l.b16 %v1099
      %v1151 = vunpack.c.h.b16 %v1099
      %v1152 = vunpack.c.l.b16 %v1102
      %v1153 = vunpack.c.h.b16 %v1102
      %v1154 = vunpack.c.l.b16 %v1105
      %v1155 = vunpack.c.h.b16 %v1105
      %v1156 = vunpack.c.l.b16 %v1108
      %v1157 = vunpack.c.h.b16 %v1108
      %v1158 = vunpack.c.l.b16 %v1111
      %v1159 = vunpack.c.h.b16 %v1111
      %v1160 = vpack.c.b16 %v1128, %v1128
      %v1161 = vpack.c.b16 %v1129, %v1129
      %v1162 = vpack.c.b16 %v1130, %v1130
      %v1163 = vpack.c.b16 %v1131, %v1131
      %v1164 = vpack.c.b16 %v1132, %v1132
      %v1165 = vpack.c.b16 %v1133, %v1133
      %v1166 = vpack.c.b16 %v1134, %v1134
      %v1167 = vpack.c.b16 %v1135, %v1135
      %v1168 = vpack.c.b16 %v1136, %v1136
      %v1169 = vpack.c.b16 %v1137, %v1137
      %v1170 = vpack.c.b16 %v1138, %v1138
      %v1171 = vpack.c.b16 %v1139, %v1139
      %v1172 = vpack.c.b16 %v1140, %v1140
      %v1173 = vpack.c.b16 %v1141, %v1141
      %v1174 = vpack.c.b16 %v1142, %v1142
      %v1175 = vpack.c.b16 %v1143, %v1143
      %v1176 = vpack.c.b16 %v1144, %v1144
      %v1177 = vpack.c.b16 %v1145, %v1145
      %v1178 = vpack.c.b16 %v1146, %v1146
      %v1179 = vpack.c.b16 %v1147, %v1147
      %v1180 = vpack.c.b16 %v1148, %v1148
      %v1181 = vpack.c.b16 %v1149, %v1149
      %v1182 = vpack.c.b16 %v1150, %v1150
      %v1183 = vpack.c.b16 %v1151, %v1151
      %v1184 = vpack.c.b16 %v1152, %v1152
      %v1185 = vpack.c.b16 %v1153, %v1153
      %v1186 = vpack.c.b16 %v1154, %v1154
      %v1187 = vpack.c.b16 %v1155, %v1155
      %v1188 = vpack.c.b16 %v1156, %v1156
      %v1189 = vpack.c.b16 %v1157, %v1157
      %v1190 = vpack.c.b16 %v1158, %v1158
      %v1191 = vpack.c.b16 %v1159, %v1159
      %1224 = vst [vmem:[#allocation3] sm:$0xf] %v1160
      %1225 = vst [vmem:[#allocation3 + $0x14] sm:$0xf] %v1161
      %1226 = vst [vmem:[#allocation3 + $0x28] sm:$0xf] %v1162
      %1227 = vst [vmem:[#allocation3 + $0x3c] sm:$0xf] %v1163
      %1228 = vst [vmem:[#allocation3 + $0x50] sm:$0xf] %v1164
      %1229 = vst [vmem:[#allocation3 + $0x64] sm:$0xf] %v1165
      %1230 = vst [vmem:[#allocation3 + $0x78] sm:$0xf] %v1166
      %1231 = vst [vmem:[#allocation3 + $0x8c] sm:$0xf] %v1167
      %1232 = vst [vmem:[#allocation3 + $0xa0] sm:$0xf] %v1168
      %1233 = vst [vmem:[#allocation3 + $0xb4] sm:$0xf] %v1169
      %1234 = vst [vmem:[#allocation3 + $0xc8] sm:$0xf] %v1170
      %1235 = vst [vmem:[#allocation3 + $0xdc] sm:$0xf] %v1171
      %1236 = vst [vmem:[#allocation3 + $0xf0] sm:$0xf] %v1172
      %1237 = vst [vmem:[#allocation3 + $0x104] sm:$0xf] %v1173
      %1238 = vst [vmem:[#allocation3 + $0x118] sm:$0xf] %v1174
      %1239 = vst [vmem:[#allocation3 + $0x12c] sm:$0xf] %v1175
      %1240 = vst [vmem:[#allocation3 + $0x140] sm:$0xf] %v1176
      %1241 = vst [vmem:[#allocation3 + $0x154] sm:$0xf] %v1177
      %1242 = vst [vmem:[#allocation3 + $0x168] sm:$0xf] %v1178
      %1243 = vst [vmem:[#allocation3 + $0x17c] sm:$0xf] %v1179
      %1244 = vst [vmem:[#allocation3 + $0x190] sm:$0xf] %v1180
      %1245 = vst [vmem:[#allocation3 + $0x1a4] sm:$0xf] %v1181
      %1246 = vst [vmem:[#allocation3 + $0x1b8] sm:$0xf] %v1182
      %1247 = vst [vmem:[#allocation3 + $0x1cc] sm:$0xf] %v1183
      %1248 = vst [vmem:[#allocation3 + $0x1e0] sm:$0xf] %v1184
      %1249 = vst [vmem:[#allocation3 + $0x1f4] sm:$0xf] %v1185
      %1250 = vst [vmem:[#allocation3 + $0x208] sm:$0xf] %v1186
      %1251 = vst [vmem:[#allocation3 + $0x21c] sm:$0xf] %v1187
      %1252 = vst [vmem:[#allocation3 + $0x230] sm:$0xf] %v1188
      %1253 = vst [vmem:[#allocation3 + $0x244] sm:$0xf] %v1189
      %1254 = vst [vmem:[#allocation3 + $0x258] sm:$0xf] %v1190
      %1255 = vst [vmem:[#allocation3 + $0x26c] sm:$0xf] %v1191
      %v1256 = vld [vmem:[#allocation2] sm:$0xc]
      %v1257 = vld [vmem:[#allocation2 + $0x4] sm:$0xf]
      %v1258 = vld [vmem:[#allocation2 + $0x8] sm:$0x3]
      %v1259 = vld [vmem:[#allocation2 + $0xc] sm:$0xc]
      %v1260 = vld [vmem:[#allocation2 + $0x10] sm:$0xf]
      %v1261 = vld [vmem:[#allocation2 + $0x14] sm:$0x3]
      %v1262 = vld [vmem:[#allocation2 + $0x18] sm:$0xc]
      %v1263 = vld [vmem:[#allocation2 + $0x1c] sm:$0xf]
      %v1264 = vld [vmem:[#allocation2 + $0x20] sm:$0x3]
      %v1265 = vld [vmem:[#allocation2 + $0x24] sm:$0xc]
      %v1266 = vld [vmem:[#allocation2 + $0x28] sm:$0xf]
      %v1267 = vld [vmem:[#allocation2 + $0x2c] sm:$0x3]
      %v1268 = vld [vmem:[#allocation2 + $0x30] sm:$0xc]
      %v1269 = vld [vmem:[#allocation2 + $0x34] sm:$0xf]
      %v1270 = vld [vmem:[#allocation2 + $0x38] sm:$0x3]
      %v1271 = vld [vmem:[#allocation2 + $0x3c] sm:$0xc]
      %v1272 = vld [vmem:[#allocation2 + $0x40] sm:$0xf]
      %v1273 = vld [vmem:[#allocation2 + $0x44] sm:$0x3]
      %v1274 = vld [vmem:[#allocation2 + $0x48] sm:$0xc]
      %v1275 = vld [vmem:[#allocation2 + $0x4c] sm:$0xf]
      %v1276 = vld [vmem:[#allocation2 + $0x50] sm:$0x3]
      %v1277 = vld [vmem:[#allocation2 + $0x54] sm:$0xc]
      %v1278 = vld [vmem:[#allocation2 + $0x58] sm:$0xf]
      %v1279 = vld [vmem:[#allocation2 + $0x5c] sm:$0x3]
      %v1280 = vld [vmem:[#allocation2 + $0x60] sm:$0xc]
      %v1281 = vld [vmem:[#allocation2 + $0x64] sm:$0xf]
      %v1282 = vld [vmem:[#allocation2 + $0x68] sm:$0x3]
      %v1283 = vld [vmem:[#allocation2 + $0x6c] sm:$0xc]
      %v1284 = vld [vmem:[#allocation2 + $0x70] sm:$0xf]
      %v1285 = vld [vmem:[#allocation2 + $0x74] sm:$0x3]
      %v1286 = vld [vmem:[#allocation2 + $0x78] sm:$0xc]
      %v1287 = vld [vmem:[#allocation2 + $0x7c] sm:$0xf]
      %v1288 = vld [vmem:[#allocation2 + $0x80] sm:$0x3]
      %v1289 = vld [vmem:[#allocation2 + $0x84] sm:$0xc]
      %v1290 = vld [vmem:[#allocation2 + $0x88] sm:$0xf]
      %v1291 = vld [vmem:[#allocation2 + $0x8c] sm:$0x3]
      %v1292 = vld [vmem:[#allocation2 + $0x90] sm:$0xc]
      %v1293 = vld [vmem:[#allocation2 + $0x94] sm:$0xf]
      %v1294 = vld [vmem:[#allocation2 + $0x98] sm:$0x3]
      %v1295 = vld [vmem:[#allocation2 + $0x9c] sm:$0xc]
      %v1296 = vld [vmem:[#allocation2 + $0xa0] sm:$0xf]
      %v1297 = vld [vmem:[#allocation2 + $0xa4] sm:$0x3]
      %v1298 = vld [vmem:[#allocation2 + $0xa8] sm:$0xc]
      %v1299 = vld [vmem:[#allocation2 + $0xac] sm:$0xf]
      %v1300 = vld [vmem:[#allocation2 + $0xb0] sm:$0x3]
      %v1301 = vld [vmem:[#allocation2 + $0xb4] sm:$0xc]
      %v1302 = vld [vmem:[#allocation2 + $0xb8] sm:$0xf]
      %v1303 = vld [vmem:[#allocation2 + $0xbc] sm:$0x3]
      %vm1352 = vcmask 1041408
      %vm1353 = vcmask 1045508
      %vm1354 = vmor %vm1352, %vm1353
      %v1355 = vrot.slane %v1256, 6
      %v1356 = vrot.slane %v1355, 4
      %v1357 = vrot.slane %v1257, 6
      %v1358 = vsel %vm1354, %v1356, %v1357
      %v1359 = vrot.slane %v1357, 4
      %v1360 = vrot.slane %v1258, 6
      %v1361 = vsel %vm1354, %v1359, %v1360
      %v1362 = vrot.slane %v1259, 6
      %v1363 = vrot.slane %v1362, 4
      %v1364 = vrot.slane %v1260, 6
      %v1365 = vsel %vm1354, %v1363, %v1364
      %v1366 = vrot.slane %v1364, 4
      %v1367 = vrot.slane %v1261, 6
      %v1368 = vsel %vm1354, %v1366, %v1367
      %v1369 = vrot.slane %v1262, 6
      %v1370 = vrot.slane %v1369, 4
      %v1371 = vrot.slane %v1263, 6
      %v1372 = vsel %vm1354, %v1370, %v1371
      %v1373 = vrot.slane %v1371, 4
      %v1374 = vrot.slane %v1264, 6
      %v1375 = vsel %vm1354, %v1373, %v1374
      %v1376 = vrot.slane %v1265, 6
      %v1377 = vrot.slane %v1376, 4
      %v1378 = vrot.slane %v1266, 6
      %v1379 = vsel %vm1354, %v1377, %v1378
      %v1380 = vrot.slane %v1378, 4
      %v1381 = vrot.slane %v1267, 6
      %v1382 = vsel %vm1354, %v1380, %v1381
      %v1383 = vrot.slane %v1268, 6
      %v1384 = vrot.slane %v1383, 4
      %v1385 = vrot.slane %v1269, 6
      %v1386 = vsel %vm1354, %v1384, %v1385
      %v1387 = vrot.slane %v1385, 4
      %v1388 = vrot.slane %v1270, 6
      %v1389 = vsel %vm1354, %v1387, %v1388
      %v1390 = vrot.slane %v1271, 6
      %v1391 = vrot.slane %v1390, 4
      %v1392 = vrot.slane %v1272, 6
      %v1393 = vsel %vm1354, %v1391, %v1392
      %v1394 = vrot.slane %v1392, 4
      %v1395 = vrot.slane %v1273, 6
      %v1396 = vsel %vm1354, %v1394, %v1395
      %v1397 = vrot.slane %v1274, 6
      %v1398 = vrot.slane %v1397, 4
      %v1399 = vrot.slane %v1275, 6
      %v1400 = vsel %vm1354, %v1398, %v1399
      %v1401 = vrot.slane %v1399, 4
      %v1402 = vrot.slane %v1276, 6
      %v1403 = vsel %vm1354, %v1401, %v1402
      %v1404 = vrot.slane %v1277, 6
      %v1405 = vrot.slane %v1404, 4
      %v1406 = vrot.slane %v1278, 6
      %v1407 = vsel %vm1354, %v1405, %v1406
      %v1408 = vrot.slane %v1406, 4
      %v1409 = vrot.slane %v1279, 6
      %v1410 = vsel %vm1354, %v1408, %v1409
      %v1411 = vrot.slane %v1280, 6
      %v1412 = vrot.slane %v1411, 4
      %v1413 = vrot.slane %v1281, 6
      %v1414 = vsel %vm1354, %v1412, %v1413
      %v1415 = vrot.slane %v1413, 4
      %v1416 = vrot.slane %v1282, 6
      %v1417 = vsel %vm1354, %v1415, %v1416
      %v1418 = vrot.slane %v1283, 6
      %v1419 = vrot.slane %v1418, 4
      %v1420 = vrot.slane %v1284, 6
      %v1421 = vsel %vm1354, %v1419, %v1420
      %v1422 = vrot.slane %v1420, 4
      %v1423 = vrot.slane %v1285, 6
      %v1424 = vsel %vm1354, %v1422, %v1423
      %v1425 = vrot.slane %v1286, 6
      %v1426 = vrot.slane %v1425, 4
      %v1427 = vrot.slane %v1287, 6
      %v1428 = vsel %vm1354, %v1426, %v1427
      %v1429 = vrot.slane %v1427, 4
      %v1430 = vrot.slane %v1288, 6
      %v1431 = vsel %vm1354, %v1429, %v1430
      %v1432 = vrot.slane %v1289, 6
      %v1433 = vrot.slane %v1432, 4
      %v1434 = vrot.slane %v1290, 6
      %v1435 = vsel %vm1354, %v1433, %v1434
      %v1436 = vrot.slane %v1434, 4
      %v1437 = vrot.slane %v1291, 6
      %v1438 = vsel %vm1354, %v1436, %v1437
      %v1439 = vrot.slane %v1292, 6
      %v1440 = vrot.slane %v1439, 4
      %v1441 = vrot.slane %v1293, 6
      %v1442 = vsel %vm1354, %v1440, %v1441
      %v1443 = vrot.slane %v1441, 4
      %v1444 = vrot.slane %v1294, 6
      %v1445 = vsel %vm1354, %v1443, %v1444
      %v1446 = vrot.slane %v1295, 6
      %v1447 = vrot.slane %v1446, 4
      %v1448 = vrot.slane %v1296, 6
      %v1449 = vsel %vm1354, %v1447, %v1448
      %v1450 = vrot.slane %v1448, 4
      %v1451 = vrot.slane %v1297, 6
      %v1452 = vsel %vm1354, %v1450, %v1451
      %v1453 = vrot.slane %v1298, 6
      %v1454 = vrot.slane %v1453, 4
      %v1455 = vrot.slane %v1299, 6
      %v1456 = vsel %vm1354, %v1454, %v1455
      %v1457 = vrot.slane %v1455, 4
      %v1458 = vrot.slane %v1300, 6
      %v1459 = vsel %vm1354, %v1457, %v1458
      %v1460 = vrot.slane %v1301, 6
      %v1461 = vrot.slane %v1460, 4
      %v1462 = vrot.slane %v1302, 6
      %v1463 = vsel %vm1354, %v1461, %v1462
      %v1464 = vrot.slane %v1462, 4
      %v1465 = vrot.slane %v1303, 6
      %v1466 = vsel %vm1354, %v1464, %v1465
      %v1467 = vld [vmem:[%s349] sm:$0xf]
      %v1468 = vld [vmem:[%s349 + $0x4] sm:$0xf]
      %v1469 = vld [vmem:[%s349 + $0xc] sm:$0xf]
      %v1470 = vld [vmem:[%s349 + $0x10] sm:$0xf]
      %v1471 = vld [vmem:[%s349 + $0x18] sm:$0xf]
      %v1472 = vld [vmem:[%s349 + $0x1c] sm:$0xf]
      %v1473 = vld [vmem:[%s349 + $0x24] sm:$0xf]
      %v1474 = vld [vmem:[%s349 + $0x28] sm:$0xf]
      %v1475 = vld [vmem:[%s349 + $0x30] sm:$0xf]
      %v1476 = vld [vmem:[%s349 + $0x34] sm:$0xf]
      %v1477 = vld [vmem:[%s349 + $0x3c] sm:$0xf]
      %v1478 = vld [vmem:[%s349 + $0x40] sm:$0xf]
      %v1479 = vld [vmem:[%s349 + $0x48] sm:$0xf]
      %v1480 = vld [vmem:[%s349 + $0x4c] sm:$0xf]
      %v1481 = vld [vmem:[%s349 + $0x54] sm:$0xf]
      %v1482 = vld [vmem:[%s349 + $0x58] sm:$0xf]
      %v1483 = vld [vmem:[%s349 + $0x60] sm:$0xf]
      %v1484 = vld [vmem:[%s349 + $0x64] sm:$0xf]
      %v1485 = vld [vmem:[%s349 + $0x6c] sm:$0xf]
      %v1486 = vld [vmem:[%s349 + $0x70] sm:$0xf]
      %v1487 = vld [vmem:[%s349 + $0x78] sm:$0xf]
      %v1488 = vld [vmem:[%s349 + $0x7c] sm:$0xf]
      %v1489 = vld [vmem:[%s349 + $0x84] sm:$0xf]
      %v1490 = vld [vmem:[%s349 + $0x88] sm:$0xf]
      %v1491 = vld [vmem:[%s349 + $0x90] sm:$0xf]
      %v1492 = vld [vmem:[%s349 + $0x94] sm:$0xf]
      %v1493 = vld [vmem:[%s349 + $0x9c] sm:$0xf]
      %v1494 = vld [vmem:[%s349 + $0xa0] sm:$0xf]
      %v1495 = vld [vmem:[%s349 + $0xa8] sm:$0xf]
      %v1496 = vld [vmem:[%s349 + $0xac] sm:$0xf]
      %v1497 = vld [vmem:[%s349 + $0xb4] sm:$0xf]
      %v1498 = vld [vmem:[%s349 + $0xb8] sm:$0xf]
      %v1499 = vunpack.c.l.b16 %v1358
      %v1500 = vunpack.c.l.b16 %v1361
      %v1501 = vunpack.c.l.b16 %v1365
      %v1502 = vunpack.c.l.b16 %v1368
      %v1503 = vunpack.c.l.b16 %v1372
      %v1504 = vunpack.c.l.b16 %v1375
      %v1505 = vunpack.c.l.b16 %v1379
      %v1506 = vunpack.c.l.b16 %v1382
      %v1507 = vunpack.c.l.b16 %v1386
      %v1508 = vunpack.c.l.b16 %v1389
      %v1509 = vunpack.c.l.b16 %v1393
      %v1510 = vunpack.c.l.b16 %v1396
      %v1511 = vunpack.c.l.b16 %v1400
      %v1512 = vunpack.c.l.b16 %v1403
      %v1513 = vunpack.c.l.b16 %v1407
      %v1514 = vunpack.c.l.b16 %v1410
      %v1515 = vunpack.c.l.b16 %v1414
      %v1516 = vunpack.c.l.b16 %v1417
      %v1517 = vunpack.c.l.b16 %v1421
      %v1518 = vunpack.c.l.b16 %v1424
      %v1519 = vunpack.c.l.b16 %v1428
      %v1520 = vunpack.c.l.b16 %v1431
      %v1521 = vunpack.c.l.b16 %v1435
      %v1522 = vunpack.c.l.b16 %v1438
      %v1523 = vunpack.c.l.b16 %v1442
      %v1524 = vunpack.c.l.b16 %v1445
      %v1525 = vunpack.c.l.b16 %v1449
      %v1526 = vunpack.c.l.b16 %v1452
      %v1527 = vunpack.c.l.b16 %v1456
      %v1528 = vunpack.c.l.b16 %v1459
      %v1529 = vunpack.c.l.b16 %v1463
      %v1530 = vunpack.c.l.b16 %v1466
      %v1531 = vpack.c.b16 %v1500, %v1499
      %v1532 = vpack.c.b16 %v1502, %v1501
      %v1533 = vpack.c.b16 %v1504, %v1503
      %v1534 = vpack.c.b16 %v1506, %v1505
      %v1535 = vpack.c.b16 %v1508, %v1507
      %v1536 = vpack.c.b16 %v1510, %v1509
      %v1537 = vpack.c.b16 %v1512, %v1511
      %v1538 = vpack.c.b16 %v1514, %v1513
      %v1539 = vpack.c.b16 %v1516, %v1515
      %v1540 = vpack.c.b16 %v1518, %v1517
      %v1541 = vpack.c.b16 %v1520, %v1519
      %v1542 = vpack.c.b16 %v1522, %v1521
      %v1543 = vpack.c.b16 %v1524, %v1523
      %v1544 = vpack.c.b16 %v1526, %v1525
      %v1545 = vpack.c.b16 %v1528, %v1527
      %v1546 = vpack.c.b16 %v1530, %v1529
      %v1579 = vunpack.c.l.b16 %v1467
      %v1580 = vunpack.c.l.b16 %v1468
      %v1581 = vunpack.c.l.b16 %v1469
      %v1582 = vunpack.c.l.b16 %v1470
      %v1583 = vunpack.c.l.b16 %v1471
      %v1584 = vunpack.c.l.b16 %v1472
      %v1585 = vunpack.c.l.b16 %v1473
      %v1586 = vunpack.c.l.b16 %v1474
      %v1587 = vunpack.c.l.b16 %v1475
      %v1588 = vunpack.c.l.b16 %v1476
      %v1589 = vunpack.c.l.b16 %v1477
      %v1590 = vunpack.c.l.b16 %v1478
      %v1591 = vunpack.c.l.b16 %v1479
      %v1592 = vunpack.c.l.b16 %v1480
      %v1593 = vunpack.c.l.b16 %v1481
      %v1594 = vunpack.c.l.b16 %v1482
      %v1595 = vunpack.c.l.b16 %v1483
      %v1596 = vunpack.c.l.b16 %v1484
      %v1597 = vunpack.c.l.b16 %v1485
      %v1598 = vunpack.c.l.b16 %v1486
      %v1599 = vunpack.c.l.b16 %v1487
      %v1600 = vunpack.c.l.b16 %v1488
      %v1601 = vunpack.c.l.b16 %v1489
      %v1602 = vunpack.c.l.b16 %v1490
      %v1603 = vunpack.c.l.b16 %v1491
      %v1604 = vunpack.c.l.b16 %v1492
      %v1605 = vunpack.c.l.b16 %v1493
      %v1606 = vunpack.c.l.b16 %v1494
      %v1607 = vunpack.c.l.b16 %v1495
      %v1608 = vunpack.c.l.b16 %v1496
      %v1609 = vunpack.c.l.b16 %v1497
      %v1610 = vunpack.c.l.b16 %v1498
      %v1611 = vpack.c.b16 %v1580, %v1579
      %v1612 = vpack.c.b16 %v1582, %v1581
      %v1613 = vpack.c.b16 %v1584, %v1583
      %v1614 = vpack.c.b16 %v1586, %v1585
      %v1615 = vpack.c.b16 %v1588, %v1587
      %v1616 = vpack.c.b16 %v1590, %v1589
      %v1617 = vpack.c.b16 %v1592, %v1591
      %v1618 = vpack.c.b16 %v1594, %v1593
      %v1619 = vpack.c.b16 %v1596, %v1595
      %v1620 = vpack.c.b16 %v1598, %v1597
      %v1621 = vpack.c.b16 %v1600, %v1599
      %v1622 = vpack.c.b16 %v1602, %v1601
      %v1623 = vpack.c.b16 %v1604, %v1603
      %v1624 = vpack.c.b16 %v1606, %v1605
      %v1625 = vpack.c.b16 %v1608, %v1607
      %v1626 = vpack.c.b16 %v1610, %v1609
      %1627 = vrot.lane.b32.xlu0 %v1611, 64
      %v1628 = vpop.permute.xlu0 %1627
      %1629 = vrot.lane.b32.xlu0 %v1612, 64
      %v1630 = vpop.permute.xlu0 %1629
      %1631 = vrot.lane.b32.xlu0 %v1613, 64
      %v1632 = vpop.permute.xlu0 %1631
      %1633 = vrot.lane.b32.xlu0 %v1614, 64
      %v1634 = vpop.permute.xlu0 %1633
      %1635 = vrot.lane.b32.xlu0 %v1615, 64
      %v1636 = vpop.permute.xlu0 %1635
      %1637 = vrot.lane.b32.xlu0 %v1616, 64
      %v1638 = vpop.permute.xlu0 %1637
      %1639 = vrot.lane.b32.xlu0 %v1617, 64
      %v1640 = vpop.permute.xlu0 %1639
      %1641 = vrot.lane.b32.xlu0 %v1618, 64
      %v1642 = vpop.permute.xlu0 %1641
      %1643 = vrot.lane.b32.xlu0 %v1619, 64
      %v1644 = vpop.permute.xlu0 %1643
      %1645 = vrot.lane.b32.xlu0 %v1620, 64
      %v1646 = vpop.permute.xlu0 %1645
      %1647 = vrot.lane.b32.xlu0 %v1621, 64
      %v1648 = vpop.permute.xlu0 %1647
      %1649 = vrot.lane.b32.xlu0 %v1622, 64
      %v1650 = vpop.permute.xlu0 %1649
      %1651 = vrot.lane.b32.xlu0 %v1623, 64
      %v1652 = vpop.permute.xlu0 %1651
      %1653 = vrot.lane.b32.xlu0 %v1624, 64
      %v1654 = vpop.permute.xlu0 %1653
      %1655 = vrot.lane.b32.xlu0 %v1625, 64
      %v1656 = vpop.permute.xlu0 %1655
      %1657 = vrot.lane.b32.xlu0 %v1626, 64
      %v1658 = vpop.permute.xlu0 %1657
      %v1661 = vsel %vm1063, %v1531, %v1628
      %v1664 = vsel %vm1063, %v1532, %v1630
      %v1667 = vsel %vm1063, %v1533, %v1632
      %v1670 = vsel %vm1063, %v1534, %v1634
      %v1673 = vsel %vm1063, %v1535, %v1636
      %v1676 = vsel %vm1063, %v1536, %v1638
      %v1679 = vsel %vm1063, %v1537, %v1640
      %v1682 = vsel %vm1063, %v1538, %v1642
      %v1685 = vsel %vm1063, %v1539, %v1644
      %v1688 = vsel %vm1063, %v1540, %v1646
      %v1691 = vsel %vm1063, %v1541, %v1648
      %v1694 = vsel %vm1063, %v1542, %v1650
      %v1697 = vsel %vm1063, %v1543, %v1652
      %v1700 = vsel %vm1063, %v1544, %v1654
      %v1703 = vsel %vm1063, %v1545, %v1656
      %v1706 = vsel %vm1063, %v1546, %v1658
      %v1723 = vunpack.c.l.b16 %v1661
      %v1724 = vunpack.c.h.b16 %v1661
      %v1725 = vunpack.c.l.b16 %v1664
      %v1726 = vunpack.c.h.b16 %v1664
      %v1727 = vunpack.c.l.b16 %v1667
      %v1728 = vunpack.c.h.b16 %v1667
      %v1729 = vunpack.c.l.b16 %v1670
      %v1730 = vunpack.c.h.b16 %v1670
      %v1731 = vunpack.c.l.b16 %v1673
      %v1732 = vunpack.c.h.b16 %v1673
      %v1733 = vunpack.c.l.b16 %v1676
      %v1734 = vunpack.c.h.b16 %v1676
      %v1735 = vunpack.c.l.b16 %v1679
      %v1736 = vunpack.c.h.b16 %v1679
      %v1737 = vunpack.c.l.b16 %v1682
      %v1738 = vunpack.c.h.b16 %v1682
      %v1739 = vunpack.c.l.b16 %v1685
      %v1740 = vunpack.c.h.b16 %v1685
      %v1741 = vunpack.c.l.b16 %v1688
      %v1742 = vunpack.c.h.b16 %v1688
      %v1743 = vunpack.c.l.b16 %v1691
      %v1744 = vunpack.c.h.b16 %v1691
      %v1745 = vunpack.c.l.b16 %v1694
      %v1746 = vunpack.c.h.b16 %v1694
      %v1747 = vunpack.c.l.b16 %v1697
      %v1748 = vunpack.c.h.b16 %v1697
      %v1749 = vunpack.c.l.b16 %v1700
      %v1750 = vunpack.c.h.b16 %v1700
      %v1751 = vunpack.c.l.b16 %v1703
      %v1752 = vunpack.c.h.b16 %v1703
      %v1753 = vunpack.c.l.b16 %v1706
      %v1754 = vunpack.c.h.b16 %v1706
      %v1755 = vpack.c.b16 %v1723, %v1723
      %v1756 = vpack.c.b16 %v1724, %v1724
      %v1757 = vpack.c.b16 %v1725, %v1725
      %v1758 = vpack.c.b16 %v1726, %v1726
      %v1759 = vpack.c.b16 %v1727, %v1727
      %v1760 = vpack.c.b16 %v1728, %v1728
      %v1761 = vpack.c.b16 %v1729, %v1729
      %v1762 = vpack.c.b16 %v1730, %v1730
      %v1763 = vpack.c.b16 %v1731, %v1731
      %v1764 = vpack.c.b16 %v1732, %v1732
      %v1765 = vpack.c.b16 %v1733, %v1733
      %v1766 = vpack.c.b16 %v1734, %v1734
      %v1767 = vpack.c.b16 %v1735, %v1735
      %v1768 = vpack.c.b16 %v1736, %v1736
      %v1769 = vpack.c.b16 %v1737, %v1737
      %v1770 = vpack.c.b16 %v1738, %v1738
      %v1771 = vpack.c.b16 %v1739, %v1739
      %v1772 = vpack.c.b16 %v1740, %v1740
      %v1773 = vpack.c.b16 %v1741, %v1741
      %v1774 = vpack.c.b16 %v1742, %v1742
      %v1775 = vpack.c.b16 %v1743, %v1743
      %v1776 = vpack.c.b16 %v1744, %v1744
      %v1777 = vpack.c.b16 %v1745, %v1745
      %v1778 = vpack.c.b16 %v1746, %v1746
      %v1779 = vpack.c.b16 %v1747, %v1747
      %v1780 = vpack.c.b16 %v1748, %v1748
      %v1781 = vpack.c.b16 %v1749, %v1749
      %v1782 = vpack.c.b16 %v1750, %v1750
      %v1783 = vpack.c.b16 %v1751, %v1751
      %v1784 = vpack.c.b16 %v1752, %v1752
      %v1785 = vpack.c.b16 %v1753, %v1753
      %v1786 = vpack.c.b16 %v1754, %v1754
      %1819 = vst [vmem:[#allocation3 + $0x4] sm:$0xf] %v1755
      %1820 = vst [vmem:[#allocation3 + $0x18] sm:$0xf] %v1756
      %1821 = vst [vmem:[#allocation3 + $0x2c] sm:$0xf] %v1757
      %1822 = vst [vmem:[#allocation3 + $0x40] sm:$0xf] %v1758
      %1823 = vst [vmem:[#allocation3 + $0x54] sm:$0xf] %v1759
      %1824 = vst [vmem:[#allocation3 + $0x68] sm:$0xf] %v1760
      %1825 = vst [vmem:[#allocation3 + $0x7c] sm:$0xf] %v1761
      %1826 = vst [vmem:[#allocation3 + $0x90] sm:$0xf] %v1762
      %1827 = vst [vmem:[#allocation3 + $0xa4] sm:$0xf] %v1763
      %1828 = vst [vmem:[#allocation3 + $0xb8] sm:$0xf] %v1764
      %1829 = vst [vmem:[#allocation3 + $0xcc] sm:$0xf] %v1765
      %1830 = vst [vmem:[#allocation3 + $0xe0] sm:$0xf] %v1766
      %1831 = vst [vmem:[#allocation3 + $0xf4] sm:$0xf] %v1767
      %1832 = vst [vmem:[#allocation3 + $0x108] sm:$0xf] %v1768
      %1833 = vst [vmem:[#allocation3 + $0x11c] sm:$0xf] %v1769
      %1834 = vst [vmem:[#allocation3 + $0x130] sm:$0xf] %v1770
      %1835 = vst [vmem:[#allocation3 + $0x144] sm:$0xf] %v1771
      %1836 = vst [vmem:[#allocation3 + $0x158] sm:$0xf] %v1772
      %1837 = vst [vmem:[#allocation3 + $0x16c] sm:$0xf] %v1773
      %1838 = vst [vmem:[#allocation3 + $0x180] sm:$0xf] %v1774
      %1839 = vst [vmem:[#allocation3 + $0x194] sm:$0xf] %v1775
      %1840 = vst [vmem:[#allocation3 + $0x1a8] sm:$0xf] %v1776
      %1841 = vst [vmem:[#allocation3 + $0x1bc] sm:$0xf] %v1777
      %1842 = vst [vmem:[#allocation3 + $0x1d0] sm:$0xf] %v1778
      %1843 = vst [vmem:[#allocation3 + $0x1e4] sm:$0xf] %v1779
      %1844 = vst [vmem:[#allocation3 + $0x1f8] sm:$0xf] %v1780
      %1845 = vst [vmem:[#allocation3 + $0x20c] sm:$0xf] %v1781
      %1846 = vst [vmem:[#allocation3 + $0x220] sm:$0xf] %v1782
      %1847 = vst [vmem:[#allocation3 + $0x234] sm:$0xf] %v1783
      %1848 = vst [vmem:[#allocation3 + $0x248] sm:$0xf] %v1784
      %1849 = vst [vmem:[#allocation3 + $0x25c] sm:$0xf] %v1785
      %1850 = vst [vmem:[#allocation3 + $0x270] sm:$0xf] %v1786
      %v1851 = vld [vmem:[%s349] sm:$0xe]
      %v1852 = vld [vmem:[%s349 + $0x4] sm:$0xf]
      %v1853 = vld [vmem:[%s349 + $0x8] sm:$0x1]
      %v1854 = vld [vmem:[%s349 + $0xc] sm:$0xe]
      %v1855 = vld [vmem:[%s349 + $0x10] sm:$0xf]
      %v1856 = vld [vmem:[%s349 + $0x14] sm:$0x1]
      %v1857 = vld [vmem:[%s349 + $0x18] sm:$0xe]
      %v1858 = vld [vmem:[%s349 + $0x1c] sm:$0xf]
      %v1859 = vld [vmem:[%s349 + $0x20] sm:$0x1]
      %v1860 = vld [vmem:[%s349 + $0x24] sm:$0xe]
      %v1861 = vld [vmem:[%s349 + $0x28] sm:$0xf]
      %v1862 = vld [vmem:[%s349 + $0x2c] sm:$0x1]
      %v1863 = vld [vmem:[%s349 + $0x30] sm:$0xe]
      %v1864 = vld [vmem:[%s349 + $0x34] sm:$0xf]
      %v1865 = vld [vmem:[%s349 + $0x38] sm:$0x1]
      %v1866 = vld [vmem:[%s349 + $0x3c] sm:$0xe]
      %v1867 = vld [vmem:[%s349 + $0x40] sm:$0xf]
      %v1868 = vld [vmem:[%s349 + $0x44] sm:$0x1]
      %v1869 = vld [vmem:[%s349 + $0x48] sm:$0xe]
      %v1870 = vld [vmem:[%s349 + $0x4c] sm:$0xf]
      %v1871 = vld [vmem:[%s349 + $0x50] sm:$0x1]
      %v1872 = vld [vmem:[%s349 + $0x54] sm:$0xe]
      %v1873 = vld [vmem:[%s349 + $0x58] sm:$0xf]
      %v1874 = vld [vmem:[%s349 + $0x5c] sm:$0x1]
      %v1875 = vld [vmem:[%s349 + $0x60] sm:$0xe]
      %v1876 = vld [vmem:[%s349 + $0x64] sm:$0xf]
      %v1877 = vld [vmem:[%s349 + $0x68] sm:$0x1]
      %v1878 = vld [vmem:[%s349 + $0x6c] sm:$0xe]
      %v1879 = vld [vmem:[%s349 + $0x70] sm:$0xf]
      %v1880 = vld [vmem:[%s349 + $0x74] sm:$0x1]
      %v1881 = vld [vmem:[%s349 + $0x78] sm:$0xe]
      %v1882 = vld [vmem:[%s349 + $0x7c] sm:$0xf]
      %v1883 = vld [vmem:[%s349 + $0x80] sm:$0x1]
      %v1884 = vld [vmem:[%s349 + $0x84] sm:$0xe]
      %v1885 = vld [vmem:[%s349 + $0x88] sm:$0xf]
      %v1886 = vld [vmem:[%s349 + $0x8c] sm:$0x1]
      %v1887 = vld [vmem:[%s349 + $0x90] sm:$0xe]
      %v1888 = vld [vmem:[%s349 + $0x94] sm:$0xf]
      %v1889 = vld [vmem:[%s349 + $0x98] sm:$0x1]
      %v1890 = vld [vmem:[%s349 + $0x9c] sm:$0xe]
      %v1891 = vld [vmem:[%s349 + $0xa0] sm:$0xf]
      %v1892 = vld [vmem:[%s349 + $0xa4] sm:$0x1]
      %v1893 = vld [vmem:[%s349 + $0xa8] sm:$0xe]
      %v1894 = vld [vmem:[%s349 + $0xac] sm:$0xf]
      %v1895 = vld [vmem:[%s349 + $0xb0] sm:$0x1]
      %v1896 = vld [vmem:[%s349 + $0xb4] sm:$0xe]
      %v1897 = vld [vmem:[%s349 + $0xb8] sm:$0xf]
      %v1898 = vld [vmem:[%s349 + $0xbc] sm:$0x1]
      %v1947 = vrot.slane %v1851, 5
      %v1948 = vrot.slane %v1947, 4
      %v1949 = vrot.slane %v1852, 5
      %v1950 = vsel %vm806, %v1948, %v1949
      %v1951 = vrot.slane %v1949, 4
      %v1952 = vrot.slane %v1853, 5
      %v1953 = vsel %vm806, %v1951, %v1952
      %v1954 = vrot.slane %v1854, 5
      %v1955 = vrot.slane %v1954, 4
      %v1956 = vrot.slane %v1855, 5
      %v1957 = vsel %vm806, %v1955, %v1956
      %v1958 = vrot.slane %v1956, 4
      %v1959 = vrot.slane %v1856, 5
      %v1960 = vsel %vm806, %v1958, %v1959
      %v1961 = vrot.slane %v1857, 5
      %v1962 = vrot.slane %v1961, 4
      %v1963 = vrot.slane %v1858, 5
      %v1964 = vsel %vm806, %v1962, %v1963
      %v1965 = vrot.slane %v1963, 4
      %v1966 = vrot.slane %v1859, 5
      %v1967 = vsel %vm806, %v1965, %v1966
      %v1968 = vrot.slane %v1860, 5
      %v1969 = vrot.slane %v1968, 4
      %v1970 = vrot.slane %v1861, 5
      %v1971 = vsel %vm806, %v1969, %v1970
      %v1972 = vrot.slane %v1970, 4
      %v1973 = vrot.slane %v1862, 5
      %v1974 = vsel %vm806, %v1972, %v1973
      %v1975 = vrot.slane %v1863, 5
      %v1976 = vrot.slane %v1975, 4
      %v1977 = vrot.slane %v1864, 5
      %v1978 = vsel %vm806, %v1976, %v1977
      %v1979 = vrot.slane %v1977, 4
      %v1980 = vrot.slane %v1865, 5
      %v1981 = vsel %vm806, %v1979, %v1980
      %v1982 = vrot.slane %v1866, 5
      %v1983 = vrot.slane %v1982, 4
      %v1984 = vrot.slane %v1867, 5
      %v1985 = vsel %vm806, %v1983, %v1984
      %v1986 = vrot.slane %v1984, 4
      %v1987 = vrot.slane %v1868, 5
      %v1988 = vsel %vm806, %v1986, %v1987
      %v1989 = vrot.slane %v1869, 5
      %v1990 = vrot.slane %v1989, 4
      %v1991 = vrot.slane %v1870, 5
      %v1992 = vsel %vm806, %v1990, %v1991
      %v1993 = vrot.slane %v1991, 4
      %v1994 = vrot.slane %v1871, 5
      %v1995 = vsel %vm806, %v1993, %v1994
      %v1996 = vrot.slane %v1872, 5
      %v1997 = vrot.slane %v1996, 4
      %v1998 = vrot.slane %v1873, 5
      %v1999 = vsel %vm806, %v1997, %v1998
      %v2000 = vrot.slane %v1998, 4
      %v2001 = vrot.slane %v1874, 5
      %v2002 = vsel %vm806, %v2000, %v2001
      %v2003 = vrot.slane %v1875, 5
      %v2004 = vrot.slane %v2003, 4
      %v2005 = vrot.slane %v1876, 5
      %v2006 = vsel %vm806, %v2004, %v2005
      %v2007 = vrot.slane %v2005, 4
      %v2008 = vrot.slane %v1877, 5
      %v2009 = vsel %vm806, %v2007, %v2008
      %v2010 = vrot.slane %v1878, 5
      %v2011 = vrot.slane %v2010, 4
      %v2012 = vrot.slane %v1879, 5
      %v2013 = vsel %vm806, %v2011, %v2012
      %v2014 = vrot.slane %v2012, 4
      %v2015 = vrot.slane %v1880, 5
      %v2016 = vsel %vm806, %v2014, %v2015
      %v2017 = vrot.slane %v1881, 5
      %v2018 = vrot.slane %v2017, 4
      %v2019 = vrot.slane %v1882, 5
      %v2020 = vsel %vm806, %v2018, %v2019
      %v2021 = vrot.slane %v2019, 4
      %v2022 = vrot.slane %v1883, 5
      %v2023 = vsel %vm806, %v2021, %v2022
      %v2024 = vrot.slane %v1884, 5
      %v2025 = vrot.slane %v2024, 4
      %v2026 = vrot.slane %v1885, 5
      %v2027 = vsel %vm806, %v2025, %v2026
      %v2028 = vrot.slane %v2026, 4
      %v2029 = vrot.slane %v1886, 5
      %v2030 = vsel %vm806, %v2028, %v2029
      %v2031 = vrot.slane %v1887, 5
      %v2032 = vrot.slane %v2031, 4
      %v2033 = vrot.slane %v1888, 5
      %v2034 = vsel %vm806, %v2032, %v2033
      %v2035 = vrot.slane %v2033, 4
      %v2036 = vrot.slane %v1889, 5
      %v2037 = vsel %vm806, %v2035, %v2036
      %v2038 = vrot.slane %v1890, 5
      %v2039 = vrot.slane %v2038, 4
      %v2040 = vrot.slane %v1891, 5
      %v2041 = vsel %vm806, %v2039, %v2040
      %v2042 = vrot.slane %v2040, 4
      %v2043 = vrot.slane %v1892, 5
      %v2044 = vsel %vm806, %v2042, %v2043
      %v2045 = vrot.slane %v1893, 5
      %v2046 = vrot.slane %v2045, 4
      %v2047 = vrot.slane %v1894, 5
      %v2048 = vsel %vm806, %v2046, %v2047
      %v2049 = vrot.slane %v2047, 4
      %v2050 = vrot.slane %v1895, 5
      %v2051 = vsel %vm806, %v2049, %v2050
      %v2052 = vrot.slane %v1896, 5
      %v2053 = vrot.slane %v2052, 4
      %v2054 = vrot.slane %v1897, 5
      %v2055 = vsel %vm806, %v2053, %v2054
      %v2056 = vrot.slane %v2054, 4
      %v2057 = vrot.slane %v1898, 5
      %v2058 = vsel %vm806, %v2056, %v2057
      %v2059 = vld [vmem:[%s349] sm:$0xc]
      %v2060 = vld [vmem:[%s349 + $0x8] sm:$0x3]
      %v2061 = vld [vmem:[%s349 + $0xc] sm:$0xc]
      %v2062 = vld [vmem:[%s349 + $0x14] sm:$0x3]
      %v2063 = vld [vmem:[%s349 + $0x18] sm:$0xc]
      %v2064 = vld [vmem:[%s349 + $0x20] sm:$0x3]
      %v2065 = vld [vmem:[%s349 + $0x24] sm:$0xc]
      %v2066 = vld [vmem:[%s349 + $0x2c] sm:$0x3]
      %v2067 = vld [vmem:[%s349 + $0x30] sm:$0xc]
      %v2068 = vld [vmem:[%s349 + $0x38] sm:$0x3]
      %v2069 = vld [vmem:[%s349 + $0x3c] sm:$0xc]
      %v2070 = vld [vmem:[%s349 + $0x44] sm:$0x3]
      %v2071 = vld [vmem:[%s349 + $0x48] sm:$0xc]
      %v2072 = vld [vmem:[%s349 + $0x50] sm:$0x3]
      %v2073 = vld [vmem:[%s349 + $0x54] sm:$0xc]
      %v2074 = vld [vmem:[%s349 + $0x5c] sm:$0x3]
      %v2075 = vld [vmem:[%s349 + $0x60] sm:$0xc]
      %v2076 = vld [vmem:[%s349 + $0x68] sm:$0x3]
      %v2077 = vld [vmem:[%s349 + $0x6c] sm:$0xc]
      %v2078 = vld [vmem:[%s349 + $0x74] sm:$0x3]
      %v2079 = vld [vmem:[%s349 + $0x78] sm:$0xc]
      %v2080 = vld [vmem:[%s349 + $0x80] sm:$0x3]
      %v2081 = vld [vmem:[%s349 + $0x84] sm:$0xc]
      %v2082 = vld [vmem:[%s349 + $0x8c] sm:$0x3]
      %v2083 = vld [vmem:[%s349 + $0x90] sm:$0xc]
      %v2084 = vld [vmem:[%s349 + $0x98] sm:$0x3]
      %v2085 = vld [vmem:[%s349 + $0x9c] sm:$0xc]
      %v2086 = vld [vmem:[%s349 + $0xa4] sm:$0x3]
      %v2087 = vld [vmem:[%s349 + $0xa8] sm:$0xc]
      %v2088 = vld [vmem:[%s349 + $0xb0] sm:$0x3]
      %v2089 = vld [vmem:[%s349 + $0xb4] sm:$0xc]
      %v2090 = vld [vmem:[%s349 + $0xbc] sm:$0x3]
      %v2123 = vrot.slane %v2059, 6
      %v2124 = vrot.slane %v2123, 4
      %v2125 = vrot.slane %v1852, 6
      %v2126 = vsel %vm1354, %v2124, %v2125
      %v2127 = vrot.slane %v2125, 4
      %v2128 = vrot.slane %v2060, 6
      %v2129 = vsel %vm1354, %v2127, %v2128
      %v2130 = vrot.slane %v2061, 6
      %v2131 = vrot.slane %v2130, 4
      %v2132 = vrot.slane %v1855, 6
      %v2133 = vsel %vm1354, %v2131, %v2132
      %v2134 = vrot.slane %v2132, 4
      %v2135 = vrot.slane %v2062, 6
      %v2136 = vsel %vm1354, %v2134, %v2135
      %v2137 = vrot.slane %v2063, 6
      %v2138 = vrot.slane %v2137, 4
      %v2139 = vrot.slane %v1858, 6
      %v2140 = vsel %vm1354, %v2138, %v2139
      %v2141 = vrot.slane %v2139, 4
      %v2142 = vrot.slane %v2064, 6
      %v2143 = vsel %vm1354, %v2141, %v2142
      %v2144 = vrot.slane %v2065, 6
      %v2145 = vrot.slane %v2144, 4
      %v2146 = vrot.slane %v1861, 6
      %v2147 = vsel %vm1354, %v2145, %v2146
      %v2148 = vrot.slane %v2146, 4
      %v2149 = vrot.slane %v2066, 6
      %v2150 = vsel %vm1354, %v2148, %v2149
      %v2151 = vrot.slane %v2067, 6
      %v2152 = vrot.slane %v2151, 4
      %v2153 = vrot.slane %v1864, 6
      %v2154 = vsel %vm1354, %v2152, %v2153
      %v2155 = vrot.slane %v2153, 4
      %v2156 = vrot.slane %v2068, 6
      %v2157 = vsel %vm1354, %v2155, %v2156
      %v2158 = vrot.slane %v2069, 6
      %v2159 = vrot.slane %v2158, 4
      %v2160 = vrot.slane %v1867, 6
      %v2161 = vsel %vm1354, %v2159, %v2160
      %v2162 = vrot.slane %v2160, 4
      %v2163 = vrot.slane %v2070, 6
      %v2164 = vsel %vm1354, %v2162, %v2163
      %v2165 = vrot.slane %v2071, 6
      %v2166 = vrot.slane %v2165, 4
      %v2167 = vrot.slane %v1870, 6
      %v2168 = vsel %vm1354, %v2166, %v2167
      %v2169 = vrot.slane %v2167, 4
      %v2170 = vrot.slane %v2072, 6
      %v2171 = vsel %vm1354, %v2169, %v2170
      %v2172 = vrot.slane %v2073, 6
      %v2173 = vrot.slane %v2172, 4
      %v2174 = vrot.slane %v1873, 6
      %v2175 = vsel %vm1354, %v2173, %v2174
      %v2176 = vrot.slane %v2174, 4
      %v2177 = vrot.slane %v2074, 6
      %v2178 = vsel %vm1354, %v2176, %v2177
      %v2179 = vrot.slane %v2075, 6
      %v2180 = vrot.slane %v2179, 4
      %v2181 = vrot.slane %v1876, 6
      %v2182 = vsel %vm1354, %v2180, %v2181
      %v2183 = vrot.slane %v2181, 4
      %v2184 = vrot.slane %v2076, 6
      %v2185 = vsel %vm1354, %v2183, %v2184
      %v2186 = vrot.slane %v2077, 6
      %v2187 = vrot.slane %v2186, 4
      %v2188 = vrot.slane %v1879, 6
      %v2189 = vsel %vm1354, %v2187, %v2188
      %v2190 = vrot.slane %v2188, 4
      %v2191 = vrot.slane %v2078, 6
      %v2192 = vsel %vm1354, %v2190, %v2191
      %v2193 = vrot.slane %v2079, 6
      %v2194 = vrot.slane %v2193, 4
      %v2195 = vrot.slane %v1882, 6
      %v2196 = vsel %vm1354, %v2194, %v2195
      %v2197 = vrot.slane %v2195, 4
      %v2198 = vrot.slane %v2080, 6
      %v2199 = vsel %vm1354, %v2197, %v2198
      %v2200 = vrot.slane %v2081, 6
      %v2201 = vrot.slane %v2200, 4
      %v2202 = vrot.slane %v1885, 6
      %v2203 = vsel %vm1354, %v2201, %v2202
      %v2204 = vrot.slane %v2202, 4
      %v2205 = vrot.slane %v2082, 6
      %v2206 = vsel %vm1354, %v2204, %v2205
      %v2207 = vrot.slane %v2083, 6
      %v2208 = vrot.slane %v2207, 4
      %v2209 = vrot.slane %v1888, 6
      %v2210 = vsel %vm1354, %v2208, %v2209
      %v2211 = vrot.slane %v2209, 4
      %v2212 = vrot.slane %v2084, 6
      %v2213 = vsel %vm1354, %v2211, %v2212
      %v2214 = vrot.slane %v2085, 6
      %v2215 = vrot.slane %v2214, 4
      %v2216 = vrot.slane %v1891, 6
      %v2217 = vsel %vm1354, %v2215, %v2216
      %v2218 = vrot.slane %v2216, 4
      %v2219 = vrot.slane %v2086, 6
      %v2220 = vsel %vm1354, %v2218, %v2219
      %v2221 = vrot.slane %v2087, 6
      %v2222 = vrot.slane %v2221, 4
      %v2223 = vrot.slane %v1894, 6
      %v2224 = vsel %vm1354, %v2222, %v2223
      %v2225 = vrot.slane %v2223, 4
      %v2226 = vrot.slane %v2088, 6
      %v2227 = vsel %vm1354, %v2225, %v2226
      %v2228 = vrot.slane %v2089, 6
      %v2229 = vrot.slane %v2228, 4
      %v2230 = vrot.slane %v1897, 6
      %v2231 = vsel %vm1354, %v2229, %v2230
      %v2232 = vrot.slane %v2230, 4
      %v2233 = vrot.slane %v2090, 6
      %v2234 = vsel %vm1354, %v2232, %v2233
      %v2235 = vunpack.c.l.b16 %v1950
      %v2236 = vunpack.c.l.b16 %v1953
      %v2237 = vunpack.c.l.b16 %v1957
      %v2238 = vunpack.c.l.b16 %v1960
      %v2239 = vunpack.c.l.b16 %v1964
      %v2240 = vunpack.c.l.b16 %v1967
      %v2241 = vunpack.c.l.b16 %v1971
      %v2242 = vunpack.c.l.b16 %v1974
      %v2243 = vunpack.c.l.b16 %v1978
      %v2244 = vunpack.c.l.b16 %v1981
      %v2245 = vunpack.c.l.b16 %v1985
      %v2246 = vunpack.c.l.b16 %v1988
      %v2247 = vunpack.c.l.b16 %v1992
      %v2248 = vunpack.c.l.b16 %v1995
      %v2249 = vunpack.c.l.b16 %v1999
      %v2250 = vunpack.c.l.b16 %v2002
      %v2251 = vunpack.c.l.b16 %v2006
      %v2252 = vunpack.c.l.b16 %v2009
      %v2253 = vunpack.c.l.b16 %v2013
      %v2254 = vunpack.c.l.b16 %v2016
      %v2255 = vunpack.c.l.b16 %v2020
      %v2256 = vunpack.c.l.b16 %v2023
      %v2257 = vunpack.c.l.b16 %v2027
      %v2258 = vunpack.c.l.b16 %v2030
      %v2259 = vunpack.c.l.b16 %v2034
      %v2260 = vunpack.c.l.b16 %v2037
      %v2261 = vunpack.c.l.b16 %v2041
      %v2262 = vunpack.c.l.b16 %v2044
      %v2263 = vunpack.c.l.b16 %v2048
      %v2264 = vunpack.c.l.b16 %v2051
      %v2265 = vunpack.c.l.b16 %v2055
      %v2266 = vunpack.c.l.b16 %v2058
      %v2267 = vpack.c.b16 %v2236, %v2235
      %v2268 = vpack.c.b16 %v2238, %v2237
      %v2269 = vpack.c.b16 %v2240, %v2239
      %v2270 = vpack.c.b16 %v2242, %v2241
      %v2271 = vpack.c.b16 %v2244, %v2243
      %v2272 = vpack.c.b16 %v2246, %v2245
      %v2273 = vpack.c.b16 %v2248, %v2247
      %v2274 = vpack.c.b16 %v2250, %v2249
      %v2275 = vpack.c.b16 %v2252, %v2251
      %v2276 = vpack.c.b16 %v2254, %v2253
      %v2277 = vpack.c.b16 %v2256, %v2255
      %v2278 = vpack.c.b16 %v2258, %v2257
      %v2279 = vpack.c.b16 %v2260, %v2259
      %v2280 = vpack.c.b16 %v2262, %v2261
      %v2281 = vpack.c.b16 %v2264, %v2263
      %v2282 = vpack.c.b16 %v2266, %v2265
      %v2283 = vunpack.c.l.b16 %v2126
      %v2284 = vunpack.c.l.b16 %v2129
      %v2285 = vunpack.c.l.b16 %v2133
      %v2286 = vunpack.c.l.b16 %v2136
      %v2287 = vunpack.c.l.b16 %v2140
      %v2288 = vunpack.c.l.b16 %v2143
      %v2289 = vunpack.c.l.b16 %v2147
      %v2290 = vunpack.c.l.b16 %v2150
      %v2291 = vunpack.c.l.b16 %v2154
      %v2292 = vunpack.c.l.b16 %v2157
      %v2293 = vunpack.c.l.b16 %v2161
      %v2294 = vunpack.c.l.b16 %v2164
      %v2295 = vunpack.c.l.b16 %v2168
      %v2296 = vunpack.c.l.b16 %v2171
      %v2297 = vunpack.c.l.b16 %v2175
      %v2298 = vunpack.c.l.b16 %v2178
      %v2299 = vunpack.c.l.b16 %v2182
      %v2300 = vunpack.c.l.b16 %v2185
      %v2301 = vunpack.c.l.b16 %v2189
      %v2302 = vunpack.c.l.b16 %v2192
      %v2303 = vunpack.c.l.b16 %v2196
      %v2304 = vunpack.c.l.b16 %v2199
      %v2305 = vunpack.c.l.b16 %v2203
      %v2306 = vunpack.c.l.b16 %v2206
      %v2307 = vunpack.c.l.b16 %v2210
      %v2308 = vunpack.c.l.b16 %v2213
      %v2309 = vunpack.c.l.b16 %v2217
      %v2310 = vunpack.c.l.b16 %v2220
      %v2311 = vunpack.c.l.b16 %v2224
      %v2312 = vunpack.c.l.b16 %v2227
      %v2313 = vunpack.c.l.b16 %v2231
      %v2314 = vunpack.c.l.b16 %v2234
      %v2315 = vpack.c.b16 %v2284, %v2283
      %v2316 = vpack.c.b16 %v2286, %v2285
      %v2317 = vpack.c.b16 %v2288, %v2287
      %v2318 = vpack.c.b16 %v2290, %v2289
      %v2319 = vpack.c.b16 %v2292, %v2291
      %v2320 = vpack.c.b16 %v2294, %v2293
      %v2321 = vpack.c.b16 %v2296, %v2295
      %v2322 = vpack.c.b16 %v2298, %v2297
      %v2323 = vpack.c.b16 %v2300, %v2299
      %v2324 = vpack.c.b16 %v2302, %v2301
      %v2325 = vpack.c.b16 %v2304, %v2303
      %v2326 = vpack.c.b16 %v2306, %v2305
      %v2327 = vpack.c.b16 %v2308, %v2307
      %v2328 = vpack.c.b16 %v2310, %v2309
      %v2329 = vpack.c.b16 %v2312, %v2311
      %v2330 = vpack.c.b16 %v2314, %v2313
      %2331 = vrot.lane.b32.xlu0 %v2315, 64
      %v2332 = vpop.permute.xlu0 %2331
      %2333 = vrot.lane.b32.xlu0 %v2316, 64
      %v2334 = vpop.permute.xlu0 %2333
      %2335 = vrot.lane.b32.xlu0 %v2317, 64
      %v2336 = vpop.permute.xlu0 %2335
      %2337 = vrot.lane.b32.xlu0 %v2318, 64
      %v2338 = vpop.permute.xlu0 %2337
      %2339 = vrot.lane.b32.xlu0 %v2319, 64
      %v2340 = vpop.permute.xlu0 %2339
      %2341 = vrot.lane.b32.xlu0 %v2320, 64
      %v2342 = vpop.permute.xlu0 %2341
      %2343 = vrot.lane.b32.xlu0 %v2321, 64
      %v2344 = vpop.permute.xlu0 %2343
      %2345 = vrot.lane.b32.xlu0 %v2322, 64
      %v2346 = vpop.permute.xlu0 %2345
      %2347 = vrot.lane.b32.xlu0 %v2323, 64
      %v2348 = vpop.permute.xlu0 %2347
      %2349 = vrot.lane.b32.xlu0 %v2324, 64
      %v2350 = vpop.permute.xlu0 %2349
      %2351 = vrot.lane.b32.xlu0 %v2325, 64
      %v2352 = vpop.permute.xlu0 %2351
      %2353 = vrot.lane.b32.xlu0 %v2326, 64
      %v2354 = vpop.permute.xlu0 %2353
      %2355 = vrot.lane.b32.xlu0 %v2327, 64
      %v2356 = vpop.permute.xlu0 %2355
      %2357 = vrot.lane.b32.xlu0 %v2328, 64
      %v2358 = vpop.permute.xlu0 %2357
      %2359 = vrot.lane.b32.xlu0 %v2329, 64
      %v2360 = vpop.permute.xlu0 %2359
      %2361 = vrot.lane.b32.xlu0 %v2330, 64
      %v2362 = vpop.permute.xlu0 %2361
      %v2365 = vsel %vm1063, %v2267, %v2332
      %v2368 = vsel %vm1063, %v2268, %v2334
      %v2371 = vsel %vm1063, %v2269, %v2336
      %v2374 = vsel %vm1063, %v2270, %v2338
      %v2377 = vsel %vm1063, %v2271, %v2340
      %v2380 = vsel %vm1063, %v2272, %v2342
      %v2383 = vsel %vm1063, %v2273, %v2344
      %v2386 = vsel %vm1063, %v2274, %v2346
      %v2389 = vsel %vm1063, %v2275, %v2348
      %v2392 = vsel %vm1063, %v2276, %v2350
      %v2395 = vsel %vm1063, %v2277, %v2352
      %v2398 = vsel %vm1063, %v2278, %v2354
      %v2401 = vsel %vm1063, %v2279, %v2356
      %v2404 = vsel %vm1063, %v2280, %v2358
      %v2407 = vsel %vm1063, %v2281, %v2360
      %v2410 = vsel %vm1063, %v2282, %v2362
      %v2427 = vunpack.c.l.b16 %v2365
      %v2428 = vunpack.c.h.b16 %v2365
      %v2429 = vunpack.c.l.b16 %v2368
      %v2430 = vunpack.c.h.b16 %v2368
      %v2431 = vunpack.c.l.b16 %v2371
      %v2432 = vunpack.c.h.b16 %v2371
      %v2433 = vunpack.c.l.b16 %v2374
      %v2434 = vunpack.c.h.b16 %v2374
      %v2435 = vunpack.c.l.b16 %v2377
      %v2436 = vunpack.c.h.b16 %v2377
      %v2437 = vunpack.c.l.b16 %v2380
      %v2438 = vunpack.c.h.b16 %v2380
      %v2439 = vunpack.c.l.b16 %v2383
      %v2440 = vunpack.c.h.b16 %v2383
      %v2441 = vunpack.c.l.b16 %v2386
      %v2442 = vunpack.c.h.b16 %v2386
      %v2443 = vunpack.c.l.b16 %v2389
      %v2444 = vunpack.c.h.b16 %v2389
      %v2445 = vunpack.c.l.b16 %v2392
      %v2446 = vunpack.c.h.b16 %v2392
      %v2447 = vunpack.c.l.b16 %v2395
      %v2448 = vunpack.c.h.b16 %v2395
      %v2449 = vunpack.c.l.b16 %v2398
      %v2450 = vunpack.c.h.b16 %v2398
      %v2451 = vunpack.c.l.b16 %v2401
      %v2452 = vunpack.c.h.b16 %v2401
      %v2453 = vunpack.c.l.b16 %v2404
      %v2454 = vunpack.c.h.b16 %v2404
      %v2455 = vunpack.c.l.b16 %v2407
      %v2456 = vunpack.c.h.b16 %v2407
      %v2457 = vunpack.c.l.b16 %v2410
      %v2458 = vunpack.c.h.b16 %v2410
      %v2459 = vpack.c.b16 %v2427, %v2427
      %v2460 = vpack.c.b16 %v2428, %v2428
      %v2461 = vpack.c.b16 %v2429, %v2429
      %v2462 = vpack.c.b16 %v2430, %v2430
      %v2463 = vpack.c.b16 %v2431, %v2431
      %v2464 = vpack.c.b16 %v2432, %v2432
      %v2465 = vpack.c.b16 %v2433, %v2433
      %v2466 = vpack.c.b16 %v2434, %v2434
      %v2467 = vpack.c.b16 %v2435, %v2435
      %v2468 = vpack.c.b16 %v2436, %v2436
      %v2469 = vpack.c.b16 %v2437, %v2437
      %v2470 = vpack.c.b16 %v2438, %v2438
      %v2471 = vpack.c.b16 %v2439, %v2439
      %v2472 = vpack.c.b16 %v2440, %v2440
      %v2473 = vpack.c.b16 %v2441, %v2441
      %v2474 = vpack.c.b16 %v2442, %v2442
      %v2475 = vpack.c.b16 %v2443, %v2443
      %v2476 = vpack.c.b16 %v2444, %v2444
      %v2477 = vpack.c.b16 %v2445, %v2445
      %v2478 = vpack.c.b16 %v2446, %v2446
      %v2479 = vpack.c.b16 %v2447, %v2447
      %v2480 = vpack.c.b16 %v2448, %v2448
      %v2481 = vpack.c.b16 %v2449, %v2449
      %v2482 = vpack.c.b16 %v2450, %v2450
      %v2483 = vpack.c.b16 %v2451, %v2451
      %v2484 = vpack.c.b16 %v2452, %v2452
      %v2485 = vpack.c.b16 %v2453, %v2453
      %v2486 = vpack.c.b16 %v2454, %v2454
      %v2487 = vpack.c.b16 %v2455, %v2455
      %v2488 = vpack.c.b16 %v2456, %v2456
      %v2489 = vpack.c.b16 %v2457, %v2457
      %v2490 = vpack.c.b16 %v2458, %v2458
      %2523 = vst [vmem:[#allocation3 + $0x8] sm:$0xf] %v2459
      %2524 = vst [vmem:[#allocation3 + $0x1c] sm:$0xf] %v2460
      %2525 = vst [vmem:[#allocation3 + $0x30] sm:$0xf] %v2461
      %2526 = vst [vmem:[#allocation3 + $0x44] sm:$0xf] %v2462
      %2527 = vst [vmem:[#allocation3 + $0x58] sm:$0xf] %v2463
      %2528 = vst [vmem:[#allocation3 + $0x6c] sm:$0xf] %v2464
      %2529 = vst [vmem:[#allocation3 + $0x80] sm:$0xf] %v2465
      %2530 = vst [vmem:[#allocation3 + $0x94] sm:$0xf] %v2466
      %2531 = vst [vmem:[#allocation3 + $0xa8] sm:$0xf] %v2467
      %2532 = vst [vmem:[#allocation3 + $0xbc] sm:$0xf] %v2468
      %2533 = vst [vmem:[#allocation3 + $0xd0] sm:$0xf] %v2469
      %2534 = vst [vmem:[#allocation3 + $0xe4] sm:$0xf] %v2470
      %2535 = vst [vmem:[#allocation3 + $0xf8] sm:$0xf] %v2471
      %2536 = vst [vmem:[#allocation3 + $0x10c] sm:$0xf] %v2472
      %2537 = vst [vmem:[#allocation3 + $0x120] sm:$0xf] %v2473
      %2538 = vst [vmem:[#allocation3 + $0x134] sm:$0xf] %v2474
      %2539 = vst [vmem:[#allocation3 + $0x148] sm:$0xf] %v2475
      %2540 = vst [vmem:[#allocation3 + $0x15c] sm:$0xf] %v2476
      %2541 = vst [vmem:[#allocation3 + $0x170] sm:$0xf] %v2477
      %2542 = vst [vmem:[#allocation3 + $0x184] sm:$0xf] %v2478
      %2543 = vst [vmem:[#allocation3 + $0x198] sm:$0xf] %v2479
      %2544 = vst [vmem:[#allocation3 + $0x1ac] sm:$0xf] %v2480
      %2545 = vst [vmem:[#allocation3 + $0x1c0] sm:$0xf] %v2481
      %2546 = vst [vmem:[#allocation3 + $0x1d4] sm:$0xf] %v2482
      %2547 = vst [vmem:[#allocation3 + $0x1e8] sm:$0xf] %v2483
      %2548 = vst [vmem:[#allocation3 + $0x1fc] sm:$0xf] %v2484
      %2549 = vst [vmem:[#allocation3 + $0x210] sm:$0xf] %v2485
      %2550 = vst [vmem:[#allocation3 + $0x224] sm:$0xf] %v2486
      %2551 = vst [vmem:[#allocation3 + $0x238] sm:$0xf] %v2487
      %2552 = vst [vmem:[#allocation3 + $0x24c] sm:$0xf] %v2488
      %2553 = vst [vmem:[#allocation3 + $0x260] sm:$0xf] %v2489
      %2554 = vst [vmem:[#allocation3 + $0x274] sm:$0xf] %v2490
      %s2555 = scalar_lea.vmem [#allocation2], 48
      %v2556 = vld [vmem:[%s2555] sm:$0xf]
      %v2557 = vld [vmem:[%s2555 + $0x4] sm:$0xf]
      %v2558 = vld [vmem:[%s2555 + $0xc] sm:$0xf]
      %v2559 = vld [vmem:[%s2555 + $0x10] sm:$0xf]
      %v2560 = vld [vmem:[%s2555 + $0x18] sm:$0xf]
      %v2561 = vld [vmem:[%s2555 + $0x1c] sm:$0xf]
      %v2562 = vld [vmem:[%s2555 + $0x24] sm:$0xf]
      %v2563 = vld [vmem:[%s2555 + $0x28] sm:$0xf]
      %v2564 = vld [vmem:[%s2555 + $0x30] sm:$0xf]
      %v2565 = vld [vmem:[%s2555 + $0x34] sm:$0xf]
      %v2566 = vld [vmem:[%s2555 + $0x3c] sm:$0xf]
      %v2567 = vld [vmem:[%s2555 + $0x40] sm:$0xf]
      %v2568 = vld [vmem:[%s2555 + $0x48] sm:$0xf]
      %v2569 = vld [vmem:[%s2555 + $0x4c] sm:$0xf]
      %v2570 = vld [vmem:[%s2555 + $0x54] sm:$0xf]
      %v2571 = vld [vmem:[%s2555 + $0x58] sm:$0xf]
      %v2572 = vld [vmem:[%s2555 + $0x60] sm:$0xf]
      %v2573 = vld [vmem:[%s2555 + $0x64] sm:$0xf]
      %v2574 = vld [vmem:[%s2555 + $0x6c] sm:$0xf]
      %v2575 = vld [vmem:[%s2555 + $0x70] sm:$0xf]
      %v2576 = vld [vmem:[%s2555 + $0x78] sm:$0xf]
      %v2577 = vld [vmem:[%s2555 + $0x7c] sm:$0xf]
      %v2578 = vld [vmem:[%s2555 + $0x84] sm:$0xf]
      %v2579 = vld [vmem:[%s2555 + $0x88] sm:$0xf]
      %v2580 = vld [vmem:[%s2555 + $0x90] sm:$0xf]
      %v2581 = vld [vmem:[%s2555 + $0x94] sm:$0xf]
      %v2582 = vld [vmem:[%s2555 + $0x9c] sm:$0xf]
      %v2583 = vld [vmem:[%s2555 + $0xa0] sm:$0xf]
      %v2584 = vld [vmem:[%s2555 + $0xa8] sm:$0xf]
      %v2585 = vld [vmem:[%s2555 + $0xac] sm:$0xf]
      %v2586 = vld [vmem:[%s2555 + $0xb4] sm:$0xf]
      %v2587 = vld [vmem:[%s2555 + $0xb8] sm:$0xf]
      %v2588 = vld [vmem:[%s2555] sm:$0xe]
      %v2589 = vld [vmem:[%s2555 + $0x8] sm:$0x1]
      %v2590 = vld [vmem:[%s2555 + $0xc] sm:$0xe]
      %v2591 = vld [vmem:[%s2555 + $0x14] sm:$0x1]
      %v2592 = vld [vmem:[%s2555 + $0x18] sm:$0xe]
      %v2593 = vld [vmem:[%s2555 + $0x20] sm:$0x1]
      %v2594 = vld [vmem:[%s2555 + $0x24] sm:$0xe]
      %v2595 = vld [vmem:[%s2555 + $0x2c] sm:$0x1]
      %v2596 = vld [vmem:[%s2555 + $0x30] sm:$0xe]
      %v2597 = vld [vmem:[%s2555 + $0x38] sm:$0x1]
      %v2598 = vld [vmem:[%s2555 + $0x3c] sm:$0xe]
      %v2599 = vld [vmem:[%s2555 + $0x44] sm:$0x1]
      %v2600 = vld [vmem:[%s2555 + $0x48] sm:$0xe]
      %v2601 = vld [vmem:[%s2555 + $0x50] sm:$0x1]
      %v2602 = vld [vmem:[%s2555 + $0x54] sm:$0xe]
      %v2603 = vld [vmem:[%s2555 + $0x5c] sm:$0x1]
      %v2604 = vld [vmem:[%s2555 + $0x60] sm:$0xe]
      %v2605 = vld [vmem:[%s2555 + $0x68] sm:$0x1]
      %v2606 = vld [vmem:[%s2555 + $0x6c] sm:$0xe]
      %v2607 = vld [vmem:[%s2555 + $0x74] sm:$0x1]
      %v2608 = vld [vmem:[%s2555 + $0x78] sm:$0xe]
      %v2609 = vld [vmem:[%s2555 + $0x80] sm:$0x1]
      %v2610 = vld [vmem:[%s2555 + $0x84] sm:$0xe]
      %v2611 = vld [vmem:[%s2555 + $0x8c] sm:$0x1]
      %v2612 = vld [vmem:[%s2555 + $0x90] sm:$0xe]
      %v2613 = vld [vmem:[%s2555 + $0x98] sm:$0x1]
      %v2614 = vld [vmem:[%s2555 + $0x9c] sm:$0xe]
      %v2615 = vld [vmem:[%s2555 + $0xa4] sm:$0x1]
      %v2616 = vld [vmem:[%s2555 + $0xa8] sm:$0xe]
      %v2617 = vld [vmem:[%s2555 + $0xb0] sm:$0x1]
      %v2618 = vld [vmem:[%s2555 + $0xb4] sm:$0xe]
      %v2619 = vld [vmem:[%s2555 + $0xbc] sm:$0x1]
      %v2668 = vrot.slane %v2588, 5
      %v2669 = vrot.slane %v2668, 4
      %v2670 = vrot.slane %v2557, 5
      %v2671 = vsel %vm806, %v2669, %v2670
      %v2672 = vrot.slane %v2670, 4
      %v2673 = vrot.slane %v2589, 5
      %v2674 = vsel %vm806, %v2672, %v2673
      %v2675 = vrot.slane %v2590, 5
      %v2676 = vrot.slane %v2675, 4
      %v2677 = vrot.slane %v2559, 5
      %v2678 = vsel %vm806, %v2676, %v2677
      %v2679 = vrot.slane %v2677, 4
      %v2680 = vrot.slane %v2591, 5
      %v2681 = vsel %vm806, %v2679, %v2680
      %v2682 = vrot.slane %v2592, 5
      %v2683 = vrot.slane %v2682, 4
      %v2684 = vrot.slane %v2561, 5
      %v2685 = vsel %vm806, %v2683, %v2684
      %v2686 = vrot.slane %v2684, 4
      %v2687 = vrot.slane %v2593, 5
      %v2688 = vsel %vm806, %v2686, %v2687
      %v2689 = vrot.slane %v2594, 5
      %v2690 = vrot.slane %v2689, 4
      %v2691 = vrot.slane %v2563, 5
      %v2692 = vsel %vm806, %v2690, %v2691
      %v2693 = vrot.slane %v2691, 4
      %v2694 = vrot.slane %v2595, 5
      %v2695 = vsel %vm806, %v2693, %v2694
      %v2696 = vrot.slane %v2596, 5
      %v2697 = vrot.slane %v2696, 4
      %v2698 = vrot.slane %v2565, 5
      %v2699 = vsel %vm806, %v2697, %v2698
      %v2700 = vrot.slane %v2698, 4
      %v2701 = vrot.slane %v2597, 5
      %v2702 = vsel %vm806, %v2700, %v2701
      %v2703 = vrot.slane %v2598, 5
      %v2704 = vrot.slane %v2703, 4
      %v2705 = vrot.slane %v2567, 5
      %v2706 = vsel %vm806, %v2704, %v2705
      %v2707 = vrot.slane %v2705, 4
      %v2708 = vrot.slane %v2599, 5
      %v2709 = vsel %vm806, %v2707, %v2708
      %v2710 = vrot.slane %v2600, 5
      %v2711 = vrot.slane %v2710, 4
      %v2712 = vrot.slane %v2569, 5
      %v2713 = vsel %vm806, %v2711, %v2712
      %v2714 = vrot.slane %v2712, 4
      %v2715 = vrot.slane %v2601, 5
      %v2716 = vsel %vm806, %v2714, %v2715
      %v2717 = vrot.slane %v2602, 5
      %v2718 = vrot.slane %v2717, 4
      %v2719 = vrot.slane %v2571, 5
      %v2720 = vsel %vm806, %v2718, %v2719
      %v2721 = vrot.slane %v2719, 4
      %v2722 = vrot.slane %v2603, 5
      %v2723 = vsel %vm806, %v2721, %v2722
      %v2724 = vrot.slane %v2604, 5
      %v2725 = vrot.slane %v2724, 4
      %v2726 = vrot.slane %v2573, 5
      %v2727 = vsel %vm806, %v2725, %v2726
      %v2728 = vrot.slane %v2726, 4
      %v2729 = vrot.slane %v2605, 5
      %v2730 = vsel %vm806, %v2728, %v2729
      %v2731 = vrot.slane %v2606, 5
      %v2732 = vrot.slane %v2731, 4
      %v2733 = vrot.slane %v2575, 5
      %v2734 = vsel %vm806, %v2732, %v2733
      %v2735 = vrot.slane %v2733, 4
      %v2736 = vrot.slane %v2607, 5
      %v2737 = vsel %vm806, %v2735, %v2736
      %v2738 = vrot.slane %v2608, 5
      %v2739 = vrot.slane %v2738, 4
      %v2740 = vrot.slane %v2577, 5
      %v2741 = vsel %vm806, %v2739, %v2740
      %v2742 = vrot.slane %v2740, 4
      %v2743 = vrot.slane %v2609, 5
      %v2744 = vsel %vm806, %v2742, %v2743
      %v2745 = vrot.slane %v2610, 5
      %v2746 = vrot.slane %v2745, 4
      %v2747 = vrot.slane %v2579, 5
      %v2748 = vsel %vm806, %v2746, %v2747
      %v2749 = vrot.slane %v2747, 4
      %v2750 = vrot.slane %v2611, 5
      %v2751 = vsel %vm806, %v2749, %v2750
      %v2752 = vrot.slane %v2612, 5
      %v2753 = vrot.slane %v2752, 4
      %v2754 = vrot.slane %v2581, 5
      %v2755 = vsel %vm806, %v2753, %v2754
      %v2756 = vrot.slane %v2754, 4
      %v2757 = vrot.slane %v2613, 5
      %v2758 = vsel %vm806, %v2756, %v2757
      %v2759 = vrot.slane %v2614, 5
      %v2760 = vrot.slane %v2759, 4
      %v2761 = vrot.slane %v2583, 5
      %v2762 = vsel %vm806, %v2760, %v2761
      %v2763 = vrot.slane %v2761, 4
      %v2764 = vrot.slane %v2615, 5
      %v2765 = vsel %vm806, %v2763, %v2764
      %v2766 = vrot.slane %v2616, 5
      %v2767 = vrot.slane %v2766, 4
      %v2768 = vrot.slane %v2585, 5
      %v2769 = vsel %vm806, %v2767, %v2768
      %v2770 = vrot.slane %v2768, 4
      %v2771 = vrot.slane %v2617, 5
      %v2772 = vsel %vm806, %v2770, %v2771
      %v2773 = vrot.slane %v2618, 5
      %v2774 = vrot.slane %v2773, 4
      %v2775 = vrot.slane %v2587, 5
      %v2776 = vsel %vm806, %v2774, %v2775
      %v2777 = vrot.slane %v2775, 4
      %v2778 = vrot.slane %v2619, 5
      %v2779 = vsel %vm806, %v2777, %v2778
      %v2796 = vunpack.c.l.b16 %v2556
      %v2797 = vunpack.c.l.b16 %v2557
      %v2798 = vunpack.c.l.b16 %v2558
      %v2799 = vunpack.c.l.b16 %v2559
      %v2800 = vunpack.c.l.b16 %v2560
      %v2801 = vunpack.c.l.b16 %v2561
      %v2802 = vunpack.c.l.b16 %v2562
      %v2803 = vunpack.c.l.b16 %v2563
      %v2804 = vunpack.c.l.b16 %v2564
      %v2805 = vunpack.c.l.b16 %v2565
      %v2806 = vunpack.c.l.b16 %v2566
      %v2807 = vunpack.c.l.b16 %v2567
      %v2808 = vunpack.c.l.b16 %v2568
      %v2809 = vunpack.c.l.b16 %v2569
      %v2810 = vunpack.c.l.b16 %v2570
      %v2811 = vunpack.c.l.b16 %v2571
      %v2812 = vunpack.c.l.b16 %v2572
      %v2813 = vunpack.c.l.b16 %v2573
      %v2814 = vunpack.c.l.b16 %v2574
      %v2815 = vunpack.c.l.b16 %v2575
      %v2816 = vunpack.c.l.b16 %v2576
      %v2817 = vunpack.c.l.b16 %v2577
      %v2818 = vunpack.c.l.b16 %v2578
      %v2819 = vunpack.c.l.b16 %v2579
      %v2820 = vunpack.c.l.b16 %v2580
      %v2821 = vunpack.c.l.b16 %v2581
      %v2822 = vunpack.c.l.b16 %v2582
      %v2823 = vunpack.c.l.b16 %v2583
      %v2824 = vunpack.c.l.b16 %v2584
      %v2825 = vunpack.c.l.b16 %v2585
      %v2826 = vunpack.c.l.b16 %v2586
      %v2827 = vunpack.c.l.b16 %v2587
      %v2828 = vpack.c.b16 %v2797, %v2796
      %v2829 = vpack.c.b16 %v2799, %v2798
      %v2830 = vpack.c.b16 %v2801, %v2800
      %v2831 = vpack.c.b16 %v2803, %v2802
      %v2832 = vpack.c.b16 %v2805, %v2804
      %v2833 = vpack.c.b16 %v2807, %v2806
      %v2834 = vpack.c.b16 %v2809, %v2808
      %v2835 = vpack.c.b16 %v2811, %v2810
      %v2836 = vpack.c.b16 %v2813, %v2812
      %v2837 = vpack.c.b16 %v2815, %v2814
      %v2838 = vpack.c.b16 %v2817, %v2816
      %v2839 = vpack.c.b16 %v2819, %v2818
      %v2840 = vpack.c.b16 %v2821, %v2820
      %v2841 = vpack.c.b16 %v2823, %v2822
      %v2842 = vpack.c.b16 %v2825, %v2824
      %v2843 = vpack.c.b16 %v2827, %v2826
      %v2844 = vunpack.c.l.b16 %v2671
      %v2845 = vunpack.c.l.b16 %v2674
      %v2846 = vunpack.c.l.b16 %v2678
      %v2847 = vunpack.c.l.b16 %v2681
      %v2848 = vunpack.c.l.b16 %v2685
      %v2849 = vunpack.c.l.b16 %v2688
      %v2850 = vunpack.c.l.b16 %v2692
      %v2851 = vunpack.c.l.b16 %v2695
      %v2852 = vunpack.c.l.b16 %v2699
      %v2853 = vunpack.c.l.b16 %v2702
      %v2854 = vunpack.c.l.b16 %v2706
      %v2855 = vunpack.c.l.b16 %v2709
      %v2856 = vunpack.c.l.b16 %v2713
      %v2857 = vunpack.c.l.b16 %v2716
      %v2858 = vunpack.c.l.b16 %v2720
      %v2859 = vunpack.c.l.b16 %v2723
      %v2860 = vunpack.c.l.b16 %v2727
      %v2861 = vunpack.c.l.b16 %v2730
      %v2862 = vunpack.c.l.b16 %v2734
      %v2863 = vunpack.c.l.b16 %v2737
      %v2864 = vunpack.c.l.b16 %v2741
      %v2865 = vunpack.c.l.b16 %v2744
      %v2866 = vunpack.c.l.b16 %v2748
      %v2867 = vunpack.c.l.b16 %v2751
      %v2868 = vunpack.c.l.b16 %v2755
      %v2869 = vunpack.c.l.b16 %v2758
      %v2870 = vunpack.c.l.b16 %v2762
      %v2871 = vunpack.c.l.b16 %v2765
      %v2872 = vunpack.c.l.b16 %v2769
      %v2873 = vunpack.c.l.b16 %v2772
      %v2874 = vunpack.c.l.b16 %v2776
      %v2875 = vunpack.c.l.b16 %v2779
      %v2876 = vpack.c.b16 %v2845, %v2844
      %v2877 = vpack.c.b16 %v2847, %v2846
      %v2878 = vpack.c.b16 %v2849, %v2848
      %v2879 = vpack.c.b16 %v2851, %v2850
      %v2880 = vpack.c.b16 %v2853, %v2852
      %v2881 = vpack.c.b16 %v2855, %v2854
      %v2882 = vpack.c.b16 %v2857, %v2856
      %v2883 = vpack.c.b16 %v2859, %v2858
      %v2884 = vpack.c.b16 %v2861, %v2860
      %v2885 = vpack.c.b16 %v2863, %v2862
      %v2886 = vpack.c.b16 %v2865, %v2864
      %v2887 = vpack.c.b16 %v2867, %v2866
      %v2888 = vpack.c.b16 %v2869, %v2868
      %v2889 = vpack.c.b16 %v2871, %v2870
      %v2890 = vpack.c.b16 %v2873, %v2872
      %v2891 = vpack.c.b16 %v2875, %v2874
      %2892 = vrot.lane.b32.xlu0 %v2876, 64
      %v2893 = vpop.permute.xlu0 %2892
      %2894 = vrot.lane.b32.xlu0 %v2877, 64
      %v2895 = vpop.permute.xlu0 %2894
      %2896 = vrot.lane.b32.xlu0 %v2878, 64
      %v2897 = vpop.permute.xlu0 %2896
      %2898 = vrot.lane.b32.xlu0 %v2879, 64
      %v2899 = vpop.permute.xlu0 %2898
      %2900 = vrot.lane.b32.xlu0 %v2880, 64
      %v2901 = vpop.permute.xlu0 %2900
      %2902 = vrot.lane.b32.xlu0 %v2881, 64
      %v2903 = vpop.permute.xlu0 %2902
      %2904 = vrot.lane.b32.xlu0 %v2882, 64
      %v2905 = vpop.permute.xlu0 %2904
      %2906 = vrot.lane.b32.xlu0 %v2883, 64
      %v2907 = vpop.permute.xlu0 %2906
      %2908 = vrot.lane.b32.xlu0 %v2884, 64
      %v2909 = vpop.permute.xlu0 %2908
      %2910 = vrot.lane.b32.xlu0 %v2885, 64
      %v2911 = vpop.permute.xlu0 %2910
      %2912 = vrot.lane.b32.xlu0 %v2886, 64
      %v2913 = vpop.permute.xlu0 %2912
      %2914 = vrot.lane.b32.xlu0 %v2887, 64
      %v2915 = vpop.permute.xlu0 %2914
      %2916 = vrot.lane.b32.xlu0 %v2888, 64
      %v2917 = vpop.permute.xlu0 %2916
      %2918 = vrot.lane.b32.xlu0 %v2889, 64
      %v2919 = vpop.permute.xlu0 %2918
      %2920 = vrot.lane.b32.xlu0 %v2890, 64
      %v2921 = vpop.permute.xlu0 %2920
      %2922 = vrot.lane.b32.xlu0 %v2891, 64
      %v2923 = vpop.permute.xlu0 %2922
      %v2926 = vsel %vm1063, %v2828, %v2893
      %v2929 = vsel %vm1063, %v2829, %v2895
      %v2932 = vsel %vm1063, %v2830, %v2897
      %v2935 = vsel %vm1063, %v2831, %v2899
      %v2938 = vsel %vm1063, %v2832, %v2901
      %v2941 = vsel %vm1063, %v2833, %v2903
      %v2944 = vsel %vm1063, %v2834, %v2905
      %v2947 = vsel %vm1063, %v2835, %v2907
      %v2950 = vsel %vm1063, %v2836, %v2909
      %v2953 = vsel %vm1063, %v2837, %v2911
      %v2956 = vsel %vm1063, %v2838, %v2913
      %v2959 = vsel %vm1063, %v2839, %v2915
      %v2962 = vsel %vm1063, %v2840, %v2917
      %v2965 = vsel %vm1063, %v2841, %v2919
      %v2968 = vsel %vm1063, %v2842, %v2921
      %v2971 = vsel %vm1063, %v2843, %v2923
      %v2988 = vunpack.c.l.b16 %v2926
      %v2989 = vunpack.c.h.b16 %v2926
      %v2990 = vunpack.c.l.b16 %v2929
      %v2991 = vunpack.c.h.b16 %v2929
      %v2992 = vunpack.c.l.b16 %v2932
      %v2993 = vunpack.c.h.b16 %v2932
      %v2994 = vunpack.c.l.b16 %v2935
      %v2995 = vunpack.c.h.b16 %v2935
      %v2996 = vunpack.c.l.b16 %v2938
      %v2997 = vunpack.c.h.b16 %v2938
      %v2998 = vunpack.c.l.b16 %v2941
      %v2999 = vunpack.c.h.b16 %v2941
      %v3000 = vunpack.c.l.b16 %v2944
      %v3001 = vunpack.c.h.b16 %v2944
      %v3002 = vunpack.c.l.b16 %v2947
      %v3003 = vunpack.c.h.b16 %v2947
      %v3004 = vunpack.c.l.b16 %v2950
      %v3005 = vunpack.c.h.b16 %v2950
      %v3006 = vunpack.c.l.b16 %v2953
      %v3007 = vunpack.c.h.b16 %v2953
      %v3008 = vunpack.c.l.b16 %v2956
      %v3009 = vunpack.c.h.b16 %v2956
      %v3010 = vunpack.c.l.b16 %v2959
      %v3011 = vunpack.c.h.b16 %v2959
      %v3012 = vunpack.c.l.b16 %v2962
      %v3013 = vunpack.c.h.b16 %v2962
      %v3014 = vunpack.c.l.b16 %v2965
      %v3015 = vunpack.c.h.b16 %v2965
      %v3016 = vunpack.c.l.b16 %v2968
      %v3017 = vunpack.c.h.b16 %v2968
      %v3018 = vunpack.c.l.b16 %v2971
      %v3019 = vunpack.c.h.b16 %v2971
      %v3020 = vpack.c.b16 %v2988, %v2988
      %v3021 = vpack.c.b16 %v2989, %v2989
      %v3022 = vpack.c.b16 %v2990, %v2990
      %v3023 = vpack.c.b16 %v2991, %v2991
      %v3024 = vpack.c.b16 %v2992, %v2992
      %v3025 = vpack.c.b16 %v2993, %v2993
      %v3026 = vpack.c.b16 %v2994, %v2994
      %v3027 = vpack.c.b16 %v2995, %v2995
      %v3028 = vpack.c.b16 %v2996, %v2996
      %v3029 = vpack.c.b16 %v2997, %v2997
      %v3030 = vpack.c.b16 %v2998, %v2998
      %v3031 = vpack.c.b16 %v2999, %v2999
      %v3032 = vpack.c.b16 %v3000, %v3000
      %v3033 = vpack.c.b16 %v3001, %v3001
      %v3034 = vpack.c.b16 %v3002, %v3002
      %v3035 = vpack.c.b16 %v3003, %v3003
      %v3036 = vpack.c.b16 %v3004, %v3004
      %v3037 = vpack.c.b16 %v3005, %v3005
      %v3038 = vpack.c.b16 %v3006, %v3006
      %v3039 = vpack.c.b16 %v3007, %v3007
      %v3040 = vpack.c.b16 %v3008, %v3008
      %v3041 = vpack.c.b16 %v3009, %v3009
      %v3042 = vpack.c.b16 %v3010, %v3010
      %v3043 = vpack.c.b16 %v3011, %v3011
      %v3044 = vpack.c.b16 %v3012, %v3012
      %v3045 = vpack.c.b16 %v3013, %v3013
      %v3046 = vpack.c.b16 %v3014, %v3014
      %v3047 = vpack.c.b16 %v3015, %v3015
      %v3048 = vpack.c.b16 %v3016, %v3016
      %v3049 = vpack.c.b16 %v3017, %v3017
      %v3050 = vpack.c.b16 %v3018, %v3018
      %v3051 = vpack.c.b16 %v3019, %v3019
      %3084 = vst [vmem:[#allocation3 + $0xc] sm:$0xf] %v3020
      %3085 = vst [vmem:[#allocation3 + $0x20] sm:$0xf] %v3021
      %3086 = vst [vmem:[#allocation3 + $0x34] sm:$0xf] %v3022
      %3087 = vst [vmem:[#allocation3 + $0x48] sm:$0xf] %v3023
      %3088 = vst [vmem:[#allocation3 + $0x5c] sm:$0xf] %v3024
      %3089 = vst [vmem:[#allocation3 + $0x70] sm:$0xf] %v3025
      %3090 = vst [vmem:[#allocation3 + $0x84] sm:$0xf] %v3026
      %3091 = vst [vmem:[#allocation3 + $0x98] sm:$0xf] %v3027
      %3092 = vst [vmem:[#allocation3 + $0xac] sm:$0xf] %v3028
      %3093 = vst [vmem:[#allocation3 + $0xc0] sm:$0xf] %v3029
      %3094 = vst [vmem:[#allocation3 + $0xd4] sm:$0xf] %v3030
      %3095 = vst [vmem:[#allocation3 + $0xe8] sm:$0xf] %v3031
      %3096 = vst [vmem:[#allocation3 + $0xfc] sm:$0xf] %v3032
      %3097 = vst [vmem:[#allocation3 + $0x110] sm:$0xf] %v3033
      %3098 = vst [vmem:[#allocation3 + $0x124] sm:$0xf] %v3034
      %3099 = vst [vmem:[#allocation3 + $0x138] sm:$0xf] %v3035
      %3100 = vst [vmem:[#allocation3 + $0x14c] sm:$0xf] %v3036
      %3101 = vst [vmem:[#allocation3 + $0x160] sm:$0xf] %v3037
      %3102 = vst [vmem:[#allocation3 + $0x174] sm:$0xf] %v3038
      %3103 = vst [vmem:[#allocation3 + $0x188] sm:$0xf] %v3039
      %3104 = vst [vmem:[#allocation3 + $0x19c] sm:$0xf] %v3040
      %3105 = vst [vmem:[#allocation3 + $0x1b0] sm:$0xf] %v3041
      %3106 = vst [vmem:[#allocation3 + $0x1c4] sm:$0xf] %v3042
      %3107 = vst [vmem:[#allocation3 + $0x1d8] sm:$0xf] %v3043
      %3108 = vst [vmem:[#allocation3 + $0x1ec] sm:$0xf] %v3044
      %3109 = vst [vmem:[#allocation3 + $0x200] sm:$0xf] %v3045
      %3110 = vst [vmem:[#allocation3 + $0x214] sm:$0xf] %v3046
      %3111 = vst [vmem:[#allocation3 + $0x228] sm:$0xf] %v3047
      %3112 = vst [vmem:[#allocation3 + $0x23c] sm:$0xf] %v3048
      %3113 = vst [vmem:[#allocation3 + $0x250] sm:$0xf] %v3049
      %3114 = vst [vmem:[#allocation3 + $0x264] sm:$0xf] %v3050
      %3115 = vst [vmem:[#allocation3 + $0x278] sm:$0xf] %v3051
      %v3116 = vld [vmem:[%s2555] sm:$0xc]
      %v3117 = vld [vmem:[%s2555 + $0x4] sm:$0xf]
      %v3118 = vld [vmem:[%s2555 + $0x8] sm:$0x3]
      %v3119 = vld [vmem:[%s2555 + $0xc] sm:$0xc]
      %v3120 = vld [vmem:[%s2555 + $0x10] sm:$0xf]
      %v3121 = vld [vmem:[%s2555 + $0x14] sm:$0x3]
      %v3122 = vld [vmem:[%s2555 + $0x18] sm:$0xc]
      %v3123 = vld [vmem:[%s2555 + $0x1c] sm:$0xf]
      %v3124 = vld [vmem:[%s2555 + $0x20] sm:$0x3]
      %v3125 = vld [vmem:[%s2555 + $0x24] sm:$0xc]
      %v3126 = vld [vmem:[%s2555 + $0x28] sm:$0xf]
      %v3127 = vld [vmem:[%s2555 + $0x2c] sm:$0x3]
      %v3128 = vld [vmem:[%s2555 + $0x30] sm:$0xc]
      %v3129 = vld [vmem:[%s2555 + $0x34] sm:$0xf]
      %v3130 = vld [vmem:[%s2555 + $0x38] sm:$0x3]
      %v3131 = vld [vmem:[%s2555 + $0x3c] sm:$0xc]
      %v3132 = vld [vmem:[%s2555 + $0x40] sm:$0xf]
      %v3133 = vld [vmem:[%s2555 + $0x44] sm:$0x3]
      %v3134 = vld [vmem:[%s2555 + $0x48] sm:$0xc]
      %v3135 = vld [vmem:[%s2555 + $0x4c] sm:$0xf]
      %v3136 = vld [vmem:[%s2555 + $0x50] sm:$0x3]
      %v3137 = vld [vmem:[%s2555 + $0x54] sm:$0xc]
      %v3138 = vld [vmem:[%s2555 + $0x58] sm:$0xf]
      %v3139 = vld [vmem:[%s2555 + $0x5c] sm:$0x3]
      %v3140 = vld [vmem:[%s2555 + $0x60] sm:$0xc]
      %v3141 = vld [vmem:[%s2555 + $0x64] sm:$0xf]
      %v3142 = vld [vmem:[%s2555 + $0x68] sm:$0x3]
      %v3143 = vld [vmem:[%s2555 + $0x6c] sm:$0xc]
      %v3144 = vld [vmem:[%s2555 + $0x70] sm:$0xf]
      %v3145 = vld [vmem:[%s2555 + $0x74] sm:$0x3]
      %v3146 = vld [vmem:[%s2555 + $0x78] sm:$0xc]
      %v3147 = vld [vmem:[%s2555 + $0x7c] sm:$0xf]
      %v3148 = vld [vmem:[%s2555 + $0x80] sm:$0x3]
      %v3149 = vld [vmem:[%s2555 + $0x84] sm:$0xc]
      %v3150 = vld [vmem:[%s2555 + $0x88] sm:$0xf]
      %v3151 = vld [vmem:[%s2555 + $0x8c] sm:$0x3]
      %v3152 = vld [vmem:[%s2555 + $0x90] sm:$0xc]
      %v3153 = vld [vmem:[%s2555 + $0x94] sm:$0xf]
      %v3154 = vld [vmem:[%s2555 + $0x98] sm:$0x3]
      %v3155 = vld [vmem:[%s2555 + $0x9c] sm:$0xc]
      %v3156 = vld [vmem:[%s2555 + $0xa0] sm:$0xf]
      %v3157 = vld [vmem:[%s2555 + $0xa4] sm:$0x3]
      %v3158 = vld [vmem:[%s2555 + $0xa8] sm:$0xc]
      %v3159 = vld [vmem:[%s2555 + $0xac] sm:$0xf]
      %v3160 = vld [vmem:[%s2555 + $0xb0] sm:$0x3]
      %v3161 = vld [vmem:[%s2555 + $0xb4] sm:$0xc]
      %v3162 = vld [vmem:[%s2555 + $0xb8] sm:$0xf]
      %v3163 = vld [vmem:[%s2555 + $0xbc] sm:$0x3]
      %v3212 = vrot.slane %v3116, 6
      %v3213 = vrot.slane %v3212, 4
      %v3214 = vrot.slane %v3117, 6
      %v3215 = vsel %vm1354, %v3213, %v3214
      %v3216 = vrot.slane %v3214, 4
      %v3217 = vrot.slane %v3118, 6
      %v3218 = vsel %vm1354, %v3216, %v3217
      %v3219 = vrot.slane %v3119, 6
      %v3220 = vrot.slane %v3219, 4
      %v3221 = vrot.slane %v3120, 6
      %v3222 = vsel %vm1354, %v3220, %v3221
      %v3223 = vrot.slane %v3221, 4
      %v3224 = vrot.slane %v3121, 6
      %v3225 = vsel %vm1354, %v3223, %v3224
      %v3226 = vrot.slane %v3122, 6
      %v3227 = vrot.slane %v3226, 4
      %v3228 = vrot.slane %v3123, 6
      %v3229 = vsel %vm1354, %v3227, %v3228
      %v3230 = vrot.slane %v3228, 4
      %v3231 = vrot.slane %v3124, 6
      %v3232 = vsel %vm1354, %v3230, %v3231
      %v3233 = vrot.slane %v3125, 6
      %v3234 = vrot.slane %v3233, 4
      %v3235 = vrot.slane %v3126, 6
      %v3236 = vsel %vm1354, %v3234, %v3235
      %v3237 = vrot.slane %v3235, 4
      %v3238 = vrot.slane %v3127, 6
      %v3239 = vsel %vm1354, %v3237, %v3238
      %v3240 = vrot.slane %v3128, 6
      %v3241 = vrot.slane %v3240, 4
      %v3242 = vrot.slane %v3129, 6
      %v3243 = vsel %vm1354, %v3241, %v3242
      %v3244 = vrot.slane %v3242, 4
      %v3245 = vrot.slane %v3130, 6
      %v3246 = vsel %vm1354, %v3244, %v3245
      %v3247 = vrot.slane %v3131, 6
      %v3248 = vrot.slane %v3247, 4
      %v3249 = vrot.slane %v3132, 6
      %v3250 = vsel %vm1354, %v3248, %v3249
      %v3251 = vrot.slane %v3249, 4
      %v3252 = vrot.slane %v3133, 6
      %v3253 = vsel %vm1354, %v3251, %v3252
      %v3254 = vrot.slane %v3134, 6
      %v3255 = vrot.slane %v3254, 4
      %v3256 = vrot.slane %v3135, 6
      %v3257 = vsel %vm1354, %v3255, %v3256
      %v3258 = vrot.slane %v3256, 4
      %v3259 = vrot.slane %v3136, 6
      %v3260 = vsel %vm1354, %v3258, %v3259
      %v3261 = vrot.slane %v3137, 6
      %v3262 = vrot.slane %v3261, 4
      %v3263 = vrot.slane %v3138, 6
      %v3264 = vsel %vm1354, %v3262, %v3263
      %v3265 = vrot.slane %v3263, 4
      %v3266 = vrot.slane %v3139, 6
      %v3267 = vsel %vm1354, %v3265, %v3266
      %v3268 = vrot.slane %v3140, 6
      %v3269 = vrot.slane %v3268, 4
      %v3270 = vrot.slane %v3141, 6
      %v3271 = vsel %vm1354, %v3269, %v3270
      %v3272 = vrot.slane %v3270, 4
      %v3273 = vrot.slane %v3142, 6
      %v3274 = vsel %vm1354, %v3272, %v3273
      %v3275 = vrot.slane %v3143, 6
      %v3276 = vrot.slane %v3275, 4
      %v3277 = vrot.slane %v3144, 6
      %v3278 = vsel %vm1354, %v3276, %v3277
      %v3279 = vrot.slane %v3277, 4
      %v3280 = vrot.slane %v3145, 6
      %v3281 = vsel %vm1354, %v3279, %v3280
      %v3282 = vrot.slane %v3146, 6
      %v3283 = vrot.slane %v3282, 4
      %v3284 = vrot.slane %v3147, 6
      %v3285 = vsel %vm1354, %v3283, %v3284
      %v3286 = vrot.slane %v3284, 4
      %v3287 = vrot.slane %v3148, 6
      %v3288 = vsel %vm1354, %v3286, %v3287
      %v3289 = vrot.slane %v3149, 6
      %v3290 = vrot.slane %v3289, 4
      %v3291 = vrot.slane %v3150, 6
      %v3292 = vsel %vm1354, %v3290, %v3291
      %v3293 = vrot.slane %v3291, 4
      %v3294 = vrot.slane %v3151, 6
      %v3295 = vsel %vm1354, %v3293, %v3294
      %v3296 = vrot.slane %v3152, 6
      %v3297 = vrot.slane %v3296, 4
      %v3298 = vrot.slane %v3153, 6
      %v3299 = vsel %vm1354, %v3297, %v3298
      %v3300 = vrot.slane %v3298, 4
      %v3301 = vrot.slane %v3154, 6
      %v3302 = vsel %vm1354, %v3300, %v3301
      %v3303 = vrot.slane %v3155, 6
      %v3304 = vrot.slane %v3303, 4
      %v3305 = vrot.slane %v3156, 6
      %v3306 = vsel %vm1354, %v3304, %v3305
      %v3307 = vrot.slane %v3305, 4
      %v3308 = vrot.slane %v3157, 6
      %v3309 = vsel %vm1354, %v3307, %v3308
      %v3310 = vrot.slane %v3158, 6
      %v3311 = vrot.slane %v3310, 4
      %v3312 = vrot.slane %v3159, 6
      %v3313 = vsel %vm1354, %v3311, %v3312
      %v3314 = vrot.slane %v3312, 4
      %v3315 = vrot.slane %v3160, 6
      %v3316 = vsel %vm1354, %v3314, %v3315
      %v3317 = vrot.slane %v3161, 6
      %v3318 = vrot.slane %v3317, 4
      %v3319 = vrot.slane %v3162, 6
      %v3320 = vsel %vm1354, %v3318, %v3319
      %v3321 = vrot.slane %v3319, 4
      %v3322 = vrot.slane %v3163, 6
      %v3323 = vsel %vm1354, %v3321, %v3322
      %v3324 = vunpack.c.l.b16 %v3215
      %v3325 = vunpack.c.l.b16 %v3218
      %v3326 = vunpack.c.l.b16 %v3222
      %v3327 = vunpack.c.l.b16 %v3225
      %v3328 = vunpack.c.l.b16 %v3229
      %v3329 = vunpack.c.l.b16 %v3232
      %v3330 = vunpack.c.l.b16 %v3236
      %v3331 = vunpack.c.l.b16 %v3239
      %v3332 = vunpack.c.l.b16 %v3243
      %v3333 = vunpack.c.l.b16 %v3246
      %v3334 = vunpack.c.l.b16 %v3250
      %v3335 = vunpack.c.l.b16 %v3253
      %v3336 = vunpack.c.l.b16 %v3257
      %v3337 = vunpack.c.l.b16 %v3260
      %v3338 = vunpack.c.l.b16 %v3264
      %v3339 = vunpack.c.l.b16 %v3267
      %v3340 = vunpack.c.l.b16 %v3271
      %v3341 = vunpack.c.l.b16 %v3274
      %v3342 = vunpack.c.l.b16 %v3278
      %v3343 = vunpack.c.l.b16 %v3281
      %v3344 = vunpack.c.l.b16 %v3285
      %v3345 = vunpack.c.l.b16 %v3288
      %v3346 = vunpack.c.l.b16 %v3292
      %v3347 = vunpack.c.l.b16 %v3295
      %v3348 = vunpack.c.l.b16 %v3299
      %v3349 = vunpack.c.l.b16 %v3302
      %v3350 = vunpack.c.l.b16 %v3306
      %v3351 = vunpack.c.l.b16 %v3309
      %v3352 = vunpack.c.l.b16 %v3313
      %v3353 = vunpack.c.l.b16 %v3316
      %v3354 = vunpack.c.l.b16 %v3320
      %v3355 = vunpack.c.l.b16 %v3323
      %v3356 = vpack.c.b16 %v3325, %v3324
      %v3357 = vpack.c.b16 %v3327, %v3326
      %v3358 = vpack.c.b16 %v3329, %v3328
      %v3359 = vpack.c.b16 %v3331, %v3330
      %v3360 = vpack.c.b16 %v3333, %v3332
      %v3361 = vpack.c.b16 %v3335, %v3334
      %v3362 = vpack.c.b16 %v3337, %v3336
      %v3363 = vpack.c.b16 %v3339, %v3338
      %v3364 = vpack.c.b16 %v3341, %v3340
      %v3365 = vpack.c.b16 %v3343, %v3342
      %v3366 = vpack.c.b16 %v3345, %v3344
      %v3367 = vpack.c.b16 %v3347, %v3346
      %v3368 = vpack.c.b16 %v3349, %v3348
      %v3369 = vpack.c.b16 %v3351, %v3350
      %v3370 = vpack.c.b16 %v3353, %v3352
      %v3371 = vpack.c.b16 %v3355, %v3354
      %v3374 = vsel %vm1063, %v3356, 0
      %v3376 = vsel %vm1063, %v3357, 0
      %v3378 = vsel %vm1063, %v3358, 0
      %v3380 = vsel %vm1063, %v3359, 0
      %v3382 = vsel %vm1063, %v3360, 0
      %v3384 = vsel %vm1063, %v3361, 0
      %v3386 = vsel %vm1063, %v3362, 0
      %v3388 = vsel %vm1063, %v3363, 0
      %v3390 = vsel %vm1063, %v3364, 0
      %v3392 = vsel %vm1063, %v3365, 0
      %v3394 = vsel %vm1063, %v3366, 0
      %v3396 = vsel %vm1063, %v3367, 0
      %v3398 = vsel %vm1063, %v3368, 0
      %v3400 = vsel %vm1063, %v3369, 0
      %v3402 = vsel %vm1063, %v3370, 0
      %v3404 = vsel %vm1063, %v3371, 0
      %v3421 = vunpack.c.l.b16 %v3374
      %v3422 = vunpack.c.h.b16 %v3374
      %v3423 = vunpack.c.l.b16 %v3376
      %v3424 = vunpack.c.h.b16 %v3376
      %v3425 = vunpack.c.l.b16 %v3378
      %v3426 = vunpack.c.h.b16 %v3378
      %v3427 = vunpack.c.l.b16 %v3380
      %v3428 = vunpack.c.h.b16 %v3380
      %v3429 = vunpack.c.l.b16 %v3382
      %v3430 = vunpack.c.h.b16 %v3382
      %v3431 = vunpack.c.l.b16 %v3384
      %v3432 = vunpack.c.h.b16 %v3384
      %v3433 = vunpack.c.l.b16 %v3386
      %v3434 = vunpack.c.h.b16 %v3386
      %v3435 = vunpack.c.l.b16 %v3388
      %v3436 = vunpack.c.h.b16 %v3388
      %v3437 = vunpack.c.l.b16 %v3390
      %v3438 = vunpack.c.h.b16 %v3390
      %v3439 = vunpack.c.l.b16 %v3392
      %v3440 = vunpack.c.h.b16 %v3392
      %v3441 = vunpack.c.l.b16 %v3394
      %v3442 = vunpack.c.h.b16 %v3394
      %v3443 = vunpack.c.l.b16 %v3396
      %v3444 = vunpack.c.h.b16 %v3396
      %v3445 = vunpack.c.l.b16 %v3398
      %v3446 = vunpack.c.h.b16 %v3398
      %v3447 = vunpack.c.l.b16 %v3400
      %v3448 = vunpack.c.h.b16 %v3400
      %v3449 = vunpack.c.l.b16 %v3402
      %v3450 = vunpack.c.h.b16 %v3402
      %v3451 = vunpack.c.l.b16 %v3404
      %v3452 = vunpack.c.h.b16 %v3404
      %v3453 = vpack.c.b16 %v3421, %v3421
      %v3454 = vpack.c.b16 %v3422, %v3422
      %v3455 = vpack.c.b16 %v3423, %v3423
      %v3456 = vpack.c.b16 %v3424, %v3424
      %v3457 = vpack.c.b16 %v3425, %v3425
      %v3458 = vpack.c.b16 %v3426, %v3426
      %v3459 = vpack.c.b16 %v3427, %v3427
      %v3460 = vpack.c.b16 %v3428, %v3428
      %v3461 = vpack.c.b16 %v3429, %v3429
      %v3462 = vpack.c.b16 %v3430, %v3430
      %v3463 = vpack.c.b16 %v3431, %v3431
      %v3464 = vpack.c.b16 %v3432, %v3432
      %v3465 = vpack.c.b16 %v3433, %v3433
      %v3466 = vpack.c.b16 %v3434, %v3434
      %v3467 = vpack.c.b16 %v3435, %v3435
      %v3468 = vpack.c.b16 %v3436, %v3436
      %v3469 = vpack.c.b16 %v3437, %v3437
      %v3470 = vpack.c.b16 %v3438, %v3438
      %v3471 = vpack.c.b16 %v3439, %v3439
      %v3472 = vpack.c.b16 %v3440, %v3440
      %v3473 = vpack.c.b16 %v3441, %v3441
      %v3474 = vpack.c.b16 %v3442, %v3442
      %v3475 = vpack.c.b16 %v3443, %v3443
      %v3476 = vpack.c.b16 %v3444, %v3444
      %v3477 = vpack.c.b16 %v3445, %v3445
      %v3478 = vpack.c.b16 %v3446, %v3446
      %v3479 = vpack.c.b16 %v3447, %v3447
      %v3480 = vpack.c.b16 %v3448, %v3448
      %v3481 = vpack.c.b16 %v3449, %v3449
      %v3482 = vpack.c.b16 %v3450, %v3450
      %v3483 = vpack.c.b16 %v3451, %v3451
      %v3484 = vpack.c.b16 %v3452, %v3452
      %3517 = vst [vmem:[#allocation3 + $0x10] sm:$0xf] %v3453
      %3518 = vst [vmem:[#allocation3 + $0x24] sm:$0xf] %v3454
      %3519 = vst [vmem:[#allocation3 + $0x38] sm:$0xf] %v3455
      %3520 = vst [vmem:[#allocation3 + $0x4c] sm:$0xf] %v3456
      %3521 = vst [vmem:[#allocation3 + $0x60] sm:$0xf] %v3457
      %3522 = vst [vmem:[#allocation3 + $0x74] sm:$0xf] %v3458
      %3523 = vst [vmem:[#allocation3 + $0x88] sm:$0xf] %v3459
      %3524 = vst [vmem:[#allocation3 + $0x9c] sm:$0xf] %v3460
      %3525 = vst [vmem:[#allocation3 + $0xb0] sm:$0xf] %v3461
      %3526 = vst [vmem:[#allocation3 + $0xc4] sm:$0xf] %v3462
      %3527 = vst [vmem:[#allocation3 + $0xd8] sm:$0xf] %v3463
      %3528 = vst [vmem:[#allocation3 + $0xec] sm:$0xf] %v3464
      %3529 = vst [vmem:[#allocation3 + $0x100] sm:$0xf] %v3465
      %3530 = vst [vmem:[#allocation3 + $0x114] sm:$0xf] %v3466
      %3531 = vst [vmem:[#allocation3 + $0x128] sm:$0xf] %v3467
      %3532 = vst [vmem:[#allocation3 + $0x13c] sm:$0xf] %v3468
      %3533 = vst [vmem:[#allocation3 + $0x150] sm:$0xf] %v3469
      %3534 = vst [vmem:[#allocation3 + $0x164] sm:$0xf] %v3470
      %3535 = vst [vmem:[#allocation3 + $0x178] sm:$0xf] %v3471
      %3536 = vst [vmem:[#allocation3 + $0x18c] sm:$0xf] %v3472
      %3537 = vst [vmem:[#allocation3 + $0x1a0] sm:$0xf] %v3473
      %3538 = vst [vmem:[#allocation3 + $0x1b4] sm:$0xf] %v3474
      %3539 = vst [vmem:[#allocation3 + $0x1c8] sm:$0xf] %v3475
      %3540 = vst [vmem:[#allocation3 + $0x1dc] sm:$0xf] %v3476
      %3541 = vst [vmem:[#allocation3 + $0x1f0] sm:$0xf] %v3477
      %3542 = vst [vmem:[#allocation3 + $0x204] sm:$0xf] %v3478
      %3543 = vst [vmem:[#allocation3 + $0x218] sm:$0xf] %v3479
      %3544 = vst [vmem:[#allocation3 + $0x22c] sm:$0xf] %v3480
      %3545 = vst [vmem:[#allocation3 + $0x240] sm:$0xf] %v3481
      %3546 = vst [vmem:[#allocation3 + $0x254] sm:$0xf] %v3482
      %3547 = vst [vmem:[#allocation3 + $0x268] sm:$0xf] %v3483
      %3548 = vst [vmem:[#allocation3 + $0x27c] sm:$0xf] %v3484
      %v3549 = vld [vmem:[#allocation3] sm:$0xff]
      %v3550 = vld [vmem:[#allocation3 + $0x8] sm:$0xff]
      %v3551 = vld [vmem:[#allocation3 + $0x10] sm:$0xf]
      %v3552 = vld [vmem:[#allocation3 + $0x14] sm:$0xff]
      %v3553 = vld [vmem:[#allocation3 + $0x1c] sm:$0xff]
      %v3554 = vld [vmem:[#allocation3 + $0x24] sm:$0xf]
      %v3555 = vld [vmem:[#allocation3 + $0x28] sm:$0xff]
      %v3556 = vld [vmem:[#allocation3 + $0x30] sm:$0xff]
      %v3557 = vld [vmem:[#allocation3 + $0x38] sm:$0xf]
      %v3558 = vld [vmem:[#allocation3 + $0x3c] sm:$0xff]
      %v3559 = vld [vmem:[#allocation3 + $0x44] sm:$0xff]
      %v3560 = vld [vmem:[#allocation3 + $0x4c] sm:$0xf]
      %v3561 = vld [vmem:[#allocation3 + $0x50] sm:$0xff]
      %v3562 = vld [vmem:[#allocation3 + $0x58] sm:$0xff]
      %v3563 = vld [vmem:[#allocation3 + $0x60] sm:$0xf]
      %v3564 = vld [vmem:[#allocation3 + $0x64] sm:$0xff]
      %v3565 = vld [vmem:[#allocation3 + $0x6c] sm:$0xff]
      %v3566 = vld [vmem:[#allocation3 + $0x74] sm:$0xf]
      %v3567 = vld [vmem:[#allocation3 + $0x78] sm:$0xff]
      %v3568 = vld [vmem:[#allocation3 + $0x80] sm:$0xff]
      %v3569 = vld [vmem:[#allocation3 + $0x88] sm:$0xf]
      %v3570 = vld [vmem:[#allocation3 + $0x8c] sm:$0xff]
      %v3571 = vld [vmem:[#allocation3 + $0x94] sm:$0xff]
      %v3572 = vld [vmem:[#allocation3 + $0x9c] sm:$0xf]
      %v3573 = vld [vmem:[#allocation3 + $0xa0] sm:$0xff]
      %v3574 = vld [vmem:[#allocation3 + $0xa8] sm:$0xff]
      %v3575 = vld [vmem:[#allocation3 + $0xb0] sm:$0xf]
      %v3576 = vld [vmem:[#allocation3 + $0xb4] sm:$0xff]
      %v3577 = vld [vmem:[#allocation3 + $0xbc] sm:$0xff]
      %v3578 = vld [vmem:[#allocation3 + $0xc4] sm:$0xf]
      %v3579 = vld [vmem:[#allocation3 + $0xc8] sm:$0xff]
      %v3580 = vld [vmem:[#allocation3 + $0xd0] sm:$0xff]
      %v3581 = vld [vmem:[#allocation3 + $0xd8] sm:$0xf]
      %v3582 = vld [vmem:[#allocation3 + $0xdc] sm:$0xff]
      %v3583 = vld [vmem:[#allocation3 + $0xe4] sm:$0xff]
      %v3584 = vld [vmem:[#allocation3 + $0xec] sm:$0xf]
      %v3585 = vld [vmem:[#allocation3 + $0xf0] sm:$0xff]
      %v3586 = vld [vmem:[#allocation3 + $0xf8] sm:$0xff]
      %v3587 = vld [vmem:[#allocation3 + $0x100] sm:$0xf]
      %v3588 = vld [vmem:[#allocation3 + $0x104] sm:$0xff]
      %v3589 = vld [vmem:[#allocation3 + $0x10c] sm:$0xff]
      %v3590 = vld [vmem:[#allocation3 + $0x114] sm:$0xf]
      %v3591 = vld [vmem:[#allocation3 + $0x118] sm:$0xff]
      %v3592 = vld [vmem:[#allocation3 + $0x120] sm:$0xff]
      %v3593 = vld [vmem:[#allocation3 + $0x128] sm:$0xf]
      %v3594 = vld [vmem:[#allocation3 + $0x12c] sm:$0xff]
      %v3595 = vld [vmem:[#allocation3 + $0x134] sm:$0xff]
      %v3596 = vld [vmem:[#allocation3 + $0x13c] sm:$0xf]
      %v3597 = vld [vmem:[#allocation3 + $0x140] sm:$0xff]
      %v3598 = vld [vmem:[#allocation3 + $0x148] sm:$0xff]
      %v3599 = vld [vmem:[#allocation3 + $0x150] sm:$0xf]
      %v3600 = vld [vmem:[#allocation3 + $0x154] sm:$0xff]
      %v3601 = vld [vmem:[#allocation3 + $0x15c] sm:$0xff]
      %v3602 = vld [vmem:[#allocation3 + $0x164] sm:$0xf]
      %v3603 = vld [vmem:[#allocation3 + $0x168] sm:$0xff]
      %v3604 = vld [vmem:[#allocation3 + $0x170] sm:$0xff]
      %v3605 = vld [vmem:[#allocation3 + $0x178] sm:$0xf]
      %v3606 = vld [vmem:[#allocation3 + $0x17c] sm:$0xff]
      %v3607 = vld [vmem:[#allocation3 + $0x184] sm:$0xff]
      %v3608 = vld [vmem:[#allocation3 + $0x18c] sm:$0xf]
      %v3609 = vld [vmem:[#allocation3 + $0x190] sm:$0xff]
      %v3610 = vld [vmem:[#allocation3 + $0x198] sm:$0xff]
      %v3611 = vld [vmem:[#allocation3 + $0x1a0] sm:$0xf]
      %v3612 = vld [vmem:[#allocation3 + $0x1a4] sm:$0xff]
      %v3613 = vld [vmem:[#allocation3 + $0x1ac] sm:$0xff]
      %v3614 = vld [vmem:[#allocation3 + $0x1b4] sm:$0xf]
      %v3615 = vld [vmem:[#allocation3 + $0x1b8] sm:$0xff]
      %v3616 = vld [vmem:[#allocation3 + $0x1c0] sm:$0xff]
      %v3617 = vld [vmem:[#allocation3 + $0x1c8] sm:$0xf]
      %v3618 = vld [vmem:[#allocation3 + $0x1cc] sm:$0xff]
      %v3619 = vld [vmem:[#allocation3 + $0x1d4] sm:$0xff]
      %v3620 = vld [vmem:[#allocation3 + $0x1dc] sm:$0xf]
      %v3621 = vld [vmem:[#allocation3 + $0x1e0] sm:$0xff]
      %v3622 = vld [vmem:[#allocation3 + $0x1e8] sm:$0xff]
      %v3623 = vld [vmem:[#allocation3 + $0x1f0] sm:$0xf]
      %v3624 = vld [vmem:[#allocation3 + $0x1f4] sm:$0xff]
      %v3625 = vld [vmem:[#allocation3 + $0x1fc] sm:$0xff]
      %v3626 = vld [vmem:[#allocation3 + $0x204] sm:$0xf]
      %v3627 = vld [vmem:[#allocation3 + $0x208] sm:$0xff]
      %v3628 = vld [vmem:[#allocation3 + $0x210] sm:$0xff]
      %v3629 = vld [vmem:[#allocation3 + $0x218] sm:$0xf]
      %v3630 = vld [vmem:[#allocation3 + $0x21c] sm:$0xff]
      %v3631 = vld [vmem:[#allocation3 + $0x224] sm:$0xff]
      %v3632 = vld [vmem:[#allocation3 + $0x22c] sm:$0xf]
      %v3633 = vld [vmem:[#allocation3 + $0x230] sm:$0xff]
      %v3634 = vld [vmem:[#allocation3 + $0x238] sm:$0xff]
      %v3635 = vld [vmem:[#allocation3 + $0x240] sm:$0xf]
      %v3636 = vld [vmem:[#allocation3 + $0x244] sm:$0xff]
      %v3637 = vld [vmem:[#allocation3 + $0x24c] sm:$0xff]
      %v3638 = vld [vmem:[#allocation3 + $0x254] sm:$0xf]
      %v3639 = vld [vmem:[#allocation3 + $0x258] sm:$0xff]
      %v3640 = vld [vmem:[#allocation3 + $0x260] sm:$0xff]
      %v3641 = vld [vmem:[#allocation3 + $0x268] sm:$0xf]
      %v3642 = vld [vmem:[#allocation3 + $0x26c] sm:$0xff]
      %v3643 = vld [vmem:[#allocation3 + $0x274] sm:$0xff]
      %v3644 = vld [vmem:[#allocation3 + $0x27c] sm:$0xf]
      %v3645 = vld [vmem:[%s1] sm:$0xf]
      %v3646 = vld [vmem:[%s1 + $0x4] sm:$0xf]
      %v3647 = vld [vmem:[%s1 + $0x8] sm:$0xf]
      %v3648 = vld [vmem:[%s1 + $0xc] sm:$0xf]
      %v3649 = vld [vmem:[%s1 + $0x10] sm:$0xf]
      %v3650 = vld [vmem:[%s1 + $0x14] sm:$0xf]
      %v3651 = vld [vmem:[%s1 + $0x18] sm:$0xf]
      %v3652 = vld [vmem:[%s1 + $0x1c] sm:$0xf]
      %v3653 = vld [vmem:[%s1 + $0x20] sm:$0xf]
      %v3654 = vld [vmem:[%s1 + $0x24] sm:$0xf]
      %v3655 = vld [vmem:[%s1 + $0x28] sm:$0xf]
      %v3656 = vld [vmem:[%s1 + $0x2c] sm:$0xf]
      %v3657 = vld [vmem:[%s1 + $0x30] sm:$0xf]
      %v3658 = vld [vmem:[%s1 + $0x34] sm:$0xf]
      %v3659 = vld [vmem:[%s1 + $0x38] sm:$0xf]
      %v3660 = vld [vmem:[%s1 + $0x3c] sm:$0xf]
      %v3661 = vld [vmem:[%s1 + $0x40] sm:$0xf]
      %v3662 = vld [vmem:[%s1 + $0x44] sm:$0xf]
      %v3663 = vld [vmem:[%s1 + $0x48] sm:$0xf]
      %v3664 = vld [vmem:[%s1 + $0x4c] sm:$0xf]
      %v3665 = vld [vmem:[%s1 + $0x50] sm:$0xf]
      %v3666 = vld [vmem:[%s1 + $0x54] sm:$0xf]
      %v3667 = vld [vmem:[%s1 + $0x58] sm:$0xf]
      %v3668 = vld [vmem:[%s1 + $0x5c] sm:$0xf]
      %v3669 = vld [vmem:[%s1 + $0x60] sm:$0xf]
      %v3670 = vld [vmem:[%s1 + $0x64] sm:$0xf]
      %v3671 = vld [vmem:[%s1 + $0x68] sm:$0xf]
      %v3672 = vld [vmem:[%s1 + $0x6c] sm:$0xf]
      %v3673 = vld [vmem:[%s1 + $0x70] sm:$0xf]
      %v3674 = vld [vmem:[%s1 + $0x74] sm:$0xf]
      %v3675 = vld [vmem:[%s1 + $0x78] sm:$0xf]
      %v3676 = vld [vmem:[%s1 + $0x7c] sm:$0xf]
      %v3677 = vld [vmem:[%s1 + $0x80] sm:$0xf]
      %v3678 = vld [vmem:[%s1 + $0x84] sm:$0xf]
      %v3679 = vld [vmem:[%s1 + $0x88] sm:$0xf]
      %v3680 = vld [vmem:[%s1 + $0x8c] sm:$0xf]
      %v3681 = vld [vmem:[%s1 + $0x90] sm:$0xf]
      %v3682 = vld [vmem:[%s1 + $0x94] sm:$0xf]
      %v3683 = vld [vmem:[%s1 + $0x98] sm:$0xf]
      %v3684 = vld [vmem:[%s1 + $0x9c] sm:$0xf]
      %v3685 = vld [vmem:[%s1 + $0xa0] sm:$0xf]
      %v3686 = vld [vmem:[%s1 + $0xa4] sm:$0xf]
      %v3687 = vld [vmem:[%s1 + $0xa8] sm:$0xf]
      %v3688 = vld [vmem:[%s1 + $0xac] sm:$0xf]
      %v3689 = vld [vmem:[%s1 + $0xb0] sm:$0xf]
      %v3690 = vld [vmem:[%s1 + $0xb4] sm:$0xf]
      %v3691 = vld [vmem:[%s1 + $0xb8] sm:$0xf]
      %v3692 = vld [vmem:[%s1 + $0xbc] sm:$0xf]
      %v3693 = vld [vmem:[%s1 + $0xc0] sm:$0xf]
      %v3694 = vld [vmem:[%s1 + $0xc4] sm:$0xf]
      %v3695 = vld [vmem:[%s1 + $0xc8] sm:$0xf]
      %v3696 = vld [vmem:[%s1 + $0xcc] sm:$0xf]
      %v3697 = vld [vmem:[%s1 + $0xd0] sm:$0xf]
      %v3698 = vld [vmem:[%s1 + $0xd4] sm:$0xf]
      %v3699 = vld [vmem:[%s1 + $0xd8] sm:$0xf]
      %v3700 = vld [vmem:[%s1 + $0xdc] sm:$0xf]
      %v3701 = vld [vmem:[%s1 + $0xe0] sm:$0xf]
      %v3702 = vld [vmem:[%s1 + $0xe4] sm:$0xf]
      %v3703 = vld [vmem:[%s1 + $0xe8] sm:$0xf]
      %v3704 = vld [vmem:[%s1 + $0xec] sm:$0xf]
      %v3705 = vld [vmem:[%s1 + $0xf0] sm:$0xf]
      %v3706 = vld [vmem:[%s1 + $0xf4] sm:$0xf]
      %v3707 = vld [vmem:[%s1 + $0xf8] sm:$0xf]
      %v3708 = vld [vmem:[%s1 + $0xfc] sm:$0xf]
      %v3709 = vld [vmem:[%s1 + $0x100] sm:$0xf]
      %v3710 = vld [vmem:[%s1 + $0x104] sm:$0xf]
      %v3711 = vld [vmem:[%s1 + $0x108] sm:$0xf]
      %v3712 = vld [vmem:[%s1 + $0x10c] sm:$0xf]
      %v3713 = vld [vmem:[%s1 + $0x110] sm:$0xf]
      %v3714 = vld [vmem:[%s1 + $0x114] sm:$0xf]
      %v3715 = vld [vmem:[%s1 + $0x118] sm:$0xf]
      %v3716 = vld [vmem:[%s1 + $0x11c] sm:$0xf]
      %v3717 = vld [vmem:[%s1 + $0x120] sm:$0xf]
      %v3718 = vld [vmem:[%s1 + $0x124] sm:$0xf]
      %v3719 = vld [vmem:[%s1 + $0x128] sm:$0xf]
      %v3720 = vld [vmem:[%s1 + $0x12c] sm:$0xf]
      %v3721 = vld [vmem:[%s1 + $0x130] sm:$0xf]
      %v3722 = vld [vmem:[%s1 + $0x134] sm:$0xf]
      %v3723 = vld [vmem:[%s1 + $0x138] sm:$0xf]
      %v3724 = vld [vmem:[%s1 + $0x13c] sm:$0xf]
      %v3821 = vunpack.c.l.b16 %v3549
      %v3822 = vunpack.c.h.b16 %v3549
      %v3823 = vunpack.c.l.b16 %v3550
      %v3824 = vunpack.c.h.b16 %v3550
      %v3825 = vunpack.c.l.b16 %v3551
      %v3826 = vunpack.c.l.b16 %v3552
      %v3827 = vunpack.c.h.b16 %v3552
      %v3828 = vunpack.c.l.b16 %v3553
      %v3829 = vunpack.c.h.b16 %v3553
      %v3830 = vunpack.c.l.b16 %v3554
      %v3831 = vunpack.c.l.b16 %v3555
      %v3832 = vunpack.c.h.b16 %v3555
      %v3833 = vunpack.c.l.b16 %v3556
      %v3834 = vunpack.c.h.b16 %v3556
      %v3835 = vunpack.c.l.b16 %v3557
      %v3836 = vunpack.c.l.b16 %v3558
      %v3837 = vunpack.c.h.b16 %v3558
      %v3838 = vunpack.c.l.b16 %v3559
      %v3839 = vunpack.c.h.b16 %v3559
      %v3840 = vunpack.c.l.b16 %v3560
      %v3841 = vunpack.c.l.b16 %v3561
      %v3842 = vunpack.c.h.b16 %v3561
      %v3843 = vunpack.c.l.b16 %v3562
      %v3844 = vunpack.c.h.b16 %v3562
      %v3845 = vunpack.c.l.b16 %v3563
      %v3846 = vunpack.c.l.b16 %v3564
      %v3847 = vunpack.c.h.b16 %v3564
      %v3848 = vunpack.c.l.b16 %v3565
      %v3849 = vunpack.c.h.b16 %v3565
      %v3850 = vunpack.c.l.b16 %v3566
      %v3851 = vunpack.c.l.b16 %v3567
      %v3852 = vunpack.c.h.b16 %v3567
      %v3853 = vunpack.c.l.b16 %v3568
      %v3854 = vunpack.c.h.b16 %v3568
      %v3855 = vunpack.c.l.b16 %v3569
      %v3856 = vunpack.c.l.b16 %v3570
      %v3857 = vunpack.c.h.b16 %v3570
      %v3858 = vunpack.c.l.b16 %v3571
      %v3859 = vunpack.c.h.b16 %v3571
      %v3860 = vunpack.c.l.b16 %v3572
      %v3861 = vunpack.c.l.b16 %v3573
      %v3862 = vunpack.c.h.b16 %v3573
      %v3863 = vunpack.c.l.b16 %v3574
      %v3864 = vunpack.c.h.b16 %v3574
      %v3865 = vunpack.c.l.b16 %v3575
      %v3866 = vunpack.c.l.b16 %v3576
      %v3867 = vunpack.c.h.b16 %v3576
      %v3868 = vunpack.c.l.b16 %v3577
      %v3869 = vunpack.c.h.b16 %v3577
      %v3870 = vunpack.c.l.b16 %v3578
      %v3871 = vunpack.c.l.b16 %v3579
      %v3872 = vunpack.c.h.b16 %v3579
      %v3873 = vunpack.c.l.b16 %v3580
      %v3874 = vunpack.c.h.b16 %v3580
      %v3875 = vunpack.c.l.b16 %v3581
      %v3876 = vunpack.c.l.b16 %v3582
      %v3877 = vunpack.c.h.b16 %v3582
      %v3878 = vunpack.c.l.b16 %v3583
      %v3879 = vunpack.c.h.b16 %v3583
      %v3880 = vunpack.c.l.b16 %v3584
      %v3881 = vunpack.c.l.b16 %v3585
      %v3882 = vunpack.c.h.b16 %v3585
      %v3883 = vunpack.c.l.b16 %v3586
      %v3884 = vunpack.c.h.b16 %v3586
      %v3885 = vunpack.c.l.b16 %v3587
      %v3886 = vunpack.c.l.b16 %v3588
      %v3887 = vunpack.c.h.b16 %v3588
      %v3888 = vunpack.c.l.b16 %v3589
      %v3889 = vunpack.c.h.b16 %v3589
      %v3890 = vunpack.c.l.b16 %v3590
      %v3891 = vunpack.c.l.b16 %v3591
      %v3892 = vunpack.c.h.b16 %v3591
      %v3893 = vunpack.c.l.b16 %v3592
      %v3894 = vunpack.c.h.b16 %v3592
      %v3895 = vunpack.c.l.b16 %v3593
      %v3896 = vunpack.c.l.b16 %v3594
      %v3897 = vunpack.c.h.b16 %v3594
      %v3898 = vunpack.c.l.b16 %v3595
      %v3899 = vunpack.c.h.b16 %v3595
      %v3900 = vunpack.c.l.b16 %v3596
      %v3901 = vunpack.c.l.b16 %v3597
      %v3902 = vunpack.c.h.b16 %v3597
      %v3903 = vunpack.c.l.b16 %v3598
      %v3904 = vunpack.c.h.b16 %v3598
      %v3905 = vunpack.c.l.b16 %v3599
      %v3906 = vunpack.c.l.b16 %v3600
      %v3907 = vunpack.c.h.b16 %v3600
      %v3908 = vunpack.c.l.b16 %v3601
      %v3909 = vunpack.c.h.b16 %v3601
      %v3910 = vunpack.c.l.b16 %v3602
      %v3911 = vunpack.c.l.b16 %v3603
      %v3912 = vunpack.c.h.b16 %v3603
      %v3913 = vunpack.c.l.b16 %v3604
      %v3914 = vunpack.c.h.b16 %v3604
      %v3915 = vunpack.c.l.b16 %v3605
      %v3916 = vunpack.c.l.b16 %v3606
      %v3917 = vunpack.c.h.b16 %v3606
      %v3918 = vunpack.c.l.b16 %v3607
      %v3919 = vunpack.c.h.b16 %v3607
      %v3920 = vunpack.c.l.b16 %v3608
      %v3921 = vunpack.c.l.b16 %v3609
      %v3922 = vunpack.c.h.b16 %v3609
      %v3923 = vunpack.c.l.b16 %v3610
      %v3924 = vunpack.c.h.b16 %v3610
      %v3925 = vunpack.c.l.b16 %v3611
      %v3926 = vunpack.c.l.b16 %v3612
      %v3927 = vunpack.c.h.b16 %v3612
      %v3928 = vunpack.c.l.b16 %v3613
      %v3929 = vunpack.c.h.b16 %v3613
      %v3930 = vunpack.c.l.b16 %v3614
      %v3931 = vunpack.c.l.b16 %v3615
      %v3932 = vunpack.c.h.b16 %v3615
      %v3933 = vunpack.c.l.b16 %v3616
      %v3934 = vunpack.c.h.b16 %v3616
      %v3935 = vunpack.c.l.b16 %v3617
      %v3936 = vunpack.c.l.b16 %v3618
      %v3937 = vunpack.c.h.b16 %v3618
      %v3938 = vunpack.c.l.b16 %v3619
      %v3939 = vunpack.c.h.b16 %v3619
      %v3940 = vunpack.c.l.b16 %v3620
      %v3941 = vunpack.c.l.b16 %v3621
      %v3942 = vunpack.c.h.b16 %v3621
      %v3943 = vunpack.c.l.b16 %v3622
      %v3944 = vunpack.c.h.b16 %v3622
      %v3945 = vunpack.c.l.b16 %v3623
      %v3946 = vunpack.c.l.b16 %v3624
      %v3947 = vunpack.c.h.b16 %v3624
      %v3948 = vunpack.c.l.b16 %v3625
      %v3949 = vunpack.c.h.b16 %v3625
      %v3950 = vunpack.c.l.b16 %v3626
      %v3951 = vunpack.c.l.b16 %v3627
      %v3952 = vunpack.c.h.b16 %v3627
      %v3953 = vunpack.c.l.b16 %v3628
      %v3954 = vunpack.c.h.b16 %v3628
      %v3955 = vunpack.c.l.b16 %v3629
      %v3956 = vunpack.c.l.b16 %v3630
      %v3957 = vunpack.c.h.b16 %v3630
      %v3958 = vunpack.c.l.b16 %v3631
      %v3959 = vunpack.c.h.b16 %v3631
      %v3960 = vunpack.c.l.b16 %v3632
      %v3961 = vunpack.c.l.b16 %v3633
      %v3962 = vunpack.c.h.b16 %v3633
      %v3963 = vunpack.c.l.b16 %v3634
      %v3964 = vunpack.c.h.b16 %v3634
      %v3965 = vunpack.c.l.b16 %v3635
      %v3966 = vunpack.c.l.b16 %v3636
      %v3967 = vunpack.c.h.b16 %v3636
      %v3968 = vunpack.c.l.b16 %v3637
      %v3969 = vunpack.c.h.b16 %v3637
      %v3970 = vunpack.c.l.b16 %v3638
      %v3971 = vunpack.c.l.b16 %v3639
      %v3972 = vunpack.c.h.b16 %v3639
      %v3973 = vunpack.c.l.b16 %v3640
      %v3974 = vunpack.c.h.b16 %v3640
      %v3975 = vunpack.c.l.b16 %v3641
      %v3976 = vunpack.c.l.b16 %v3642
      %v3977 = vunpack.c.h.b16 %v3642
      %v3978 = vunpack.c.l.b16 %v3643
      %v3979 = vunpack.c.h.b16 %v3643
      %v3980 = vunpack.c.l.b16 %v3644
      %v3981 = vpack.c.b16 %v3826, %v3821
      %v3982 = vpack.c.b16 %v3827, %v3822
      %v3983 = vpack.c.b16 %v3828, %v3823
      %v3984 = vpack.c.b16 %v3829, %v3824
      %v3985 = vpack.c.b16 %v3830, %v3825
      %v3986 = vpack.c.b16 %v3836, %v3831
      %v3987 = vpack.c.b16 %v3837, %v3832
      %v3988 = vpack.c.b16 %v3838, %v3833
      %v3989 = vpack.c.b16 %v3839, %v3834
      %v3990 = vpack.c.b16 %v3840, %v3835
      %v3991 = vpack.c.b16 %v3846, %v3841
      %v3992 = vpack.c.b16 %v3847, %v3842
      %v3993 = vpack.c.b16 %v3848, %v3843
      %v3994 = vpack.c.b16 %v3849, %v3844
      %v3995 = vpack.c.b16 %v3850, %v3845
      %v3996 = vpack.c.b16 %v3856, %v3851
      %v3997 = vpack.c.b16 %v3857, %v3852
      %v3998 = vpack.c.b16 %v3858, %v3853
      %v3999 = vpack.c.b16 %v3859, %v3854
      %v4000 = vpack.c.b16 %v3860, %v3855
      %v4001 = vpack.c.b16 %v3866, %v3861
      %v4002 = vpack.c.b16 %v3867, %v3862
      %v4003 = vpack.c.b16 %v3868, %v3863
      %v4004 = vpack.c.b16 %v3869, %v3864
      %v4005 = vpack.c.b16 %v3870, %v3865
      %v4006 = vpack.c.b16 %v3876, %v3871
      %v4007 = vpack.c.b16 %v3877, %v3872
      %v4008 = vpack.c.b16 %v3878, %v3873
      %v4009 = vpack.c.b16 %v3879, %v3874
      %v4010 = vpack.c.b16 %v3880, %v3875
      %v4011 = vpack.c.b16 %v3886, %v3881
      %v4012 = vpack.c.b16 %v3887, %v3882
      %v4013 = vpack.c.b16 %v3888, %v3883
      %v4014 = vpack.c.b16 %v3889, %v3884
      %v4015 = vpack.c.b16 %v3890, %v3885
      %v4016 = vpack.c.b16 %v3896, %v3891
      %v4017 = vpack.c.b16 %v3897, %v3892
      %v4018 = vpack.c.b16 %v3898, %v3893
      %v4019 = vpack.c.b16 %v3899, %v3894
      %v4020 = vpack.c.b16 %v3900, %v3895
      %v4021 = vpack.c.b16 %v3906, %v3901
      %v4022 = vpack.c.b16 %v3907, %v3902
      %v4023 = vpack.c.b16 %v3908, %v3903
      %v4024 = vpack.c.b16 %v3909, %v3904
      %v4025 = vpack.c.b16 %v3910, %v3905
      %v4026 = vpack.c.b16 %v3916, %v3911
      %v4027 = vpack.c.b16 %v3917, %v3912
      %v4028 = vpack.c.b16 %v3918, %v3913
      %v4029 = vpack.c.b16 %v3919, %v3914
      %v4030 = vpack.c.b16 %v3920, %v3915
      %v4031 = vpack.c.b16 %v3926, %v3921
      %v4032 = vpack.c.b16 %v3927, %v3922
      %v4033 = vpack.c.b16 %v3928, %v3923
      %v4034 = vpack.c.b16 %v3929, %v3924
      %v4035 = vpack.c.b16 %v3930, %v3925
      %v4036 = vpack.c.b16 %v3936, %v3931
      %v4037 = vpack.c.b16 %v3937, %v3932
      %v4038 = vpack.c.b16 %v3938, %v3933
      %v4039 = vpack.c.b16 %v3939, %v3934
      %v4040 = vpack.c.b16 %v3940, %v3935
      %v4041 = vpack.c.b16 %v3946, %v3941
      %v4042 = vpack.c.b16 %v3947, %v3942
      %v4043 = vpack.c.b16 %v3948, %v3943
      %v4044 = vpack.c.b16 %v3949, %v3944
      %v4045 = vpack.c.b16 %v3950, %v3945
      %v4046 = vpack.c.b16 %v3956, %v3951
      %v4047 = vpack.c.b16 %v3957, %v3952
      %v4048 = vpack.c.b16 %v3958, %v3953
      %v4049 = vpack.c.b16 %v3959, %v3954
      %v4050 = vpack.c.b16 %v3960, %v3955
      %v4051 = vpack.c.b16 %v3966, %v3961
      %v4052 = vpack.c.b16 %v3967, %v3962
      %v4053 = vpack.c.b16 %v3968, %v3963
      %v4054 = vpack.c.b16 %v3969, %v3964
      %v4055 = vpack.c.b16 %v3970, %v3965
      %v4056 = vpack.c.b16 %v3976, %v3971
      %v4057 = vpack.c.b16 %v3977, %v3972
      %v4058 = vpack.c.b16 %v3978, %v3973
      %v4059 = vpack.c.b16 %v3979, %v3974
      %v4060 = vpack.c.b16 %v3980, %v3975
      %v4221 = vunpack.c.l.b16 %v3645
      %v4222 = vunpack.c.l.b16 %v3646
      %v4223 = vunpack.c.l.b16 %v3647
      %v4224 = vunpack.c.l.b16 %v3648
      %v4225 = vunpack.c.l.b16 %v3649
      %v4226 = vunpack.c.l.b16 %v3650
      %v4227 = vunpack.c.l.b16 %v3651
      %v4228 = vunpack.c.l.b16 %v3652
      %v4229 = vunpack.c.l.b16 %v3653
      %v4230 = vunpack.c.l.b16 %v3654
      %v4231 = vunpack.c.l.b16 %v3655
      %v4232 = vunpack.c.l.b16 %v3656
      %v4233 = vunpack.c.l.b16 %v3657
      %v4234 = vunpack.c.l.b16 %v3658
      %v4235 = vunpack.c.l.b16 %v3659
      %v4236 = vunpack.c.l.b16 %v3660
      %v4237 = vunpack.c.l.b16 %v3661
      %v4238 = vunpack.c.l.b16 %v3662
      %v4239 = vunpack.c.l.b16 %v3663
      %v4240 = vunpack.c.l.b16 %v3664
      %v4241 = vunpack.c.l.b16 %v3665
      %v4242 = vunpack.c.l.b16 %v3666
      %v4243 = vunpack.c.l.b16 %v3667
      %v4244 = vunpack.c.l.b16 %v3668
      %v4245 = vunpack.c.l.b16 %v3669
      %v4246 = vunpack.c.l.b16 %v3670
      %v4247 = vunpack.c.l.b16 %v3671
      %v4248 = vunpack.c.l.b16 %v3672
      %v4249 = vunpack.c.l.b16 %v3673
      %v4250 = vunpack.c.l.b16 %v3674
      %v4251 = vunpack.c.l.b16 %v3675
      %v4252 = vunpack.c.l.b16 %v3676
      %v4253 = vunpack.c.l.b16 %v3677
      %v4254 = vunpack.c.l.b16 %v3678
      %v4255 = vunpack.c.l.b16 %v3679
      %v4256 = vunpack.c.l.b16 %v3680
      %v4257 = vunpack.c.l.b16 %v3681
      %v4258 = vunpack.c.l.b16 %v3682
      %v4259 = vunpack.c.l.b16 %v3683
      %v4260 = vunpack.c.l.b16 %v3684
      %v4261 = vunpack.c.l.b16 %v3685
      %v4262 = vunpack.c.l.b16 %v3686
      %v4263 = vunpack.c.l.b16 %v3687
      %v4264 = vunpack.c.l.b16 %v3688
      %v4265 = vunpack.c.l.b16 %v3689
      %v4266 = vunpack.c.l.b16 %v3690
      %v4267 = vunpack.c.l.b16 %v3691
      %v4268 = vunpack.c.l.b16 %v3692
      %v4269 = vunpack.c.l.b16 %v3693
      %v4270 = vunpack.c.l.b16 %v3694
      %v4271 = vunpack.c.l.b16 %v3695
      %v4272 = vunpack.c.l.b16 %v3696
      %v4273 = vunpack.c.l.b16 %v3697
      %v4274 = vunpack.c.l.b16 %v3698
      %v4275 = vunpack.c.l.b16 %v3699
      %v4276 = vunpack.c.l.b16 %v3700
      %v4277 = vunpack.c.l.b16 %v3701
      %v4278 = vunpack.c.l.b16 %v3702
      %v4279 = vunpack.c.l.b16 %v3703
      %v4280 = vunpack.c.l.b16 %v3704
      %v4281 = vunpack.c.l.b16 %v3705
      %v4282 = vunpack.c.l.b16 %v3706
      %v4283 = vunpack.c.l.b16 %v3707
      %v4284 = vunpack.c.l.b16 %v3708
      %v4285 = vunpack.c.l.b16 %v3709
      %v4286 = vunpack.c.l.b16 %v3710
      %v4287 = vunpack.c.l.b16 %v3711
      %v4288 = vunpack.c.l.b16 %v3712
      %v4289 = vunpack.c.l.b16 %v3713
      %v4290 = vunpack.c.l.b16 %v3714
      %v4291 = vunpack.c.l.b16 %v3715
      %v4292 = vunpack.c.l.b16 %v3716
      %v4293 = vunpack.c.l.b16 %v3717
      %v4294 = vunpack.c.l.b16 %v3718
      %v4295 = vunpack.c.l.b16 %v3719
      %v4296 = vunpack.c.l.b16 %v3720
      %v4297 = vunpack.c.l.b16 %v3721
      %v4298 = vunpack.c.l.b16 %v3722
      %v4299 = vunpack.c.l.b16 %v3723
      %v4300 = vunpack.c.l.b16 %v3724
      %v4301 = vpack.c.b16 %v4222, %v4221
      %v4302 = vpack.c.b16 %v4224, %v4223
      %v4303 = vpack.c.b16 %v4226, %v4225
      %v4304 = vpack.c.b16 %v4228, %v4227
      %v4305 = vpack.c.b16 %v4230, %v4229
      %v4306 = vpack.c.b16 %v4232, %v4231
      %v4307 = vpack.c.b16 %v4234, %v4233
      %v4308 = vpack.c.b16 %v4236, %v4235
      %v4309 = vpack.c.b16 %v4238, %v4237
      %v4310 = vpack.c.b16 %v4240, %v4239
      %v4311 = vpack.c.b16 %v4242, %v4241
      %v4312 = vpack.c.b16 %v4244, %v4243
      %v4313 = vpack.c.b16 %v4246, %v4245
      %v4314 = vpack.c.b16 %v4248, %v4247
      %v4315 = vpack.c.b16 %v4250, %v4249
      %v4316 = vpack.c.b16 %v4252, %v4251
      %v4317 = vpack.c.b16 %v4254, %v4253
      %v4318 = vpack.c.b16 %v4256, %v4255
      %v4319 = vpack.c.b16 %v4258, %v4257
      %v4320 = vpack.c.b16 %v4260, %v4259
      %v4321 = vpack.c.b16 %v4262, %v4261
      %v4322 = vpack.c.b16 %v4264, %v4263
      %v4323 = vpack.c.b16 %v4266, %v4265
      %v4324 = vpack.c.b16 %v4268, %v4267
      %v4325 = vpack.c.b16 %v4270, %v4269
      %v4326 = vpack.c.b16 %v4272, %v4271
      %v4327 = vpack.c.b16 %v4274, %v4273
      %v4328 = vpack.c.b16 %v4276, %v4275
      %v4329 = vpack.c.b16 %v4278, %v4277
      %v4330 = vpack.c.b16 %v4280, %v4279
      %v4331 = vpack.c.b16 %v4282, %v4281
      %v4332 = vpack.c.b16 %v4284, %v4283
      %v4333 = vpack.c.b16 %v4286, %v4285
      %v4334 = vpack.c.b16 %v4288, %v4287
      %v4335 = vpack.c.b16 %v4290, %v4289
      %v4336 = vpack.c.b16 %v4292, %v4291
      %v4337 = vpack.c.b16 %v4294, %v4293
      %v4338 = vpack.c.b16 %v4296, %v4295
      %v4339 = vpack.c.b16 %v4298, %v4297
      %v4340 = vpack.c.b16 %v4300, %v4299
      %4381 = vmatprep.subr.bf16.mxu0 0
      %4382 = vmatpush1.bf16.msra.mxu0 %v4308
      %4383 = vmatprep.subr.bf16.mxu0 0
      %4384 = vmatpush1.bf16.msra.mxu0 %v4307
      %4385 = vmatprep.subr.bf16.mxu0 0
      %4386 = vmatpush1.bf16.msra.mxu0 %v4306
      %4387 = vmatprep.subr.bf16.mxu0 0
      %4388 = vmatpush1.bf16.msra.mxu0 %v4305
      %4389 = vmatprep.subr.bf16.mxu0 0
      %4390 = vmatpush1.bf16.msra.mxu0 %v4304
      %4391 = vmatprep.subr.bf16.mxu0 0
      %4392 = vmatpush1.bf16.msra.mxu0 %v4303
      %4393 = vmatprep.subr.bf16.mxu0 0
      %4394 = vmatpush1.bf16.msra.mxu0 %v4302
      %4395 = vmatprep.subr.bf16.mxu0 0
      %4396 = vmatpush1.bf16.msra.mxu0 %v4301
      %4397 = vmatprep.subr.bf16.mxu0 0
      %4398 = vmatpush2.bf16.msra.mxu0 %v4316
      %4399 = vmatprep.subr.bf16.mxu0 0
      %4400 = vmatpush2.bf16.msra.mxu0 %v4315
      %4401 = vmatprep.subr.bf16.mxu0 0
      %4402 = vmatpush2.bf16.msra.mxu0 %v4314
      %4403 = vmatprep.subr.bf16.mxu0 0
      %4404 = vmatpush2.bf16.msra.mxu0 %v4313
      %4405 = vmatprep.subr.bf16.mxu0 0
      %4406 = vmatpush2.bf16.msra.mxu0 %v4312
      %4407 = vmatprep.subr.bf16.mxu0 0
      %4408 = vmatpush2.bf16.msra.mxu0 %v4311
      %4409 = vmatprep.subr.bf16.mxu0 0
      %4410 = vmatpush2.bf16.msra.mxu0 %v4310
      %4411 = vmatprep.subr.bf16.mxu0 0
      %4412 = vmatpush2.bf16.msra.mxu0 %v4309
      %4413 = vmatprep.mubr.bf16.mxu0 %v3982
      %4414 = vmatmul.mubr.bf16.gmra.mxu0 %v3981
      %v4415 = vpop.f32.mrf.mxu0
      %v4416 = vadd.f32 0.0, %v4415
      %v4417 = vpop.f32.mrf.mxu0
      %v4418 = vpop.f32.mrf.mxu0
      %v4419 = vadd.f32 0.0, %v4418
      %v4420 = vpop.f32.mrf.mxu0
      %4421 = vmatprep.mubr.bf16.mxu0 %v3987
      %4422 = vmatmul.mubr.bf16.gmra.mxu0 %v3986
      %v4423 = vpop.f32.mrf.mxu0
      %v4424 = vadd.f32 0.0, %v4423
      %v4425 = vpop.f32.mrf.mxu0
      %v4426 = vpop.f32.mrf.mxu0
      %v4427 = vadd.f32 0.0, %v4426
      %v4428 = vpop.f32.mrf.mxu0
      %4429 = vmatprep.mubr.bf16.mxu0 %v3992
      %4430 = vmatmul.mubr.bf16.gmra.mxu0 %v3991
      %v4431 = vpop.f32.mrf.mxu0
      %v4432 = vadd.f32 0.0, %v4431
      %v4433 = vpop.f32.mrf.mxu0
      %v4434 = vpop.f32.mrf.mxu0
      %v4435 = vadd.f32 0.0, %v4434
      %v4436 = vpop.f32.mrf.mxu0
      %4437 = vmatprep.mubr.bf16.mxu0 %v3997
      %4438 = vmatmul.mubr.bf16.gmra.mxu0 %v3996
      %v4439 = vpop.f32.mrf.mxu0
      %v4440 = vadd.f32 0.0, %v4439
      %v4441 = vpop.f32.mrf.mxu0
      %v4442 = vpop.f32.mrf.mxu0
      %v4443 = vadd.f32 0.0, %v4442
      %v4444 = vpop.f32.mrf.mxu0
      %4445 = vmatprep.mubr.bf16.mxu0 %v4002
      %4446 = vmatmul.mubr.bf16.gmra.mxu0 %v4001
      %v4447 = vpop.f32.mrf.mxu0
      %v4448 = vadd.f32 0.0, %v4447
      %v4449 = vpop.f32.mrf.mxu0
      %v4450 = vpop.f32.mrf.mxu0
      %v4451 = vadd.f32 0.0, %v4450
      %v4452 = vpop.f32.mrf.mxu0
      %4453 = vmatprep.mubr.bf16.mxu0 %v4007
      %4454 = vmatmul.mubr.bf16.gmra.mxu0 %v4006
      %v4455 = vpop.f32.mrf.mxu0
      %v4456 = vadd.f32 0.0, %v4455
      %v4457 = vpop.f32.mrf.mxu0
      %v4458 = vpop.f32.mrf.mxu0
      %v4459 = vadd.f32 0.0, %v4458
      %v4460 = vpop.f32.mrf.mxu0
      %4461 = vmatprep.mubr.bf16.mxu0 %v4012
      %4462 = vmatmul.mubr.bf16.gmra.mxu0 %v4011
      %v4463 = vpop.f32.mrf.mxu0
      %v4464 = vadd.f32 0.0, %v4463
      %v4465 = vpop.f32.mrf.mxu0
      %v4466 = vpop.f32.mrf.mxu0
      %v4467 = vadd.f32 0.0, %v4466
      %v4468 = vpop.f32.mrf.mxu0
      %4469 = vmatprep.mubr.bf16.mxu0 %v4017
      %4470 = vmatmul.mubr.bf16.gmra.mxu0 %v4016
      %v4471 = vpop.f32.mrf.mxu0
      %v4472 = vadd.f32 0.0, %v4471
      %v4473 = vpop.f32.mrf.mxu0
      %v4474 = vpop.f32.mrf.mxu0
      %v4475 = vadd.f32 0.0, %v4474
      %v4476 = vpop.f32.mrf.mxu0
      %4477 = vmatprep.mubr.bf16.mxu0 %v4022
      %4478 = vmatmul.mubr.bf16.gmra.mxu0 %v4021
      %v4479 = vpop.f32.mrf.mxu0
      %v4480 = vadd.f32 0.0, %v4479
      %v4481 = vpop.f32.mrf.mxu0
      %v4482 = vpop.f32.mrf.mxu0
      %v4483 = vadd.f32 0.0, %v4482
      %v4484 = vpop.f32.mrf.mxu0
      %4485 = vmatprep.mubr.bf16.mxu0 %v4027
      %4486 = vmatmul.mubr.bf16.gmra.mxu0 %v4026
      %v4487 = vpop.f32.mrf.mxu0
      %v4488 = vadd.f32 0.0, %v4487
      %v4489 = vpop.f32.mrf.mxu0
      %v4490 = vpop.f32.mrf.mxu0
      %v4491 = vadd.f32 0.0, %v4490
      %v4492 = vpop.f32.mrf.mxu0
      %4493 = vmatprep.mubr.bf16.mxu0 %v4032
      %4494 = vmatmul.mubr.bf16.gmra.mxu0 %v4031
      %v4495 = vpop.f32.mrf.mxu0
      %v4496 = vadd.f32 0.0, %v4495
      %v4497 = vpop.f32.mrf.mxu0
      %v4498 = vpop.f32.mrf.mxu0
      %v4499 = vadd.f32 0.0, %v4498
      %v4500 = vpop.f32.mrf.mxu0
      %4501 = vmatprep.mubr.bf16.mxu0 %v4037
      %4502 = vmatmul.mubr.bf16.gmra.mxu0 %v4036
      %v4503 = vpop.f32.mrf.mxu0
      %v4504 = vadd.f32 0.0, %v4503
      %v4505 = vpop.f32.mrf.mxu0
      %v4506 = vpop.f32.mrf.mxu0
      %v4507 = vadd.f32 0.0, %v4506
      %v4508 = vpop.f32.mrf.mxu0
      %4509 = vmatprep.mubr.bf16.mxu0 %v4042
      %4510 = vmatmul.mubr.bf16.gmra.mxu0 %v4041
      %v4511 = vpop.f32.mrf.mxu0
      %v4512 = vadd.f32 0.0, %v4511
      %v4513 = vpop.f32.mrf.mxu0
      %v4514 = vpop.f32.mrf.mxu0
      %v4515 = vadd.f32 0.0, %v4514
      %v4516 = vpop.f32.mrf.mxu0
      %4517 = vmatprep.mubr.bf16.mxu0 %v4047
      %4518 = vmatmul.mubr.bf16.gmra.mxu0 %v4046
      %v4519 = vpop.f32.mrf.mxu0
      %v4520 = vadd.f32 0.0, %v4519
      %v4521 = vpop.f32.mrf.mxu0
      %v4522 = vpop.f32.mrf.mxu0
      %v4523 = vadd.f32 0.0, %v4522
      %v4524 = vpop.f32.mrf.mxu0
      %4525 = vmatprep.mubr.bf16.mxu0 %v4052
      %4526 = vmatmul.mubr.bf16.gmra.mxu0 %v4051
      %v4527 = vpop.f32.mrf.mxu0
      %v4528 = vadd.f32 0.0, %v4527
      %v4529 = vpop.f32.mrf.mxu0
      %v4530 = vpop.f32.mrf.mxu0
      %v4531 = vadd.f32 0.0, %v4530
      %v4532 = vpop.f32.mrf.mxu0
      %4533 = vmatprep.mubr.bf16.mxu0 %v4057
      %4534 = vmatmul.mubr.bf16.gmra.mxu0 %v4056
      %v4535 = vpop.f32.mrf.mxu0
      %v4536 = vadd.f32 0.0, %v4535
      %v4537 = vpop.f32.mrf.mxu0
      %v4538 = vpop.f32.mrf.mxu0
      %v4539 = vadd.f32 0.0, %v4538
      %v4540 = vpop.f32.mrf.mxu0
      %4541 = vdwg.mxu0
      %4542 = vmatprep.subr.bf16.mxu0 0
      %4543 = vmatpush1.bf16.msra.mxu0 %v4324
      %4544 = vmatprep.subr.bf16.mxu0 0
      %4545 = vmatpush1.bf16.msra.mxu0 %v4323
      %4546 = vmatprep.subr.bf16.mxu0 0
      %4547 = vmatpush1.bf16.msra.mxu0 %v4322
      %4548 = vmatprep.subr.bf16.mxu0 0
      %4549 = vmatpush1.bf16.msra.mxu0 %v4321
      %4550 = vmatprep.subr.bf16.mxu0 0
      %4551 = vmatpush1.bf16.msra.mxu0 %v4320
      %4552 = vmatprep.subr.bf16.mxu0 0
      %4553 = vmatpush1.bf16.msra.mxu0 %v4319
      %4554 = vmatprep.subr.bf16.mxu0 0
      %4555 = vmatpush1.bf16.msra.mxu0 %v4318
      %4556 = vmatprep.subr.bf16.mxu0 0
      %4557 = vmatpush1.bf16.msra.mxu0 %v4317
      %4558 = vmatprep.subr.bf16.mxu0 0
      %4559 = vmatpush2.bf16.msra.mxu0 %v4332
      %4560 = vmatprep.subr.bf16.mxu0 0
      %4561 = vmatpush2.bf16.msra.mxu0 %v4331
      %4562 = vmatprep.subr.bf16.mxu0 0
      %4563 = vmatpush2.bf16.msra.mxu0 %v4330
      %4564 = vmatprep.subr.bf16.mxu0 0
      %4565 = vmatpush2.bf16.msra.mxu0 %v4329
      %4566 = vmatprep.subr.bf16.mxu0 0
      %4567 = vmatpush2.bf16.msra.mxu0 %v4328
      %4568 = vmatprep.subr.bf16.mxu0 0
      %4569 = vmatpush2.bf16.msra.mxu0 %v4327
      %4570 = vmatprep.subr.bf16.mxu0 0
      %4571 = vmatpush2.bf16.msra.mxu0 %v4326
      %4572 = vmatprep.subr.bf16.mxu0 0
      %4573 = vmatpush2.bf16.msra.mxu0 %v4325
      %4574 = vmatprep.mubr.bf16.mxu0 %v3984
      %4575 = vmatmul.mubr.bf16.gmra.mxu0 %v3983
      %v4576 = vpop.f32.mrf.mxu0
      %v4577 = vadd.f32 %v4416, %v4576
      %v4578 = vpop.f32.mrf.mxu0
      %v4579 = vpop.f32.mrf.mxu0
      %v4580 = vadd.f32 %v4419, %v4579
      %v4581 = vpop.f32.mrf.mxu0
      %4582 = vmatprep.mubr.bf16.mxu0 %v3989
      %4583 = vmatmul.mubr.bf16.gmra.mxu0 %v3988
      %v4584 = vpop.f32.mrf.mxu0
      %v4585 = vadd.f32 %v4424, %v4584
      %v4586 = vpop.f32.mrf.mxu0
      %v4587 = vpop.f32.mrf.mxu0
      %v4588 = vadd.f32 %v4427, %v4587
      %v4589 = vpop.f32.mrf.mxu0
      %4590 = vmatprep.mubr.bf16.mxu0 %v3994
      %4591 = vmatmul.mubr.bf16.gmra.mxu0 %v3993
      %v4592 = vpop.f32.mrf.mxu0
      %v4593 = vadd.f32 %v4432, %v4592
      %v4594 = vpop.f32.mrf.mxu0
      %v4595 = vpop.f32.mrf.mxu0
      %v4596 = vadd.f32 %v4435, %v4595
      %v4597 = vpop.f32.mrf.mxu0
      %4598 = vmatprep.mubr.bf16.mxu0 %v3999
      %4599 = vmatmul.mubr.bf16.gmra.mxu0 %v3998
      %v4600 = vpop.f32.mrf.mxu0
      %v4601 = vadd.f32 %v4440, %v4600
      %v4602 = vpop.f32.mrf.mxu0
      %v4603 = vpop.f32.mrf.mxu0
      %v4604 = vadd.f32 %v4443, %v4603
      %v4605 = vpop.f32.mrf.mxu0
      %4606 = vmatprep.mubr.bf16.mxu0 %v4004
      %4607 = vmatmul.mubr.bf16.gmra.mxu0 %v4003
      %v4608 = vpop.f32.mrf.mxu0
      %v4609 = vadd.f32 %v4448, %v4608
      %v4610 = vpop.f32.mrf.mxu0
      %v4611 = vpop.f32.mrf.mxu0
      %v4612 = vadd.f32 %v4451, %v4611
      %v4613 = vpop.f32.mrf.mxu0
      %4614 = vmatprep.mubr.bf16.mxu0 %v4009
      %4615 = vmatmul.mubr.bf16.gmra.mxu0 %v4008
      %v4616 = vpop.f32.mrf.mxu0
      %v4617 = vadd.f32 %v4456, %v4616
      %v4618 = vpop.f32.mrf.mxu0
      %v4619 = vpop.f32.mrf.mxu0
      %v4620 = vadd.f32 %v4459, %v4619
      %v4621 = vpop.f32.mrf.mxu0
      %4622 = vmatprep.mubr.bf16.mxu0 %v4014
      %4623 = vmatmul.mubr.bf16.gmra.mxu0 %v4013
      %v4624 = vpop.f32.mrf.mxu0
      %v4625 = vadd.f32 %v4464, %v4624
      %v4626 = vpop.f32.mrf.mxu0
      %v4627 = vpop.f32.mrf.mxu0
      %v4628 = vadd.f32 %v4467, %v4627
      %v4629 = vpop.f32.mrf.mxu0
      %4630 = vmatprep.mubr.bf16.mxu0 %v4019
      %4631 = vmatmul.mubr.bf16.gmra.mxu0 %v4018
      %v4632 = vpop.f32.mrf.mxu0
      %v4633 = vadd.f32 %v4472, %v4632
      %v4634 = vpop.f32.mrf.mxu0
      %v4635 = vpop.f32.mrf.mxu0
      %v4636 = vadd.f32 %v4475, %v4635
      %v4637 = vpop.f32.mrf.mxu0
      %4638 = vmatprep.mubr.bf16.mxu0 %v4024
      %4639 = vmatmul.mubr.bf16.gmra.mxu0 %v4023
      %v4640 = vpop.f32.mrf.mxu0
      %v4641 = vadd.f32 %v4480, %v4640
      %v4642 = vpop.f32.mrf.mxu0
      %v4643 = vpop.f32.mrf.mxu0
      %v4644 = vadd.f32 %v4483, %v4643
      %v4645 = vpop.f32.mrf.mxu0
      %4646 = vmatprep.mubr.bf16.mxu0 %v4029
      %4647 = vmatmul.mubr.bf16.gmra.mxu0 %v4028
      %v4648 = vpop.f32.mrf.mxu0
      %v4649 = vadd.f32 %v4488, %v4648
      %v4650 = vpop.f32.mrf.mxu0
      %v4651 = vpop.f32.mrf.mxu0
      %v4652 = vadd.f32 %v4491, %v4651
      %v4653 = vpop.f32.mrf.mxu0
      %4654 = vmatprep.mubr.bf16.mxu0 %v4034
      %4655 = vmatmul.mubr.bf16.gmra.mxu0 %v4033
      %v4656 = vpop.f32.mrf.mxu0
      %v4657 = vadd.f32 %v4496, %v4656
      %v4658 = vpop.f32.mrf.mxu0
      %v4659 = vpop.f32.mrf.mxu0
      %v4660 = vadd.f32 %v4499, %v4659
      %v4661 = vpop.f32.mrf.mxu0
      %4662 = vmatprep.mubr.bf16.mxu0 %v4039
      %4663 = vmatmul.mubr.bf16.gmra.mxu0 %v4038
      %v4664 = vpop.f32.mrf.mxu0
      %v4665 = vadd.f32 %v4504, %v4664
      %v4666 = vpop.f32.mrf.mxu0
      %v4667 = vpop.f32.mrf.mxu0
      %v4668 = vadd.f32 %v4507, %v4667
      %v4669 = vpop.f32.mrf.mxu0
      %4670 = vmatprep.mubr.bf16.mxu0 %v4044
      %4671 = vmatmul.mubr.bf16.gmra.mxu0 %v4043
      %v4672 = vpop.f32.mrf.mxu0
      %v4673 = vadd.f32 %v4512, %v4672
      %v4674 = vpop.f32.mrf.mxu0
      %v4675 = vpop.f32.mrf.mxu0
      %v4676 = vadd.f32 %v4515, %v4675
      %v4677 = vpop.f32.mrf.mxu0
      %4678 = vmatprep.mubr.bf16.mxu0 %v4049
      %4679 = vmatmul.mubr.bf16.gmra.mxu0 %v4048
      %v4680 = vpop.f32.mrf.mxu0
      %v4681 = vadd.f32 %v4520, %v4680
      %v4682 = vpop.f32.mrf.mxu0
      %v4683 = vpop.f32.mrf.mxu0
      %v4684 = vadd.f32 %v4523, %v4683
      %v4685 = vpop.f32.mrf.mxu0
      %4686 = vmatprep.mubr.bf16.mxu0 %v4054
      %4687 = vmatmul.mubr.bf16.gmra.mxu0 %v4053
      %v4688 = vpop.f32.mrf.mxu0
      %v4689 = vadd.f32 %v4528, %v4688
      %v4690 = vpop.f32.mrf.mxu0
      %v4691 = vpop.f32.mrf.mxu0
      %v4692 = vadd.f32 %v4531, %v4691
      %v4693 = vpop.f32.mrf.mxu0
      %4694 = vmatprep.mubr.bf16.mxu0 %v4059
      %4695 = vmatmul.mubr.bf16.gmra.mxu0 %v4058
      %v4696 = vpop.f32.mrf.mxu0
      %v4697 = vadd.f32 %v4536, %v4696
      %v4698 = vpop.f32.mrf.mxu0
      %v4699 = vpop.f32.mrf.mxu0
      %v4700 = vadd.f32 %v4539, %v4699
      %v4701 = vpop.f32.mrf.mxu0
      %4702 = vdwg.mxu0
      %4703 = vmatprep.subr.bf16.mxu0 0
      %4704 = vmatpush1.bf16.msra.mxu0 %v4340
      %4705 = vmatprep.subr.bf16.mxu0 0
      %4706 = vmatpush1.bf16.msra.mxu0 %v4339
      %4707 = vmatprep.subr.bf16.mxu0 0
      %4708 = vmatpush1.bf16.msra.mxu0 %v4338
      %4709 = vmatprep.subr.bf16.mxu0 0
      %4710 = vmatpush1.bf16.msra.mxu0 %v4337
      %4711 = vmatprep.subr.bf16.mxu0 0
      %4712 = vmatpush1.bf16.msra.mxu0 %v4336
      %4713 = vmatprep.subr.bf16.mxu0 0
      %4714 = vmatpush1.bf16.msra.mxu0 %v4335
      %4715 = vmatprep.subr.bf16.mxu0 0
      %4716 = vmatpush1.bf16.msra.mxu0 %v4334
      %4717 = vmatprep.subr.bf16.mxu0 0
      %4718 = vmatpush1.bf16.msra.mxu0 %v4333
      %4719 = vmatprep.subr.bf16.mxu0 0
      %4720 = vmatpush2.bf16.msra.mxu0 0
      %4721 = vmatprep.subr.bf16.mxu0 0
      %4722 = vmatpush2.bf16.msra.mxu0 0
      %4723 = vmatprep.subr.bf16.mxu0 0
      %4724 = vmatpush2.bf16.msra.mxu0 0
      %4725 = vmatprep.subr.bf16.mxu0 0
      %4726 = vmatpush2.bf16.msra.mxu0 0
      %4727 = vmatprep.subr.bf16.mxu0 0
      %4728 = vmatpush2.bf16.msra.mxu0 0
      %4729 = vmatprep.subr.bf16.mxu0 0
      %4730 = vmatpush2.bf16.msra.mxu0 0
      %4731 = vmatprep.subr.bf16.mxu0 0
      %4732 = vmatpush2.bf16.msra.mxu0 0
      %4733 = vmatprep.subr.bf16.mxu0 0
      %4734 = vmatpush2.bf16.msra.mxu0 0
      %4735 = vmatprep.mubr.bf16.mxu0 0
      %4736 = vmatmul.mubr.bf16.gmra.mxu0 %v3985
      %v4737 = vpop.f32.mrf.mxu0
      %v4738 = vadd.f32 %v4577, %v4737
      %v4739 = vpop.f32.mrf.mxu0
      %v4740 = vpop.f32.mrf.mxu0
      %v4741 = vadd.f32 %v4580, %v4740
      %v4742 = vpop.f32.mrf.mxu0
      %4743 = vmatprep.mubr.bf16.mxu0 0
      %4744 = vmatmul.mubr.bf16.gmra.mxu0 %v3990
      %v4745 = vpop.f32.mrf.mxu0
      %v4746 = vadd.f32 %v4585, %v4745
      %v4747 = vpop.f32.mrf.mxu0
      %v4748 = vpop.f32.mrf.mxu0
      %v4749 = vadd.f32 %v4588, %v4748
      %v4750 = vpop.f32.mrf.mxu0
      %4751 = vmatprep.mubr.bf16.mxu0 0
      %4752 = vmatmul.mubr.bf16.gmra.mxu0 %v3995
      %v4753 = vpop.f32.mrf.mxu0
      %v4754 = vadd.f32 %v4593, %v4753
      %v4755 = vpop.f32.mrf.mxu0
      %v4756 = vpop.f32.mrf.mxu0
      %v4757 = vadd.f32 %v4596, %v4756
      %v4758 = vpop.f32.mrf.mxu0
      %4759 = vmatprep.mubr.bf16.mxu0 0
      %4760 = vmatmul.mubr.bf16.gmra.mxu0 %v4000
      %v4761 = vpop.f32.mrf.mxu0
      %v4762 = vadd.f32 %v4601, %v4761
      %v4763 = vpop.f32.mrf.mxu0
      %v4764 = vpop.f32.mrf.mxu0
      %v4765 = vadd.f32 %v4604, %v4764
      %v4766 = vpop.f32.mrf.mxu0
      %4767 = vmatprep.mubr.bf16.mxu0 0
      %4768 = vmatmul.mubr.bf16.gmra.mxu0 %v4005
      %v4769 = vpop.f32.mrf.mxu0
      %v4770 = vadd.f32 %v4609, %v4769
      %v4771 = vpop.f32.mrf.mxu0
      %v4772 = vpop.f32.mrf.mxu0
      %v4773 = vadd.f32 %v4612, %v4772
      %v4774 = vpop.f32.mrf.mxu0
      %4775 = vmatprep.mubr.bf16.mxu0 0
      %4776 = vmatmul.mubr.bf16.gmra.mxu0 %v4010
      %v4777 = vpop.f32.mrf.mxu0
      %v4778 = vadd.f32 %v4617, %v4777
      %v4779 = vpop.f32.mrf.mxu0
      %v4780 = vpop.f32.mrf.mxu0
      %v4781 = vadd.f32 %v4620, %v4780
      %v4782 = vpop.f32.mrf.mxu0
      %4783 = vmatprep.mubr.bf16.mxu0 0
      %4784 = vmatmul.mubr.bf16.gmra.mxu0 %v4015
      %v4785 = vpop.f32.mrf.mxu0
      %v4786 = vadd.f32 %v4625, %v4785
      %v4787 = vpop.f32.mrf.mxu0
      %v4788 = vpop.f32.mrf.mxu0
      %v4789 = vadd.f32 %v4628, %v4788
      %v4790 = vpop.f32.mrf.mxu0
      %4791 = vmatprep.mubr.bf16.mxu0 0
      %4792 = vmatmul.mubr.bf16.gmra.mxu0 %v4020
      %v4793 = vpop.f32.mrf.mxu0
      %v4794 = vadd.f32 %v4633, %v4793
      %v4795 = vpop.f32.mrf.mxu0
      %v4796 = vpop.f32.mrf.mxu0
      %v4797 = vadd.f32 %v4636, %v4796
      %v4798 = vpop.f32.mrf.mxu0
      %4799 = vmatprep.mubr.bf16.mxu0 0
      %4800 = vmatmul.mubr.bf16.gmra.mxu0 %v4025
      %v4801 = vpop.f32.mrf.mxu0
      %v4802 = vadd.f32 %v4641, %v4801
      %v4803 = vpop.f32.mrf.mxu0
      %v4804 = vpop.f32.mrf.mxu0
      %v4805 = vadd.f32 %v4644, %v4804
      %v4806 = vpop.f32.mrf.mxu0
      %4807 = vmatprep.mubr.bf16.mxu0 0
      %4808 = vmatmul.mubr.bf16.gmra.mxu0 %v4030
      %v4809 = vpop.f32.mrf.mxu0
      %v4810 = vadd.f32 %v4649, %v4809
      %v4811 = vpop.f32.mrf.mxu0
      %v4812 = vpop.f32.mrf.mxu0
      %v4813 = vadd.f32 %v4652, %v4812
      %v4814 = vpop.f32.mrf.mxu0
      %4815 = vmatprep.mubr.bf16.mxu0 0
      %4816 = vmatmul.mubr.bf16.gmra.mxu0 %v4035
      %v4817 = vpop.f32.mrf.mxu0
      %v4818 = vadd.f32 %v4657, %v4817
      %v4819 = vpop.f32.mrf.mxu0
      %v4820 = vpop.f32.mrf.mxu0
      %v4821 = vadd.f32 %v4660, %v4820
      %v4822 = vpop.f32.mrf.mxu0
      %4823 = vmatprep.mubr.bf16.mxu0 0
      %4824 = vmatmul.mubr.bf16.gmra.mxu0 %v4040
      %v4825 = vpop.f32.mrf.mxu0
      %v4826 = vadd.f32 %v4665, %v4825
      %v4827 = vpop.f32.mrf.mxu0
      %v4828 = vpop.f32.mrf.mxu0
      %v4829 = vadd.f32 %v4668, %v4828
      %v4830 = vpop.f32.mrf.mxu0
      %4831 = vmatprep.mubr.bf16.mxu0 0
      %4832 = vmatmul.mubr.bf16.gmra.mxu0 %v4045
      %v4833 = vpop.f32.mrf.mxu0
      %v4834 = vadd.f32 %v4673, %v4833
      %v4835 = vpop.f32.mrf.mxu0
      %v4836 = vpop.f32.mrf.mxu0
      %v4837 = vadd.f32 %v4676, %v4836
      %v4838 = vpop.f32.mrf.mxu0
      %4839 = vmatprep.mubr.bf16.mxu0 0
      %4840 = vmatmul.mubr.bf16.gmra.mxu0 %v4050
      %v4841 = vpop.f32.mrf.mxu0
      %v4842 = vadd.f32 %v4681, %v4841
      %v4843 = vpop.f32.mrf.mxu0
      %v4844 = vpop.f32.mrf.mxu0
      %v4845 = vadd.f32 %v4684, %v4844
      %v4846 = vpop.f32.mrf.mxu0
      %4847 = vmatprep.mubr.bf16.mxu0 0
      %4848 = vmatmul.mubr.bf16.gmra.mxu0 %v4055
      %v4849 = vpop.f32.mrf.mxu0
      %v4850 = vadd.f32 %v4689, %v4849
      %v4851 = vpop.f32.mrf.mxu0
      %v4852 = vpop.f32.mrf.mxu0
      %v4853 = vadd.f32 %v4692, %v4852
      %v4854 = vpop.f32.mrf.mxu0
      %4855 = vmatprep.mubr.bf16.mxu0 0
      %4856 = vmatmul.mubr.bf16.gmra.mxu0 %v4060
      %v4857 = vpop.f32.mrf.mxu0
      %v4858 = vadd.f32 %v4697, %v4857
      %v4859 = vpop.f32.mrf.mxu0
      %v4860 = vpop.f32.mrf.mxu0
      %v4861 = vadd.f32 %v4700, %v4860
      %v4862 = vpop.f32.mrf.mxu0
      %4863 = vdwg.mxu0
      %4864 = vst.msk [vmem:[#allocation4] sm:$0xff] %vm1063, %v4738
      %4865 = vst.msk [vmem:[#allocation4 + $0x8] sm:$0xff] %vm1063, %v4741
      %4866 = vst.msk [vmem:[#allocation4 + $0x10] sm:$0xff] %vm1063, %v4746
      %4867 = vst.msk [vmem:[#allocation4 + $0x18] sm:$0xff] %vm1063, %v4749
      %4868 = vst.msk [vmem:[#allocation4 + $0x20] sm:$0xff] %vm1063, %v4754
      %4869 = vst.msk [vmem:[#allocation4 + $0x28] sm:$0xff] %vm1063, %v4757
      %4870 = vst.msk [vmem:[#allocation4 + $0x30] sm:$0xff] %vm1063, %v4762
      %4871 = vst.msk [vmem:[#allocation4 + $0x38] sm:$0xff] %vm1063, %v4765
      %4872 = vst.msk [vmem:[#allocation4 + $0x40] sm:$0xff] %vm1063, %v4770
      %4873 = vst.msk [vmem:[#allocation4 + $0x48] sm:$0xff] %vm1063, %v4773
      %4874 = vst.msk [vmem:[#allocation4 + $0x50] sm:$0xff] %vm1063, %v4778
      %4875 = vst.msk [vmem:[#allocation4 + $0x58] sm:$0xff] %vm1063, %v4781
      %4876 = vst.msk [vmem:[#allocation4 + $0x60] sm:$0xff] %vm1063, %v4786
      %4877 = vst.msk [vmem:[#allocation4 + $0x68] sm:$0xff] %vm1063, %v4789
      %4878 = vst.msk [vmem:[#allocation4 + $0x70] sm:$0xff] %vm1063, %v4794
      %4879 = vst.msk [vmem:[#allocation4 + $0x78] sm:$0xff] %vm1063, %v4797
      %4880 = vst.msk [vmem:[#allocation4 + $0x80] sm:$0xff] %vm1063, %v4802
      %4881 = vst.msk [vmem:[#allocation4 + $0x88] sm:$0xff] %vm1063, %v4805
      %4882 = vst.msk [vmem:[#allocation4 + $0x90] sm:$0xff] %vm1063, %v4810
      %4883 = vst.msk [vmem:[#allocation4 + $0x98] sm:$0xff] %vm1063, %v4813
      %4884 = vst.msk [vmem:[#allocation4 + $0xa0] sm:$0xff] %vm1063, %v4818
      %4885 = vst.msk [vmem:[#allocation4 + $0xa8] sm:$0xff] %vm1063, %v4821
      %4886 = vst.msk [vmem:[#allocation4 + $0xb0] sm:$0xff] %vm1063, %v4826
      %4887 = vst.msk [vmem:[#allocation4 + $0xb8] sm:$0xff] %vm1063, %v4829
      %4888 = vst.msk [vmem:[#allocation4 + $0xc0] sm:$0xff] %vm1063, %v4834
      %4889 = vst.msk [vmem:[#allocation4 + $0xc8] sm:$0xff] %vm1063, %v4837
      %4890 = vst.msk [vmem:[#allocation4 + $0xd0] sm:$0xff] %vm1063, %v4842
      %4891 = vst.msk [vmem:[#allocation4 + $0xd8] sm:$0xff] %vm1063, %v4845
      %4892 = vst.msk [vmem:[#allocation4 + $0xe0] sm:$0xff] %vm1063, %v4850
      %4893 = vst.msk [vmem:[#allocation4 + $0xe8] sm:$0xff] %vm1063, %v4853
      %4894 = vst.msk [vmem:[#allocation4 + $0xf0] sm:$0xff] %vm1063, %v4858
      %4895 = vst.msk [vmem:[#allocation4 + $0xf8] sm:$0xff] %vm1063, %v4861
      %v4896 = vld [vmem:[%s2] sm:$0x1]
      %v4897 = vld [vmem:[%s3] sm:$0x1]
      %v4898 = vld [vmem:[#allocation4] sm:$0xff]
      %v4899 = vld [vmem:[#allocation4 + $0x8] sm:$0xff]
      %v4900 = vld [vmem:[#allocation4 + $0x10] sm:$0xff]
      %v4901 = vld [vmem:[#allocation4 + $0x18] sm:$0xff]
      %v4902 = vld [vmem:[#allocation4 + $0x20] sm:$0xff]
      %v4903 = vld [vmem:[#allocation4 + $0x28] sm:$0xff]
      %v4904 = vld [vmem:[#allocation4 + $0x30] sm:$0xff]
      %v4905 = vld [vmem:[#allocation4 + $0x38] sm:$0xff]
      %v4906 = vld [vmem:[#allocation4 + $0x40] sm:$0xff]
      %v4907 = vld [vmem:[#allocation4 + $0x48] sm:$0xff]
      %v4908 = vld [vmem:[#allocation4 + $0x50] sm:$0xff]
      %v4909 = vld [vmem:[#allocation4 + $0x58] sm:$0xff]
      %v4910 = vld [vmem:[#allocation4 + $0x60] sm:$0xff]
      %v4911 = vld [vmem:[#allocation4 + $0x68] sm:$0xff]
      %v4912 = vld [vmem:[#allocation4 + $0x70] sm:$0xff]
      %v4913 = vld [vmem:[#allocation4 + $0x78] sm:$0xff]
      %v4914 = vld [vmem:[#allocation4 + $0x80] sm:$0xff]
      %v4915 = vld [vmem:[#allocation4 + $0x88] sm:$0xff]
      %v4916 = vld [vmem:[#allocation4 + $0x90] sm:$0xff]
      %v4917 = vld [vmem:[#allocation4 + $0x98] sm:$0xff]
      %v4918 = vld [vmem:[#allocation4 + $0xa0] sm:$0xff]
      %v4919 = vld [vmem:[#allocation4 + $0xa8] sm:$0xff]
      %v4920 = vld [vmem:[#allocation4 + $0xb0] sm:$0xff]
      %v4921 = vld [vmem:[#allocation4 + $0xb8] sm:$0xff]
      %v4922 = vld [vmem:[#allocation4 + $0xc0] sm:$0xff]
      %v4923 = vld [vmem:[#allocation4 + $0xc8] sm:$0xff]
      %v4924 = vld [vmem:[#allocation4 + $0xd0] sm:$0xff]
      %v4925 = vld [vmem:[#allocation4 + $0xd8] sm:$0xff]
      %v4926 = vld [vmem:[#allocation4 + $0xe0] sm:$0xff]
      %v4927 = vld [vmem:[#allocation4 + $0xe8] sm:$0xff]
      %v4928 = vld [vmem:[#allocation4 + $0xf0] sm:$0xff]
      %v4929 = vld [vmem:[#allocation4 + $0xf8] sm:$0xff]
      %v4930 = vsel %vm1063, %v4898, 0.0
      %v4931 = vsel %vm1063, %v4899, 0.0
      %v4932 = vadd.f32 %v4930, %v4931
      %v4933 = vsel %vm1063, %v4900, 0.0
      %v4934 = vadd.f32 %v4932, %v4933
      %v4935 = vsel %vm1063, %v4901, 0.0
      %v4936 = vadd.f32 %v4934, %v4935
      %v4937 = vsel %vm1063, %v4902, 0.0
      %v4938 = vadd.f32 %v4936, %v4937
      %v4939 = vsel %vm1063, %v4903, 0.0
      %v4940 = vadd.f32 %v4938, %v4939
      %v4941 = vsel %vm1063, %v4904, 0.0
      %v4942 = vadd.f32 %v4940, %v4941
      %v4943 = vsel %vm1063, %v4905, 0.0
      %v4944 = vadd.f32 %v4942, %v4943
      %v4945 = vsel %vm1063, %v4906, 0.0
      %v4946 = vadd.f32 %v4944, %v4945
      %v4947 = vsel %vm1063, %v4907, 0.0
      %v4948 = vadd.f32 %v4946, %v4947
      %v4949 = vsel %vm1063, %v4908, 0.0
      %v4950 = vadd.f32 %v4948, %v4949
      %v4951 = vsel %vm1063, %v4909, 0.0
      %v4952 = vadd.f32 %v4950, %v4951
      %v4953 = vsel %vm1063, %v4910, 0.0
      %v4954 = vadd.f32 %v4952, %v4953
      %v4955 = vsel %vm1063, %v4911, 0.0
      %v4956 = vadd.f32 %v4954, %v4955
      %v4957 = vsel %vm1063, %v4912, 0.0
      %v4958 = vadd.f32 %v4956, %v4957
      %v4959 = vsel %vm1063, %v4913, 0.0
      %v4960 = vadd.f32 %v4958, %v4959
      %v4961 = vsel %vm1063, %v4914, 0.0
      %v4962 = vadd.f32 %v4960, %v4961
      %v4963 = vsel %vm1063, %v4915, 0.0
      %v4964 = vadd.f32 %v4962, %v4963
      %v4965 = vsel %vm1063, %v4916, 0.0
      %v4966 = vadd.f32 %v4964, %v4965
      %v4967 = vsel %vm1063, %v4917, 0.0
      %v4968 = vadd.f32 %v4966, %v4967
      %v4969 = vsel %vm1063, %v4918, 0.0
      %v4970 = vadd.f32 %v4968, %v4969
      %v4971 = vsel %vm1063, %v4919, 0.0
      %v4972 = vadd.f32 %v4970, %v4971
      %v4973 = vsel %vm1063, %v4920, 0.0
      %v4974 = vadd.f32 %v4972, %v4973
      %v4975 = vsel %vm1063, %v4921, 0.0
      %v4976 = vadd.f32 %v4974, %v4975
      %v4977 = vsel %vm1063, %v4922, 0.0
      %v4978 = vadd.f32 %v4976, %v4977
      %v4979 = vsel %vm1063, %v4923, 0.0
      %v4980 = vadd.f32 %v4978, %v4979
      %v4981 = vsel %vm1063, %v4924, 0.0
      %v4982 = vadd.f32 %v4980, %v4981
      %v4983 = vsel %vm1063, %v4925, 0.0
      %v4984 = vadd.f32 %v4982, %v4983
      %v4985 = vsel %vm1063, %v4926, 0.0
      %v4986 = vadd.f32 %v4984, %v4985
      %v4987 = vsel %vm1063, %v4927, 0.0
      %v4988 = vadd.f32 %v4986, %v4987
      %v4989 = vsel %vm1063, %v4928, 0.0
      %v4990 = vadd.f32 %v4988, %v4989
      %v4991 = vsel %vm1063, %v4929, 0.0
      %v4992 = vadd.f32 %v4990, %v4991
      %v4993 = vrot.slane %v4992, 4
      %v4994 = vadd.f32 %v4992, %v4993
      %v4995 = vrot.slane %v4994, 2
      %v4996 = vadd.f32 %v4994, %v4995
      %v4997 = vrot.slane %v4996, 1
      %v4998 = vadd.f32 %v4996, %v4997
      %v4999 = vmul.f32 %v4998, 0.00390625
      %v5000 = vmul.f32 %v4898, %v4898
      %v5001 = vmul.f32 %v4899, %v4899
      %v5002 = vmul.f32 %v4900, %v4900
      %v5003 = vmul.f32 %v4901, %v4901
      %v5004 = vmul.f32 %v4902, %v4902
      %v5005 = vmul.f32 %v4903, %v4903
      %v5006 = vmul.f32 %v4904, %v4904
      %v5007 = vmul.f32 %v4905, %v4905
      %v5008 = vmul.f32 %v4906, %v4906
      %v5009 = vmul.f32 %v4907, %v4907
      %v5010 = vmul.f32 %v4908, %v4908
      %v5011 = vmul.f32 %v4909, %v4909
      %v5012 = vmul.f32 %v4910, %v4910
      %v5013 = vmul.f32 %v4911, %v4911
      %v5014 = vmul.f32 %v4912, %v4912
      %v5015 = vmul.f32 %v4913, %v4913
      %v5016 = vmul.f32 %v4914, %v4914
      %v5017 = vmul.f32 %v4915, %v4915
      %v5018 = vmul.f32 %v4916, %v4916
      %v5019 = vmul.f32 %v4917, %v4917
      %v5020 = vmul.f32 %v4918, %v4918
      %v5021 = vmul.f32 %v4919, %v4919
      %v5022 = vmul.f32 %v4920, %v4920
      %v5023 = vmul.f32 %v4921, %v4921
      %v5024 = vmul.f32 %v4922, %v4922
      %v5025 = vmul.f32 %v4923, %v4923
      %v5026 = vmul.f32 %v4924, %v4924
      %v5027 = vmul.f32 %v4925, %v4925
      %v5028 = vmul.f32 %v4926, %v4926
      %v5029 = vmul.f32 %v4927, %v4927
      %v5030 = vmul.f32 %v4928, %v4928
      %v5031 = vmul.f32 %v4929, %v4929
      %v5032 = vsel %vm1063, %v5000, 0.0
      %v5033 = vsel %vm1063, %v5001, 0.0
      %v5034 = vadd.f32 %v5032, %v5033
      %v5035 = vsel %vm1063, %v5002, 0.0
      %v5036 = vadd.f32 %v5034, %v5035
      %v5037 = vsel %vm1063, %v5003, 0.0
      %v5038 = vadd.f32 %v5036, %v5037
      %v5039 = vsel %vm1063, %v5004, 0.0
      %v5040 = vadd.f32 %v5038, %v5039
      %v5041 = vsel %vm1063, %v5005, 0.0
      %v5042 = vadd.f32 %v5040, %v5041
      %v5043 = vsel %vm1063, %v5006, 0.0
      %v5044 = vadd.f32 %v5042, %v5043
      %v5045 = vsel %vm1063, %v5007, 0.0
      %v5046 = vadd.f32 %v5044, %v5045
      %v5047 = vsel %vm1063, %v5008, 0.0
      %v5048 = vadd.f32 %v5046, %v5047
      %v5049 = vsel %vm1063, %v5009, 0.0
      %v5050 = vadd.f32 %v5048, %v5049
      %v5051 = vsel %vm1063, %v5010, 0.0
      %v5052 = vadd.f32 %v5050, %v5051
      %v5053 = vsel %vm1063, %v5011, 0.0
      %v5054 = vadd.f32 %v5052, %v5053
      %v5055 = vsel %vm1063, %v5012, 0.0
      %v5056 = vadd.f32 %v5054, %v5055
      %v5057 = vsel %vm1063, %v5013, 0.0
      %v5058 = vadd.f32 %v5056, %v5057
      %v5059 = vsel %vm1063, %v5014, 0.0
      %v5060 = vadd.f32 %v5058, %v5059
      %v5061 = vsel %vm1063, %v5015, 0.0
      %v5062 = vadd.f32 %v5060, %v5061
      %v5063 = vsel %vm1063, %v5016, 0.0
      %v5064 = vadd.f32 %v5062, %v5063
      %v5065 = vsel %vm1063, %v5017, 0.0
      %v5066 = vadd.f32 %v5064, %v5065
      %v5067 = vsel %vm1063, %v5018, 0.0
      %v5068 = vadd.f32 %v5066, %v5067
      %v5069 = vsel %vm1063, %v5019, 0.0
      %v5070 = vadd.f32 %v5068, %v5069
      %v5071 = vsel %vm1063, %v5020, 0.0
      %v5072 = vadd.f32 %v5070, %v5071
      %v5073 = vsel %vm1063, %v5021, 0.0
      %v5074 = vadd.f32 %v5072, %v5073
      %v5075 = vsel %vm1063, %v5022, 0.0
      %v5076 = vadd.f32 %v5074, %v5075
      %v5077 = vsel %vm1063, %v5023, 0.0
      %v5078 = vadd.f32 %v5076, %v5077
      %v5079 = vsel %vm1063, %v5024, 0.0
      %v5080 = vadd.f32 %v5078, %v5079
      %v5081 = vsel %vm1063, %v5025, 0.0
      %v5082 = vadd.f32 %v5080, %v5081
      %v5083 = vsel %vm1063, %v5026, 0.0
      %v5084 = vadd.f32 %v5082, %v5083
      %v5085 = vsel %vm1063, %v5027, 0.0
      %v5086 = vadd.f32 %v5084, %v5085
      %v5087 = vsel %vm1063, %v5028, 0.0
      %v5088 = vadd.f32 %v5086, %v5087
      %v5089 = vsel %vm1063, %v5029, 0.0
      %v5090 = vadd.f32 %v5088, %v5089
      %v5091 = vsel %vm1063, %v5030, 0.0
      %v5092 = vadd.f32 %v5090, %v5091
      %v5093 = vsel %vm1063, %v5031, 0.0
      %v5094 = vadd.f32 %v5092, %v5093
      %v5095 = vrot.slane %v5094, 4
      %v5096 = vadd.f32 %v5094, %v5095
      %v5097 = vrot.slane %v5096, 2
      %v5098 = vadd.f32 %v5096, %v5097
      %v5099 = vrot.slane %v5098, 1
      %v5100 = vadd.f32 %v5098, %v5099
      %v5101 = vmul.f32 %v5100, 0.00390625
      %v5102 = vmul.f32 %v4999, %v4999
      %v5103 = vsub.f32 %v5101, %v5102
      %v5104 = vmax.f32 %v5103, 0.0
      %v5105 = vadd.f32 %v5104, 1e-05
      %v5106 = vrsqrt.pop %v5105
      %v5107 = vmul.f32 %v4896, %v5106
      %v5108 = vmul.f32 %v4999, %v5107
      %v5109 = vsub.f32 %v4897, %v5108
      %v5111 = vlaneseq
      %v5112 = vshrl.u32 %v5111, 7
      %v5113 = vsub.s32 0, %v5112
      %v5114 = vrot.slane %v5107, %v5113
      %v5116 = vmul.f32 %v4898, %v5114
      %v5117 = vmul.f32 %v4899, %v5114
      %v5118 = vmul.f32 %v4900, %v5114
      %v5119 = vmul.f32 %v4901, %v5114
      %v5120 = vmul.f32 %v4902, %v5114
      %v5121 = vmul.f32 %v4903, %v5114
      %v5122 = vmul.f32 %v4904, %v5114
      %v5123 = vmul.f32 %v4905, %v5114
      %v5124 = vmul.f32 %v4906, %v5114
      %v5125 = vmul.f32 %v4907, %v5114
      %v5126 = vmul.f32 %v4908, %v5114
      %v5127 = vmul.f32 %v4909, %v5114
      %v5128 = vmul.f32 %v4910, %v5114
      %v5129 = vmul.f32 %v4911, %v5114
      %v5130 = vmul.f32 %v4912, %v5114
      %v5131 = vmul.f32 %v4913, %v5114
      %v5132 = vmul.f32 %v4914, %v5114
      %v5133 = vmul.f32 %v4915, %v5114
      %v5134 = vmul.f32 %v4916, %v5114
      %v5135 = vmul.f32 %v4917, %v5114
      %v5136 = vmul.f32 %v4918, %v5114
      %v5137 = vmul.f32 %v4919, %v5114
      %v5138 = vmul.f32 %v4920, %v5114
      %v5139 = vmul.f32 %v4921, %v5114
      %v5140 = vmul.f32 %v4922, %v5114
      %v5141 = vmul.f32 %v4923, %v5114
      %v5142 = vmul.f32 %v4924, %v5114
      %v5143 = vmul.f32 %v4925, %v5114
      %v5144 = vmul.f32 %v4926, %v5114
      %v5145 = vmul.f32 %v4927, %v5114
      %v5146 = vmul.f32 %v4928, %v5114
      %v5147 = vmul.f32 %v4929, %v5114
      %v5149 = vlaneseq
      %v5150 = vshrl.u32 %v5149, 7
      %v5151 = vsub.s32 0, %v5150
      %v5152 = vrot.slane %v5109, %v5151
      %v5154 = vadd.f32 %v5116, %v5152
      %v5155 = vadd.f32 %v5117, %v5152
      %v5156 = vadd.f32 %v5118, %v5152
      %v5157 = vadd.f32 %v5119, %v5152
      %v5158 = vadd.f32 %v5120, %v5152
      %v5159 = vadd.f32 %v5121, %v5152
      %v5160 = vadd.f32 %v5122, %v5152
      %v5161 = vadd.f32 %v5123, %v5152
      %v5162 = vadd.f32 %v5124, %v5152
      %v5163 = vadd.f32 %v5125, %v5152
      %v5164 = vadd.f32 %v5126, %v5152
      %v5165 = vadd.f32 %v5127, %v5152
      %v5166 = vadd.f32 %v5128, %v5152
      %v5167 = vadd.f32 %v5129, %v5152
      %v5168 = vadd.f32 %v5130, %v5152
      %v5169 = vadd.f32 %v5131, %v5152
      %v5170 = vadd.f32 %v5132, %v5152
      %v5171 = vadd.f32 %v5133, %v5152
      %v5172 = vadd.f32 %v5134, %v5152
      %v5173 = vadd.f32 %v5135, %v5152
      %v5174 = vadd.f32 %v5136, %v5152
      %v5175 = vadd.f32 %v5137, %v5152
      %v5176 = vadd.f32 %v5138, %v5152
      %v5177 = vadd.f32 %v5139, %v5152
      %v5178 = vadd.f32 %v5140, %v5152
      %v5179 = vadd.f32 %v5141, %v5152
      %v5180 = vadd.f32 %v5142, %v5152
      %v5181 = vadd.f32 %v5143, %v5152
      %v5182 = vadd.f32 %v5144, %v5152
      %v5183 = vadd.f32 %v5145, %v5152
      %v5184 = vadd.f32 %v5146, %v5152
      %v5185 = vadd.f32 %v5147, %v5152
      %v5186 = vmax.f32 %v5154, 0.0
      %v5187 = vmax.f32 %v5155, 0.0
      %v5188 = vmax.f32 %v5156, 0.0
      %v5189 = vmax.f32 %v5157, 0.0
      %v5190 = vmax.f32 %v5158, 0.0
      %v5191 = vmax.f32 %v5159, 0.0
      %v5192 = vmax.f32 %v5160, 0.0
      %v5193 = vmax.f32 %v5161, 0.0
      %v5194 = vmax.f32 %v5162, 0.0
      %v5195 = vmax.f32 %v5163, 0.0
      %v5196 = vmax.f32 %v5164, 0.0
      %v5197 = vmax.f32 %v5165, 0.0
      %v5198 = vmax.f32 %v5166, 0.0
      %v5199 = vmax.f32 %v5167, 0.0
      %v5200 = vmax.f32 %v5168, 0.0
      %v5201 = vmax.f32 %v5169, 0.0
      %v5202 = vmax.f32 %v5170, 0.0
      %v5203 = vmax.f32 %v5171, 0.0
      %v5204 = vmax.f32 %v5172, 0.0
      %v5205 = vmax.f32 %v5173, 0.0
      %v5206 = vmax.f32 %v5174, 0.0
      %v5207 = vmax.f32 %v5175, 0.0
      %v5208 = vmax.f32 %v5176, 0.0
      %v5209 = vmax.f32 %v5177, 0.0
      %v5210 = vmax.f32 %v5178, 0.0
      %v5211 = vmax.f32 %v5179, 0.0
      %v5212 = vmax.f32 %v5180, 0.0
      %v5213 = vmax.f32 %v5181, 0.0
      %v5214 = vmax.f32 %v5182, 0.0
      %v5215 = vmax.f32 %v5183, 0.0
      %v5216 = vmax.f32 %v5184, 0.0
      %v5217 = vmax.f32 %v5185, 0.0
      %v5218 = vpack.c.bf16 %v5187, %v5186
      %v5219 = vpack.c.bf16 %v5189, %v5188
      %v5220 = vpack.c.bf16 %v5191, %v5190
      %v5221 = vpack.c.bf16 %v5193, %v5192
      %v5222 = vpack.c.bf16 %v5195, %v5194
      %v5223 = vpack.c.bf16 %v5197, %v5196
      %v5224 = vpack.c.bf16 %v5199, %v5198
      %v5225 = vpack.c.bf16 %v5201, %v5200
      %v5226 = vpack.c.bf16 %v5203, %v5202
      %v5227 = vpack.c.bf16 %v5205, %v5204
      %v5228 = vpack.c.bf16 %v5207, %v5206
      %v5229 = vpack.c.bf16 %v5209, %v5208
      %v5230 = vpack.c.bf16 %v5211, %v5210
      %v5231 = vpack.c.bf16 %v5213, %v5212
      %v5232 = vpack.c.bf16 %v5215, %v5214
      %v5233 = vpack.c.bf16 %v5217, %v5216
      %v5250 = vunpack.c.l.b16 %v5218
      %v5251 = vunpack.c.h.b16 %v5218
      %v5252 = vunpack.c.l.b16 %v5219
      %v5253 = vunpack.c.h.b16 %v5219
      %v5254 = vunpack.c.l.b16 %v5220
      %v5255 = vunpack.c.h.b16 %v5220
      %v5256 = vunpack.c.l.b16 %v5221
      %v5257 = vunpack.c.h.b16 %v5221
      %v5258 = vunpack.c.l.b16 %v5222
      %v5259 = vunpack.c.h.b16 %v5222
      %v5260 = vunpack.c.l.b16 %v5223
      %v5261 = vunpack.c.h.b16 %v5223
      %v5262 = vunpack.c.l.b16 %v5224
      %v5263 = vunpack.c.h.b16 %v5224
      %v5264 = vunpack.c.l.b16 %v5225
      %v5265 = vunpack.c.h.b16 %v5225
      %v5266 = vunpack.c.l.b16 %v5226
      %v5267 = vunpack.c.h.b16 %v5226
      %v5268 = vunpack.c.l.b16 %v5227
      %v5269 = vunpack.c.h.b16 %v5227
      %v5270 = vunpack.c.l.b16 %v5228
      %v5271 = vunpack.c.h.b16 %v5228
      %v5272 = vunpack.c.l.b16 %v5229
      %v5273 = vunpack.c.h.b16 %v5229
      %v5274 = vunpack.c.l.b16 %v5230
      %v5275 = vunpack.c.h.b16 %v5230
      %v5276 = vunpack.c.l.b16 %v5231
      %v5277 = vunpack.c.h.b16 %v5231
      %v5278 = vunpack.c.l.b16 %v5232
      %v5279 = vunpack.c.h.b16 %v5232
      %v5280 = vunpack.c.l.b16 %v5233
      %v5281 = vunpack.c.h.b16 %v5233
      %v5282 = vpack.c.b16 %v5250, %v5250
      %v5283 = vpack.c.b16 %v5251, %v5251
      %v5284 = vpack.c.b16 %v5252, %v5252
      %v5285 = vpack.c.b16 %v5253, %v5253
      %v5286 = vpack.c.b16 %v5254, %v5254
      %v5287 = vpack.c.b16 %v5255, %v5255
      %v5288 = vpack.c.b16 %v5256, %v5256
      %v5289 = vpack.c.b16 %v5257, %v5257
      %v5290 = vpack.c.b16 %v5258, %v5258
      %v5291 = vpack.c.b16 %v5259, %v5259
      %v5292 = vpack.c.b16 %v5260, %v5260
      %v5293 = vpack.c.b16 %v5261, %v5261
      %v5294 = vpack.c.b16 %v5262, %v5262
      %v5295 = vpack.c.b16 %v5263, %v5263
      %v5296 = vpack.c.b16 %v5264, %v5264
      %v5297 = vpack.c.b16 %v5265, %v5265
      %v5298 = vpack.c.b16 %v5266, %v5266
      %v5299 = vpack.c.b16 %v5267, %v5267
      %v5300 = vpack.c.b16 %v5268, %v5268
      %v5301 = vpack.c.b16 %v5269, %v5269
      %v5302 = vpack.c.b16 %v5270, %v5270
      %v5303 = vpack.c.b16 %v5271, %v5271
      %v5304 = vpack.c.b16 %v5272, %v5272
      %v5305 = vpack.c.b16 %v5273, %v5273
      %v5306 = vpack.c.b16 %v5274, %v5274
      %v5307 = vpack.c.b16 %v5275, %v5275
      %v5308 = vpack.c.b16 %v5276, %v5276
      %v5309 = vpack.c.b16 %v5277, %v5277
      %v5310 = vpack.c.b16 %v5278, %v5278
      %v5311 = vpack.c.b16 %v5279, %v5279
      %v5312 = vpack.c.b16 %v5280, %v5280
      %v5313 = vpack.c.b16 %v5281, %v5281
      %v5314 = vrot.slane %v5282, 7
      %v5315 = vrot.slane %v5314, 4
      %v5316 = vrot.slane %v5283, 7
      %v5317 = vsel %vm514, %v5315, %v5316
      %v5318 = vrot.slane %v5316, 4
      %v5319 = vrot.slane %v5284, 7
      %v5320 = vrot.slane %v5319, 4
      %v5321 = vrot.slane %v5285, 7
      %v5322 = vsel %vm514, %v5320, %v5321
      %v5323 = vrot.slane %v5321, 4
      %v5324 = vrot.slane %v5286, 7
      %v5325 = vrot.slane %v5324, 4
      %v5326 = vrot.slane %v5287, 7
      %v5327 = vsel %vm514, %v5325, %v5326
      %v5328 = vrot.slane %v5326, 4
      %v5329 = vrot.slane %v5288, 7
      %v5330 = vrot.slane %v5329, 4
      %v5331 = vrot.slane %v5289, 7
      %v5332 = vsel %vm514, %v5330, %v5331
      %v5333 = vrot.slane %v5331, 4
      %v5334 = vrot.slane %v5290, 7
      %v5335 = vrot.slane %v5334, 4
      %v5336 = vrot.slane %v5291, 7
      %v5337 = vsel %vm514, %v5335, %v5336
      %v5338 = vrot.slane %v5336, 4
      %v5339 = vrot.slane %v5292, 7
      %v5340 = vrot.slane %v5339, 4
      %v5341 = vrot.slane %v5293, 7
      %v5342 = vsel %vm514, %v5340, %v5341
      %v5343 = vrot.slane %v5341, 4
      %v5344 = vrot.slane %v5294, 7
      %v5345 = vrot.slane %v5344, 4
      %v5346 = vrot.slane %v5295, 7
      %v5347 = vsel %vm514, %v5345, %v5346
      %v5348 = vrot.slane %v5346, 4
      %v5349 = vrot.slane %v5296, 7
      %v5350 = vrot.slane %v5349, 4
      %v5351 = vrot.slane %v5297, 7
      %v5352 = vsel %vm514, %v5350, %v5351
      %v5353 = vrot.slane %v5351, 4
      %v5354 = vrot.slane %v5298, 7
      %v5355 = vrot.slane %v5354, 4
      %v5356 = vrot.slane %v5299, 7
      %v5357 = vsel %vm514, %v5355, %v5356
      %v5358 = vrot.slane %v5356, 4
      %v5359 = vrot.slane %v5300, 7
      %v5360 = vrot.slane %v5359, 4
      %v5361 = vrot.slane %v5301, 7
      %v5362 = vsel %vm514, %v5360, %v5361
      %v5363 = vrot.slane %v5361, 4
      %v5364 = vrot.slane %v5302, 7
      %v5365 = vrot.slane %v5364, 4
      %v5366 = vrot.slane %v5303, 7
      %v5367 = vsel %vm514, %v5365, %v5366
      %v5368 = vrot.slane %v5366, 4
      %v5369 = vrot.slane %v5304, 7
      %v5370 = vrot.slane %v5369, 4
      %v5371 = vrot.slane %v5305, 7
      %v5372 = vsel %vm514, %v5370, %v5371
      %v5373 = vrot.slane %v5371, 4
      %v5374 = vrot.slane %v5306, 7
      %v5375 = vrot.slane %v5374, 4
      %v5376 = vrot.slane %v5307, 7
      %v5377 = vsel %vm514, %v5375, %v5376
      %v5378 = vrot.slane %v5376, 4
      %v5379 = vrot.slane %v5308, 7
      %v5380 = vrot.slane %v5379, 4
      %v5381 = vrot.slane %v5309, 7
      %v5382 = vsel %vm514, %v5380, %v5381
      %v5383 = vrot.slane %v5381, 4
      %v5384 = vrot.slane %v5310, 7
      %v5385 = vrot.slane %v5384, 4
      %v5386 = vrot.slane %v5311, 7
      %v5387 = vsel %vm514, %v5385, %v5386
      %v5388 = vrot.slane %v5386, 4
      %v5389 = vrot.slane %v5312, 7
      %v5390 = vrot.slane %v5389, 4
      %v5391 = vrot.slane %v5313, 7
      %v5392 = vsel %vm514, %v5390, %v5391
      %v5393 = vrot.slane %v5391, 4
      %5442 = vst.msk [vmem:[%s349] sm:$0xe] %vm643, %v5314
      %5443 = vst.msk [vmem:[%s349 + $0x4] sm:$0xf] %vm334, %v5317
      %5444 = vst.msk [vmem:[%s349 + $0x8] sm:$0x1] %vm350, %v5318
      %5445 = vst.msk [vmem:[%s349 + $0xc] sm:$0xe] %vm643, %v5319
      %5446 = vst.msk [vmem:[%s349 + $0x10] sm:$0xf] %vm334, %v5322
      %5447 = vst.msk [vmem:[%s349 + $0x14] sm:$0x1] %vm350, %v5323
      %5448 = vst.msk [vmem:[%s349 + $0x18] sm:$0xe] %vm643, %v5324
      %5449 = vst.msk [vmem:[%s349 + $0x1c] sm:$0xf] %vm334, %v5327
      %5450 = vst.msk [vmem:[%s349 + $0x20] sm:$0x1] %vm350, %v5328
      %5451 = vst.msk [vmem:[%s349 + $0x24] sm:$0xe] %vm643, %v5329
      %5452 = vst.msk [vmem:[%s349 + $0x28] sm:$0xf] %vm334, %v5332
      %5453 = vst.msk [vmem:[%s349 + $0x2c] sm:$0x1] %vm350, %v5333
      %5454 = vst.msk [vmem:[%s349 + $0x30] sm:$0xe] %vm643, %v5334
      %5455 = vst.msk [vmem:[%s349 + $0x34] sm:$0xf] %vm334, %v5337
      %5456 = vst.msk [vmem:[%s349 + $0x38] sm:$0x1] %vm350, %v5338
      %5457 = vst.msk [vmem:[%s349 + $0x3c] sm:$0xe] %vm643, %v5339
      %5458 = vst.msk [vmem:[%s349 + $0x40] sm:$0xf] %vm334, %v5342
      %5459 = vst.msk [vmem:[%s349 + $0x44] sm:$0x1] %vm350, %v5343
      %5460 = vst.msk [vmem:[%s349 + $0x48] sm:$0xe] %vm643, %v5344
      %5461 = vst.msk [vmem:[%s349 + $0x4c] sm:$0xf] %vm334, %v5347
      %5462 = vst.msk [vmem:[%s349 + $0x50] sm:$0x1] %vm350, %v5348
      %5463 = vst.msk [vmem:[%s349 + $0x54] sm:$0xe] %vm643, %v5349
      %5464 = vst.msk [vmem:[%s349 + $0x58] sm:$0xf] %vm334, %v5352
      %5465 = vst.msk [vmem:[%s349 + $0x5c] sm:$0x1] %vm350, %v5353
      %5466 = vst.msk [vmem:[%s349 + $0x60] sm:$0xe] %vm643, %v5354
      %5467 = vst.msk [vmem:[%s349 + $0x64] sm:$0xf] %vm334, %v5357
      %5468 = vst.msk [vmem:[%s349 + $0x68] sm:$0x1] %vm350, %v5358
      %5469 = vst.msk [vmem:[%s349 + $0x6c] sm:$0xe] %vm643, %v5359
      %5470 = vst.msk [vmem:[%s349 + $0x70] sm:$0xf] %vm334, %v5362
      %5471 = vst.msk [vmem:[%s349 + $0x74] sm:$0x1] %vm350, %v5363
      %5472 = vst.msk [vmem:[%s349 + $0x78] sm:$0xe] %vm643, %v5364
      %5473 = vst.msk [vmem:[%s349 + $0x7c] sm:$0xf] %vm334, %v5367
      %5474 = vst.msk [vmem:[%s349 + $0x80] sm:$0x1] %vm350, %v5368
      %5475 = vst.msk [vmem:[%s349 + $0x84] sm:$0xe] %vm643, %v5369
      %5476 = vst.msk [vmem:[%s349 + $0x88] sm:$0xf] %vm334, %v5372
      %5477 = vst.msk [vmem:[%s349 + $0x8c] sm:$0x1] %vm350, %v5373
      %5478 = vst.msk [vmem:[%s349 + $0x90] sm:$0xe] %vm643, %v5374
      %5479 = vst.msk [vmem:[%s349 + $0x94] sm:$0xf] %vm334, %v5377
      %5480 = vst.msk [vmem:[%s349 + $0x98] sm:$0x1] %vm350, %v5378
      %5481 = vst.msk [vmem:[%s349 + $0x9c] sm:$0xe] %vm643, %v5379
      %5482 = vst.msk [vmem:[%s349 + $0xa0] sm:$0xf] %vm334, %v5382
      %5483 = vst.msk [vmem:[%s349 + $0xa4] sm:$0x1] %vm350, %v5383
      %5484 = vst.msk [vmem:[%s349 + $0xa8] sm:$0xe] %vm643, %v5384
      %5485 = vst.msk [vmem:[%s349 + $0xac] sm:$0xf] %vm334, %v5387
      %5486 = vst.msk [vmem:[%s349 + $0xb0] sm:$0x1] %vm350, %v5388
      %5487 = vst.msk [vmem:[%s349 + $0xb4] sm:$0xe] %vm643, %v5389
      %5488 = vst.msk [vmem:[%s349 + $0xb8] sm:$0xf] %vm334, %v5392
      %5489 = vst.msk [vmem:[%s349 + $0xbc] sm:$0x1] %vm350, %v5393
      %v5490 = vld [vmem:[#allocation2] sm:$0xf]
      %v5491 = vld [vmem:[#allocation2 + $0x4] sm:$0xf]
      %v5492 = vld [vmem:[#allocation2 + $0xc] sm:$0xf]
      %v5493 = vld [vmem:[#allocation2 + $0x10] sm:$0xf]
      %v5494 = vld [vmem:[#allocation2 + $0x18] sm:$0xf]
      %v5495 = vld [vmem:[#allocation2 + $0x1c] sm:$0xf]
      %v5496 = vld [vmem:[#allocation2 + $0x24] sm:$0xf]
      %v5497 = vld [vmem:[#allocation2 + $0x28] sm:$0xf]
      %v5498 = vld [vmem:[#allocation2 + $0x30] sm:$0xf]
      %v5499 = vld [vmem:[#allocation2 + $0x34] sm:$0xf]
      %v5500 = vld [vmem:[#allocation2 + $0x3c] sm:$0xf]
      %v5501 = vld [vmem:[#allocation2 + $0x40] sm:$0xf]
      %v5502 = vld [vmem:[#allocation2 + $0x48] sm:$0xf]
      %v5503 = vld [vmem:[#allocation2 + $0x4c] sm:$0xf]
      %v5504 = vld [vmem:[#allocation2 + $0x54] sm:$0xf]
      %v5505 = vld [vmem:[#allocation2 + $0x58] sm:$0xf]
      %v5506 = vld [vmem:[#allocation2 + $0x60] sm:$0xf]
      %v5507 = vld [vmem:[#allocation2 + $0x64] sm:$0xf]
      %v5508 = vld [vmem:[#allocation2 + $0x6c] sm:$0xf]
      %v5509 = vld [vmem:[#allocation2 + $0x70] sm:$0xf]
      %v5510 = vld [vmem:[#allocation2 + $0x78] sm:$0xf]
      %v5511 = vld [vmem:[#allocation2 + $0x7c] sm:$0xf]
      %v5512 = vld [vmem:[#allocation2 + $0x84] sm:$0xf]
      %v5513 = vld [vmem:[#allocation2 + $0x88] sm:$0xf]
      %v5514 = vld [vmem:[#allocation2 + $0x90] sm:$0xf]
      %v5515 = vld [vmem:[#allocation2 + $0x94] sm:$0xf]
      %v5516 = vld [vmem:[#allocation2 + $0x9c] sm:$0xf]
      %v5517 = vld [vmem:[#allocation2 + $0xa0] sm:$0xf]
      %v5518 = vld [vmem:[#allocation2 + $0xa8] sm:$0xf]
      %v5519 = vld [vmem:[#allocation2 + $0xac] sm:$0xf]
      %v5520 = vld [vmem:[#allocation2 + $0xb4] sm:$0xf]
      %v5521 = vld [vmem:[#allocation2 + $0xb8] sm:$0xf]
      %v5522 = vld [vmem:[#allocation2] sm:$0xe]
      %v5523 = vld [vmem:[#allocation2 + $0x8] sm:$0x1]
      %v5524 = vld [vmem:[#allocation2 + $0xc] sm:$0xe]
      %v5525 = vld [vmem:[#allocation2 + $0x14] sm:$0x1]
      %v5526 = vld [vmem:[#allocation2 + $0x18] sm:$0xe]
      %v5527 = vld [vmem:[#allocation2 + $0x20] sm:$0x1]
      %v5528 = vld [vmem:[#allocation2 + $0x24] sm:$0xe]
      %v5529 = vld [vmem:[#allocation2 + $0x2c] sm:$0x1]
      %v5530 = vld [vmem:[#allocation2 + $0x30] sm:$0xe]
      %v5531 = vld [vmem:[#allocation2 + $0x38] sm:$0x1]
      %v5532 = vld [vmem:[#allocation2 + $0x3c] sm:$0xe]
      %v5533 = vld [vmem:[#allocation2 + $0x44] sm:$0x1]
      %v5534 = vld [vmem:[#allocation2 + $0x48] sm:$0xe]
      %v5535 = vld [vmem:[#allocation2 + $0x50] sm:$0x1]
      %v5536 = vld [vmem:[#allocation2 + $0x54] sm:$0xe]
      %v5537 = vld [vmem:[#allocation2 + $0x5c] sm:$0x1]
      %v5538 = vld [vmem:[#allocation2 + $0x60] sm:$0xe]
      %v5539 = vld [vmem:[#allocation2 + $0x68] sm:$0x1]
      %v5540 = vld [vmem:[#allocation2 + $0x6c] sm:$0xe]
      %v5541 = vld [vmem:[#allocation2 + $0x74] sm:$0x1]
      %v5542 = vld [vmem:[#allocation2 + $0x78] sm:$0xe]
      %v5543 = vld [vmem:[#allocation2 + $0x80] sm:$0x1]
      %v5544 = vld [vmem:[#allocation2 + $0x84] sm:$0xe]
      %v5545 = vld [vmem:[#allocation2 + $0x8c] sm:$0x1]
      %v5546 = vld [vmem:[#allocation2 + $0x90] sm:$0xe]
      %v5547 = vld [vmem:[#allocation2 + $0x98] sm:$0x1]
      %v5548 = vld [vmem:[#allocation2 + $0x9c] sm:$0xe]
      %v5549 = vld [vmem:[#allocation2 + $0xa4] sm:$0x1]
      %v5550 = vld [vmem:[#allocation2 + $0xa8] sm:$0xe]
      %v5551 = vld [vmem:[#allocation2 + $0xb0] sm:$0x1]
      %v5552 = vld [vmem:[#allocation2 + $0xb4] sm:$0xe]
      %v5553 = vld [vmem:[#allocation2 + $0xbc] sm:$0x1]
      %v5602 = vrot.slane %v5522, 5
      %v5603 = vrot.slane %v5602, 4
      %v5604 = vrot.slane %v5491, 5
      %v5605 = vsel %vm806, %v5603, %v5604
      %v5606 = vrot.slane %v5604, 4
      %v5607 = vrot.slane %v5523, 5
      %v5608 = vsel %vm806, %v5606, %v5607
      %v5609 = vrot.slane %v5524, 5
      %v5610 = vrot.slane %v5609, 4
      %v5611 = vrot.slane %v5493, 5
      %v5612 = vsel %vm806, %v5610, %v5611
      %v5613 = vrot.slane %v5611, 4
      %v5614 = vrot.slane %v5525, 5
      %v5615 = vsel %vm806, %v5613, %v5614
      %v5616 = vrot.slane %v5526, 5
      %v5617 = vrot.slane %v5616, 4
      %v5618 = vrot.slane %v5495, 5
      %v5619 = vsel %vm806, %v5617, %v5618
      %v5620 = vrot.slane %v5618, 4
      %v5621 = vrot.slane %v5527, 5
      %v5622 = vsel %vm806, %v5620, %v5621
      %v5623 = vrot.slane %v5528, 5
      %v5624 = vrot.slane %v5623, 4
      %v5625 = vrot.slane %v5497, 5
      %v5626 = vsel %vm806, %v5624, %v5625
      %v5627 = vrot.slane %v5625, 4
      %v5628 = vrot.slane %v5529, 5
      %v5629 = vsel %vm806, %v5627, %v5628
      %v5630 = vrot.slane %v5530, 5
      %v5631 = vrot.slane %v5630, 4
      %v5632 = vrot.slane %v5499, 5
      %v5633 = vsel %vm806, %v5631, %v5632
      %v5634 = vrot.slane %v5632, 4
      %v5635 = vrot.slane %v5531, 5
      %v5636 = vsel %vm806, %v5634, %v5635
      %v5637 = vrot.slane %v5532, 5
      %v5638 = vrot.slane %v5637, 4
      %v5639 = vrot.slane %v5501, 5
      %v5640 = vsel %vm806, %v5638, %v5639
      %v5641 = vrot.slane %v5639, 4
      %v5642 = vrot.slane %v5533, 5
      %v5643 = vsel %vm806, %v5641, %v5642
      %v5644 = vrot.slane %v5534, 5
      %v5645 = vrot.slane %v5644, 4
      %v5646 = vrot.slane %v5503, 5
      %v5647 = vsel %vm806, %v5645, %v5646
      %v5648 = vrot.slane %v5646, 4
      %v5649 = vrot.slane %v5535, 5
      %v5650 = vsel %vm806, %v5648, %v5649
      %v5651 = vrot.slane %v5536, 5
      %v5652 = vrot.slane %v5651, 4
      %v5653 = vrot.slane %v5505, 5
      %v5654 = vsel %vm806, %v5652, %v5653
      %v5655 = vrot.slane %v5653, 4
      %v5656 = vrot.slane %v5537, 5
      %v5657 = vsel %vm806, %v5655, %v5656
      %v5658 = vrot.slane %v5538, 5
      %v5659 = vrot.slane %v5658, 4
      %v5660 = vrot.slane %v5507, 5
      %v5661 = vsel %vm806, %v5659, %v5660
      %v5662 = vrot.slane %v5660, 4
      %v5663 = vrot.slane %v5539, 5
      %v5664 = vsel %vm806, %v5662, %v5663
      %v5665 = vrot.slane %v5540, 5
      %v5666 = vrot.slane %v5665, 4
      %v5667 = vrot.slane %v5509, 5
      %v5668 = vsel %vm806, %v5666, %v5667
      %v5669 = vrot.slane %v5667, 4
      %v5670 = vrot.slane %v5541, 5
      %v5671 = vsel %vm806, %v5669, %v5670
      %v5672 = vrot.slane %v5542, 5
      %v5673 = vrot.slane %v5672, 4
      %v5674 = vrot.slane %v5511, 5
      %v5675 = vsel %vm806, %v5673, %v5674
      %v5676 = vrot.slane %v5674, 4
      %v5677 = vrot.slane %v5543, 5
      %v5678 = vsel %vm806, %v5676, %v5677
      %v5679 = vrot.slane %v5544, 5
      %v5680 = vrot.slane %v5679, 4
      %v5681 = vrot.slane %v5513, 5
      %v5682 = vsel %vm806, %v5680, %v5681
      %v5683 = vrot.slane %v5681, 4
      %v5684 = vrot.slane %v5545, 5
      %v5685 = vsel %vm806, %v5683, %v5684
      %v5686 = vrot.slane %v5546, 5
      %v5687 = vrot.slane %v5686, 4
      %v5688 = vrot.slane %v5515, 5
      %v5689 = vsel %vm806, %v5687, %v5688
      %v5690 = vrot.slane %v5688, 4
      %v5691 = vrot.slane %v5547, 5
      %v5692 = vsel %vm806, %v5690, %v5691
      %v5693 = vrot.slane %v5548, 5
      %v5694 = vrot.slane %v5693, 4
      %v5695 = vrot.slane %v5517, 5
      %v5696 = vsel %vm806, %v5694, %v5695
      %v5697 = vrot.slane %v5695, 4
      %v5698 = vrot.slane %v5549, 5
      %v5699 = vsel %vm806, %v5697, %v5698
      %v5700 = vrot.slane %v5550, 5
      %v5701 = vrot.slane %v5700, 4
      %v5702 = vrot.slane %v5519, 5
      %v5703 = vsel %vm806, %v5701, %v5702
      %v5704 = vrot.slane %v5702, 4
      %v5705 = vrot.slane %v5551, 5
      %v5706 = vsel %vm806, %v5704, %v5705
      %v5707 = vrot.slane %v5552, 5
      %v5708 = vrot.slane %v5707, 4
      %v5709 = vrot.slane %v5521, 5
      %v5710 = vsel %vm806, %v5708, %v5709
      %v5711 = vrot.slane %v5709, 4
      %v5712 = vrot.slane %v5553, 5
      %v5713 = vsel %vm806, %v5711, %v5712
      %v5730 = vunpack.c.l.b16 %v5490
      %v5731 = vunpack.c.l.b16 %v5491
      %v5732 = vunpack.c.l.b16 %v5492
      %v5733 = vunpack.c.l.b16 %v5493
      %v5734 = vunpack.c.l.b16 %v5494
      %v5735 = vunpack.c.l.b16 %v5495
      %v5736 = vunpack.c.l.b16 %v5496
      %v5737 = vunpack.c.l.b16 %v5497
      %v5738 = vunpack.c.l.b16 %v5498
      %v5739 = vunpack.c.l.b16 %v5499
      %v5740 = vunpack.c.l.b16 %v5500
      %v5741 = vunpack.c.l.b16 %v5501
      %v5742 = vunpack.c.l.b16 %v5502
      %v5743 = vunpack.c.l.b16 %v5503
      %v5744 = vunpack.c.l.b16 %v5504
      %v5745 = vunpack.c.l.b16 %v5505
      %v5746 = vunpack.c.l.b16 %v5506
      %v5747 = vunpack.c.l.b16 %v5507
      %v5748 = vunpack.c.l.b16 %v5508
      %v5749 = vunpack.c.l.b16 %v5509
      %v5750 = vunpack.c.l.b16 %v5510
      %v5751 = vunpack.c.l.b16 %v5511
      %v5752 = vunpack.c.l.b16 %v5512
      %v5753 = vunpack.c.l.b16 %v5513
      %v5754 = vunpack.c.l.b16 %v5514
      %v5755 = vunpack.c.l.b16 %v5515
      %v5756 = vunpack.c.l.b16 %v5516
      %v5757 = vunpack.c.l.b16 %v5517
      %v5758 = vunpack.c.l.b16 %v5518
      %v5759 = vunpack.c.l.b16 %v5519
      %v5760 = vunpack.c.l.b16 %v5520
      %v5761 = vunpack.c.l.b16 %v5521
      %v5762 = vpack.c.b16 %v5731, %v5730
      %v5763 = vpack.c.b16 %v5733, %v5732
      %v5764 = vpack.c.b16 %v5735, %v5734
      %v5765 = vpack.c.b16 %v5737, %v5736
      %v5766 = vpack.c.b16 %v5739, %v5738
      %v5767 = vpack.c.b16 %v5741, %v5740
      %v5768 = vpack.c.b16 %v5743, %v5742
      %v5769 = vpack.c.b16 %v5745, %v5744
      %v5770 = vpack.c.b16 %v5747, %v5746
      %v5771 = vpack.c.b16 %v5749, %v5748
      %v5772 = vpack.c.b16 %v5751, %v5750
      %v5773 = vpack.c.b16 %v5753, %v5752
      %v5774 = vpack.c.b16 %v5755, %v5754
      %v5775 = vpack.c.b16 %v5757, %v5756
      %v5776 = vpack.c.b16 %v5759, %v5758
      %v5777 = vpack.c.b16 %v5761, %v5760
      %v5778 = vunpack.c.l.b16 %v5605
      %v5779 = vunpack.c.l.b16 %v5608
      %v5780 = vunpack.c.l.b16 %v5612
      %v5781 = vunpack.c.l.b16 %v5615
      %v5782 = vunpack.c.l.b16 %v5619
      %v5783 = vunpack.c.l.b16 %v5622
      %v5784 = vunpack.c.l.b16 %v5626
      %v5785 = vunpack.c.l.b16 %v5629
      %v5786 = vunpack.c.l.b16 %v5633
      %v5787 = vunpack.c.l.b16 %v5636
      %v5788 = vunpack.c.l.b16 %v5640
      %v5789 = vunpack.c.l.b16 %v5643
      %v5790 = vunpack.c.l.b16 %v5647
      %v5791 = vunpack.c.l.b16 %v5650
      %v5792 = vunpack.c.l.b16 %v5654
      %v5793 = vunpack.c.l.b16 %v5657
      %v5794 = vunpack.c.l.b16 %v5661
      %v5795 = vunpack.c.l.b16 %v5664
      %v5796 = vunpack.c.l.b16 %v5668
      %v5797 = vunpack.c.l.b16 %v5671
      %v5798 = vunpack.c.l.b16 %v5675
      %v5799 = vunpack.c.l.b16 %v5678
      %v5800 = vunpack.c.l.b16 %v5682
      %v5801 = vunpack.c.l.b16 %v5685
      %v5802 = vunpack.c.l.b16 %v5689
      %v5803 = vunpack.c.l.b16 %v5692
      %v5804 = vunpack.c.l.b16 %v5696
      %v5805 = vunpack.c.l.b16 %v5699
      %v5806 = vunpack.c.l.b16 %v5703
      %v5807 = vunpack.c.l.b16 %v5706
      %v5808 = vunpack.c.l.b16 %v5710
      %v5809 = vunpack.c.l.b16 %v5713
      %v5810 = vpack.c.b16 %v5779, %v5778
      %v5811 = vpack.c.b16 %v5781, %v5780
      %v5812 = vpack.c.b16 %v5783, %v5782
      %v5813 = vpack.c.b16 %v5785, %v5784
      %v5814 = vpack.c.b16 %v5787, %v5786
      %v5815 = vpack.c.b16 %v5789, %v5788
      %v5816 = vpack.c.b16 %v5791, %v5790
      %v5817 = vpack.c.b16 %v5793, %v5792
      %v5818 = vpack.c.b16 %v5795, %v5794
      %v5819 = vpack.c.b16 %v5797, %v5796
      %v5820 = vpack.c.b16 %v5799, %v5798
      %v5821 = vpack.c.b16 %v5801, %v5800
      %v5822 = vpack.c.b16 %v5803, %v5802
      %v5823 = vpack.c.b16 %v5805, %v5804
      %v5824 = vpack.c.b16 %v5807, %v5806
      %v5825 = vpack.c.b16 %v5809, %v5808
      %5826 = vrot.lane.b32.xlu0 %v5810, 64
      %v5827 = vpop.permute.xlu0 %5826
      %5828 = vrot.lane.b32.xlu0 %v5811, 64
      %v5829 = vpop.permute.xlu0 %5828
      %5830 = vrot.lane.b32.xlu0 %v5812, 64
      %v5831 = vpop.permute.xlu0 %5830
      %5832 = vrot.lane.b32.xlu0 %v5813, 64
      %v5833 = vpop.permute.xlu0 %5832
      %5834 = vrot.lane.b32.xlu0 %v5814, 64
      %v5835 = vpop.permute.xlu0 %5834
      %5836 = vrot.lane.b32.xlu0 %v5815, 64
      %v5837 = vpop.permute.xlu0 %5836
      %5838 = vrot.lane.b32.xlu0 %v5816, 64
      %v5839 = vpop.permute.xlu0 %5838
      %5840 = vrot.lane.b32.xlu0 %v5817, 64
      %v5841 = vpop.permute.xlu0 %5840
      %5842 = vrot.lane.b32.xlu0 %v5818, 64
      %v5843 = vpop.permute.xlu0 %5842
      %5844 = vrot.lane.b32.xlu0 %v5819, 64
      %v5845 = vpop.permute.xlu0 %5844
      %5846 = vrot.lane.b32.xlu0 %v5820, 64
      %v5847 = vpop.permute.xlu0 %5846
      %5848 = vrot.lane.b32.xlu0 %v5821, 64
      %v5849 = vpop.permute.xlu0 %5848
      %5850 = vrot.lane.b32.xlu0 %v5822, 64
      %v5851 = vpop.permute.xlu0 %5850
      %5852 = vrot.lane.b32.xlu0 %v5823, 64
      %v5853 = vpop.permute.xlu0 %5852
      %5854 = vrot.lane.b32.xlu0 %v5824, 64
      %v5855 = vpop.permute.xlu0 %5854
      %5856 = vrot.lane.b32.xlu0 %v5825, 64
      %v5857 = vpop.permute.xlu0 %5856
      %v5860 = vsel %vm1063, %v5762, %v5827
      %v5863 = vsel %vm1063, %v5763, %v5829
      %v5866 = vsel %vm1063, %v5764, %v5831
      %v5869 = vsel %vm1063, %v5765, %v5833
      %v5872 = vsel %vm1063, %v5766, %v5835
      %v5875 = vsel %vm1063, %v5767, %v5837
      %v5878 = vsel %vm1063, %v5768, %v5839
      %v5881 = vsel %vm1063, %v5769, %v5841
      %v5884 = vsel %vm1063, %v5770, %v5843
      %v5887 = vsel %vm1063, %v5771, %v5845
      %v5890 = vsel %vm1063, %v5772, %v5847
      %v5893 = vsel %vm1063, %v5773, %v5849
      %v5896 = vsel %vm1063, %v5774, %v5851
      %v5899 = vsel %vm1063, %v5775, %v5853
      %v5902 = vsel %vm1063, %v5776, %v5855
      %v5905 = vsel %vm1063, %v5777, %v5857
      %v5922 = vunpack.c.l.b16 %v5860
      %v5923 = vunpack.c.h.b16 %v5860
      %v5924 = vunpack.c.l.b16 %v5863
      %v5925 = vunpack.c.h.b16 %v5863
      %v5926 = vunpack.c.l.b16 %v5866
      %v5927 = vunpack.c.h.b16 %v5866
      %v5928 = vunpack.c.l.b16 %v5869
      %v5929 = vunpack.c.h.b16 %v5869
      %v5930 = vunpack.c.l.b16 %v5872
      %v5931 = vunpack.c.h.b16 %v5872
      %v5932 = vunpack.c.l.b16 %v5875
      %v5933 = vunpack.c.h.b16 %v5875
      %v5934 = vunpack.c.l.b16 %v5878
      %v5935 = vunpack.c.h.b16 %v5878
      %v5936 = vunpack.c.l.b16 %v5881
      %v5937 = vunpack.c.h.b16 %v5881
      %v5938 = vunpack.c.l.b16 %v5884
      %v5939 = vunpack.c.h.b16 %v5884
      %v5940 = vunpack.c.l.b16 %v5887
      %v5941 = vunpack.c.h.b16 %v5887
      %v5942 = vunpack.c.l.b16 %v5890
      %v5943 = vunpack.c.h.b16 %v5890
      %v5944 = vunpack.c.l.b16 %v5893
      %v5945 = vunpack.c.h.b16 %v5893
      %v5946 = vunpack.c.l.b16 %v5896
      %v5947 = vunpack.c.h.b16 %v5896
      %v5948 = vunpack.c.l.b16 %v5899
      %v5949 = vunpack.c.h.b16 %v5899
      %v5950 = vunpack.c.l.b16 %v5902
      %v5951 = vunpack.c.h.b16 %v5902
      %v5952 = vunpack.c.l.b16 %v5905
      %v5953 = vunpack.c.h.b16 %v5905
      %v5954 = vpack.c.b16 %v5922, %v5922
      %v5955 = vpack.c.b16 %v5923, %v5923
      %v5956 = vpack.c.b16 %v5924, %v5924
      %v5957 = vpack.c.b16 %v5925, %v5925
      %v5958 = vpack.c.b16 %v5926, %v5926
      %v5959 = vpack.c.b16 %v5927, %v5927
      %v5960 = vpack.c.b16 %v5928, %v5928
      %v5961 = vpack.c.b16 %v5929, %v5929
      %v5962 = vpack.c.b16 %v5930, %v5930
      %v5963 = vpack.c.b16 %v5931, %v5931
      %v5964 = vpack.c.b16 %v5932, %v5932
      %v5965 = vpack.c.b16 %v5933, %v5933
      %v5966 = vpack.c.b16 %v5934, %v5934
      %v5967 = vpack.c.b16 %v5935, %v5935
      %v5968 = vpack.c.b16 %v5936, %v5936
      %v5969 = vpack.c.b16 %v5937, %v5937
      %v5970 = vpack.c.b16 %v5938, %v5938
      %v5971 = vpack.c.b16 %v5939, %v5939
      %v5972 = vpack.c.b16 %v5940, %v5940
      %v5973 = vpack.c.b16 %v5941, %v5941
      %v5974 = vpack.c.b16 %v5942, %v5942
      %v5975 = vpack.c.b16 %v5943, %v5943
      %v5976 = vpack.c.b16 %v5944, %v5944
      %v5977 = vpack.c.b16 %v5945, %v5945
      %v5978 = vpack.c.b16 %v5946, %v5946
      %v5979 = vpack.c.b16 %v5947, %v5947
      %v5980 = vpack.c.b16 %v5948, %v5948
      %v5981 = vpack.c.b16 %v5949, %v5949
      %v5982 = vpack.c.b16 %v5950, %v5950
      %v5983 = vpack.c.b16 %v5951, %v5951
      %v5984 = vpack.c.b16 %v5952, %v5952
      %v5985 = vpack.c.b16 %v5953, %v5953
      %6018 = vst [vmem:[#allocation3] sm:$0xf] %v5954
      %6019 = vst [vmem:[#allocation3 + $0x14] sm:$0xf] %v5955
      %6020 = vst [vmem:[#allocation3 + $0x28] sm:$0xf] %v5956
      %6021 = vst [vmem:[#allocation3 + $0x3c] sm:$0xf] %v5957
      %6022 = vst [vmem:[#allocation3 + $0x50] sm:$0xf] %v5958
      %6023 = vst [vmem:[#allocation3 + $0x64] sm:$0xf] %v5959
      %6024 = vst [vmem:[#allocation3 + $0x78] sm:$0xf] %v5960
      %6025 = vst [vmem:[#allocation3 + $0x8c] sm:$0xf] %v5961
      %6026 = vst [vmem:[#allocation3 + $0xa0] sm:$0xf] %v5962
      %6027 = vst [vmem:[#allocation3 + $0xb4] sm:$0xf] %v5963
      %6028 = vst [vmem:[#allocation3 + $0xc8] sm:$0xf] %v5964
      %6029 = vst [vmem:[#allocation3 + $0xdc] sm:$0xf] %v5965
      %6030 = vst [vmem:[#allocation3 + $0xf0] sm:$0xf] %v5966
      %6031 = vst [vmem:[#allocation3 + $0x104] sm:$0xf] %v5967
      %6032 = vst [vmem:[#allocation3 + $0x118] sm:$0xf] %v5968
      %6033 = vst [vmem:[#allocation3 + $0x12c] sm:$0xf] %v5969
      %6034 = vst [vmem:[#allocation3 + $0x140] sm:$0xf] %v5970
      %6035 = vst [vmem:[#allocation3 + $0x154] sm:$0xf] %v5971
      %6036 = vst [vmem:[#allocation3 + $0x168] sm:$0xf] %v5972
      %6037 = vst [vmem:[#allocation3 + $0x17c] sm:$0xf] %v5973
      %6038 = vst [vmem:[#allocation3 + $0x190] sm:$0xf] %v5974
      %6039 = vst [vmem:[#allocation3 + $0x1a4] sm:$0xf] %v5975
      %6040 = vst [vmem:[#allocation3 + $0x1b8] sm:$0xf] %v5976
      %6041 = vst [vmem:[#allocation3 + $0x1cc] sm:$0xf] %v5977
      %6042 = vst [vmem:[#allocation3 + $0x1e0] sm:$0xf] %v5978
      %6043 = vst [vmem:[#allocation3 + $0x1f4] sm:$0xf] %v5979
      %6044 = vst [vmem:[#allocation3 + $0x208] sm:$0xf] %v5980
      %6045 = vst [vmem:[#allocation3 + $0x21c] sm:$0xf] %v5981
      %6046 = vst [vmem:[#allocation3 + $0x230] sm:$0xf] %v5982
      %6047 = vst [vmem:[#allocation3 + $0x244] sm:$0xf] %v5983
      %6048 = vst [vmem:[#allocation3 + $0x258] sm:$0xf] %v5984
      %6049 = vst [vmem:[#allocation3 + $0x26c] sm:$0xf] %v5985
      %v6050 = vld [vmem:[#allocation2] sm:$0xc]
      %v6051 = vld [vmem:[#allocation2 + $0x4] sm:$0xf]
      %v6052 = vld [vmem:[#allocation2 + $0x8] sm:$0x3]
      %v6053 = vld [vmem:[#allocation2 + $0xc] sm:$0xc]
      %v6054 = vld [vmem:[#allocation2 + $0x10] sm:$0xf]
      %v6055 = vld [vmem:[#allocation2 + $0x14] sm:$0x3]
      %v6056 = vld [vmem:[#allocation2 + $0x18] sm:$0xc]
      %v6057 = vld [vmem:[#allocation2 + $0x1c] sm:$0xf]
      %v6058 = vld [vmem:[#allocation2 + $0x20] sm:$0x3]
      %v6059 = vld [vmem:[#allocation2 + $0x24] sm:$0xc]
      %v6060 = vld [vmem:[#allocation2 + $0x28] sm:$0xf]
      %v6061 = vld [vmem:[#allocation2 + $0x2c] sm:$0x3]
      %v6062 = vld [vmem:[#allocation2 + $0x30] sm:$0xc]
      %v6063 = vld [vmem:[#allocation2 + $0x34] sm:$0xf]
      %v6064 = vld [vmem:[#allocation2 + $0x38] sm:$0x3]
      %v6065 = vld [vmem:[#allocation2 + $0x3c] sm:$0xc]
      %v6066 = vld [vmem:[#allocation2 + $0x40] sm:$0xf]
      %v6067 = vld [vmem:[#allocation2 + $0x44] sm:$0x3]
      %v6068 = vld [vmem:[#allocation2 + $0x48] sm:$0xc]
      %v6069 = vld [vmem:[#allocation2 + $0x4c] sm:$0xf]
      %v6070 = vld [vmem:[#allocation2 + $0x50] sm:$0x3]
      %v6071 = vld [vmem:[#allocation2 + $0x54] sm:$0xc]
      %v6072 = vld [vmem:[#allocation2 + $0x58] sm:$0xf]
      %v6073 = vld [vmem:[#allocation2 + $0x5c] sm:$0x3]
      %v6074 = vld [vmem:[#allocation2 + $0x60] sm:$0xc]
      %v6075 = vld [vmem:[#allocation2 + $0x64] sm:$0xf]
      %v6076 = vld [vmem:[#allocation2 + $0x68] sm:$0x3]
      %v6077 = vld [vmem:[#allocation2 + $0x6c] sm:$0xc]
      %v6078 = vld [vmem:[#allocation2 + $0x70] sm:$0xf]
      %v6079 = vld [vmem:[#allocation2 + $0x74] sm:$0x3]
      %v6080 = vld [vmem:[#allocation2 + $0x78] sm:$0xc]
      %v6081 = vld [vmem:[#allocation2 + $0x7c] sm:$0xf]
      %v6082 = vld [vmem:[#allocation2 + $0x80] sm:$0x3]
      %v6083 = vld [vmem:[#allocation2 + $0x84] sm:$0xc]
      %v6084 = vld [vmem:[#allocation2 + $0x88] sm:$0xf]
      %v6085 = vld [vmem:[#allocation2 + $0x8c] sm:$0x3]
      %v6086 = vld [vmem:[#allocation2 + $0x90] sm:$0xc]
      %v6087 = vld [vmem:[#allocation2 + $0x94] sm:$0xf]
      %v6088 = vld [vmem:[#allocation2 + $0x98] sm:$0x3]
      %v6089 = vld [vmem:[#allocation2 + $0x9c] sm:$0xc]
      %v6090 = vld [vmem:[#allocation2 + $0xa0] sm:$0xf]
      %v6091 = vld [vmem:[#allocation2 + $0xa4] sm:$0x3]
      %v6092 = vld [vmem:[#allocation2 + $0xa8] sm:$0xc]
      %v6093 = vld [vmem:[#allocation2 + $0xac] sm:$0xf]
      %v6094 = vld [vmem:[#allocation2 + $0xb0] sm:$0x3]
      %v6095 = vld [vmem:[#allocation2 + $0xb4] sm:$0xc]
      %v6096 = vld [vmem:[#allocation2 + $0xb8] sm:$0xf]
      %v6097 = vld [vmem:[#allocation2 + $0xbc] sm:$0x3]
      %v6146 = vrot.slane %v6050, 6
      %v6147 = vrot.slane %v6146, 4
      %v6148 = vrot.slane %v6051, 6
      %v6149 = vsel %vm1354, %v6147, %v6148
      %v6150 = vrot.slane %v6148, 4
      %v6151 = vrot.slane %v6052, 6
      %v6152 = vsel %vm1354, %v6150, %v6151
      %v6153 = vrot.slane %v6053, 6
      %v6154 = vrot.slane %v6153, 4
      %v6155 = vrot.slane %v6054, 6
      %v6156 = vsel %vm1354, %v6154, %v6155
      %v6157 = vrot.slane %v6155, 4
      %v6158 = vrot.slane %v6055, 6
      %v6159 = vsel %vm1354, %v6157, %v6158
      %v6160 = vrot.slane %v6056, 6
      %v6161 = vrot.slane %v6160, 4
      %v6162 = vrot.slane %v6057, 6
      %v6163 = vsel %vm1354, %v6161, %v6162
      %v6164 = vrot.slane %v6162, 4
      %v6165 = vrot.slane %v6058, 6
      %v6166 = vsel %vm1354, %v6164, %v6165
      %v6167 = vrot.slane %v6059, 6
      %v6168 = vrot.slane %v6167, 4
      %v6169 = vrot.slane %v6060, 6
      %v6170 = vsel %vm1354, %v6168, %v6169
      %v6171 = vrot.slane %v6169, 4
      %v6172 = vrot.slane %v6061, 6
      %v6173 = vsel %vm1354, %v6171, %v6172
      %v6174 = vrot.slane %v6062, 6
      %v6175 = vrot.slane %v6174, 4
      %v6176 = vrot.slane %v6063, 6
      %v6177 = vsel %vm1354, %v6175, %v6176
      %v6178 = vrot.slane %v6176, 4
      %v6179 = vrot.slane %v6064, 6
      %v6180 = vsel %vm1354, %v6178, %v6179
      %v6181 = vrot.slane %v6065, 6
      %v6182 = vrot.slane %v6181, 4
      %v6183 = vrot.slane %v6066, 6
      %v6184 = vsel %vm1354, %v6182, %v6183
      %v6185 = vrot.slane %v6183, 4
      %v6186 = vrot.slane %v6067, 6
      %v6187 = vsel %vm1354, %v6185, %v6186
      %v6188 = vrot.slane %v6068, 6
      %v6189 = vrot.slane %v6188, 4
      %v6190 = vrot.slane %v6069, 6
      %v6191 = vsel %vm1354, %v6189, %v6190
      %v6192 = vrot.slane %v6190, 4
      %v6193 = vrot.slane %v6070, 6
      %v6194 = vsel %vm1354, %v6192, %v6193
      %v6195 = vrot.slane %v6071, 6
      %v6196 = vrot.slane %v6195, 4
      %v6197 = vrot.slane %v6072, 6
      %v6198 = vsel %vm1354, %v6196, %v6197
      %v6199 = vrot.slane %v6197, 4
      %v6200 = vrot.slane %v6073, 6
      %v6201 = vsel %vm1354, %v6199, %v6200
      %v6202 = vrot.slane %v6074, 6
      %v6203 = vrot.slane %v6202, 4
      %v6204 = vrot.slane %v6075, 6
      %v6205 = vsel %vm1354, %v6203, %v6204
      %v6206 = vrot.slane %v6204, 4
      %v6207 = vrot.slane %v6076, 6
      %v6208 = vsel %vm1354, %v6206, %v6207
      %v6209 = vrot.slane %v6077, 6
      %v6210 = vrot.slane %v6209, 4
      %v6211 = vrot.slane %v6078, 6
      %v6212 = vsel %vm1354, %v6210, %v6211
      %v6213 = vrot.slane %v6211, 4
      %v6214 = vrot.slane %v6079, 6
      %v6215 = vsel %vm1354, %v6213, %v6214
      %v6216 = vrot.slane %v6080, 6
      %v6217 = vrot.slane %v6216, 4
      %v6218 = vrot.slane %v6081, 6
      %v6219 = vsel %vm1354, %v6217, %v6218
      %v6220 = vrot.slane %v6218, 4
      %v6221 = vrot.slane %v6082, 6
      %v6222 = vsel %vm1354, %v6220, %v6221
      %v6223 = vrot.slane %v6083, 6
      %v6224 = vrot.slane %v6223, 4
      %v6225 = vrot.slane %v6084, 6
      %v6226 = vsel %vm1354, %v6224, %v6225
      %v6227 = vrot.slane %v6225, 4
      %v6228 = vrot.slane %v6085, 6
      %v6229 = vsel %vm1354, %v6227, %v6228
      %v6230 = vrot.slane %v6086, 6
      %v6231 = vrot.slane %v6230, 4
      %v6232 = vrot.slane %v6087, 6
      %v6233 = vsel %vm1354, %v6231, %v6232
      %v6234 = vrot.slane %v6232, 4
      %v6235 = vrot.slane %v6088, 6
      %v6236 = vsel %vm1354, %v6234, %v6235
      %v6237 = vrot.slane %v6089, 6
      %v6238 = vrot.slane %v6237, 4
      %v6239 = vrot.slane %v6090, 6
      %v6240 = vsel %vm1354, %v6238, %v6239
      %v6241 = vrot.slane %v6239, 4
      %v6242 = vrot.slane %v6091, 6
      %v6243 = vsel %vm1354, %v6241, %v6242
      %v6244 = vrot.slane %v6092, 6
      %v6245 = vrot.slane %v6244, 4
      %v6246 = vrot.slane %v6093, 6
      %v6247 = vsel %vm1354, %v6245, %v6246
      %v6248 = vrot.slane %v6246, 4
      %v6249 = vrot.slane %v6094, 6
      %v6250 = vsel %vm1354, %v6248, %v6249
      %v6251 = vrot.slane %v6095, 6
      %v6252 = vrot.slane %v6251, 4
      %v6253 = vrot.slane %v6096, 6
      %v6254 = vsel %vm1354, %v6252, %v6253
      %v6255 = vrot.slane %v6253, 4
      %v6256 = vrot.slane %v6097, 6
      %v6257 = vsel %vm1354, %v6255, %v6256
      %v6258 = vld [vmem:[%s349] sm:$0xf]
      %v6259 = vld [vmem:[%s349 + $0x4] sm:$0xf]
      %v6260 = vld [vmem:[%s349 + $0xc] sm:$0xf]
      %v6261 = vld [vmem:[%s349 + $0x10] sm:$0xf]
      %v6262 = vld [vmem:[%s349 + $0x18] sm:$0xf]
      %v6263 = vld [vmem:[%s349 + $0x1c] sm:$0xf]
      %v6264 = vld [vmem:[%s349 + $0x24] sm:$0xf]
      %v6265 = vld [vmem:[%s349 + $0x28] sm:$0xf]
      %v6266 = vld [vmem:[%s349 + $0x30] sm:$0xf]
      %v6267 = vld [vmem:[%s349 + $0x34] sm:$0xf]
      %v6268 = vld [vmem:[%s349 + $0x3c] sm:$0xf]
      %v6269 = vld [vmem:[%s349 + $0x40] sm:$0xf]
      %v6270 = vld [vmem:[%s349 + $0x48] sm:$0xf]
      %v6271 = vld [vmem:[%s349 + $0x4c] sm:$0xf]
      %v6272 = vld [vmem:[%s349 + $0x54] sm:$0xf]
      %v6273 = vld [vmem:[%s349 + $0x58] sm:$0xf]
      %v6274 = vld [vmem:[%s349 + $0x60] sm:$0xf]
      %v6275 = vld [vmem:[%s349 + $0x64] sm:$0xf]
      %v6276 = vld [vmem:[%s349 + $0x6c] sm:$0xf]
      %v6277 = vld [vmem:[%s349 + $0x70] sm:$0xf]
      %v6278 = vld [vmem:[%s349 + $0x78] sm:$0xf]
      %v6279 = vld [vmem:[%s349 + $0x7c] sm:$0xf]
      %v6280 = vld [vmem:[%s349 + $0x84] sm:$0xf]
      %v6281 = vld [vmem:[%s349 + $0x88] sm:$0xf]
      %v6282 = vld [vmem:[%s349 + $0x90] sm:$0xf]
      %v6283 = vld [vmem:[%s349 + $0x94] sm:$0xf]
      %v6284 = vld [vmem:[%s349 + $0x9c] sm:$0xf]
      %v6285 = vld [vmem:[%s349 + $0xa0] sm:$0xf]
      %v6286 = vld [vmem:[%s349 + $0xa8] sm:$0xf]
      %v6287 = vld [vmem:[%s349 + $0xac] sm:$0xf]
      %v6288 = vld [vmem:[%s349 + $0xb4] sm:$0xf]
      %v6289 = vld [vmem:[%s349 + $0xb8] sm:$0xf]
      %v6290 = vunpack.c.l.b16 %v6149
      %v6291 = vunpack.c.l.b16 %v6152
      %v6292 = vunpack.c.l.b16 %v6156
      %v6293 = vunpack.c.l.b16 %v6159
      %v6294 = vunpack.c.l.b16 %v6163
      %v6295 = vunpack.c.l.b16 %v6166
      %v6296 = vunpack.c.l.b16 %v6170
      %v6297 = vunpack.c.l.b16 %v6173
      %v6298 = vunpack.c.l.b16 %v6177
      %v6299 = vunpack.c.l.b16 %v6180
      %v6300 = vunpack.c.l.b16 %v6184
      %v6301 = vunpack.c.l.b16 %v6187
      %v6302 = vunpack.c.l.b16 %v6191
      %v6303 = vunpack.c.l.b16 %v6194
      %v6304 = vunpack.c.l.b16 %v6198
      %v6305 = vunpack.c.l.b16 %v6201
      %v6306 = vunpack.c.l.b16 %v6205
      %v6307 = vunpack.c.l.b16 %v6208
      %v6308 = vunpack.c.l.b16 %v6212
      %v6309 = vunpack.c.l.b16 %v6215
      %v6310 = vunpack.c.l.b16 %v6219
      %v6311 = vunpack.c.l.b16 %v6222
      %v6312 = vunpack.c.l.b16 %v6226
      %v6313 = vunpack.c.l.b16 %v6229
      %v6314 = vunpack.c.l.b16 %v6233
      %v6315 = vunpack.c.l.b16 %v6236
      %v6316 = vunpack.c.l.b16 %v6240
      %v6317 = vunpack.c.l.b16 %v6243
      %v6318 = vunpack.c.l.b16 %v6247
      %v6319 = vunpack.c.l.b16 %v6250
      %v6320 = vunpack.c.l.b16 %v6254
      %v6321 = vunpack.c.l.b16 %v6257
      %v6322 = vpack.c.b16 %v6291, %v6290
      %v6323 = vpack.c.b16 %v6293, %v6292
      %v6324 = vpack.c.b16 %v6295, %v6294
      %v6325 = vpack.c.b16 %v6297, %v6296
      %v6326 = vpack.c.b16 %v6299, %v6298
      %v6327 = vpack.c.b16 %v6301, %v6300
      %v6328 = vpack.c.b16 %v6303, %v6302
      %v6329 = vpack.c.b16 %v6305, %v6304
      %v6330 = vpack.c.b16 %v6307, %v6306
      %v6331 = vpack.c.b16 %v6309, %v6308
      %v6332 = vpack.c.b16 %v6311, %v6310
      %v6333 = vpack.c.b16 %v6313, %v6312
      %v6334 = vpack.c.b16 %v6315, %v6314
      %v6335 = vpack.c.b16 %v6317, %v6316
      %v6336 = vpack.c.b16 %v6319, %v6318
      %v6337 = vpack.c.b16 %v6321, %v6320
      %v6370 = vunpack.c.l.b16 %v6258
      %v6371 = vunpack.c.l.b16 %v6259
      %v6372 = vunpack.c.l.b16 %v6260
      %v6373 = vunpack.c.l.b16 %v6261
      %v6374 = vunpack.c.l.b16 %v6262
      %v6375 = vunpack.c.l.b16 %v6263
      %v6376 = vunpack.c.l.b16 %v6264
      %v6377 = vunpack.c.l.b16 %v6265
      %v6378 = vunpack.c.l.b16 %v6266
      %v6379 = vunpack.c.l.b16 %v6267
      %v6380 = vunpack.c.l.b16 %v6268
      %v6381 = vunpack.c.l.b16 %v6269
      %v6382 = vunpack.c.l.b16 %v6270
      %v6383 = vunpack.c.l.b16 %v6271
      %v6384 = vunpack.c.l.b16 %v6272
      %v6385 = vunpack.c.l.b16 %v6273
      %v6386 = vunpack.c.l.b16 %v6274
      %v6387 = vunpack.c.l.b16 %v6275
      %v6388 = vunpack.c.l.b16 %v6276
      %v6389 = vunpack.c.l.b16 %v6277
      %v6390 = vunpack.c.l.b16 %v6278
      %v6391 = vunpack.c.l.b16 %v6279
      %v6392 = vunpack.c.l.b16 %v6280
      %v6393 = vunpack.c.l.b16 %v6281
      %v6394 = vunpack.c.l.b16 %v6282
      %v6395 = vunpack.c.l.b16 %v6283
      %v6396 = vunpack.c.l.b16 %v6284
      %v6397 = vunpack.c.l.b16 %v6285
      %v6398 = vunpack.c.l.b16 %v6286
      %v6399 = vunpack.c.l.b16 %v6287
      %v6400 = vunpack.c.l.b16 %v6288
      %v6401 = vunpack.c.l.b16 %v6289
      %v6402 = vpack.c.b16 %v6371, %v6370
      %v6403 = vpack.c.b16 %v6373, %v6372
      %v6404 = vpack.c.b16 %v6375, %v6374
      %v6405 = vpack.c.b16 %v6377, %v6376
      %v6406 = vpack.c.b16 %v6379, %v6378
      %v6407 = vpack.c.b16 %v6381, %v6380
      %v6408 = vpack.c.b16 %v6383, %v6382
      %v6409 = vpack.c.b16 %v6385, %v6384
      %v6410 = vpack.c.b16 %v6387, %v6386
      %v6411 = vpack.c.b16 %v6389, %v6388
      %v6412 = vpack.c.b16 %v6391, %v6390
      %v6413 = vpack.c.b16 %v6393, %v6392
      %v6414 = vpack.c.b16 %v6395, %v6394
      %v6415 = vpack.c.b16 %v6397, %v6396
      %v6416 = vpack.c.b16 %v6399, %v6398
      %v6417 = vpack.c.b16 %v6401, %v6400
      %6418 = vrot.lane.b32.xlu0 %v6402, 64
      %v6419 = vpop.permute.xlu0 %6418
      %6420 = vrot.lane.b32.xlu0 %v6403, 64
      %v6421 = vpop.permute.xlu0 %6420
      %6422 = vrot.lane.b32.xlu0 %v6404, 64
      %v6423 = vpop.permute.xlu0 %6422
      %6424 = vrot.lane.b32.xlu0 %v6405, 64
      %v6425 = vpop.permute.xlu0 %6424
      %6426 = vrot.lane.b32.xlu0 %v6406, 64
      %v6427 = vpop.permute.xlu0 %6426
      %6428 = vrot.lane.b32.xlu0 %v6407, 64
      %v6429 = vpop.permute.xlu0 %6428
      %6430 = vrot.lane.b32.xlu0 %v6408, 64
      %v6431 = vpop.permute.xlu0 %6430
      %6432 = vrot.lane.b32.xlu0 %v6409, 64
      %v6433 = vpop.permute.xlu0 %6432
      %6434 = vrot.lane.b32.xlu0 %v6410, 64
      %v6435 = vpop.permute.xlu0 %6434
      %6436 = vrot.lane.b32.xlu0 %v6411, 64
      %v6437 = vpop.permute.xlu0 %6436
      %6438 = vrot.lane.b32.xlu0 %v6412, 64
      %v6439 = vpop.permute.xlu0 %6438
      %6440 = vrot.lane.b32.xlu0 %v6413, 64
      %v6441 = vpop.permute.xlu0 %6440
      %6442 = vrot.lane.b32.xlu0 %v6414, 64
      %v6443 = vpop.permute.xlu0 %6442
      %6444 = vrot.lane.b32.xlu0 %v6415, 64
      %v6445 = vpop.permute.xlu0 %6444
      %6446 = vrot.lane.b32.xlu0 %v6416, 64
      %v6447 = vpop.permute.xlu0 %6446
      %6448 = vrot.lane.b32.xlu0 %v6417, 64
      %v6449 = vpop.permute.xlu0 %6448
      %v6452 = vsel %vm1063, %v6322, %v6419
      %v6455 = vsel %vm1063, %v6323, %v6421
      %v6458 = vsel %vm1063, %v6324, %v6423
      %v6461 = vsel %vm1063, %v6325, %v6425
      %v6464 = vsel %vm1063, %v6326, %v6427
      %v6467 = vsel %vm1063, %v6327, %v6429
      %v6470 = vsel %vm1063, %v6328, %v6431
      %v6473 = vsel %vm1063, %v6329, %v6433
      %v6476 = vsel %vm1063, %v6330, %v6435
      %v6479 = vsel %vm1063, %v6331, %v6437
      %v6482 = vsel %vm1063, %v6332, %v6439
      %v6485 = vsel %vm1063, %v6333, %v6441
      %v6488 = vsel %vm1063, %v6334, %v6443
      %v6491 = vsel %vm1063, %v6335, %v6445
      %v6494 = vsel %vm1063, %v6336, %v6447
      %v6497 = vsel %vm1063, %v6337, %v6449
      %v6514 = vunpack.c.l.b16 %v6452
      %v6515 = vunpack.c.h.b16 %v6452
      %v6516 = vunpack.c.l.b16 %v6455
      %v6517 = vunpack.c.h.b16 %v6455
      %v6518 = vunpack.c.l.b16 %v6458
      %v6519 = vunpack.c.h.b16 %v6458
      %v6520 = vunpack.c.l.b16 %v6461
      %v6521 = vunpack.c.h.b16 %v6461
      %v6522 = vunpack.c.l.b16 %v6464
      %v6523 = vunpack.c.h.b16 %v6464
      %v6524 = vunpack.c.l.b16 %v6467
      %v6525 = vunpack.c.h.b16 %v6467
      %v6526 = vunpack.c.l.b16 %v6470
      %v6527 = vunpack.c.h.b16 %v6470
      %v6528 = vunpack.c.l.b16 %v6473
      %v6529 = vunpack.c.h.b16 %v6473
      %v6530 = vunpack.c.l.b16 %v6476
      %v6531 = vunpack.c.h.b16 %v6476
      %v6532 = vunpack.c.l.b16 %v6479
      %v6533 = vunpack.c.h.b16 %v6479
      %v6534 = vunpack.c.l.b16 %v6482
      %v6535 = vunpack.c.h.b16 %v6482
      %v6536 = vunpack.c.l.b16 %v6485
      %v6537 = vunpack.c.h.b16 %v6485
      %v6538 = vunpack.c.l.b16 %v6488
      %v6539 = vunpack.c.h.b16 %v6488
      %v6540 = vunpack.c.l.b16 %v6491
      %v6541 = vunpack.c.h.b16 %v6491
      %v6542 = vunpack.c.l.b16 %v6494
      %v6543 = vunpack.c.h.b16 %v6494
      %v6544 = vunpack.c.l.b16 %v6497
      %v6545 = vunpack.c.h.b16 %v6497
      %v6546 = vpack.c.b16 %v6514, %v6514
      %v6547 = vpack.c.b16 %v6515, %v6515
      %v6548 = vpack.c.b16 %v6516, %v6516
      %v6549 = vpack.c.b16 %v6517, %v6517
      %v6550 = vpack.c.b16 %v6518, %v6518
      %v6551 = vpack.c.b16 %v6519, %v6519
      %v6552 = vpack.c.b16 %v6520, %v6520
      %v6553 = vpack.c.b16 %v6521, %v6521
      %v6554 = vpack.c.b16 %v6522, %v6522
      %v6555 = vpack.c.b16 %v6523, %v6523
      %v6556 = vpack.c.b16 %v6524, %v6524
      %v6557 = vpack.c.b16 %v6525, %v6525
      %v6558 = vpack.c.b16 %v6526, %v6526
      %v6559 = vpack.c.b16 %v6527, %v6527
      %v6560 = vpack.c.b16 %v6528, %v6528
      %v6561 = vpack.c.b16 %v6529, %v6529
      %v6562 = vpack.c.b16 %v6530, %v6530
      %v6563 = vpack.c.b16 %v6531, %v6531
      %v6564 = vpack.c.b16 %v6532, %v6532
      %v6565 = vpack.c.b16 %v6533, %v6533
      %v6566 = vpack.c.b16 %v6534, %v6534
      %v6567 = vpack.c.b16 %v6535, %v6535
      %v6568 = vpack.c.b16 %v6536, %v6536
      %v6569 = vpack.c.b16 %v6537, %v6537
      %v6570 = vpack.c.b16 %v6538, %v6538
      %v6571 = vpack.c.b16 %v6539, %v6539
      %v6572 = vpack.c.b16 %v6540, %v6540
      %v6573 = vpack.c.b16 %v6541, %v6541
      %v6574 = vpack.c.b16 %v6542, %v6542
      %v6575 = vpack.c.b16 %v6543, %v6543
      %v6576 = vpack.c.b16 %v6544, %v6544
      %v6577 = vpack.c.b16 %v6545, %v6545
      %6610 = vst [vmem:[#allocation3 + $0x4] sm:$0xf] %v6546
      %6611 = vst [vmem:[#allocation3 + $0x18] sm:$0xf] %v6547
      %6612 = vst [vmem:[#allocation3 + $0x2c] sm:$0xf] %v6548
      %6613 = vst [vmem:[#allocation3 + $0x40] sm:$0xf] %v6549
      %6614 = vst [vmem:[#allocation3 + $0x54] sm:$0xf] %v6550
      %6615 = vst [vmem:[#allocation3 + $0x68] sm:$0xf] %v6551
      %6616 = vst [vmem:[#allocation3 + $0x7c] sm:$0xf] %v6552
      %6617 = vst [vmem:[#allocation3 + $0x90] sm:$0xf] %v6553
      %6618 = vst [vmem:[#allocation3 + $0xa4] sm:$0xf] %v6554
      %6619 = vst [vmem:[#allocation3 + $0xb8] sm:$0xf] %v6555
      %6620 = vst [vmem:[#allocation3 + $0xcc] sm:$0xf] %v6556
      %6621 = vst [vmem:[#allocation3 + $0xe0] sm:$0xf] %v6557
      %6622 = vst [vmem:[#allocation3 + $0xf4] sm:$0xf] %v6558
      %6623 = vst [vmem:[#allocation3 + $0x108] sm:$0xf] %v6559
      %6624 = vst [vmem:[#allocation3 + $0x11c] sm:$0xf] %v6560
      %6625 = vst [vmem:[#allocation3 + $0x130] sm:$0xf] %v6561
      %6626 = vst [vmem:[#allocation3 + $0x144] sm:$0xf] %v6562
      %6627 = vst [vmem:[#allocation3 + $0x158] sm:$0xf] %v6563
      %6628 = vst [vmem:[#allocation3 + $0x16c] sm:$0xf] %v6564
      %6629 = vst [vmem:[#allocation3 + $0x180] sm:$0xf] %v6565
      %6630 = vst [vmem:[#allocation3 + $0x194] sm:$0xf] %v6566
      %6631 = vst [vmem:[#allocation3 + $0x1a8] sm:$0xf] %v6567
      %6632 = vst [vmem:[#allocation3 + $0x1bc] sm:$0xf] %v6568
      %6633 = vst [vmem:[#allocation3 + $0x1d0] sm:$0xf] %v6569
      %6634 = vst [vmem:[#allocation3 + $0x1e4] sm:$0xf] %v6570
      %6635 = vst [vmem:[#allocation3 + $0x1f8] sm:$0xf] %v6571
      %6636 = vst [vmem:[#allocation3 + $0x20c] sm:$0xf] %v6572
      %6637 = vst [vmem:[#allocation3 + $0x220] sm:$0xf] %v6573
      %6638 = vst [vmem:[#allocation3 + $0x234] sm:$0xf] %v6574
      %6639 = vst [vmem:[#allocation3 + $0x248] sm:$0xf] %v6575
      %6640 = vst [vmem:[#allocation3 + $0x25c] sm:$0xf] %v6576
      %6641 = vst [vmem:[#allocation3 + $0x270] sm:$0xf] %v6577
      %v6642 = vld [vmem:[%s349] sm:$0xe]
      %v6643 = vld [vmem:[%s349 + $0x4] sm:$0xf]
      %v6644 = vld [vmem:[%s349 + $0x8] sm:$0x1]
      %v6645 = vld [vmem:[%s349 + $0xc] sm:$0xe]
      %v6646 = vld [vmem:[%s349 + $0x10] sm:$0xf]
      %v6647 = vld [vmem:[%s349 + $0x14] sm:$0x1]
      %v6648 = vld [vmem:[%s349 + $0x18] sm:$0xe]
      %v6649 = vld [vmem:[%s349 + $0x1c] sm:$0xf]
      %v6650 = vld [vmem:[%s349 + $0x20] sm:$0x1]
      %v6651 = vld [vmem:[%s349 + $0x24] sm:$0xe]
      %v6652 = vld [vmem:[%s349 + $0x28] sm:$0xf]
      %v6653 = vld [vmem:[%s349 + $0x2c] sm:$0x1]
      %v6654 = vld [vmem:[%s349 + $0x30] sm:$0xe]
      %v6655 = vld [vmem:[%s349 + $0x34] sm:$0xf]
      %v6656 = vld [vmem:[%s349 + $0x38] sm:$0x1]
      %v6657 = vld [vmem:[%s349 + $0x3c] sm:$0xe]
      %v6658 = vld [vmem:[%s349 + $0x40] sm:$0xf]
      %v6659 = vld [vmem:[%s349 + $0x44] sm:$0x1]
      %v6660 = vld [vmem:[%s349 + $0x48] sm:$0xe]
      %v6661 = vld [vmem:[%s349 + $0x4c] sm:$0xf]
      %v6662 = vld [vmem:[%s349 + $0x50] sm:$0x1]
      %v6663 = vld [vmem:[%s349 + $0x54] sm:$0xe]
      %v6664 = vld [vmem:[%s349 + $0x58] sm:$0xf]
      %v6665 = vld [vmem:[%s349 + $0x5c] sm:$0x1]
      %v6666 = vld [vmem:[%s349 + $0x60] sm:$0xe]
      %v6667 = vld [vmem:[%s349 + $0x64] sm:$0xf]
      %v6668 = vld [vmem:[%s349 + $0x68] sm:$0x1]
      %v6669 = vld [vmem:[%s349 + $0x6c] sm:$0xe]
      %v6670 = vld [vmem:[%s349 + $0x70] sm:$0xf]
      %v6671 = vld [vmem:[%s349 + $0x74] sm:$0x1]
      %v6672 = vld [vmem:[%s349 + $0x78] sm:$0xe]
      %v6673 = vld [vmem:[%s349 + $0x7c] sm:$0xf]
      %v6674 = vld [vmem:[%s349 + $0x80] sm:$0x1]
      %v6675 = vld [vmem:[%s349 + $0x84] sm:$0xe]
      %v6676 = vld [vmem:[%s349 + $0x88] sm:$0xf]
      %v6677 = vld [vmem:[%s349 + $0x8c] sm:$0x1]
      %v6678 = vld [vmem:[%s349 + $0x90] sm:$0xe]
      %v6679 = vld [vmem:[%s349 + $0x94] sm:$0xf]
      %v6680 = vld [vmem:[%s349 + $0x98] sm:$0x1]
      %v6681 = vld [vmem:[%s349 + $0x9c] sm:$0xe]
      %v6682 = vld [vmem:[%s349 + $0xa0] sm:$0xf]
      %v6683 = vld [vmem:[%s349 + $0xa4] sm:$0x1]
      %v6684 = vld [vmem:[%s349 + $0xa8] sm:$0xe]
      %v6685 = vld [vmem:[%s349 + $0xac] sm:$0xf]
      %v6686 = vld [vmem:[%s349 + $0xb0] sm:$0x1]
      %v6687 = vld [vmem:[%s349 + $0xb4] sm:$0xe]
      %v6688 = vld [vmem:[%s349 + $0xb8] sm:$0xf]
      %v6689 = vld [vmem:[%s349 + $0xbc] sm:$0x1]
      %v6738 = vrot.slane %v6642, 5
      %v6739 = vrot.slane %v6738, 4
      %v6740 = vrot.slane %v6643, 5
      %v6741 = vsel %vm806, %v6739, %v6740
      %v6742 = vrot.slane %v6740, 4
      %v6743 = vrot.slane %v6644, 5
      %v6744 = vsel %vm806, %v6742, %v6743
      %v6745 = vrot.slane %v6645, 5
      %v6746 = vrot.slane %v6745, 4
      %v6747 = vrot.slane %v6646, 5
      %v6748 = vsel %vm806, %v6746, %v6747
      %v6749 = vrot.slane %v6747, 4
      %v6750 = vrot.slane %v6647, 5
      %v6751 = vsel %vm806, %v6749, %v6750
      %v6752 = vrot.slane %v6648, 5
      %v6753 = vrot.slane %v6752, 4
      %v6754 = vrot.slane %v6649, 5
      %v6755 = vsel %vm806, %v6753, %v6754
      %v6756 = vrot.slane %v6754, 4
      %v6757 = vrot.slane %v6650, 5
      %v6758 = vsel %vm806, %v6756, %v6757
      %v6759 = vrot.slane %v6651, 5
      %v6760 = vrot.slane %v6759, 4
      %v6761 = vrot.slane %v6652, 5
      %v6762 = vsel %vm806, %v6760, %v6761
      %v6763 = vrot.slane %v6761, 4
      %v6764 = vrot.slane %v6653, 5
      %v6765 = vsel %vm806, %v6763, %v6764
      %v6766 = vrot.slane %v6654, 5
      %v6767 = vrot.slane %v6766, 4
      %v6768 = vrot.slane %v6655, 5
      %v6769 = vsel %vm806, %v6767, %v6768
      %v6770 = vrot.slane %v6768, 4
      %v6771 = vrot.slane %v6656, 5
      %v6772 = vsel %vm806, %v6770, %v6771
      %v6773 = vrot.slane %v6657, 5
      %v6774 = vrot.slane %v6773, 4
      %v6775 = vrot.slane %v6658, 5
      %v6776 = vsel %vm806, %v6774, %v6775
      %v6777 = vrot.slane %v6775, 4
      %v6778 = vrot.slane %v6659, 5
      %v6779 = vsel %vm806, %v6777, %v6778
      %v6780 = vrot.slane %v6660, 5
      %v6781 = vrot.slane %v6780, 4
      %v6782 = vrot.slane %v6661, 5
      %v6783 = vsel %vm806, %v6781, %v6782
      %v6784 = vrot.slane %v6782, 4
      %v6785 = vrot.slane %v6662, 5
      %v6786 = vsel %vm806, %v6784, %v6785
      %v6787 = vrot.slane %v6663, 5
      %v6788 = vrot.slane %v6787, 4
      %v6789 = vrot.slane %v6664, 5
      %v6790 = vsel %vm806, %v6788, %v6789
      %v6791 = vrot.slane %v6789, 4
      %v6792 = vrot.slane %v6665, 5
      %v6793 = vsel %vm806, %v6791, %v6792
      %v6794 = vrot.slane %v6666, 5
      %v6795 = vrot.slane %v6794, 4
      %v6796 = vrot.slane %v6667, 5
      %v6797 = vsel %vm806, %v6795, %v6796
      %v6798 = vrot.slane %v6796, 4
      %v6799 = vrot.slane %v6668, 5
      %v6800 = vsel %vm806, %v6798, %v6799
      %v6801 = vrot.slane %v6669, 5
      %v6802 = vrot.slane %v6801, 4
      %v6803 = vrot.slane %v6670, 5
      %v6804 = vsel %vm806, %v6802, %v6803
      %v6805 = vrot.slane %v6803, 4
      %v6806 = vrot.slane %v6671, 5
      %v6807 = vsel %vm806, %v6805, %v6806
      %v6808 = vrot.slane %v6672, 5
      %v6809 = vrot.slane %v6808, 4
      %v6810 = vrot.slane %v6673, 5
      %v6811 = vsel %vm806, %v6809, %v6810
      %v6812 = vrot.slane %v6810, 4
      %v6813 = vrot.slane %v6674, 5
      %v6814 = vsel %vm806, %v6812, %v6813
      %v6815 = vrot.slane %v6675, 5
      %v6816 = vrot.slane %v6815, 4
      %v6817 = vrot.slane %v6676, 5
      %v6818 = vsel %vm806, %v6816, %v6817
      %v6819 = vrot.slane %v6817, 4
      %v6820 = vrot.slane %v6677, 5
      %v6821 = vsel %vm806, %v6819, %v6820
      %v6822 = vrot.slane %v6678, 5
      %v6823 = vrot.slane %v6822, 4
      %v6824 = vrot.slane %v6679, 5
      %v6825 = vsel %vm806, %v6823, %v6824
      %v6826 = vrot.slane %v6824, 4
      %v6827 = vrot.slane %v6680, 5
      %v6828 = vsel %vm806, %v6826, %v6827
      %v6829 = vrot.slane %v6681, 5
      %v6830 = vrot.slane %v6829, 4
      %v6831 = vrot.slane %v6682, 5
      %v6832 = vsel %vm806, %v6830, %v6831
      %v6833 = vrot.slane %v6831, 4
      %v6834 = vrot.slane %v6683, 5
      %v6835 = vsel %vm806, %v6833, %v6834
      %v6836 = vrot.slane %v6684, 5
      %v6837 = vrot.slane %v6836, 4
      %v6838 = vrot.slane %v6685, 5
      %v6839 = vsel %vm806, %v6837, %v6838
      %v6840 = vrot.slane %v6838, 4
      %v6841 = vrot.slane %v6686, 5
      %v6842 = vsel %vm806, %v6840, %v6841
      %v6843 = vrot.slane %v6687, 5
      %v6844 = vrot.slane %v6843, 4
      %v6845 = vrot.slane %v6688, 5
      %v6846 = vsel %vm806, %v6844, %v6845
      %v6847 = vrot.slane %v6845, 4
      %v6848 = vrot.slane %v6689, 5
      %v6849 = vsel %vm806, %v6847, %v6848
      %v6850 = vld [vmem:[%s349] sm:$0xc]
      %v6851 = vld [vmem:[%s349 + $0x8] sm:$0x3]
      %v6852 = vld [vmem:[%s349 + $0xc] sm:$0xc]
      %v6853 = vld [vmem:[%s349 + $0x14] sm:$0x3]
      %v6854 = vld [vmem:[%s349 + $0x18] sm:$0xc]
      %v6855 = vld [vmem:[%s349 + $0x20] sm:$0x3]
      %v6856 = vld [vmem:[%s349 + $0x24] sm:$0xc]
      %v6857 = vld [vmem:[%s349 + $0x2c] sm:$0x3]
      %v6858 = vld [vmem:[%s349 + $0x30] sm:$0xc]
      %v6859 = vld [vmem:[%s349 + $0x38] sm:$0x3]
      %v6860 = vld [vmem:[%s349 + $0x3c] sm:$0xc]
      %v6861 = vld [vmem:[%s349 + $0x44] sm:$0x3]
      %v6862 = vld [vmem:[%s349 + $0x48] sm:$0xc]
      %v6863 = vld [vmem:[%s349 + $0x50] sm:$0x3]
      %v6864 = vld [vmem:[%s349 + $0x54] sm:$0xc]
      %v6865 = vld [vmem:[%s349 + $0x5c] sm:$0x3]
      %v6866 = vld [vmem:[%s349 + $0x60] sm:$0xc]
      %v6867 = vld [vmem:[%s349 + $0x68] sm:$0x3]
      %v6868 = vld [vmem:[%s349 + $0x6c] sm:$0xc]
      %v6869 = vld [vmem:[%s349 + $0x74] sm:$0x3]
      %v6870 = vld [vmem:[%s349 + $0x78] sm:$0xc]
      %v6871 = vld [vmem:[%s349 + $0x80] sm:$0x3]
      %v6872 = vld [vmem:[%s349 + $0x84] sm:$0xc]
      %v6873 = vld [vmem:[%s349 + $0x8c] sm:$0x3]
      %v6874 = vld [vmem:[%s349 + $0x90] sm:$0xc]
      %v6875 = vld [vmem:[%s349 + $0x98] sm:$0x3]
      %v6876 = vld [vmem:[%s349 + $0x9c] sm:$0xc]
      %v6877 = vld [vmem:[%s349 + $0xa4] sm:$0x3]
      %v6878 = vld [vmem:[%s349 + $0xa8] sm:$0xc]
      %v6879 = vld [vmem:[%s349 + $0xb0] sm:$0x3]
      %v6880 = vld [vmem:[%s349 + $0xb4] sm:$0xc]
      %v6881 = vld [vmem:[%s349 + $0xbc] sm:$0x3]
      %v6914 = vrot.slane %v6850, 6
      %v6915 = vrot.slane %v6914, 4
      %v6916 = vrot.slane %v6643, 6
      %v6917 = vsel %vm1354, %v6915, %v6916
      %v6918 = vrot.slane %v6916, 4
      %v6919 = vrot.slane %v6851, 6
      %v6920 = vsel %vm1354, %v6918, %v6919
      %v6921 = vrot.slane %v6852, 6
      %v6922 = vrot.slane %v6921, 4
      %v6923 = vrot.slane %v6646, 6
      %v6924 = vsel %vm1354, %v6922, %v6923
      %v6925 = vrot.slane %v6923, 4
      %v6926 = vrot.slane %v6853, 6
      %v6927 = vsel %vm1354, %v6925, %v6926
      %v6928 = vrot.slane %v6854, 6
      %v6929 = vrot.slane %v6928, 4
      %v6930 = vrot.slane %v6649, 6
      %v6931 = vsel %vm1354, %v6929, %v6930
      %v6932 = vrot.slane %v6930, 4
      %v6933 = vrot.slane %v6855, 6
      %v6934 = vsel %vm1354, %v6932, %v6933
      %v6935 = vrot.slane %v6856, 6
      %v6936 = vrot.slane %v6935, 4
      %v6937 = vrot.slane %v6652, 6
      %v6938 = vsel %vm1354, %v6936, %v6937
      %v6939 = vrot.slane %v6937, 4
      %v6940 = vrot.slane %v6857, 6
      %v6941 = vsel %vm1354, %v6939, %v6940
      %v6942 = vrot.slane %v6858, 6
      %v6943 = vrot.slane %v6942, 4
      %v6944 = vrot.slane %v6655, 6
      %v6945 = vsel %vm1354, %v6943, %v6944
      %v6946 = vrot.slane %v6944, 4
      %v6947 = vrot.slane %v6859, 6
      %v6948 = vsel %vm1354, %v6946, %v6947
      %v6949 = vrot.slane %v6860, 6
      %v6950 = vrot.slane %v6949, 4
      %v6951 = vrot.slane %v6658, 6
      %v6952 = vsel %vm1354, %v6950, %v6951
      %v6953 = vrot.slane %v6951, 4
      %v6954 = vrot.slane %v6861, 6
      %v6955 = vsel %vm1354, %v6953, %v6954
      %v6956 = vrot.slane %v6862, 6
      %v6957 = vrot.slane %v6956, 4
      %v6958 = vrot.slane %v6661, 6
      %v6959 = vsel %vm1354, %v6957, %v6958
      %v6960 = vrot.slane %v6958, 4
      %v6961 = vrot.slane %v6863, 6
      %v6962 = vsel %vm1354, %v6960, %v6961
      %v6963 = vrot.slane %v6864, 6
      %v6964 = vrot.slane %v6963, 4
      %v6965 = vrot.slane %v6664, 6
      %v6966 = vsel %vm1354, %v6964, %v6965
      %v6967 = vrot.slane %v6965, 4
      %v6968 = vrot.slane %v6865, 6
      %v6969 = vsel %vm1354, %v6967, %v6968
      %v6970 = vrot.slane %v6866, 6
      %v6971 = vrot.slane %v6970, 4
      %v6972 = vrot.slane %v6667, 6
      %v6973 = vsel %vm1354, %v6971, %v6972
      %v6974 = vrot.slane %v6972, 4
      %v6975 = vrot.slane %v6867, 6
      %v6976 = vsel %vm1354, %v6974, %v6975
      %v6977 = vrot.slane %v6868, 6
      %v6978 = vrot.slane %v6977, 4
      %v6979 = vrot.slane %v6670, 6
      %v6980 = vsel %vm1354, %v6978, %v6979
      %v6981 = vrot.slane %v6979, 4
      %v6982 = vrot.slane %v6869, 6
      %v6983 = vsel %vm1354, %v6981, %v6982
      %v6984 = vrot.slane %v6870, 6
      %v6985 = vrot.slane %v6984, 4
      %v6986 = vrot.slane %v6673, 6
      %v6987 = vsel %vm1354, %v6985, %v6986
      %v6988 = vrot.slane %v6986, 4
      %v6989 = vrot.slane %v6871, 6
      %v6990 = vsel %vm1354, %v6988, %v6989
      %v6991 = vrot.slane %v6872, 6
      %v6992 = vrot.slane %v6991, 4
      %v6993 = vrot.slane %v6676, 6
      %v6994 = vsel %vm1354, %v6992, %v6993
      %v6995 = vrot.slane %v6993, 4
      %v6996 = vrot.slane %v6873, 6
      %v6997 = vsel %vm1354, %v6995, %v6996
      %v6998 = vrot.slane %v6874, 6
      %v6999 = vrot.slane %v6998, 4
      %v7000 = vrot.slane %v6679, 6
      %v7001 = vsel %vm1354, %v6999, %v7000
      %v7002 = vrot.slane %v7000, 4
      %v7003 = vrot.slane %v6875, 6
      %v7004 = vsel %vm1354, %v7002, %v7003
      %v7005 = vrot.slane %v6876, 6
      %v7006 = vrot.slane %v7005, 4
      %v7007 = vrot.slane %v6682, 6
      %v7008 = vsel %vm1354, %v7006, %v7007
      %v7009 = vrot.slane %v7007, 4
      %v7010 = vrot.slane %v6877, 6
      %v7011 = vsel %vm1354, %v7009, %v7010
      %v7012 = vrot.slane %v6878, 6
      %v7013 = vrot.slane %v7012, 4
      %v7014 = vrot.slane %v6685, 6
      %v7015 = vsel %vm1354, %v7013, %v7014
      %v7016 = vrot.slane %v7014, 4
      %v7017 = vrot.slane %v6879, 6
      %v7018 = vsel %vm1354, %v7016, %v7017
      %v7019 = vrot.slane %v6880, 6
      %v7020 = vrot.slane %v7019, 4
      %v7021 = vrot.slane %v6688, 6
      %v7022 = vsel %vm1354, %v7020, %v7021
      %v7023 = vrot.slane %v7021, 4
      %v7024 = vrot.slane %v6881, 6
      %v7025 = vsel %vm1354, %v7023, %v7024
      %v7026 = vunpack.c.l.b16 %v6741
      %v7027 = vunpack.c.l.b16 %v6744
      %v7028 = vunpack.c.l.b16 %v6748
      %v7029 = vunpack.c.l.b16 %v6751
      %v7030 = vunpack.c.l.b16 %v6755
      %v7031 = vunpack.c.l.b16 %v6758
      %v7032 = vunpack.c.l.b16 %v6762
      %v7033 = vunpack.c.l.b16 %v6765
      %v7034 = vunpack.c.l.b16 %v6769
      %v7035 = vunpack.c.l.b16 %v6772
      %v7036 = vunpack.c.l.b16 %v6776
      %v7037 = vunpack.c.l.b16 %v6779
      %v7038 = vunpack.c.l.b16 %v6783
      %v7039 = vunpack.c.l.b16 %v6786
      %v7040 = vunpack.c.l.b16 %v6790
      %v7041 = vunpack.c.l.b16 %v6793
      %v7042 = vunpack.c.l.b16 %v6797
      %v7043 = vunpack.c.l.b16 %v6800
      %v7044 = vunpack.c.l.b16 %v6804
      %v7045 = vunpack.c.l.b16 %v6807
      %v7046 = vunpack.c.l.b16 %v6811
      %v7047 = vunpack.c.l.b16 %v6814
      %v7048 = vunpack.c.l.b16 %v6818
      %v7049 = vunpack.c.l.b16 %v6821
      %v7050 = vunpack.c.l.b16 %v6825
      %v7051 = vunpack.c.l.b16 %v6828
      %v7052 = vunpack.c.l.b16 %v6832
      %v7053 = vunpack.c.l.b16 %v6835
      %v7054 = vunpack.c.l.b16 %v6839
      %v7055 = vunpack.c.l.b16 %v6842
      %v7056 = vunpack.c.l.b16 %v6846
      %v7057 = vunpack.c.l.b16 %v6849
      %v7058 = vpack.c.b16 %v7027, %v7026
      %v7059 = vpack.c.b16 %v7029, %v7028
      %v7060 = vpack.c.b16 %v7031, %v7030
      %v7061 = vpack.c.b16 %v7033, %v7032
      %v7062 = vpack.c.b16 %v7035, %v7034
      %v7063 = vpack.c.b16 %v7037, %v7036
      %v7064 = vpack.c.b16 %v7039, %v7038
      %v7065 = vpack.c.b16 %v7041, %v7040
      %v7066 = vpack.c.b16 %v7043, %v7042
      %v7067 = vpack.c.b16 %v7045, %v7044
      %v7068 = vpack.c.b16 %v7047, %v7046
      %v7069 = vpack.c.b16 %v7049, %v7048
      %v7070 = vpack.c.b16 %v7051, %v7050
      %v7071 = vpack.c.b16 %v7053, %v7052
      %v7072 = vpack.c.b16 %v7055, %v7054
      %v7073 = vpack.c.b16 %v7057, %v7056
      %v7074 = vunpack.c.l.b16 %v6917
      %v7075 = vunpack.c.l.b16 %v6920
      %v7076 = vunpack.c.l.b16 %v6924
      %v7077 = vunpack.c.l.b16 %v6927
      %v7078 = vunpack.c.l.b16 %v6931
      %v7079 = vunpack.c.l.b16 %v6934
      %v7080 = vunpack.c.l.b16 %v6938
      %v7081 = vunpack.c.l.b16 %v6941
      %v7082 = vunpack.c.l.b16 %v6945
      %v7083 = vunpack.c.l.b16 %v6948
      %v7084 = vunpack.c.l.b16 %v6952
      %v7085 = vunpack.c.l.b16 %v6955
      %v7086 = vunpack.c.l.b16 %v6959
      %v7087 = vunpack.c.l.b16 %v6962
      %v7088 = vunpack.c.l.b16 %v6966
      %v7089 = vunpack.c.l.b16 %v6969
      %v7090 = vunpack.c.l.b16 %v6973
      %v7091 = vunpack.c.l.b16 %v6976
      %v7092 = vunpack.c.l.b16 %v6980
      %v7093 = vunpack.c.l.b16 %v6983
      %v7094 = vunpack.c.l.b16 %v6987
      %v7095 = vunpack.c.l.b16 %v6990
      %v7096 = vunpack.c.l.b16 %v6994
      %v7097 = vunpack.c.l.b16 %v6997
      %v7098 = vunpack.c.l.b16 %v7001
      %v7099 = vunpack.c.l.b16 %v7004
      %v7100 = vunpack.c.l.b16 %v7008
      %v7101 = vunpack.c.l.b16 %v7011
      %v7102 = vunpack.c.l.b16 %v7015
      %v7103 = vunpack.c.l.b16 %v7018
      %v7104 = vunpack.c.l.b16 %v7022
      %v7105 = vunpack.c.l.b16 %v7025
      %v7106 = vpack.c.b16 %v7075, %v7074
      %v7107 = vpack.c.b16 %v7077, %v7076
      %v7108 = vpack.c.b16 %v7079, %v7078
      %v7109 = vpack.c.b16 %v7081, %v7080
      %v7110 = vpack.c.b16 %v7083, %v7082
      %v7111 = vpack.c.b16 %v7085, %v7084
      %v7112 = vpack.c.b16 %v7087, %v7086
      %v7113 = vpack.c.b16 %v7089, %v7088
      %v7114 = vpack.c.b16 %v7091, %v7090
      %v7115 = vpack.c.b16 %v7093, %v7092
      %v7116 = vpack.c.b16 %v7095, %v7094
      %v7117 = vpack.c.b16 %v7097, %v7096
      %v7118 = vpack.c.b16 %v7099, %v7098
      %v7119 = vpack.c.b16 %v7101, %v7100
      %v7120 = vpack.c.b16 %v7103, %v7102
      %v7121 = vpack.c.b16 %v7105, %v7104
      %7122 = vrot.lane.b32.xlu0 %v7106, 64
      %v7123 = vpop.permute.xlu0 %7122
      %7124 = vrot.lane.b32.xlu0 %v7107, 64
      %v7125 = vpop.permute.xlu0 %7124
      %7126 = vrot.lane.b32.xlu0 %v7108, 64
      %v7127 = vpop.permute.xlu0 %7126
      %7128 = vrot.lane.b32.xlu0 %v7109, 64
      %v7129 = vpop.permute.xlu0 %7128
      %7130 = vrot.lane.b32.xlu0 %v7110, 64
      %v7131 = vpop.permute.xlu0 %7130
      %7132 = vrot.lane.b32.xlu0 %v7111, 64
      %v7133 = vpop.permute.xlu0 %7132
      %7134 = vrot.lane.b32.xlu0 %v7112, 64
      %v7135 = vpop.permute.xlu0 %7134
      %7136 = vrot.lane.b32.xlu0 %v7113, 64
      %v7137 = vpop.permute.xlu0 %7136
      %7138 = vrot.lane.b32.xlu0 %v7114, 64
      %v7139 = vpop.permute.xlu0 %7138
      %7140 = vrot.lane.b32.xlu0 %v7115, 64
      %v7141 = vpop.permute.xlu0 %7140
      %7142 = vrot.lane.b32.xlu0 %v7116, 64
      %v7143 = vpop.permute.xlu0 %7142
      %7144 = vrot.lane.b32.xlu0 %v7117, 64
      %v7145 = vpop.permute.xlu0 %7144
      %7146 = vrot.lane.b32.xlu0 %v7118, 64
      %v7147 = vpop.permute.xlu0 %7146
      %7148 = vrot.lane.b32.xlu0 %v7119, 64
      %v7149 = vpop.permute.xlu0 %7148
      %7150 = vrot.lane.b32.xlu0 %v7120, 64
      %v7151 = vpop.permute.xlu0 %7150
      %7152 = vrot.lane.b32.xlu0 %v7121, 64
      %v7153 = vpop.permute.xlu0 %7152
      %v7156 = vsel %vm1063, %v7058, %v7123
      %v7159 = vsel %vm1063, %v7059, %v7125
      %v7162 = vsel %vm1063, %v7060, %v7127
      %v7165 = vsel %vm1063, %v7061, %v7129
      %v7168 = vsel %vm1063, %v7062, %v7131
      %v7171 = vsel %vm1063, %v7063, %v7133
      %v7174 = vsel %vm1063, %v7064, %v7135
      %v7177 = vsel %vm1063, %v7065, %v7137
      %v7180 = vsel %vm1063, %v7066, %v7139
      %v7183 = vsel %vm1063, %v7067, %v7141
      %v7186 = vsel %vm1063, %v7068, %v7143
      %v7189 = vsel %vm1063, %v7069, %v7145
      %v7192 = vsel %vm1063, %v7070, %v7147
      %v7195 = vsel %vm1063, %v7071, %v7149
      %v7198 = vsel %vm1063, %v7072, %v7151
      %v7201 = vsel %vm1063, %v7073, %v7153
      %v7218 = vunpack.c.l.b16 %v7156
      %v7219 = vunpack.c.h.b16 %v7156
      %v7220 = vunpack.c.l.b16 %v7159
      %v7221 = vunpack.c.h.b16 %v7159
      %v7222 = vunpack.c.l.b16 %v7162
      %v7223 = vunpack.c.h.b16 %v7162
      %v7224 = vunpack.c.l.b16 %v7165
      %v7225 = vunpack.c.h.b16 %v7165
      %v7226 = vunpack.c.l.b16 %v7168
      %v7227 = vunpack.c.h.b16 %v7168
      %v7228 = vunpack.c.l.b16 %v7171
      %v7229 = vunpack.c.h.b16 %v7171
      %v7230 = vunpack.c.l.b16 %v7174
      %v7231 = vunpack.c.h.b16 %v7174
      %v7232 = vunpack.c.l.b16 %v7177
      %v7233 = vunpack.c.h.b16 %v7177
      %v7234 = vunpack.c.l.b16 %v7180
      %v7235 = vunpack.c.h.b16 %v7180
      %v7236 = vunpack.c.l.b16 %v7183
      %v7237 = vunpack.c.h.b16 %v7183
      %v7238 = vunpack.c.l.b16 %v7186
      %v7239 = vunpack.c.h.b16 %v7186
      %v7240 = vunpack.c.l.b16 %v7189
      %v7241 = vunpack.c.h.b16 %v7189
      %v7242 = vunpack.c.l.b16 %v7192
      %v7243 = vunpack.c.h.b16 %v7192
      %v7244 = vunpack.c.l.b16 %v7195
      %v7245 = vunpack.c.h.b16 %v7195
      %v7246 = vunpack.c.l.b16 %v7198
      %v7247 = vunpack.c.h.b16 %v7198
      %v7248 = vunpack.c.l.b16 %v7201
      %v7249 = vunpack.c.h.b16 %v7201
      %v7250 = vpack.c.b16 %v7218, %v7218
      %v7251 = vpack.c.b16 %v7219, %v7219
      %v7252 = vpack.c.b16 %v7220, %v7220
      %v7253 = vpack.c.b16 %v7221, %v7221
      %v7254 = vpack.c.b16 %v7222, %v7222
      %v7255 = vpack.c.b16 %v7223, %v7223
      %v7256 = vpack.c.b16 %v7224, %v7224
      %v7257 = vpack.c.b16 %v7225, %v7225
      %v7258 = vpack.c.b16 %v7226, %v7226
      %v7259 = vpack.c.b16 %v7227, %v7227
      %v7260 = vpack.c.b16 %v7228, %v7228
      %v7261 = vpack.c.b16 %v7229, %v7229
      %v7262 = vpack.c.b16 %v7230, %v7230
      %v7263 = vpack.c.b16 %v7231, %v7231
      %v7264 = vpack.c.b16 %v7232, %v7232
      %v7265 = vpack.c.b16 %v7233, %v7233
      %v7266 = vpack.c.b16 %v7234, %v7234
      %v7267 = vpack.c.b16 %v7235, %v7235
      %v7268 = vpack.c.b16 %v7236, %v7236
      %v7269 = vpack.c.b16 %v7237, %v7237
      %v7270 = vpack.c.b16 %v7238, %v7238
      %v7271 = vpack.c.b16 %v7239, %v7239
      %v7272 = vpack.c.b16 %v7240, %v7240
      %v7273 = vpack.c.b16 %v7241, %v7241
      %v7274 = vpack.c.b16 %v7242, %v7242
      %v7275 = vpack.c.b16 %v7243, %v7243
      %v7276 = vpack.c.b16 %v7244, %v7244
      %v7277 = vpack.c.b16 %v7245, %v7245
      %v7278 = vpack.c.b16 %v7246, %v7246
      %v7279 = vpack.c.b16 %v7247, %v7247
      %v7280 = vpack.c.b16 %v7248, %v7248
      %v7281 = vpack.c.b16 %v7249, %v7249
      %7314 = vst [vmem:[#allocation3 + $0x8] sm:$0xf] %v7250
      %7315 = vst [vmem:[#allocation3 + $0x1c] sm:$0xf] %v7251
      %7316 = vst [vmem:[#allocation3 + $0x30] sm:$0xf] %v7252
      %7317 = vst [vmem:[#allocation3 + $0x44] sm:$0xf] %v7253
      %7318 = vst [vmem:[#allocation3 + $0x58] sm:$0xf] %v7254
      %7319 = vst [vmem:[#allocation3 + $0x6c] sm:$0xf] %v7255
      %7320 = vst [vmem:[#allocation3 + $0x80] sm:$0xf] %v7256
      %7321 = vst [vmem:[#allocation3 + $0x94] sm:$0xf] %v7257
      %7322 = vst [vmem:[#allocation3 + $0xa8] sm:$0xf] %v7258
      %7323 = vst [vmem:[#allocation3 + $0xbc] sm:$0xf] %v7259
      %7324 = vst [vmem:[#allocation3 + $0xd0] sm:$0xf] %v7260
      %7325 = vst [vmem:[#allocation3 + $0xe4] sm:$0xf] %v7261
      %7326 = vst [vmem:[#allocation3 + $0xf8] sm:$0xf] %v7262
      %7327 = vst [vmem:[#allocation3 + $0x10c] sm:$0xf] %v7263
      %7328 = vst [vmem:[#allocation3 + $0x120] sm:$0xf] %v7264
      %7329 = vst [vmem:[#allocation3 + $0x134] sm:$0xf] %v7265
      %7330 = vst [vmem:[#allocation3 + $0x148] sm:$0xf] %v7266
      %7331 = vst [vmem:[#allocation3 + $0x15c] sm:$0xf] %v7267
      %7332 = vst [vmem:[#allocation3 + $0x170] sm:$0xf] %v7268
      %7333 = vst [vmem:[#allocation3 + $0x184] sm:$0xf] %v7269
      %7334 = vst [vmem:[#allocation3 + $0x198] sm:$0xf] %v7270
      %7335 = vst [vmem:[#allocation3 + $0x1ac] sm:$0xf] %v7271
      %7336 = vst [vmem:[#allocation3 + $0x1c0] sm:$0xf] %v7272
      %7337 = vst [vmem:[#allocation3 + $0x1d4] sm:$0xf] %v7273
      %7338 = vst [vmem:[#allocation3 + $0x1e8] sm:$0xf] %v7274
      %7339 = vst [vmem:[#allocation3 + $0x1fc] sm:$0xf] %v7275
      %7340 = vst [vmem:[#allocation3 + $0x210] sm:$0xf] %v7276
      %7341 = vst [vmem:[#allocation3 + $0x224] sm:$0xf] %v7277
      %7342 = vst [vmem:[#allocation3 + $0x238] sm:$0xf] %v7278
      %7343 = vst [vmem:[#allocation3 + $0x24c] sm:$0xf] %v7279
      %7344 = vst [vmem:[#allocation3 + $0x260] sm:$0xf] %v7280
      %7345 = vst [vmem:[#allocation3 + $0x274] sm:$0xf] %v7281
      %v7346 = vld [vmem:[%s2555] sm:$0xf]
      %v7347 = vld [vmem:[%s2555 + $0x4] sm:$0xf]
      %v7348 = vld [vmem:[%s2555 + $0xc] sm:$0xf]
      %v7349 = vld [vmem:[%s2555 + $0x10] sm:$0xf]
      %v7350 = vld [vmem:[%s2555 + $0x18] sm:$0xf]
      %v7351 = vld [vmem:[%s2555 + $0x1c] sm:$0xf]
      %v7352 = vld [vmem:[%s2555 + $0x24] sm:$0xf]
      %v7353 = vld [vmem:[%s2555 + $0x28] sm:$0xf]
      %v7354 = vld [vmem:[%s2555 + $0x30] sm:$0xf]
      %v7355 = vld [vmem:[%s2555 + $0x34] sm:$0xf]
      %v7356 = vld [vmem:[%s2555 + $0x3c] sm:$0xf]
      %v7357 = vld [vmem:[%s2555 + $0x40] sm:$0xf]
      %v7358 = vld [vmem:[%s2555 + $0x48] sm:$0xf]
      %v7359 = vld [vmem:[%s2555 + $0x4c] sm:$0xf]
      %v7360 = vld [vmem:[%s2555 + $0x54] sm:$0xf]
      %v7361 = vld [vmem:[%s2555 + $0x58] sm:$0xf]
      %v7362 = vld [vmem:[%s2555 + $0x60] sm:$0xf]
      %v7363 = vld [vmem:[%s2555 + $0x64] sm:$0xf]
      %v7364 = vld [vmem:[%s2555 + $0x6c] sm:$0xf]
      %v7365 = vld [vmem:[%s2555 + $0x70] sm:$0xf]
      %v7366 = vld [vmem:[%s2555 + $0x78] sm:$0xf]
      %v7367 = vld [vmem:[%s2555 + $0x7c] sm:$0xf]
      %v7368 = vld [vmem:[%s2555 + $0x84] sm:$0xf]
      %v7369 = vld [vmem:[%s2555 + $0x88] sm:$0xf]
      %v7370 = vld [vmem:[%s2555 + $0x90] sm:$0xf]
      %v7371 = vld [vmem:[%s2555 + $0x94] sm:$0xf]
      %v7372 = vld [vmem:[%s2555 + $0x9c] sm:$0xf]
      %v7373 = vld [vmem:[%s2555 + $0xa0] sm:$0xf]
      %v7374 = vld [vmem:[%s2555 + $0xa8] sm:$0xf]
      %v7375 = vld [vmem:[%s2555 + $0xac] sm:$0xf]
      %v7376 = vld [vmem:[%s2555 + $0xb4] sm:$0xf]
      %v7377 = vld [vmem:[%s2555 + $0xb8] sm:$0xf]
      %v7378 = vld [vmem:[%s2555] sm:$0xe]
      %v7379 = vld [vmem:[%s2555 + $0x8] sm:$0x1]
      %v7380 = vld [vmem:[%s2555 + $0xc] sm:$0xe]
      %v7381 = vld [vmem:[%s2555 + $0x14] sm:$0x1]
      %v7382 = vld [vmem:[%s2555 + $0x18] sm:$0xe]
      %v7383 = vld [vmem:[%s2555 + $0x20] sm:$0x1]
      %v7384 = vld [vmem:[%s2555 + $0x24] sm:$0xe]
      %v7385 = vld [vmem:[%s2555 + $0x2c] sm:$0x1]
      %v7386 = vld [vmem:[%s2555 + $0x30] sm:$0xe]
      %v7387 = vld [vmem:[%s2555 + $0x38] sm:$0x1]
      %v7388 = vld [vmem:[%s2555 + $0x3c] sm:$0xe]
      %v7389 = vld [vmem:[%s2555 + $0x44] sm:$0x1]
      %v7390 = vld [vmem:[%s2555 + $0x48] sm:$0xe]
      %v7391 = vld [vmem:[%s2555 + $0x50] sm:$0x1]
      %v7392 = vld [vmem:[%s2555 + $0x54] sm:$0xe]
      %v7393 = vld [vmem:[%s2555 + $0x5c] sm:$0x1]
      %v7394 = vld [vmem:[%s2555 + $0x60] sm:$0xe]
      %v7395 = vld [vmem:[%s2555 + $0x68] sm:$0x1]
      %v7396 = vld [vmem:[%s2555 + $0x6c] sm:$0xe]
      %v7397 = vld [vmem:[%s2555 + $0x74] sm:$0x1]
      %v7398 = vld [vmem:[%s2555 + $0x78] sm:$0xe]
      %v7399 = vld [vmem:[%s2555 + $0x80] sm:$0x1]
      %v7400 = vld [vmem:[%s2555 + $0x84] sm:$0xe]
      %v7401 = vld [vmem:[%s2555 + $0x8c] sm:$0x1]
      %v7402 = vld [vmem:[%s2555 + $0x90] sm:$0xe]
      %v7403 = vld [vmem:[%s2555 + $0x98] sm:$0x1]
      %v7404 = vld [vmem:[%s2555 + $0x9c] sm:$0xe]
      %v7405 = vld [vmem:[%s2555 + $0xa4] sm:$0x1]
      %v7406 = vld [vmem:[%s2555 + $0xa8] sm:$0xe]
      %v7407 = vld [vmem:[%s2555 + $0xb0] sm:$0x1]
      %v7408 = vld [vmem:[%s2555 + $0xb4] sm:$0xe]
      %v7409 = vld [vmem:[%s2555 + $0xbc] sm:$0x1]
      %v7458 = vrot.slane %v7378, 5
      %v7459 = vrot.slane %v7458, 4
      %v7460 = vrot.slane %v7347, 5
      %v7461 = vsel %vm806, %v7459, %v7460
      %v7462 = vrot.slane %v7460, 4
      %v7463 = vrot.slane %v7379, 5
      %v7464 = vsel %vm806, %v7462, %v7463
      %v7465 = vrot.slane %v7380, 5
      %v7466 = vrot.slane %v7465, 4
      %v7467 = vrot.slane %v7349, 5
      %v7468 = vsel %vm806, %v7466, %v7467
      %v7469 = vrot.slane %v7467, 4
      %v7470 = vrot.slane %v7381, 5
      %v7471 = vsel %vm806, %v7469, %v7470
      %v7472 = vrot.slane %v7382, 5
      %v7473 = vrot.slane %v7472, 4
      %v7474 = vrot.slane %v7351, 5
      %v7475 = vsel %vm806, %v7473, %v7474
      %v7476 = vrot.slane %v7474, 4
      %v7477 = vrot.slane %v7383, 5
      %v7478 = vsel %vm806, %v7476, %v7477
      %v7479 = vrot.slane %v7384, 5
      %v7480 = vrot.slane %v7479, 4
      %v7481 = vrot.slane %v7353, 5
      %v7482 = vsel %vm806, %v7480, %v7481
      %v7483 = vrot.slane %v7481, 4
      %v7484 = vrot.slane %v7385, 5
      %v7485 = vsel %vm806, %v7483, %v7484
      %v7486 = vrot.slane %v7386, 5
      %v7487 = vrot.slane %v7486, 4
      %v7488 = vrot.slane %v7355, 5
      %v7489 = vsel %vm806, %v7487, %v7488
      %v7490 = vrot.slane %v7488, 4
      %v7491 = vrot.slane %v7387, 5
      %v7492 = vsel %vm806, %v7490, %v7491
      %v7493 = vrot.slane %v7388, 5
      %v7494 = vrot.slane %v7493, 4
      %v7495 = vrot.slane %v7357, 5
      %v7496 = vsel %vm806, %v7494, %v7495
      %v7497 = vrot.slane %v7495, 4
      %v7498 = vrot.slane %v7389, 5
      %v7499 = vsel %vm806, %v7497, %v7498
      %v7500 = vrot.slane %v7390, 5
      %v7501 = vrot.slane %v7500, 4
      %v7502 = vrot.slane %v7359, 5
      %v7503 = vsel %vm806, %v7501, %v7502
      %v7504 = vrot.slane %v7502, 4
      %v7505 = vrot.slane %v7391, 5
      %v7506 = vsel %vm806, %v7504, %v7505
      %v7507 = vrot.slane %v7392, 5
      %v7508 = vrot.slane %v7507, 4
      %v7509 = vrot.slane %v7361, 5
      %v7510 = vsel %vm806, %v7508, %v7509
      %v7511 = vrot.slane %v7509, 4
      %v7512 = vrot.slane %v7393, 5
      %v7513 = vsel %vm806, %v7511, %v7512
      %v7514 = vrot.slane %v7394, 5
      %v7515 = vrot.slane %v7514, 4
      %v7516 = vrot.slane %v7363, 5
      %v7517 = vsel %vm806, %v7515, %v7516
      %v7518 = vrot.slane %v7516, 4
      %v7519 = vrot.slane %v7395, 5
      %v7520 = vsel %vm806, %v7518, %v7519
      %v7521 = vrot.slane %v7396, 5
      %v7522 = vrot.slane %v7521, 4
      %v7523 = vrot.slane %v7365, 5
      %v7524 = vsel %vm806, %v7522, %v7523
      %v7525 = vrot.slane %v7523, 4
      %v7526 = vrot.slane %v7397, 5
      %v7527 = vsel %vm806, %v7525, %v7526
      %v7528 = vrot.slane %v7398, 5
      %v7529 = vrot.slane %v7528, 4
      %v7530 = vrot.slane %v7367, 5
      %v7531 = vsel %vm806, %v7529, %v7530
      %v7532 = vrot.slane %v7530, 4
      %v7533 = vrot.slane %v7399, 5
      %v7534 = vsel %vm806, %v7532, %v7533
      %v7535 = vrot.slane %v7400, 5
      %v7536 = vrot.slane %v7535, 4
      %v7537 = vrot.slane %v7369, 5
      %v7538 = vsel %vm806, %v7536, %v7537
      %v7539 = vrot.slane %v7537, 4
      %v7540 = vrot.slane %v7401, 5
      %v7541 = vsel %vm806, %v7539, %v7540
      %v7542 = vrot.slane %v7402, 5
      %v7543 = vrot.slane %v7542, 4
      %v7544 = vrot.slane %v7371, 5
      %v7545 = vsel %vm806, %v7543, %v7544
      %v7546 = vrot.slane %v7544, 4
      %v7547 = vrot.slane %v7403, 5
      %v7548 = vsel %vm806, %v7546, %v7547
      %v7549 = vrot.slane %v7404, 5
      %v7550 = vrot.slane %v7549, 4
      %v7551 = vrot.slane %v7373, 5
      %v7552 = vsel %vm806, %v7550, %v7551
      %v7553 = vrot.slane %v7551, 4
      %v7554 = vrot.slane %v7405, 5
      %v7555 = vsel %vm806, %v7553, %v7554
      %v7556 = vrot.slane %v7406, 5
      %v7557 = vrot.slane %v7556, 4
      %v7558 = vrot.slane %v7375, 5
      %v7559 = vsel %vm806, %v7557, %v7558
      %v7560 = vrot.slane %v7558, 4
      %v7561 = vrot.slane %v7407, 5
      %v7562 = vsel %vm806, %v7560, %v7561
      %v7563 = vrot.slane %v7408, 5
      %v7564 = vrot.slane %v7563, 4
      %v7565 = vrot.slane %v7377, 5
      %v7566 = vsel %vm806, %v7564, %v7565
      %v7567 = vrot.slane %v7565, 4
      %v7568 = vrot.slane %v7409, 5
      %v7569 = vsel %vm806, %v7567, %v7568
      %v7586 = vunpack.c.l.b16 %v7346
      %v7587 = vunpack.c.l.b16 %v7347
      %v7588 = vunpack.c.l.b16 %v7348
      %v7589 = vunpack.c.l.b16 %v7349
      %v7590 = vunpack.c.l.b16 %v7350
      %v7591 = vunpack.c.l.b16 %v7351
      %v7592 = vunpack.c.l.b16 %v7352
      %v7593 = vunpack.c.l.b16 %v7353
      %v7594 = vunpack.c.l.b16 %v7354
      %v7595 = vunpack.c.l.b16 %v7355
      %v7596 = vunpack.c.l.b16 %v7356
      %v7597 = vunpack.c.l.b16 %v7357
      %v7598 = vunpack.c.l.b16 %v7358
      %v7599 = vunpack.c.l.b16 %v7359
      %v7600 = vunpack.c.l.b16 %v7360
      %v7601 = vunpack.c.l.b16 %v7361
      %v7602 = vunpack.c.l.b16 %v7362
      %v7603 = vunpack.c.l.b16 %v7363
      %v7604 = vunpack.c.l.b16 %v7364
      %v7605 = vunpack.c.l.b16 %v7365
      %v7606 = vunpack.c.l.b16 %v7366
      %v7607 = vunpack.c.l.b16 %v7367
      %v7608 = vunpack.c.l.b16 %v7368
      %v7609 = vunpack.c.l.b16 %v7369
      %v7610 = vunpack.c.l.b16 %v7370
      %v7611 = vunpack.c.l.b16 %v7371
      %v7612 = vunpack.c.l.b16 %v7372
      %v7613 = vunpack.c.l.b16 %v7373
      %v7614 = vunpack.c.l.b16 %v7374
      %v7615 = vunpack.c.l.b16 %v7375
      %v7616 = vunpack.c.l.b16 %v7376
      %v7617 = vunpack.c.l.b16 %v7377
      %v7618 = vpack.c.b16 %v7587, %v7586
      %v7619 = vpack.c.b16 %v7589, %v7588
      %v7620 = vpack.c.b16 %v7591, %v7590
      %v7621 = vpack.c.b16 %v7593, %v7592
      %v7622 = vpack.c.b16 %v7595, %v7594
      %v7623 = vpack.c.b16 %v7597, %v7596
      %v7624 = vpack.c.b16 %v7599, %v7598
      %v7625 = vpack.c.b16 %v7601, %v7600
      %v7626 = vpack.c.b16 %v7603, %v7602
      %v7627 = vpack.c.b16 %v7605, %v7604
      %v7628 = vpack.c.b16 %v7607, %v7606
      %v7629 = vpack.c.b16 %v7609, %v7608
      %v7630 = vpack.c.b16 %v7611, %v7610
      %v7631 = vpack.c.b16 %v7613, %v7612
      %v7632 = vpack.c.b16 %v7615, %v7614
      %v7633 = vpack.c.b16 %v7617, %v7616
      %v7634 = vunpack.c.l.b16 %v7461
      %v7635 = vunpack.c.l.b16 %v7464
      %v7636 = vunpack.c.l.b16 %v7468
      %v7637 = vunpack.c.l.b16 %v7471
      %v7638 = vunpack.c.l.b16 %v7475
      %v7639 = vunpack.c.l.b16 %v7478
      %v7640 = vunpack.c.l.b16 %v7482
      %v7641 = vunpack.c.l.b16 %v7485
      %v7642 = vunpack.c.l.b16 %v7489
      %v7643 = vunpack.c.l.b16 %v7492
      %v7644 = vunpack.c.l.b16 %v7496
      %v7645 = vunpack.c.l.b16 %v7499
      %v7646 = vunpack.c.l.b16 %v7503
      %v7647 = vunpack.c.l.b16 %v7506
      %v7648 = vunpack.c.l.b16 %v7510
      %v7649 = vunpack.c.l.b16 %v7513
      %v7650 = vunpack.c.l.b16 %v7517
      %v7651 = vunpack.c.l.b16 %v7520
      %v7652 = vunpack.c.l.b16 %v7524
      %v7653 = vunpack.c.l.b16 %v7527
      %v7654 = vunpack.c.l.b16 %v7531
      %v7655 = vunpack.c.l.b16 %v7534
      %v7656 = vunpack.c.l.b16 %v7538
      %v7657 = vunpack.c.l.b16 %v7541
      %v7658 = vunpack.c.l.b16 %v7545
      %v7659 = vunpack.c.l.b16 %v7548
      %v7660 = vunpack.c.l.b16 %v7552
      %v7661 = vunpack.c.l.b16 %v7555
      %v7662 = vunpack.c.l.b16 %v7559
      %v7663 = vunpack.c.l.b16 %v7562
      %v7664 = vunpack.c.l.b16 %v7566
      %v7665 = vunpack.c.l.b16 %v7569
      %v7666 = vpack.c.b16 %v7635, %v7634
      %v7667 = vpack.c.b16 %v7637, %v7636
      %v7668 = vpack.c.b16 %v7639, %v7638
      %v7669 = vpack.c.b16 %v7641, %v7640
      %v7670 = vpack.c.b16 %v7643, %v7642
      %v7671 = vpack.c.b16 %v7645, %v7644
      %v7672 = vpack.c.b16 %v7647, %v7646
      %v7673 = vpack.c.b16 %v7649, %v7648
      %v7674 = vpack.c.b16 %v7651, %v7650
      %v7675 = vpack.c.b16 %v7653, %v7652
      %v7676 = vpack.c.b16 %v7655, %v7654
      %v7677 = vpack.c.b16 %v7657, %v7656
      %v7678 = vpack.c.b16 %v7659, %v7658
      %v7679 = vpack.c.b16 %v7661, %v7660
      %v7680 = vpack.c.b16 %v7663, %v7662
      %v7681 = vpack.c.b16 %v7665, %v7664
      %7682 = vrot.lane.b32.xlu0 %v7666, 64
      %v7683 = vpop.permute.xlu0 %7682
      %7684 = vrot.lane.b32.xlu0 %v7667, 64
      %v7685 = vpop.permute.xlu0 %7684
      %7686 = vrot.lane.b32.xlu0 %v7668, 64
      %v7687 = vpop.permute.xlu0 %7686
      %7688 = vrot.lane.b32.xlu0 %v7669, 64
      %v7689 = vpop.permute.xlu0 %7688
      %7690 = vrot.lane.b32.xlu0 %v7670, 64
      %v7691 = vpop.permute.xlu0 %7690
      %7692 = vrot.lane.b32.xlu0 %v7671, 64
      %v7693 = vpop.permute.xlu0 %7692
      %7694 = vrot.lane.b32.xlu0 %v7672, 64
      %v7695 = vpop.permute.xlu0 %7694
      %7696 = vrot.lane.b32.xlu0 %v7673, 64
      %v7697 = vpop.permute.xlu0 %7696
      %7698 = vrot.lane.b32.xlu0 %v7674, 64
      %v7699 = vpop.permute.xlu0 %7698
      %7700 = vrot.lane.b32.xlu0 %v7675, 64
      %v7701 = vpop.permute.xlu0 %7700
      %7702 = vrot.lane.b32.xlu0 %v7676, 64
      %v7703 = vpop.permute.xlu0 %7702
      %7704 = vrot.lane.b32.xlu0 %v7677, 64
      %v7705 = vpop.permute.xlu0 %7704
      %7706 = vrot.lane.b32.xlu0 %v7678, 64
      %v7707 = vpop.permute.xlu0 %7706
      %7708 = vrot.lane.b32.xlu0 %v7679, 64
      %v7709 = vpop.permute.xlu0 %7708
      %7710 = vrot.lane.b32.xlu0 %v7680, 64
      %v7711 = vpop.permute.xlu0 %7710
      %7712 = vrot.lane.b32.xlu0 %v7681, 64
      %v7713 = vpop.permute.xlu0 %7712
      %v7716 = vsel %vm1063, %v7618, %v7683
      %v7719 = vsel %vm1063, %v7619, %v7685
      %v7722 = vsel %vm1063, %v7620, %v7687
      %v7725 = vsel %vm1063, %v7621, %v7689
      %v7728 = vsel %vm1063, %v7622, %v7691
      %v7731 = vsel %vm1063, %v7623, %v7693
      %v7734 = vsel %vm1063, %v7624, %v7695
      %v7737 = vsel %vm1063, %v7625, %v7697
      %v7740 = vsel %vm1063, %v7626, %v7699
      %v7743 = vsel %vm1063, %v7627, %v7701
      %v7746 = vsel %vm1063, %v7628, %v7703
      %v7749 = vsel %vm1063, %v7629, %v7705
      %v7752 = vsel %vm1063, %v7630, %v7707
      %v7755 = vsel %vm1063, %v7631, %v7709
      %v7758 = vsel %vm1063, %v7632, %v7711
      %v7761 = vsel %vm1063, %v7633, %v7713
      %v7778 = vunpack.c.l.b16 %v7716
      %v7779 = vunpack.c.h.b16 %v7716
      %v7780 = vunpack.c.l.b16 %v7719
      %v7781 = vunpack.c.h.b16 %v7719
      %v7782 = vunpack.c.l.b16 %v7722
      %v7783 = vunpack.c.h.b16 %v7722
      %v7784 = vunpack.c.l.b16 %v7725
      %v7785 = vunpack.c.h.b16 %v7725
      %v7786 = vunpack.c.l.b16 %v7728
      %v7787 = vunpack.c.h.b16 %v7728
      %v7788 = vunpack.c.l.b16 %v7731
      %v7789 = vunpack.c.h.b16 %v7731
      %v7790 = vunpack.c.l.b16 %v7734
      %v7791 = vunpack.c.h.b16 %v7734
      %v7792 = vunpack.c.l.b16 %v7737
      %v7793 = vunpack.c.h.b16 %v7737
      %v7794 = vunpack.c.l.b16 %v7740
      %v7795 = vunpack.c.h.b16 %v7740
      %v7796 = vunpack.c.l.b16 %v7743
      %v7797 = vunpack.c.h.b16 %v7743
      %v7798 = vunpack.c.l.b16 %v7746
      %v7799 = vunpack.c.h.b16 %v7746
      %v7800 = vunpack.c.l.b16 %v7749
      %v7801 = vunpack.c.h.b16 %v7749
      %v7802 = vunpack.c.l.b16 %v7752
      %v7803 = vunpack.c.h.b16 %v7752
      %v7804 = vunpack.c.l.b16 %v7755
      %v7805 = vunpack.c.h.b16 %v7755
      %v7806 = vunpack.c.l.b16 %v7758
      %v7807 = vunpack.c.h.b16 %v7758
      %v7808 = vunpack.c.l.b16 %v7761
      %v7809 = vunpack.c.h.b16 %v7761
      %v7810 = vpack.c.b16 %v7778, %v7778
      %v7811 = vpack.c.b16 %v7779, %v7779
      %v7812 = vpack.c.b16 %v7780, %v7780
      %v7813 = vpack.c.b16 %v7781, %v7781
      %v7814 = vpack.c.b16 %v7782, %v7782
      %v7815 = vpack.c.b16 %v7783, %v7783
      %v7816 = vpack.c.b16 %v7784, %v7784
      %v7817 = vpack.c.b16 %v7785, %v7785
      %v7818 = vpack.c.b16 %v7786, %v7786
      %v7819 = vpack.c.b16 %v7787, %v7787
      %v7820 = vpack.c.b16 %v7788, %v7788
      %v7821 = vpack.c.b16 %v7789, %v7789
      %v7822 = vpack.c.b16 %v7790, %v7790
      %v7823 = vpack.c.b16 %v7791, %v7791
      %v7824 = vpack.c.b16 %v7792, %v7792
      %v7825 = vpack.c.b16 %v7793, %v7793
      %v7826 = vpack.c.b16 %v7794, %v7794
      %v7827 = vpack.c.b16 %v7795, %v7795
      %v7828 = vpack.c.b16 %v7796, %v7796
      %v7829 = vpack.c.b16 %v7797, %v7797
      %v7830 = vpack.c.b16 %v7798, %v7798
      %v7831 = vpack.c.b16 %v7799, %v7799
      %v7832 = vpack.c.b16 %v7800, %v7800
      %v7833 = vpack.c.b16 %v7801, %v7801
      %v7834 = vpack.c.b16 %v7802, %v7802
      %v7835 = vpack.c.b16 %v7803, %v7803
      %v7836 = vpack.c.b16 %v7804, %v7804
      %v7837 = vpack.c.b16 %v7805, %v7805
      %v7838 = vpack.c.b16 %v7806, %v7806
      %v7839 = vpack.c.b16 %v7807, %v7807
      %v7840 = vpack.c.b16 %v7808, %v7808
      %v7841 = vpack.c.b16 %v7809, %v7809
      %7874 = vst [vmem:[#allocation3 + $0xc] sm:$0xf] %v7810
      %7875 = vst [vmem:[#allocation3 + $0x20] sm:$0xf] %v7811
      %7876 = vst [vmem:[#allocation3 + $0x34] sm:$0xf] %v7812
      %7877 = vst [vmem:[#allocation3 + $0x48] sm:$0xf] %v7813
      %7878 = vst [vmem:[#allocation3 + $0x5c] sm:$0xf] %v7814
      %7879 = vst [vmem:[#allocation3 + $0x70] sm:$0xf] %v7815
      %7880 = vst [vmem:[#allocation3 + $0x84] sm:$0xf] %v7816
      %7881 = vst [vmem:[#allocation3 + $0x98] sm:$0xf] %v7817
      %7882 = vst [vmem:[#allocation3 + $0xac] sm:$0xf] %v7818
      %7883 = vst [vmem:[#allocation3 + $0xc0] sm:$0xf] %v7819
      %7884 = vst [vmem:[#allocation3 + $0xd4] sm:$0xf] %v7820
      %7885 = vst [vmem:[#allocation3 + $0xe8] sm:$0xf] %v7821
      %7886 = vst [vmem:[#allocation3 + $0xfc] sm:$0xf] %v7822
      %7887 = vst [vmem:[#allocation3 + $0x110] sm:$0xf] %v7823
      %7888 = vst [vmem:[#allocation3 + $0x124] sm:$0xf] %v7824
      %7889 = vst [vmem:[#allocation3 + $0x138] sm:$0xf] %v7825
      %7890 = vst [vmem:[#allocation3 + $0x14c] sm:$0xf] %v7826
      %7891 = vst [vmem:[#allocation3 + $0x160] sm:$0xf] %v7827
      %7892 = vst [vmem:[#allocation3 + $0x174] sm:$0xf] %v7828
      %7893 = vst [vmem:[#allocation3 + $0x188] sm:$0xf] %v7829
      %7894 = vst [vmem:[#allocation3 + $0x19c] sm:$0xf] %v7830
      %7895 = vst [vmem:[#allocation3 + $0x1b0] sm:$0xf] %v7831
      %7896 = vst [vmem:[#allocation3 + $0x1c4] sm:$0xf] %v7832
      %7897 = vst [vmem:[#allocation3 + $0x1d8] sm:$0xf] %v7833
      %7898 = vst [vmem:[#allocation3 + $0x1ec] sm:$0xf] %v7834
      %7899 = vst [vmem:[#allocation3 + $0x200] sm:$0xf] %v7835
      %7900 = vst [vmem:[#allocation3 + $0x214] sm:$0xf] %v7836
      %7901 = vst [vmem:[#allocation3 + $0x228] sm:$0xf] %v7837
      %7902 = vst [vmem:[#allocation3 + $0x23c] sm:$0xf] %v7838
      %7903 = vst [vmem:[#allocation3 + $0x250] sm:$0xf] %v7839
      %7904 = vst [vmem:[#allocation3 + $0x264] sm:$0xf] %v7840
      %7905 = vst [vmem:[#allocation3 + $0x278] sm:$0xf] %v7841
      %v7906 = vld [vmem:[%s2555] sm:$0xc]
      %v7907 = vld [vmem:[%s2555 + $0x4] sm:$0xf]
      %v7908 = vld [vmem:[%s2555 + $0x8] sm:$0x3]
      %v7909 = vld [vmem:[%s2555 + $0xc] sm:$0xc]
      %v7910 = vld [vmem:[%s2555 + $0x10] sm:$0xf]
      %v7911 = vld [vmem:[%s2555 + $0x14] sm:$0x3]
      %v7912 = vld [vmem:[%s2555 + $0x18] sm:$0xc]
      %v7913 = vld [vmem:[%s2555 + $0x1c] sm:$0xf]
      %v7914 = vld [vmem:[%s2555 + $0x20] sm:$0x3]
      %v7915 = vld [vmem:[%s2555 + $0x24] sm:$0xc]
      %v7916 = vld [vmem:[%s2555 + $0x28] sm:$0xf]
      %v7917 = vld [vmem:[%s2555 + $0x2c] sm:$0x3]
      %v7918 = vld [vmem:[%s2555 + $0x30] sm:$0xc]
      %v7919 = vld [vmem:[%s2555 + $0x34] sm:$0xf]
      %v7920 = vld [vmem:[%s2555 + $0x38] sm:$0x3]
      %v7921 = vld [vmem:[%s2555 + $0x3c] sm:$0xc]
      %v7922 = vld [vmem:[%s2555 + $0x40] sm:$0xf]
      %v7923 = vld [vmem:[%s2555 + $0x44] sm:$0x3]
      %v7924 = vld [vmem:[%s2555 + $0x48] sm:$0xc]
      %v7925 = vld [vmem:[%s2555 + $0x4c] sm:$0xf]
      %v7926 = vld [vmem:[%s2555 + $0x50] sm:$0x3]
      %v7927 = vld [vmem:[%s2555 + $0x54] sm:$0xc]
      %v7928 = vld [vmem:[%s2555 + $0x58] sm:$0xf]
      %v7929 = vld [vmem:[%s2555 + $0x5c] sm:$0x3]
      %v7930 = vld [vmem:[%s2555 + $0x60] sm:$0xc]
      %v7931 = vld [vmem:[%s2555 + $0x64] sm:$0xf]
      %v7932 = vld [vmem:[%s2555 + $0x68] sm:$0x3]
      %v7933 = vld [vmem:[%s2555 + $0x6c] sm:$0xc]
      %v7934 = vld [vmem:[%s2555 + $0x70] sm:$0xf]
      %v7935 = vld [vmem:[%s2555 + $0x74] sm:$0x3]
      %v7936 = vld [vmem:[%s2555 + $0x78] sm:$0xc]
      %v7937 = vld [vmem:[%s2555 + $0x7c] sm:$0xf]
      %v7938 = vld [vmem:[%s2555 + $0x80] sm:$0x3]
      %v7939 = vld [vmem:[%s2555 + $0x84] sm:$0xc]
      %v7940 = vld [vmem:[%s2555 + $0x88] sm:$0xf]
      %v7941 = vld [vmem:[%s2555 + $0x8c] sm:$0x3]
      %v7942 = vld [vmem:[%s2555 + $0x90] sm:$0xc]
      %v7943 = vld [vmem:[%s2555 + $0x94] sm:$0xf]
      %v7944 = vld [vmem:[%s2555 + $0x98] sm:$0x3]
      %v7945 = vld [vmem:[%s2555 + $0x9c] sm:$0xc]
      %v7946 = vld [vmem:[%s2555 + $0xa0] sm:$0xf]
      %v7947 = vld [vmem:[%s2555 + $0xa4] sm:$0x3]
      %v7948 = vld [vmem:[%s2555 + $0xa8] sm:$0xc]
      %v7949 = vld [vmem:[%s2555 + $0xac] sm:$0xf]
      %v7950 = vld [vmem:[%s2555 + $0xb0] sm:$0x3]
      %v7951 = vld [vmem:[%s2555 + $0xb4] sm:$0xc]
      %v7952 = vld [vmem:[%s2555 + $0xb8] sm:$0xf]
      %v7953 = vld [vmem:[%s2555 + $0xbc] sm:$0x3]
      %v8002 = vrot.slane %v7906, 6
      %v8003 = vrot.slane %v8002, 4
      %v8004 = vrot.slane %v7907, 6
      %v8005 = vsel %vm1354, %v8003, %v8004
      %v8006 = vrot.slane %v8004, 4
      %v8007 = vrot.slane %v7908, 6
      %v8008 = vsel %vm1354, %v8006, %v8007
      %v8009 = vrot.slane %v7909, 6
      %v8010 = vrot.slane %v8009, 4
      %v8011 = vrot.slane %v7910, 6
      %v8012 = vsel %vm1354, %v8010, %v8011
      %v8013 = vrot.slane %v8011, 4
      %v8014 = vrot.slane %v7911, 6
      %v8015 = vsel %vm1354, %v8013, %v8014
      %v8016 = vrot.slane %v7912, 6
      %v8017 = vrot.slane %v8016, 4
      %v8018 = vrot.slane %v7913, 6
      %v8019 = vsel %vm1354, %v8017, %v8018
      %v8020 = vrot.slane %v8018, 4
      %v8021 = vrot.slane %v7914, 6
      %v8022 = vsel %vm1354, %v8020, %v8021
      %v8023 = vrot.slane %v7915, 6
      %v8024 = vrot.slane %v8023, 4
      %v8025 = vrot.slane %v7916, 6
      %v8026 = vsel %vm1354, %v8024, %v8025
      %v8027 = vrot.slane %v8025, 4
      %v8028 = vrot.slane %v7917, 6
      %v8029 = vsel %vm1354, %v8027, %v8028
      %v8030 = vrot.slane %v7918, 6
      %v8031 = vrot.slane %v8030, 4
      %v8032 = vrot.slane %v7919, 6
      %v8033 = vsel %vm1354, %v8031, %v8032
      %v8034 = vrot.slane %v8032, 4
      %v8035 = vrot.slane %v7920, 6
      %v8036 = vsel %vm1354, %v8034, %v8035
      %v8037 = vrot.slane %v7921, 6
      %v8038 = vrot.slane %v8037, 4
      %v8039 = vrot.slane %v7922, 6
      %v8040 = vsel %vm1354, %v8038, %v8039
      %v8041 = vrot.slane %v8039, 4
      %v8042 = vrot.slane %v7923, 6
      %v8043 = vsel %vm1354, %v8041, %v8042
      %v8044 = vrot.slane %v7924, 6
      %v8045 = vrot.slane %v8044, 4
      %v8046 = vrot.slane %v7925, 6
      %v8047 = vsel %vm1354, %v8045, %v8046
      %v8048 = vrot.slane %v8046, 4
      %v8049 = vrot.slane %v7926, 6
      %v8050 = vsel %vm1354, %v8048, %v8049
      %v8051 = vrot.slane %v7927, 6
      %v8052 = vrot.slane %v8051, 4
      %v8053 = vrot.slane %v7928, 6
      %v8054 = vsel %vm1354, %v8052, %v8053
      %v8055 = vrot.slane %v8053, 4
      %v8056 = vrot.slane %v7929, 6
      %v8057 = vsel %vm1354, %v8055, %v8056
      %v8058 = vrot.slane %v7930, 6
      %v8059 = vrot.slane %v8058, 4
      %v8060 = vrot.slane %v7931, 6
      %v8061 = vsel %vm1354, %v8059, %v8060
      %v8062 = vrot.slane %v8060, 4
      %v8063 = vrot.slane %v7932, 6
      %v8064 = vsel %vm1354, %v8062, %v8063
      %v8065 = vrot.slane %v7933, 6
      %v8066 = vrot.slane %v8065, 4
      %v8067 = vrot.slane %v7934, 6
      %v8068 = vsel %vm1354, %v8066, %v8067
      %v8069 = vrot.slane %v8067, 4
      %v8070 = vrot.slane %v7935, 6
      %v8071 = vsel %vm1354, %v8069, %v8070
      %v8072 = vrot.slane %v7936, 6
      %v8073 = vrot.slane %v8072, 4
      %v8074 = vrot.slane %v7937, 6
      %v8075 = vsel %vm1354, %v8073, %v8074
      %v8076 = vrot.slane %v8074, 4
      %v8077 = vrot.slane %v7938, 6
      %v8078 = vsel %vm1354, %v8076, %v8077
      %v8079 = vrot.slane %v7939, 6
      %v8080 = vrot.slane %v8079, 4
      %v8081 = vrot.slane %v7940, 6
      %v8082 = vsel %vm1354, %v8080, %v8081
      %v8083 = vrot.slane %v8081, 4
      %v8084 = vrot.slane %v7941, 6
      %v8085 = vsel %vm1354, %v8083, %v8084
      %v8086 = vrot.slane %v7942, 6
      %v8087 = vrot.slane %v8086, 4
      %v8088 = vrot.slane %v7943, 6
      %v8089 = vsel %vm1354, %v8087, %v8088
      %v8090 = vrot.slane %v8088, 4
      %v8091 = vrot.slane %v7944, 6
      %v8092 = vsel %vm1354, %v8090, %v8091
      %v8093 = vrot.slane %v7945, 6
      %v8094 = vrot.slane %v8093, 4
      %v8095 = vrot.slane %v7946, 6
      %v8096 = vsel %vm1354, %v8094, %v8095
      %v8097 = vrot.slane %v8095, 4
      %v8098 = vrot.slane %v7947, 6
      %v8099 = vsel %vm1354, %v8097, %v8098
      %v8100 = vrot.slane %v7948, 6
      %v8101 = vrot.slane %v8100, 4
      %v8102 = vrot.slane %v7949, 6
      %v8103 = vsel %vm1354, %v8101, %v8102
      %v8104 = vrot.slane %v8102, 4
      %v8105 = vrot.slane %v7950, 6
      %v8106 = vsel %vm1354, %v8104, %v8105
      %v8107 = vrot.slane %v7951, 6
      %v8108 = vrot.slane %v8107, 4
      %v8109 = vrot.slane %v7952, 6
      %v8110 = vsel %vm1354, %v8108, %v8109
      %v8111 = vrot.slane %v8109, 4
      %v8112 = vrot.slane %v7953, 6
      %v8113 = vsel %vm1354, %v8111, %v8112
      %v8114 = vunpack.c.l.b16 %v8005
      %v8115 = vunpack.c.l.b16 %v8008
      %v8116 = vunpack.c.l.b16 %v8012
      %v8117 = vunpack.c.l.b16 %v8015
      %v8118 = vunpack.c.l.b16 %v8019
      %v8119 = vunpack.c.l.b16 %v8022
      %v8120 = vunpack.c.l.b16 %v8026
      %v8121 = vunpack.c.l.b16 %v8029
      %v8122 = vunpack.c.l.b16 %v8033
      %v8123 = vunpack.c.l.b16 %v8036
      %v8124 = vunpack.c.l.b16 %v8040
      %v8125 = vunpack.c.l.b16 %v8043
      %v8126 = vunpack.c.l.b16 %v8047
      %v8127 = vunpack.c.l.b16 %v8050
      %v8128 = vunpack.c.l.b16 %v8054
      %v8129 = vunpack.c.l.b16 %v8057
      %v8130 = vunpack.c.l.b16 %v8061
      %v8131 = vunpack.c.l.b16 %v8064
      %v8132 = vunpack.c.l.b16 %v8068
      %v8133 = vunpack.c.l.b16 %v8071
      %v8134 = vunpack.c.l.b16 %v8075
      %v8135 = vunpack.c.l.b16 %v8078
      %v8136 = vunpack.c.l.b16 %v8082
      %v8137 = vunpack.c.l.b16 %v8085
      %v8138 = vunpack.c.l.b16 %v8089
      %v8139 = vunpack.c.l.b16 %v8092
      %v8140 = vunpack.c.l.b16 %v8096
      %v8141 = vunpack.c.l.b16 %v8099
      %v8142 = vunpack.c.l.b16 %v8103
      %v8143 = vunpack.c.l.b16 %v8106
      %v8144 = vunpack.c.l.b16 %v8110
      %v8145 = vunpack.c.l.b16 %v8113
      %v8146 = vpack.c.b16 %v8115, %v8114
      %v8147 = vpack.c.b16 %v8117, %v8116
      %v8148 = vpack.c.b16 %v8119, %v8118
      %v8149 = vpack.c.b16 %v8121, %v8120
      %v8150 = vpack.c.b16 %v8123, %v8122
      %v8151 = vpack.c.b16 %v8125, %v8124
      %v8152 = vpack.c.b16 %v8127, %v8126
      %v8153 = vpack.c.b16 %v8129, %v8128
      %v8154 = vpack.c.b16 %v8131, %v8130
      %v8155 = vpack.c.b16 %v8133, %v8132
      %v8156 = vpack.c.b16 %v8135, %v8134
      %v8157 = vpack.c.b16 %v8137, %v8136
      %v8158 = vpack.c.b16 %v8139, %v8138
      %v8159 = vpack.c.b16 %v8141, %v8140
      %v8160 = vpack.c.b16 %v8143, %v8142
      %v8161 = vpack.c.b16 %v8145, %v8144
      %v8163 = vsel %vm1063, %v8146, 0
      %v8165 = vsel %vm1063, %v8147, 0
      %v8167 = vsel %vm1063, %v8148, 0
      %v8169 = vsel %vm1063, %v8149, 0
      %v8171 = vsel %vm1063, %v8150, 0
      %v8173 = vsel %vm1063, %v8151, 0
      %v8175 = vsel %vm1063, %v8152, 0
      %v8177 = vsel %vm1063, %v8153, 0
      %v8179 = vsel %vm1063, %v8154, 0
      %v8181 = vsel %vm1063, %v8155, 0
      %v8183 = vsel %vm1063, %v8156, 0
      %v8185 = vsel %vm1063, %v8157, 0
      %v8187 = vsel %vm1063, %v8158, 0
      %v8189 = vsel %vm1063, %v8159, 0
      %v8191 = vsel %vm1063, %v8160, 0
      %v8193 = vsel %vm1063, %v8161, 0
      %v8210 = vunpack.c.l.b16 %v8163
      %v8211 = vunpack.c.h.b16 %v8163
      %v8212 = vunpack.c.l.b16 %v8165
      %v8213 = vunpack.c.h.b16 %v8165
      %v8214 = vunpack.c.l.b16 %v8167
      %v8215 = vunpack.c.h.b16 %v8167
      %v8216 = vunpack.c.l.b16 %v8169
      %v8217 = vunpack.c.h.b16 %v8169
      %v8218 = vunpack.c.l.b16 %v8171
      %v8219 = vunpack.c.h.b16 %v8171
      %v8220 = vunpack.c.l.b16 %v8173
      %v8221 = vunpack.c.h.b16 %v8173
      %v8222 = vunpack.c.l.b16 %v8175
      %v8223 = vunpack.c.h.b16 %v8175
      %v8224 = vunpack.c.l.b16 %v8177
      %v8225 = vunpack.c.h.b16 %v8177
      %v8226 = vunpack.c.l.b16 %v8179
      %v8227 = vunpack.c.h.b16 %v8179
      %v8228 = vunpack.c.l.b16 %v8181
      %v8229 = vunpack.c.h.b16 %v8181
      %v8230 = vunpack.c.l.b16 %v8183
      %v8231 = vunpack.c.h.b16 %v8183
      %v8232 = vunpack.c.l.b16 %v8185
      %v8233 = vunpack.c.h.b16 %v8185
      %v8234 = vunpack.c.l.b16 %v8187
      %v8235 = vunpack.c.h.b16 %v8187
      %v8236 = vunpack.c.l.b16 %v8189
      %v8237 = vunpack.c.h.b16 %v8189
      %v8238 = vunpack.c.l.b16 %v8191
      %v8239 = vunpack.c.h.b16 %v8191
      %v8240 = vunpack.c.l.b16 %v8193
      %v8241 = vunpack.c.h.b16 %v8193
      %v8242 = vpack.c.b16 %v8210, %v8210
      %v8243 = vpack.c.b16 %v8211, %v8211
      %v8244 = vpack.c.b16 %v8212, %v8212
      %v8245 = vpack.c.b16 %v8213, %v8213
      %v8246 = vpack.c.b16 %v8214, %v8214
      %v8247 = vpack.c.b16 %v8215, %v8215
      %v8248 = vpack.c.b16 %v8216, %v8216
      %v8249 = vpack.c.b16 %v8217, %v8217
      %v8250 = vpack.c.b16 %v8218, %v8218
      %v8251 = vpack.c.b16 %v8219, %v8219
      %v8252 = vpack.c.b16 %v8220, %v8220
      %v8253 = vpack.c.b16 %v8221, %v8221
      %v8254 = vpack.c.b16 %v8222, %v8222
      %v8255 = vpack.c.b16 %v8223, %v8223
      %v8256 = vpack.c.b16 %v8224, %v8224
      %v8257 = vpack.c.b16 %v8225, %v8225
      %v8258 = vpack.c.b16 %v8226, %v8226
      %v8259 = vpack.c.b16 %v8227, %v8227
      %v8260 = vpack.c.b16 %v8228, %v8228
      %v8261 = vpack.c.b16 %v8229, %v8229
      %v8262 = vpack.c.b16 %v8230, %v8230
      %v8263 = vpack.c.b16 %v8231, %v8231
      %v8264 = vpack.c.b16 %v8232, %v8232
      %v8265 = vpack.c.b16 %v8233, %v8233
      %v8266 = vpack.c.b16 %v8234, %v8234
      %v8267 = vpack.c.b16 %v8235, %v8235
      %v8268 = vpack.c.b16 %v8236, %v8236
      %v8269 = vpack.c.b16 %v8237, %v8237
      %v8270 = vpack.c.b16 %v8238, %v8238
      %v8271 = vpack.c.b16 %v8239, %v8239
      %v8272 = vpack.c.b16 %v8240, %v8240
      %v8273 = vpack.c.b16 %v8241, %v8241
      %8306 = vst [vmem:[#allocation3 + $0x10] sm:$0xf] %v8242
      %8307 = vst [vmem:[#allocation3 + $0x24] sm:$0xf] %v8243
      %8308 = vst [vmem:[#allocation3 + $0x38] sm:$0xf] %v8244
      %8309 = vst [vmem:[#allocation3 + $0x4c] sm:$0xf] %v8245
      %8310 = vst [vmem:[#allocation3 + $0x60] sm:$0xf] %v8246
      %8311 = vst [vmem:[#allocation3 + $0x74] sm:$0xf] %v8247
      %8312 = vst [vmem:[#allocation3 + $0x88] sm:$0xf] %v8248
      %8313 = vst [vmem:[#allocation3 + $0x9c] sm:$0xf] %v8249
      %8314 = vst [vmem:[#allocation3 + $0xb0] sm:$0xf] %v8250
      %8315 = vst [vmem:[#allocation3 + $0xc4] sm:$0xf] %v8251
      %8316 = vst [vmem:[#allocation3 + $0xd8] sm:$0xf] %v8252
      %8317 = vst [vmem:[#allocation3 + $0xec] sm:$0xf] %v8253
      %8318 = vst [vmem:[#allocation3 + $0x100] sm:$0xf] %v8254
      %8319 = vst [vmem:[#allocation3 + $0x114] sm:$0xf] %v8255
      %8320 = vst [vmem:[#allocation3 + $0x128] sm:$0xf] %v8256
      %8321 = vst [vmem:[#allocation3 + $0x13c] sm:$0xf] %v8257
      %8322 = vst [vmem:[#allocation3 + $0x150] sm:$0xf] %v8258
      %8323 = vst [vmem:[#allocation3 + $0x164] sm:$0xf] %v8259
      %8324 = vst [vmem:[#allocation3 + $0x178] sm:$0xf] %v8260
      %8325 = vst [vmem:[#allocation3 + $0x18c] sm:$0xf] %v8261
      %8326 = vst [vmem:[#allocation3 + $0x1a0] sm:$0xf] %v8262
      %8327 = vst [vmem:[#allocation3 + $0x1b4] sm:$0xf] %v8263
      %8328 = vst [vmem:[#allocation3 + $0x1c8] sm:$0xf] %v8264
      %8329 = vst [vmem:[#allocation3 + $0x1dc] sm:$0xf] %v8265
      %8330 = vst [vmem:[#allocation3 + $0x1f0] sm:$0xf] %v8266
      %8331 = vst [vmem:[#allocation3 + $0x204] sm:$0xf] %v8267
      %8332 = vst [vmem:[#allocation3 + $0x218] sm:$0xf] %v8268
      %8333 = vst [vmem:[#allocation3 + $0x22c] sm:$0xf] %v8269
      %8334 = vst [vmem:[#allocation3 + $0x240] sm:$0xf] %v8270
      %8335 = vst [vmem:[#allocation3 + $0x254] sm:$0xf] %v8271
      %8336 = vst [vmem:[#allocation3 + $0x268] sm:$0xf] %v8272
      %8337 = vst [vmem:[#allocation3 + $0x27c] sm:$0xf] %v8273
      %v8338 = vld [vmem:[#allocation3] sm:$0xff]
      %v8339 = vld [vmem:[#allocation3 + $0x8] sm:$0xff]
      %v8340 = vld [vmem:[#allocation3 + $0x10] sm:$0xf]
      %v8341 = vld [vmem:[#allocation3 + $0x14] sm:$0xff]
      %v8342 = vld [vmem:[#allocation3 + $0x1c] sm:$0xff]
      %v8343 = vld [vmem:[#allocation3 + $0x24] sm:$0xf]
      %v8344 = vld [vmem:[#allocation3 + $0x28] sm:$0xff]
      %v8345 = vld [vmem:[#allocation3 + $0x30] sm:$0xff]
      %v8346 = vld [vmem:[#allocation3 + $0x38] sm:$0xf]
      %v8347 = vld [vmem:[#allocation3 + $0x3c] sm:$0xff]
      %v8348 = vld [vmem:[#allocation3 + $0x44] sm:$0xff]
      %v8349 = vld [vmem:[#allocation3 + $0x4c] sm:$0xf]
      %v8350 = vld [vmem:[#allocation3 + $0x50] sm:$0xff]
      %v8351 = vld [vmem:[#allocation3 + $0x58] sm:$0xff]
      %v8352 = vld [vmem:[#allocation3 + $0x60] sm:$0xf]
      %v8353 = vld [vmem:[#allocation3 + $0x64] sm:$0xff]
      %v8354 = vld [vmem:[#allocation3 + $0x6c] sm:$0xff]
      %v8355 = vld [vmem:[#allocation3 + $0x74] sm:$0xf]
      %v8356 = vld [vmem:[#allocation3 + $0x78] sm:$0xff]
      %v8357 = vld [vmem:[#allocation3 + $0x80] sm:$0xff]
      %v8358 = vld [vmem:[#allocation3 + $0x88] sm:$0xf]
      %v8359 = vld [vmem:[#allocation3 + $0x8c] sm:$0xff]
      %v8360 = vld [vmem:[#allocation3 + $0x94] sm:$0xff]
      %v8361 = vld [vmem:[#allocation3 + $0x9c] sm:$0xf]
      %v8362 = vld [vmem:[#allocation3 + $0xa0] sm:$0xff]
      %v8363 = vld [vmem:[#allocation3 + $0xa8] sm:$0xff]
      %v8364 = vld [vmem:[#allocation3 + $0xb0] sm:$0xf]
      %v8365 = vld [vmem:[#allocation3 + $0xb4] sm:$0xff]
      %v8366 = vld [vmem:[#allocation3 + $0xbc] sm:$0xff]
      %v8367 = vld [vmem:[#allocation3 + $0xc4] sm:$0xf]
      %v8368 = vld [vmem:[#allocation3 + $0xc8] sm:$0xff]
      %v8369 = vld [vmem:[#allocation3 + $0xd0] sm:$0xff]
      %v8370 = vld [vmem:[#allocation3 + $0xd8] sm:$0xf]
      %v8371 = vld [vmem:[#allocation3 + $0xdc] sm:$0xff]
      %v8372 = vld [vmem:[#allocation3 + $0xe4] sm:$0xff]
      %v8373 = vld [vmem:[#allocation3 + $0xec] sm:$0xf]
      %v8374 = vld [vmem:[#allocation3 + $0xf0] sm:$0xff]
      %v8375 = vld [vmem:[#allocation3 + $0xf8] sm:$0xff]
      %v8376 = vld [vmem:[#allocation3 + $0x100] sm:$0xf]
      %v8377 = vld [vmem:[#allocation3 + $0x104] sm:$0xff]
      %v8378 = vld [vmem:[#allocation3 + $0x10c] sm:$0xff]
      %v8379 = vld [vmem:[#allocation3 + $0x114] sm:$0xf]
      %v8380 = vld [vmem:[#allocation3 + $0x118] sm:$0xff]
      %v8381 = vld [vmem:[#allocation3 + $0x120] sm:$0xff]
      %v8382 = vld [vmem:[#allocation3 + $0x128] sm:$0xf]
      %v8383 = vld [vmem:[#allocation3 + $0x12c] sm:$0xff]
      %v8384 = vld [vmem:[#allocation3 + $0x134] sm:$0xff]
      %v8385 = vld [vmem:[#allocation3 + $0x13c] sm:$0xf]
      %v8386 = vld [vmem:[#allocation3 + $0x140] sm:$0xff]
      %v8387 = vld [vmem:[#allocation3 + $0x148] sm:$0xff]
      %v8388 = vld [vmem:[#allocation3 + $0x150] sm:$0xf]
      %v8389 = vld [vmem:[#allocation3 + $0x154] sm:$0xff]
      %v8390 = vld [vmem:[#allocation3 + $0x15c] sm:$0xff]
      %v8391 = vld [vmem:[#allocation3 + $0x164] sm:$0xf]
      %v8392 = vld [vmem:[#allocation3 + $0x168] sm:$0xff]
      %v8393 = vld [vmem:[#allocation3 + $0x170] sm:$0xff]
      %v8394 = vld [vmem:[#allocation3 + $0x178] sm:$0xf]
      %v8395 = vld [vmem:[#allocation3 + $0x17c] sm:$0xff]
      %v8396 = vld [vmem:[#allocation3 + $0x184] sm:$0xff]
      %v8397 = vld [vmem:[#allocation3 + $0x18c] sm:$0xf]
      %v8398 = vld [vmem:[#allocation3 + $0x190] sm:$0xff]
      %v8399 = vld [vmem:[#allocation3 + $0x198] sm:$0xff]
      %v8400 = vld [vmem:[#allocation3 + $0x1a0] sm:$0xf]
      %v8401 = vld [vmem:[#allocation3 + $0x1a4] sm:$0xff]
      %v8402 = vld [vmem:[#allocation3 + $0x1ac] sm:$0xff]
      %v8403 = vld [vmem:[#allocation3 + $0x1b4] sm:$0xf]
      %v8404 = vld [vmem:[#allocation3 + $0x1b8] sm:$0xff]
      %v8405 = vld [vmem:[#allocation3 + $0x1c0] sm:$0xff]
      %v8406 = vld [vmem:[#allocation3 + $0x1c8] sm:$0xf]
      %v8407 = vld [vmem:[#allocation3 + $0x1cc] sm:$0xff]
      %v8408 = vld [vmem:[#allocation3 + $0x1d4] sm:$0xff]
      %v8409 = vld [vmem:[#allocation3 + $0x1dc] sm:$0xf]
      %v8410 = vld [vmem:[#allocation3 + $0x1e0] sm:$0xff]
      %v8411 = vld [vmem:[#allocation3 + $0x1e8] sm:$0xff]
      %v8412 = vld [vmem:[#allocation3 + $0x1f0] sm:$0xf]
      %v8413 = vld [vmem:[#allocation3 + $0x1f4] sm:$0xff]
      %v8414 = vld [vmem:[#allocation3 + $0x1fc] sm:$0xff]
      %v8415 = vld [vmem:[#allocation3 + $0x204] sm:$0xf]
      %v8416 = vld [vmem:[#allocation3 + $0x208] sm:$0xff]
      %v8417 = vld [vmem:[#allocation3 + $0x210] sm:$0xff]
      %v8418 = vld [vmem:[#allocation3 + $0x218] sm:$0xf]
      %v8419 = vld [vmem:[#allocation3 + $0x21c] sm:$0xff]
      %v8420 = vld [vmem:[#allocation3 + $0x224] sm:$0xff]
      %v8421 = vld [vmem:[#allocation3 + $0x22c] sm:$0xf]
      %v8422 = vld [vmem:[#allocation3 + $0x230] sm:$0xff]
      %v8423 = vld [vmem:[#allocation3 + $0x238] sm:$0xff]
      %v8424 = vld [vmem:[#allocation3 + $0x240] sm:$0xf]
      %v8425 = vld [vmem:[#allocation3 + $0x244] sm:$0xff]
      %v8426 = vld [vmem:[#allocation3 + $0x24c] sm:$0xff]
      %v8427 = vld [vmem:[#allocation3 + $0x254] sm:$0xf]
      %v8428 = vld [vmem:[#allocation3 + $0x258] sm:$0xff]
      %v8429 = vld [vmem:[#allocation3 + $0x260] sm:$0xff]
      %v8430 = vld [vmem:[#allocation3 + $0x268] sm:$0xf]
      %v8431 = vld [vmem:[#allocation3 + $0x26c] sm:$0xff]
      %v8432 = vld [vmem:[#allocation3 + $0x274] sm:$0xff]
      %v8433 = vld [vmem:[#allocation3 + $0x27c] sm:$0xf]
      %v8434 = vld [vmem:[%s4] sm:$0xf]
      %v8435 = vld [vmem:[%s4 + $0x4] sm:$0xf]
      %v8436 = vld [vmem:[%s4 + $0x8] sm:$0xf]
      %v8437 = vld [vmem:[%s4 + $0xc] sm:$0xf]
      %v8438 = vld [vmem:[%s4 + $0x10] sm:$0xf]
      %v8439 = vld [vmem:[%s4 + $0x14] sm:$0xf]
      %v8440 = vld [vmem:[%s4 + $0x18] sm:$0xf]
      %v8441 = vld [vmem:[%s4 + $0x1c] sm:$0xf]
      %v8442 = vld [vmem:[%s4 + $0x20] sm:$0xf]
      %v8443 = vld [vmem:[%s4 + $0x24] sm:$0xf]
      %v8444 = vld [vmem:[%s4 + $0x28] sm:$0xf]
      %v8445 = vld [vmem:[%s4 + $0x2c] sm:$0xf]
      %v8446 = vld [vmem:[%s4 + $0x30] sm:$0xf]
      %v8447 = vld [vmem:[%s4 + $0x34] sm:$0xf]
      %v8448 = vld [vmem:[%s4 + $0x38] sm:$0xf]
      %v8449 = vld [vmem:[%s4 + $0x3c] sm:$0xf]
      %v8450 = vld [vmem:[%s4 + $0x40] sm:$0xf]
      %v8451 = vld [vmem:[%s4 + $0x44] sm:$0xf]
      %v8452 = vld [vmem:[%s4 + $0x48] sm:$0xf]
      %v8453 = vld [vmem:[%s4 + $0x4c] sm:$0xf]
      %v8454 = vld [vmem:[%s4 + $0x50] sm:$0xf]
      %v8455 = vld [vmem:[%s4 + $0x54] sm:$0xf]
      %v8456 = vld [vmem:[%s4 + $0x58] sm:$0xf]
      %v8457 = vld [vmem:[%s4 + $0x5c] sm:$0xf]
      %v8458 = vld [vmem:[%s4 + $0x60] sm:$0xf]
      %v8459 = vld [vmem:[%s4 + $0x64] sm:$0xf]
      %v8460 = vld [vmem:[%s4 + $0x68] sm:$0xf]
      %v8461 = vld [vmem:[%s4 + $0x6c] sm:$0xf]
      %v8462 = vld [vmem:[%s4 + $0x70] sm:$0xf]
      %v8463 = vld [vmem:[%s4 + $0x74] sm:$0xf]
      %v8464 = vld [vmem:[%s4 + $0x78] sm:$0xf]
      %v8465 = vld [vmem:[%s4 + $0x7c] sm:$0xf]
      %v8466 = vld [vmem:[%s4 + $0x80] sm:$0xf]
      %v8467 = vld [vmem:[%s4 + $0x84] sm:$0xf]
      %v8468 = vld [vmem:[%s4 + $0x88] sm:$0xf]
      %v8469 = vld [vmem:[%s4 + $0x8c] sm:$0xf]
      %v8470 = vld [vmem:[%s4 + $0x90] sm:$0xf]
      %v8471 = vld [vmem:[%s4 + $0x94] sm:$0xf]
      %v8472 = vld [vmem:[%s4 + $0x98] sm:$0xf]
      %v8473 = vld [vmem:[%s4 + $0x9c] sm:$0xf]
      %v8474 = vld [vmem:[%s4 + $0xa0] sm:$0xf]
      %v8475 = vld [vmem:[%s4 + $0xa4] sm:$0xf]
      %v8476 = vld [vmem:[%s4 + $0xa8] sm:$0xf]
      %v8477 = vld [vmem:[%s4 + $0xac] sm:$0xf]
      %v8478 = vld [vmem:[%s4 + $0xb0] sm:$0xf]
      %v8479 = vld [vmem:[%s4 + $0xb4] sm:$0xf]
      %v8480 = vld [vmem:[%s4 + $0xb8] sm:$0xf]
      %v8481 = vld [vmem:[%s4 + $0xbc] sm:$0xf]
      %v8482 = vld [vmem:[%s4 + $0xc0] sm:$0xf]
      %v8483 = vld [vmem:[%s4 + $0xc4] sm:$0xf]
      %v8484 = vld [vmem:[%s4 + $0xc8] sm:$0xf]
      %v8485 = vld [vmem:[%s4 + $0xcc] sm:$0xf]
      %v8486 = vld [vmem:[%s4 + $0xd0] sm:$0xf]
      %v8487 = vld [vmem:[%s4 + $0xd4] sm:$0xf]
      %v8488 = vld [vmem:[%s4 + $0xd8] sm:$0xf]
      %v8489 = vld [vmem:[%s4 + $0xdc] sm:$0xf]
      %v8490 = vld [vmem:[%s4 + $0xe0] sm:$0xf]
      %v8491 = vld [vmem:[%s4 + $0xe4] sm:$0xf]
      %v8492 = vld [vmem:[%s4 + $0xe8] sm:$0xf]
      %v8493 = vld [vmem:[%s4 + $0xec] sm:$0xf]
      %v8494 = vld [vmem:[%s4 + $0xf0] sm:$0xf]
      %v8495 = vld [vmem:[%s4 + $0xf4] sm:$0xf]
      %v8496 = vld [vmem:[%s4 + $0xf8] sm:$0xf]
      %v8497 = vld [vmem:[%s4 + $0xfc] sm:$0xf]
      %v8498 = vld [vmem:[%s4 + $0x100] sm:$0xf]
      %v8499 = vld [vmem:[%s4 + $0x104] sm:$0xf]
      %v8500 = vld [vmem:[%s4 + $0x108] sm:$0xf]
      %v8501 = vld [vmem:[%s4 + $0x10c] sm:$0xf]
      %v8502 = vld [vmem:[%s4 + $0x110] sm:$0xf]
      %v8503 = vld [vmem:[%s4 + $0x114] sm:$0xf]
      %v8504 = vld [vmem:[%s4 + $0x118] sm:$0xf]
      %v8505 = vld [vmem:[%s4 + $0x11c] sm:$0xf]
      %v8506 = vld [vmem:[%s4 + $0x120] sm:$0xf]
      %v8507 = vld [vmem:[%s4 + $0x124] sm:$0xf]
      %v8508 = vld [vmem:[%s4 + $0x128] sm:$0xf]
      %v8509 = vld [vmem:[%s4 + $0x12c] sm:$0xf]
      %v8510 = vld [vmem:[%s4 + $0x130] sm:$0xf]
      %v8511 = vld [vmem:[%s4 + $0x134] sm:$0xf]
      %v8512 = vld [vmem:[%s4 + $0x138] sm:$0xf]
      %v8513 = vld [vmem:[%s4 + $0x13c] sm:$0xf]
      %v8610 = vunpack.c.l.b16 %v8338
      %v8611 = vunpack.c.h.b16 %v8338
      %v8612 = vunpack.c.l.b16 %v8339
      %v8613 = vunpack.c.h.b16 %v8339
      %v8614 = vunpack.c.l.b16 %v8340
      %v8615 = vunpack.c.l.b16 %v8341
      %v8616 = vunpack.c.h.b16 %v8341
      %v8617 = vunpack.c.l.b16 %v8342
      %v8618 = vunpack.c.h.b16 %v8342
      %v8619 = vunpack.c.l.b16 %v8343
      %v8620 = vunpack.c.l.b16 %v8344
      %v8621 = vunpack.c.h.b16 %v8344
      %v8622 = vunpack.c.l.b16 %v8345
      %v8623 = vunpack.c.h.b16 %v8345
      %v8624 = vunpack.c.l.b16 %v8346
      %v8625 = vunpack.c.l.b16 %v8347
      %v8626 = vunpack.c.h.b16 %v8347
      %v8627 = vunpack.c.l.b16 %v8348
      %v8628 = vunpack.c.h.b16 %v8348
      %v8629 = vunpack.c.l.b16 %v8349
      %v8630 = vunpack.c.l.b16 %v8350
      %v8631 = vunpack.c.h.b16 %v8350
      %v8632 = vunpack.c.l.b16 %v8351
      %v8633 = vunpack.c.h.b16 %v8351
      %v8634 = vunpack.c.l.b16 %v8352
      %v8635 = vunpack.c.l.b16 %v8353
      %v8636 = vunpack.c.h.b16 %v8353
      %v8637 = vunpack.c.l.b16 %v8354
      %v8638 = vunpack.c.h.b16 %v8354
      %v8639 = vunpack.c.l.b16 %v8355
      %v8640 = vunpack.c.l.b16 %v8356
      %v8641 = vunpack.c.h.b16 %v8356
      %v8642 = vunpack.c.l.b16 %v8357
      %v8643 = vunpack.c.h.b16 %v8357
      %v8644 = vunpack.c.l.b16 %v8358
      %v8645 = vunpack.c.l.b16 %v8359
      %v8646 = vunpack.c.h.b16 %v8359
      %v8647 = vunpack.c.l.b16 %v8360
      %v8648 = vunpack.c.h.b16 %v8360
      %v8649 = vunpack.c.l.b16 %v8361
      %v8650 = vunpack.c.l.b16 %v8362
      %v8651 = vunpack.c.h.b16 %v8362
      %v8652 = vunpack.c.l.b16 %v8363
      %v8653 = vunpack.c.h.b16 %v8363
      %v8654 = vunpack.c.l.b16 %v8364
      %v8655 = vunpack.c.l.b16 %v8365
      %v8656 = vunpack.c.h.b16 %v8365
      %v8657 = vunpack.c.l.b16 %v8366
      %v8658 = vunpack.c.h.b16 %v8366
      %v8659 = vunpack.c.l.b16 %v8367
      %v8660 = vunpack.c.l.b16 %v8368
      %v8661 = vunpack.c.h.b16 %v8368
      %v8662 = vunpack.c.l.b16 %v8369
      %v8663 = vunpack.c.h.b16 %v8369
      %v8664 = vunpack.c.l.b16 %v8370
      %v8665 = vunpack.c.l.b16 %v8371
      %v8666 = vunpack.c.h.b16 %v8371
      %v8667 = vunpack.c.l.b16 %v8372
      %v8668 = vunpack.c.h.b16 %v8372
      %v8669 = vunpack.c.l.b16 %v8373
      %v8670 = vunpack.c.l.b16 %v8374
      %v8671 = vunpack.c.h.b16 %v8374
      %v8672 = vunpack.c.l.b16 %v8375
      %v8673 = vunpack.c.h.b16 %v8375
      %v8674 = vunpack.c.l.b16 %v8376
      %v8675 = vunpack.c.l.b16 %v8377
      %v8676 = vunpack.c.h.b16 %v8377
      %v8677 = vunpack.c.l.b16 %v8378
      %v8678 = vunpack.c.h.b16 %v8378
      %v8679 = vunpack.c.l.b16 %v8379
      %v8680 = vunpack.c.l.b16 %v8380
      %v8681 = vunpack.c.h.b16 %v8380
      %v8682 = vunpack.c.l.b16 %v8381
      %v8683 = vunpack.c.h.b16 %v8381
      %v8684 = vunpack.c.l.b16 %v8382
      %v8685 = vunpack.c.l.b16 %v8383
      %v8686 = vunpack.c.h.b16 %v8383
      %v8687 = vunpack.c.l.b16 %v8384
      %v8688 = vunpack.c.h.b16 %v8384
      %v8689 = vunpack.c.l.b16 %v8385
      %v8690 = vunpack.c.l.b16 %v8386
      %v8691 = vunpack.c.h.b16 %v8386
      %v8692 = vunpack.c.l.b16 %v8387
      %v8693 = vunpack.c.h.b16 %v8387
      %v8694 = vunpack.c.l.b16 %v8388
      %v8695 = vunpack.c.l.b16 %v8389
      %v8696 = vunpack.c.h.b16 %v8389
      %v8697 = vunpack.c.l.b16 %v8390
      %v8698 = vunpack.c.h.b16 %v8390
      %v8699 = vunpack.c.l.b16 %v8391
      %v8700 = vunpack.c.l.b16 %v8392
      %v8701 = vunpack.c.h.b16 %v8392
      %v8702 = vunpack.c.l.b16 %v8393
      %v8703 = vunpack.c.h.b16 %v8393
      %v8704 = vunpack.c.l.b16 %v8394
      %v8705 = vunpack.c.l.b16 %v8395
      %v8706 = vunpack.c.h.b16 %v8395
      %v8707 = vunpack.c.l.b16 %v8396
      %v8708 = vunpack.c.h.b16 %v8396
      %v8709 = vunpack.c.l.b16 %v8397
      %v8710 = vunpack.c.l.b16 %v8398
      %v8711 = vunpack.c.h.b16 %v8398
      %v8712 = vunpack.c.l.b16 %v8399
      %v8713 = vunpack.c.h.b16 %v8399
      %v8714 = vunpack.c.l.b16 %v8400
      %v8715 = vunpack.c.l.b16 %v8401
      %v8716 = vunpack.c.h.b16 %v8401
      %v8717 = vunpack.c.l.b16 %v8402
      %v8718 = vunpack.c.h.b16 %v8402
      %v8719 = vunpack.c.l.b16 %v8403
      %v8720 = vunpack.c.l.b16 %v8404
      %v8721 = vunpack.c.h.b16 %v8404
      %v8722 = vunpack.c.l.b16 %v8405
      %v8723 = vunpack.c.h.b16 %v8405
      %v8724 = vunpack.c.l.b16 %v8406
      %v8725 = vunpack.c.l.b16 %v8407
      %v8726 = vunpack.c.h.b16 %v8407
      %v8727 = vunpack.c.l.b16 %v8408
      %v8728 = vunpack.c.h.b16 %v8408
      %v8729 = vunpack.c.l.b16 %v8409
      %v8730 = vunpack.c.l.b16 %v8410
      %v8731 = vunpack.c.h.b16 %v8410
      %v8732 = vunpack.c.l.b16 %v8411
      %v8733 = vunpack.c.h.b16 %v8411
      %v8734 = vunpack.c.l.b16 %v8412
      %v8735 = vunpack.c.l.b16 %v8413
      %v8736 = vunpack.c.h.b16 %v8413
      %v8737 = vunpack.c.l.b16 %v8414
      %v8738 = vunpack.c.h.b16 %v8414
      %v8739 = vunpack.c.l.b16 %v8415
      %v8740 = vunpack.c.l.b16 %v8416
      %v8741 = vunpack.c.h.b16 %v8416
      %v8742 = vunpack.c.l.b16 %v8417
      %v8743 = vunpack.c.h.b16 %v8417
      %v8744 = vunpack.c.l.b16 %v8418
      %v8745 = vunpack.c.l.b16 %v8419
      %v8746 = vunpack.c.h.b16 %v8419
      %v8747 = vunpack.c.l.b16 %v8420
      %v8748 = vunpack.c.h.b16 %v8420
      %v8749 = vunpack.c.l.b16 %v8421
      %v8750 = vunpack.c.l.b16 %v8422
      %v8751 = vunpack.c.h.b16 %v8422
      %v8752 = vunpack.c.l.b16 %v8423
      %v8753 = vunpack.c.h.b16 %v8423
      %v8754 = vunpack.c.l.b16 %v8424
      %v8755 = vunpack.c.l.b16 %v8425
      %v8756 = vunpack.c.h.b16 %v8425
      %v8757 = vunpack.c.l.b16 %v8426
      %v8758 = vunpack.c.h.b16 %v8426
      %v8759 = vunpack.c.l.b16 %v8427
      %v8760 = vunpack.c.l.b16 %v8428
      %v8761 = vunpack.c.h.b16 %v8428
      %v8762 = vunpack.c.l.b16 %v8429
      %v8763 = vunpack.c.h.b16 %v8429
      %v8764 = vunpack.c.l.b16 %v8430
      %v8765 = vunpack.c.l.b16 %v8431
      %v8766 = vunpack.c.h.b16 %v8431
      %v8767 = vunpack.c.l.b16 %v8432
      %v8768 = vunpack.c.h.b16 %v8432
      %v8769 = vunpack.c.l.b16 %v8433
      %v8770 = vpack.c.b16 %v8615, %v8610
      %v8771 = vpack.c.b16 %v8616, %v8611
      %v8772 = vpack.c.b16 %v8617, %v8612
      %v8773 = vpack.c.b16 %v8618, %v8613
      %v8774 = vpack.c.b16 %v8619, %v8614
      %v8775 = vpack.c.b16 %v8625, %v8620
      %v8776 = vpack.c.b16 %v8626, %v8621
      %v8777 = vpack.c.b16 %v8627, %v8622
      %v8778 = vpack.c.b16 %v8628, %v8623
      %v8779 = vpack.c.b16 %v8629, %v8624
      %v8780 = vpack.c.b16 %v8635, %v8630
      %v8781 = vpack.c.b16 %v8636, %v8631
      %v8782 = vpack.c.b16 %v8637, %v8632
      %v8783 = vpack.c.b16 %v8638, %v8633
      %v8784 = vpack.c.b16 %v8639, %v8634
      %v8785 = vpack.c.b16 %v8645, %v8640
      %v8786 = vpack.c.b16 %v8646, %v8641
      %v8787 = vpack.c.b16 %v8647, %v8642
      %v8788 = vpack.c.b16 %v8648, %v8643
      %v8789 = vpack.c.b16 %v8649, %v8644
      %v8790 = vpack.c.b16 %v8655, %v8650
      %v8791 = vpack.c.b16 %v8656, %v8651
      %v8792 = vpack.c.b16 %v8657, %v8652
      %v8793 = vpack.c.b16 %v8658, %v8653
      %v8794 = vpack.c.b16 %v8659, %v8654
      %v8795 = vpack.c.b16 %v8665, %v8660
      %v8796 = vpack.c.b16 %v8666, %v8661
      %v8797 = vpack.c.b16 %v8667, %v8662
      %v8798 = vpack.c.b16 %v8668, %v8663
      %v8799 = vpack.c.b16 %v8669, %v8664
      %v8800 = vpack.c.b16 %v8675, %v8670
      %v8801 = vpack.c.b16 %v8676, %v8671
      %v8802 = vpack.c.b16 %v8677, %v8672
      %v8803 = vpack.c.b16 %v8678, %v8673
      %v8804 = vpack.c.b16 %v8679, %v8674
      %v8805 = vpack.c.b16 %v8685, %v8680
      %v8806 = vpack.c.b16 %v8686, %v8681
      %v8807 = vpack.c.b16 %v8687, %v8682
      %v8808 = vpack.c.b16 %v8688, %v8683
      %v8809 = vpack.c.b16 %v8689, %v8684
      %v8810 = vpack.c.b16 %v8695, %v8690
      %v8811 = vpack.c.b16 %v8696, %v8691
      %v8812 = vpack.c.b16 %v8697, %v8692
      %v8813 = vpack.c.b16 %v8698, %v8693
      %v8814 = vpack.c.b16 %v8699, %v8694
      %v8815 = vpack.c.b16 %v8705, %v8700
      %v8816 = vpack.c.b16 %v8706, %v8701
      %v8817 = vpack.c.b16 %v8707, %v8702
      %v8818 = vpack.c.b16 %v8708, %v8703
      %v8819 = vpack.c.b16 %v8709, %v8704
      %v8820 = vpack.c.b16 %v8715, %v8710
      %v8821 = vpack.c.b16 %v8716, %v8711
      %v8822 = vpack.c.b16 %v8717, %v8712
      %v8823 = vpack.c.b16 %v8718, %v8713
      %v8824 = vpack.c.b16 %v8719, %v8714
      %v8825 = vpack.c.b16 %v8725, %v8720
      %v8826 = vpack.c.b16 %v8726, %v8721
      %v8827 = vpack.c.b16 %v8727, %v8722
      %v8828 = vpack.c.b16 %v8728, %v8723
      %v8829 = vpack.c.b16 %v8729, %v8724
      %v8830 = vpack.c.b16 %v8735, %v8730
      %v8831 = vpack.c.b16 %v8736, %v8731
      %v8832 = vpack.c.b16 %v8737, %v8732
      %v8833 = vpack.c.b16 %v8738, %v8733
      %v8834 = vpack.c.b16 %v8739, %v8734
      %v8835 = vpack.c.b16 %v8745, %v8740
      %v8836 = vpack.c.b16 %v8746, %v8741
      %v8837 = vpack.c.b16 %v8747, %v8742
      %v8838 = vpack.c.b16 %v8748, %v8743
      %v8839 = vpack.c.b16 %v8749, %v8744
      %v8840 = vpack.c.b16 %v8755, %v8750
      %v8841 = vpack.c.b16 %v8756, %v8751
      %v8842 = vpack.c.b16 %v8757, %v8752
      %v8843 = vpack.c.b16 %v8758, %v8753
      %v8844 = vpack.c.b16 %v8759, %v8754
      %v8845 = vpack.c.b16 %v8765, %v8760
      %v8846 = vpack.c.b16 %v8766, %v8761
      %v8847 = vpack.c.b16 %v8767, %v8762
      %v8848 = vpack.c.b16 %v8768, %v8763
      %v8849 = vpack.c.b16 %v8769, %v8764
      %v9010 = vunpack.c.l.b16 %v8434
      %v9011 = vunpack.c.l.b16 %v8435
      %v9012 = vunpack.c.l.b16 %v8436
      %v9013 = vunpack.c.l.b16 %v8437
      %v9014 = vunpack.c.l.b16 %v8438
      %v9015 = vunpack.c.l.b16 %v8439
      %v9016 = vunpack.c.l.b16 %v8440
      %v9017 = vunpack.c.l.b16 %v8441
      %v9018 = vunpack.c.l.b16 %v8442
      %v9019 = vunpack.c.l.b16 %v8443
      %v9020 = vunpack.c.l.b16 %v8444
      %v9021 = vunpack.c.l.b16 %v8445
      %v9022 = vunpack.c.l.b16 %v8446
      %v9023 = vunpack.c.l.b16 %v8447
      %v9024 = vunpack.c.l.b16 %v8448
      %v9025 = vunpack.c.l.b16 %v8449
      %v9026 = vunpack.c.l.b16 %v8450
      %v9027 = vunpack.c.l.b16 %v8451
      %v9028 = vunpack.c.l.b16 %v8452
      %v9029 = vunpack.c.l.b16 %v8453
      %v9030 = vunpack.c.l.b16 %v8454
      %v9031 = vunpack.c.l.b16 %v8455
      %v9032 = vunpack.c.l.b16 %v8456
      %v9033 = vunpack.c.l.b16 %v8457
      %v9034 = vunpack.c.l.b16 %v8458
      %v9035 = vunpack.c.l.b16 %v8459
      %v9036 = vunpack.c.l.b16 %v8460
      %v9037 = vunpack.c.l.b16 %v8461
      %v9038 = vunpack.c.l.b16 %v8462
      %v9039 = vunpack.c.l.b16 %v8463
      %v9040 = vunpack.c.l.b16 %v8464
      %v9041 = vunpack.c.l.b16 %v8465
      %v9042 = vunpack.c.l.b16 %v8466
      %v9043 = vunpack.c.l.b16 %v8467
      %v9044 = vunpack.c.l.b16 %v8468
      %v9045 = vunpack.c.l.b16 %v8469
      %v9046 = vunpack.c.l.b16 %v8470
      %v9047 = vunpack.c.l.b16 %v8471
      %v9048 = vunpack.c.l.b16 %v8472
      %v9049 = vunpack.c.l.b16 %v8473
      %v9050 = vunpack.c.l.b16 %v8474
      %v9051 = vunpack.c.l.b16 %v8475
      %v9052 = vunpack.c.l.b16 %v8476
      %v9053 = vunpack.c.l.b16 %v8477
      %v9054 = vunpack.c.l.b16 %v8478
      %v9055 = vunpack.c.l.b16 %v8479
      %v9056 = vunpack.c.l.b16 %v8480
      %v9057 = vunpack.c.l.b16 %v8481
      %v9058 = vunpack.c.l.b16 %v8482
      %v9059 = vunpack.c.l.b16 %v8483
      %v9060 = vunpack.c.l.b16 %v8484
      %v9061 = vunpack.c.l.b16 %v8485
      %v9062 = vunpack.c.l.b16 %v8486
      %v9063 = vunpack.c.l.b16 %v8487
      %v9064 = vunpack.c.l.b16 %v8488
      %v9065 = vunpack.c.l.b16 %v8489
      %v9066 = vunpack.c.l.b16 %v8490
      %v9067 = vunpack.c.l.b16 %v8491
      %v9068 = vunpack.c.l.b16 %v8492
      %v9069 = vunpack.c.l.b16 %v8493
      %v9070 = vunpack.c.l.b16 %v8494
      %v9071 = vunpack.c.l.b16 %v8495
      %v9072 = vunpack.c.l.b16 %v8496
      %v9073 = vunpack.c.l.b16 %v8497
      %v9074 = vunpack.c.l.b16 %v8498
      %v9075 = vunpack.c.l.b16 %v8499
      %v9076 = vunpack.c.l.b16 %v8500
      %v9077 = vunpack.c.l.b16 %v8501
      %v9078 = vunpack.c.l.b16 %v8502
      %v9079 = vunpack.c.l.b16 %v8503
      %v9080 = vunpack.c.l.b16 %v8504
      %v9081 = vunpack.c.l.b16 %v8505
      %v9082 = vunpack.c.l.b16 %v8506
      %v9083 = vunpack.c.l.b16 %v8507
      %v9084 = vunpack.c.l.b16 %v8508
      %v9085 = vunpack.c.l.b16 %v8509
      %v9086 = vunpack.c.l.b16 %v8510
      %v9087 = vunpack.c.l.b16 %v8511
      %v9088 = vunpack.c.l.b16 %v8512
      %v9089 = vunpack.c.l.b16 %v8513
      %v9090 = vpack.c.b16 %v9011, %v9010
      %v9091 = vpack.c.b16 %v9013, %v9012
      %v9092 = vpack.c.b16 %v9015, %v9014
      %v9093 = vpack.c.b16 %v9017, %v9016
      %v9094 = vpack.c.b16 %v9019, %v9018
      %v9095 = vpack.c.b16 %v9021, %v9020
      %v9096 = vpack.c.b16 %v9023, %v9022
      %v9097 = vpack.c.b16 %v9025, %v9024
      %v9098 = vpack.c.b16 %v9027, %v9026
      %v9099 = vpack.c.b16 %v9029, %v9028
      %v9100 = vpack.c.b16 %v9031, %v9030
      %v9101 = vpack.c.b16 %v9033, %v9032
      %v9102 = vpack.c.b16 %v9035, %v9034
      %v9103 = vpack.c.b16 %v9037, %v9036
      %v9104 = vpack.c.b16 %v9039, %v9038
      %v9105 = vpack.c.b16 %v9041, %v9040
      %v9106 = vpack.c.b16 %v9043, %v9042
      %v9107 = vpack.c.b16 %v9045, %v9044
      %v9108 = vpack.c.b16 %v9047, %v9046
      %v9109 = vpack.c.b16 %v9049, %v9048
      %v9110 = vpack.c.b16 %v9051, %v9050
      %v9111 = vpack.c.b16 %v9053, %v9052
      %v9112 = vpack.c.b16 %v9055, %v9054
      %v9113 = vpack.c.b16 %v9057, %v9056
      %v9114 = vpack.c.b16 %v9059, %v9058
      %v9115 = vpack.c.b16 %v9061, %v9060
      %v9116 = vpack.c.b16 %v9063, %v9062
      %v9117 = vpack.c.b16 %v9065, %v9064
      %v9118 = vpack.c.b16 %v9067, %v9066
      %v9119 = vpack.c.b16 %v9069, %v9068
      %v9120 = vpack.c.b16 %v9071, %v9070
      %v9121 = vpack.c.b16 %v9073, %v9072
      %v9122 = vpack.c.b16 %v9075, %v9074
      %v9123 = vpack.c.b16 %v9077, %v9076
      %v9124 = vpack.c.b16 %v9079, %v9078
      %v9125 = vpack.c.b16 %v9081, %v9080
      %v9126 = vpack.c.b16 %v9083, %v9082
      %v9127 = vpack.c.b16 %v9085, %v9084
      %v9128 = vpack.c.b16 %v9087, %v9086
      %v9129 = vpack.c.b16 %v9089, %v9088
      %9170 = vmatprep.subr.bf16.mxu0 0
      %9171 = vmatpush1.bf16.msra.mxu0 %v9097
      %9172 = vmatprep.subr.bf16.mxu0 0
      %9173 = vmatpush1.bf16.msra.mxu0 %v9096
      %9174 = vmatprep.subr.bf16.mxu0 0
      %9175 = vmatpush1.bf16.msra.mxu0 %v9095
      %9176 = vmatprep.subr.bf16.mxu0 0
      %9177 = vmatpush1.bf16.msra.mxu0 %v9094
      %9178 = vmatprep.subr.bf16.mxu0 0
      %9179 = vmatpush1.bf16.msra.mxu0 %v9093
      %9180 = vmatprep.subr.bf16.mxu0 0
      %9181 = vmatpush1.bf16.msra.mxu0 %v9092
      %9182 = vmatprep.subr.bf16.mxu0 0
      %9183 = vmatpush1.bf16.msra.mxu0 %v9091
      %9184 = vmatprep.subr.bf16.mxu0 0
      %9185 = vmatpush1.bf16.msra.mxu0 %v9090
      %9186 = vmatprep.subr.bf16.mxu0 0
      %9187 = vmatpush2.bf16.msra.mxu0 %v9105
      %9188 = vmatprep.subr.bf16.mxu0 0
      %9189 = vmatpush2.bf16.msra.mxu0 %v9104
      %9190 = vmatprep.subr.bf16.mxu0 0
      %9191 = vmatpush2.bf16.msra.mxu0 %v9103
      %9192 = vmatprep.subr.bf16.mxu0 0
      %9193 = vmatpush2.bf16.msra.mxu0 %v9102
      %9194 = vmatprep.subr.bf16.mxu0 0
      %9195 = vmatpush2.bf16.msra.mxu0 %v9101
      %9196 = vmatprep.subr.bf16.mxu0 0
      %9197 = vmatpush2.bf16.msra.mxu0 %v9100
      %9198 = vmatprep.subr.bf16.mxu0 0
      %9199 = vmatpush2.bf16.msra.mxu0 %v9099
      %9200 = vmatprep.subr.bf16.mxu0 0
      %9201 = vmatpush2.bf16.msra.mxu0 %v9098
      %9202 = vmatprep.mubr.bf16.mxu0 %v8771
      %9203 = vmatmul.mubr.bf16.gmra.mxu0 %v8770
      %v9204 = vpop.f32.mrf.mxu0
      %v9205 = vadd.f32 0.0, %v9204
      %v9206 = vpop.f32.mrf.mxu0
      %v9207 = vpop.f32.mrf.mxu0
      %v9208 = vadd.f32 0.0, %v9207
      %v9209 = vpop.f32.mrf.mxu0
      %9210 = vmatprep.mubr.bf16.mxu0 %v8776
      %9211 = vmatmul.mubr.bf16.gmra.mxu0 %v8775
      %v9212 = vpop.f32.mrf.mxu0
      %v9213 = vadd.f32 0.0, %v9212
      %v9214 = vpop.f32.mrf.mxu0
      %v9215 = vpop.f32.mrf.mxu0
      %v9216 = vadd.f32 0.0, %v9215
      %v9217 = vpop.f32.mrf.mxu0
      %9218 = vmatprep.mubr.bf16.mxu0 %v8781
      %9219 = vmatmul.mubr.bf16.gmra.mxu0 %v8780
      %v9220 = vpop.f32.mrf.mxu0
      %v9221 = vadd.f32 0.0, %v9220
      %v9222 = vpop.f32.mrf.mxu0
      %v9223 = vpop.f32.mrf.mxu0
      %v9224 = vadd.f32 0.0, %v9223
      %v9225 = vpop.f32.mrf.mxu0
      %9226 = vmatprep.mubr.bf16.mxu0 %v8786
      %9227 = vmatmul.mubr.bf16.gmra.mxu0 %v8785
      %v9228 = vpop.f32.mrf.mxu0
      %v9229 = vadd.f32 0.0, %v9228
      %v9230 = vpop.f32.mrf.mxu0
      %v9231 = vpop.f32.mrf.mxu0
      %v9232 = vadd.f32 0.0, %v9231
      %v9233 = vpop.f32.mrf.mxu0
      %9234 = vmatprep.mubr.bf16.mxu0 %v8791
      %9235 = vmatmul.mubr.bf16.gmra.mxu0 %v8790
      %v9236 = vpop.f32.mrf.mxu0
      %v9237 = vadd.f32 0.0, %v9236
      %v9238 = vpop.f32.mrf.mxu0
      %v9239 = vpop.f32.mrf.mxu0
      %v9240 = vadd.f32 0.0, %v9239
      %v9241 = vpop.f32.mrf.mxu0
      %9242 = vmatprep.mubr.bf16.mxu0 %v8796
      %9243 = vmatmul.mubr.bf16.gmra.mxu0 %v8795
      %v9244 = vpop.f32.mrf.mxu0
      %v9245 = vadd.f32 0.0, %v9244
      %v9246 = vpop.f32.mrf.mxu0
      %v9247 = vpop.f32.mrf.mxu0
      %v9248 = vadd.f32 0.0, %v9247
      %v9249 = vpop.f32.mrf.mxu0
      %9250 = vmatprep.mubr.bf16.mxu0 %v8801
      %9251 = vmatmul.mubr.bf16.gmra.mxu0 %v8800
      %v9252 = vpop.f32.mrf.mxu0
      %v9253 = vadd.f32 0.0, %v9252
      %v9254 = vpop.f32.mrf.mxu0
      %v9255 = vpop.f32.mrf.mxu0
      %v9256 = vadd.f32 0.0, %v9255
      %v9257 = vpop.f32.mrf.mxu0
      %9258 = vmatprep.mubr.bf16.mxu0 %v8806
      %9259 = vmatmul.mubr.bf16.gmra.mxu0 %v8805
      %v9260 = vpop.f32.mrf.mxu0
      %v9261 = vadd.f32 0.0, %v9260
      %v9262 = vpop.f32.mrf.mxu0
      %v9263 = vpop.f32.mrf.mxu0
      %v9264 = vadd.f32 0.0, %v9263
      %v9265 = vpop.f32.mrf.mxu0
      %9266 = vmatprep.mubr.bf16.mxu0 %v8811
      %9267 = vmatmul.mubr.bf16.gmra.mxu0 %v8810
      %v9268 = vpop.f32.mrf.mxu0
      %v9269 = vadd.f32 0.0, %v9268
      %v9270 = vpop.f32.mrf.mxu0
      %v9271 = vpop.f32.mrf.mxu0
      %v9272 = vadd.f32 0.0, %v9271
      %v9273 = vpop.f32.mrf.mxu0
      %9274 = vmatprep.mubr.bf16.mxu0 %v8816
      %9275 = vmatmul.mubr.bf16.gmra.mxu0 %v8815
      %v9276 = vpop.f32.mrf.mxu0
      %v9277 = vadd.f32 0.0, %v9276
      %v9278 = vpop.f32.mrf.mxu0
      %v9279 = vpop.f32.mrf.mxu0
      %v9280 = vadd.f32 0.0, %v9279
      %v9281 = vpop.f32.mrf.mxu0
      %9282 = vmatprep.mubr.bf16.mxu0 %v8821
      %9283 = vmatmul.mubr.bf16.gmra.mxu0 %v8820
      %v9284 = vpop.f32.mrf.mxu0
      %v9285 = vadd.f32 0.0, %v9284
      %v9286 = vpop.f32.mrf.mxu0
      %v9287 = vpop.f32.mrf.mxu0
      %v9288 = vadd.f32 0.0, %v9287
      %v9289 = vpop.f32.mrf.mxu0
      %9290 = vmatprep.mubr.bf16.mxu0 %v8826
      %9291 = vmatmul.mubr.bf16.gmra.mxu0 %v8825
      %v9292 = vpop.f32.mrf.mxu0
      %v9293 = vadd.f32 0.0, %v9292
      %v9294 = vpop.f32.mrf.mxu0
      %v9295 = vpop.f32.mrf.mxu0
      %v9296 = vadd.f32 0.0, %v9295
      %v9297 = vpop.f32.mrf.mxu0
      %9298 = vmatprep.mubr.bf16.mxu0 %v8831
      %9299 = vmatmul.mubr.bf16.gmra.mxu0 %v8830
      %v9300 = vpop.f32.mrf.mxu0
      %v9301 = vadd.f32 0.0, %v9300
      %v9302 = vpop.f32.mrf.mxu0
      %v9303 = vpop.f32.mrf.mxu0
      %v9304 = vadd.f32 0.0, %v9303
      %v9305 = vpop.f32.mrf.mxu0
      %9306 = vmatprep.mubr.bf16.mxu0 %v8836
      %9307 = vmatmul.mubr.bf16.gmra.mxu0 %v8835
      %v9308 = vpop.f32.mrf.mxu0
      %v9309 = vadd.f32 0.0, %v9308
      %v9310 = vpop.f32.mrf.mxu0
      %v9311 = vpop.f32.mrf.mxu0
      %v9312 = vadd.f32 0.0, %v9311
      %v9313 = vpop.f32.mrf.mxu0
      %9314 = vmatprep.mubr.bf16.mxu0 %v8841
      %9315 = vmatmul.mubr.bf16.gmra.mxu0 %v8840
      %v9316 = vpop.f32.mrf.mxu0
      %v9317 = vadd.f32 0.0, %v9316
      %v9318 = vpop.f32.mrf.mxu0
      %v9319 = vpop.f32.mrf.mxu0
      %v9320 = vadd.f32 0.0, %v9319
      %v9321 = vpop.f32.mrf.mxu0
      %9322 = vmatprep.mubr.bf16.mxu0 %v8846
      %9323 = vmatmul.mubr.bf16.gmra.mxu0 %v8845
      %v9324 = vpop.f32.mrf.mxu0
      %v9325 = vadd.f32 0.0, %v9324
      %v9326 = vpop.f32.mrf.mxu0
      %v9327 = vpop.f32.mrf.mxu0
      %v9328 = vadd.f32 0.0, %v9327
      %v9329 = vpop.f32.mrf.mxu0
      %9330 = vdwg.mxu0
      %9331 = vmatprep.subr.bf16.mxu0 0
      %9332 = vmatpush1.bf16.msra.mxu0 %v9113
      %9333 = vmatprep.subr.bf16.mxu0 0
      %9334 = vmatpush1.bf16.msra.mxu0 %v9112
      %9335 = vmatprep.subr.bf16.mxu0 0
      %9336 = vmatpush1.bf16.msra.mxu0 %v9111
      %9337 = vmatprep.subr.bf16.mxu0 0
      %9338 = vmatpush1.bf16.msra.mxu0 %v9110
      %9339 = vmatprep.subr.bf16.mxu0 0
      %9340 = vmatpush1.bf16.msra.mxu0 %v9109
      %9341 = vmatprep.subr.bf16.mxu0 0
      %9342 = vmatpush1.bf16.msra.mxu0 %v9108
      %9343 = vmatprep.subr.bf16.mxu0 0
      %9344 = vmatpush1.bf16.msra.mxu0 %v9107
      %9345 = vmatprep.subr.bf16.mxu0 0
      %9346 = vmatpush1.bf16.msra.mxu0 %v9106
      %9347 = vmatprep.subr.bf16.mxu0 0
      %9348 = vmatpush2.bf16.msra.mxu0 %v9121
      %9349 = vmatprep.subr.bf16.mxu0 0
      %9350 = vmatpush2.bf16.msra.mxu0 %v9120
      %9351 = vmatprep.subr.bf16.mxu0 0
      %9352 = vmatpush2.bf16.msra.mxu0 %v9119
      %9353 = vmatprep.subr.bf16.mxu0 0
      %9354 = vmatpush2.bf16.msra.mxu0 %v9118
      %9355 = vmatprep.subr.bf16.mxu0 0
      %9356 = vmatpush2.bf16.msra.mxu0 %v9117
      %9357 = vmatprep.subr.bf16.mxu0 0
      %9358 = vmatpush2.bf16.msra.mxu0 %v9116
      %9359 = vmatprep.subr.bf16.mxu0 0
      %9360 = vmatpush2.bf16.msra.mxu0 %v9115
      %9361 = vmatprep.subr.bf16.mxu0 0
      %9362 = vmatpush2.bf16.msra.mxu0 %v9114
      %9363 = vmatprep.mubr.bf16.mxu0 %v8773
      %9364 = vmatmul.mubr.bf16.gmra.mxu0 %v8772
      %v9365 = vpop.f32.mrf.mxu0
      %v9366 = vadd.f32 %v9205, %v9365
      %v9367 = vpop.f32.mrf.mxu0
      %v9368 = vpop.f32.mrf.mxu0
      %v9369 = vadd.f32 %v9208, %v9368
      %v9370 = vpop.f32.mrf.mxu0
      %9371 = vmatprep.mubr.bf16.mxu0 %v8778
      %9372 = vmatmul.mubr.bf16.gmra.mxu0 %v8777
      %v9373 = vpop.f32.mrf.mxu0
      %v9374 = vadd.f32 %v9213, %v9373
      %v9375 = vpop.f32.mrf.mxu0
      %v9376 = vpop.f32.mrf.mxu0
      %v9377 = vadd.f32 %v9216, %v9376
      %v9378 = vpop.f32.mrf.mxu0
      %9379 = vmatprep.mubr.bf16.mxu0 %v8783
      %9380 = vmatmul.mubr.bf16.gmra.mxu0 %v8782
      %v9381 = vpop.f32.mrf.mxu0
      %v9382 = vadd.f32 %v9221, %v9381
      %v9383 = vpop.f32.mrf.mxu0
      %v9384 = vpop.f32.mrf.mxu0
      %v9385 = vadd.f32 %v9224, %v9384
      %v9386 = vpop.f32.mrf.mxu0
      %9387 = vmatprep.mubr.bf16.mxu0 %v8788
      %9388 = vmatmul.mubr.bf16.gmra.mxu0 %v8787
      %v9389 = vpop.f32.mrf.mxu0
      %v9390 = vadd.f32 %v9229, %v9389
      %v9391 = vpop.f32.mrf.mxu0
      %v9392 = vpop.f32.mrf.mxu0
      %v9393 = vadd.f32 %v9232, %v9392
      %v9394 = vpop.f32.mrf.mxu0
      %9395 = vmatprep.mubr.bf16.mxu0 %v8793
      %9396 = vmatmul.mubr.bf16.gmra.mxu0 %v8792
      %v9397 = vpop.f32.mrf.mxu0
      %v9398 = vadd.f32 %v9237, %v9397
      %v9399 = vpop.f32.mrf.mxu0
      %v9400 = vpop.f32.mrf.mxu0
      %v9401 = vadd.f32 %v9240, %v9400
      %v9402 = vpop.f32.mrf.mxu0
      %9403 = vmatprep.mubr.bf16.mxu0 %v8798
      %9404 = vmatmul.mubr.bf16.gmra.mxu0 %v8797
      %v9405 = vpop.f32.mrf.mxu0
      %v9406 = vadd.f32 %v9245, %v9405
      %v9407 = vpop.f32.mrf.mxu0
      %v9408 = vpop.f32.mrf.mxu0
      %v9409 = vadd.f32 %v9248, %v9408
      %v9410 = vpop.f32.mrf.mxu0
      %9411 = vmatprep.mubr.bf16.mxu0 %v8803
      %9412 = vmatmul.mubr.bf16.gmra.mxu0 %v8802
      %v9413 = vpop.f32.mrf.mxu0
      %v9414 = vadd.f32 %v9253, %v9413
      %v9415 = vpop.f32.mrf.mxu0
      %v9416 = vpop.f32.mrf.mxu0
      %v9417 = vadd.f32 %v9256, %v9416
      %v9418 = vpop.f32.mrf.mxu0
      %9419 = vmatprep.mubr.bf16.mxu0 %v8808
      %9420 = vmatmul.mubr.bf16.gmra.mxu0 %v8807
      %v9421 = vpop.f32.mrf.mxu0
      %v9422 = vadd.f32 %v9261, %v9421
      %v9423 = vpop.f32.mrf.mxu0
      %v9424 = vpop.f32.mrf.mxu0
      %v9425 = vadd.f32 %v9264, %v9424
      %v9426 = vpop.f32.mrf.mxu0
      %9427 = vmatprep.mubr.bf16.mxu0 %v8813
      %9428 = vmatmul.mubr.bf16.gmra.mxu0 %v8812
      %v9429 = vpop.f32.mrf.mxu0
      %v9430 = vadd.f32 %v9269, %v9429
      %v9431 = vpop.f32.mrf.mxu0
      %v9432 = vpop.f32.mrf.mxu0
      %v9433 = vadd.f32 %v9272, %v9432
      %v9434 = vpop.f32.mrf.mxu0
      %9435 = vmatprep.mubr.bf16.mxu0 %v8818
      %9436 = vmatmul.mubr.bf16.gmra.mxu0 %v8817
      %v9437 = vpop.f32.mrf.mxu0
      %v9438 = vadd.f32 %v9277, %v9437
      %v9439 = vpop.f32.mrf.mxu0
      %v9440 = vpop.f32.mrf.mxu0
      %v9441 = vadd.f32 %v9280, %v9440
      %v9442 = vpop.f32.mrf.mxu0
      %9443 = vmatprep.mubr.bf16.mxu0 %v8823
      %9444 = vmatmul.mubr.bf16.gmra.mxu0 %v8822
      %v9445 = vpop.f32.mrf.mxu0
      %v9446 = vadd.f32 %v9285, %v9445
      %v9447 = vpop.f32.mrf.mxu0
      %v9448 = vpop.f32.mrf.mxu0
      %v9449 = vadd.f32 %v9288, %v9448
      %v9450 = vpop.f32.mrf.mxu0
      %9451 = vmatprep.mubr.bf16.mxu0 %v8828
      %9452 = vmatmul.mubr.bf16.gmra.mxu0 %v8827
      %v9453 = vpop.f32.mrf.mxu0
      %v9454 = vadd.f32 %v9293, %v9453
      %v9455 = vpop.f32.mrf.mxu0
      %v9456 = vpop.f32.mrf.mxu0
      %v9457 = vadd.f32 %v9296, %v9456
      %v9458 = vpop.f32.mrf.mxu0
      %9459 = vmatprep.mubr.bf16.mxu0 %v8833
      %9460 = vmatmul.mubr.bf16.gmra.mxu0 %v8832
      %v9461 = vpop.f32.mrf.mxu0
      %v9462 = vadd.f32 %v9301, %v9461
      %v9463 = vpop.f32.mrf.mxu0
      %v9464 = vpop.f32.mrf.mxu0
      %v9465 = vadd.f32 %v9304, %v9464
      %v9466 = vpop.f32.mrf.mxu0
      %9467 = vmatprep.mubr.bf16.mxu0 %v8838
      %9468 = vmatmul.mubr.bf16.gmra.mxu0 %v8837
      %v9469 = vpop.f32.mrf.mxu0
      %v9470 = vadd.f32 %v9309, %v9469
      %v9471 = vpop.f32.mrf.mxu0
      %v9472 = vpop.f32.mrf.mxu0
      %v9473 = vadd.f32 %v9312, %v9472
      %v9474 = vpop.f32.mrf.mxu0
      %9475 = vmatprep.mubr.bf16.mxu0 %v8843
      %9476 = vmatmul.mubr.bf16.gmra.mxu0 %v8842
      %v9477 = vpop.f32.mrf.mxu0
      %v9478 = vadd.f32 %v9317, %v9477
      %v9479 = vpop.f32.mrf.mxu0
      %v9480 = vpop.f32.mrf.mxu0
      %v9481 = vadd.f32 %v9320, %v9480
      %v9482 = vpop.f32.mrf.mxu0
      %9483 = vmatprep.mubr.bf16.mxu0 %v8848
      %9484 = vmatmul.mubr.bf16.gmra.mxu0 %v8847
      %v9485 = vpop.f32.mrf.mxu0
      %v9486 = vadd.f32 %v9325, %v9485
      %v9487 = vpop.f32.mrf.mxu0
      %v9488 = vpop.f32.mrf.mxu0
      %v9489 = vadd.f32 %v9328, %v9488
      %v9490 = vpop.f32.mrf.mxu0
      %9491 = vdwg.mxu0
      %9492 = vmatprep.subr.bf16.mxu0 0
      %9493 = vmatpush1.bf16.msra.mxu0 %v9129
      %9494 = vmatprep.subr.bf16.mxu0 0
      %9495 = vmatpush1.bf16.msra.mxu0 %v9128
      %9496 = vmatprep.subr.bf16.mxu0 0
      %9497 = vmatpush1.bf16.msra.mxu0 %v9127
      %9498 = vmatprep.subr.bf16.mxu0 0
      %9499 = vmatpush1.bf16.msra.mxu0 %v9126
      %9500 = vmatprep.subr.bf16.mxu0 0
      %9501 = vmatpush1.bf16.msra.mxu0 %v9125
      %9502 = vmatprep.subr.bf16.mxu0 0
      %9503 = vmatpush1.bf16.msra.mxu0 %v9124
      %9504 = vmatprep.subr.bf16.mxu0 0
      %9505 = vmatpush1.bf16.msra.mxu0 %v9123
      %9506 = vmatprep.subr.bf16.mxu0 0
      %9507 = vmatpush1.bf16.msra.mxu0 %v9122
      %9508 = vmatprep.subr.bf16.mxu0 0
      %9509 = vmatpush2.bf16.msra.mxu0 0
      %9510 = vmatprep.subr.bf16.mxu0 0
      %9511 = vmatpush2.bf16.msra.mxu0 0
      %9512 = vmatprep.subr.bf16.mxu0 0
      %9513 = vmatpush2.bf16.msra.mxu0 0
      %9514 = vmatprep.subr.bf16.mxu0 0
      %9515 = vmatpush2.bf16.msra.mxu0 0
      %9516 = vmatprep.subr.bf16.mxu0 0
      %9517 = vmatpush2.bf16.msra.mxu0 0
      %9518 = vmatprep.subr.bf16.mxu0 0
      %9519 = vmatpush2.bf16.msra.mxu0 0
      %9520 = vmatprep.subr.bf16.mxu0 0
      %9521 = vmatpush2.bf16.msra.mxu0 0
      %9522 = vmatprep.subr.bf16.mxu0 0
      %9523 = vmatpush2.bf16.msra.mxu0 0
      %9524 = vmatprep.mubr.bf16.mxu0 0
      %9525 = vmatmul.mubr.bf16.gmra.mxu0 %v8774
      %v9526 = vpop.f32.mrf.mxu0
      %v9527 = vadd.f32 %v9366, %v9526
      %v9528 = vpop.f32.mrf.mxu0
      %v9529 = vpop.f32.mrf.mxu0
      %v9530 = vadd.f32 %v9369, %v9529
      %v9531 = vpop.f32.mrf.mxu0
      %9532 = vmatprep.mubr.bf16.mxu0 0
      %9533 = vmatmul.mubr.bf16.gmra.mxu0 %v8779
      %v9534 = vpop.f32.mrf.mxu0
      %v9535 = vadd.f32 %v9374, %v9534
      %v9536 = vpop.f32.mrf.mxu0
      %v9537 = vpop.f32.mrf.mxu0
      %v9538 = vadd.f32 %v9377, %v9537
      %v9539 = vpop.f32.mrf.mxu0
      %9540 = vmatprep.mubr.bf16.mxu0 0
      %9541 = vmatmul.mubr.bf16.gmra.mxu0 %v8784
      %v9542 = vpop.f32.mrf.mxu0
      %v9543 = vadd.f32 %v9382, %v9542
      %v9544 = vpop.f32.mrf.mxu0
      %v9545 = vpop.f32.mrf.mxu0
      %v9546 = vadd.f32 %v9385, %v9545
      %v9547 = vpop.f32.mrf.mxu0
      %9548 = vmatprep.mubr.bf16.mxu0 0
      %9549 = vmatmul.mubr.bf16.gmra.mxu0 %v8789
      %v9550 = vpop.f32.mrf.mxu0
      %v9551 = vadd.f32 %v9390, %v9550
      %v9552 = vpop.f32.mrf.mxu0
      %v9553 = vpop.f32.mrf.mxu0
      %v9554 = vadd.f32 %v9393, %v9553
      %v9555 = vpop.f32.mrf.mxu0
      %9556 = vmatprep.mubr.bf16.mxu0 0
      %9557 = vmatmul.mubr.bf16.gmra.mxu0 %v8794
      %v9558 = vpop.f32.mrf.mxu0
      %v9559 = vadd.f32 %v9398, %v9558
      %v9560 = vpop.f32.mrf.mxu0
      %v9561 = vpop.f32.mrf.mxu0
      %v9562 = vadd.f32 %v9401, %v9561
      %v9563 = vpop.f32.mrf.mxu0
      %9564 = vmatprep.mubr.bf16.mxu0 0
      %9565 = vmatmul.mubr.bf16.gmra.mxu0 %v8799
      %v9566 = vpop.f32.mrf.mxu0
      %v9567 = vadd.f32 %v9406, %v9566
      %v9568 = vpop.f32.mrf.mxu0
      %v9569 = vpop.f32.mrf.mxu0
      %v9570 = vadd.f32 %v9409, %v9569
      %v9571 = vpop.f32.mrf.mxu0
      %9572 = vmatprep.mubr.bf16.mxu0 0
      %9573 = vmatmul.mubr.bf16.gmra.mxu0 %v8804
      %v9574 = vpop.f32.mrf.mxu0
      %v9575 = vadd.f32 %v9414, %v9574
      %v9576 = vpop.f32.mrf.mxu0
      %v9577 = vpop.f32.mrf.mxu0
      %v9578 = vadd.f32 %v9417, %v9577
      %v9579 = vpop.f32.mrf.mxu0
      %9580 = vmatprep.mubr.bf16.mxu0 0
      %9581 = vmatmul.mubr.bf16.gmra.mxu0 %v8809
      %v9582 = vpop.f32.mrf.mxu0
      %v9583 = vadd.f32 %v9422, %v9582
      %v9584 = vpop.f32.mrf.mxu0
      %v9585 = vpop.f32.mrf.mxu0
      %v9586 = vadd.f32 %v9425, %v9585
      %v9587 = vpop.f32.mrf.mxu0
      %9588 = vmatprep.mubr.bf16.mxu0 0
      %9589 = vmatmul.mubr.bf16.gmra.mxu0 %v8814
      %v9590 = vpop.f32.mrf.mxu0
      %v9591 = vadd.f32 %v9430, %v9590
      %v9592 = vpop.f32.mrf.mxu0
      %v9593 = vpop.f32.mrf.mxu0
      %v9594 = vadd.f32 %v9433, %v9593
      %v9595 = vpop.f32.mrf.mxu0
      %9596 = vmatprep.mubr.bf16.mxu0 0
      %9597 = vmatmul.mubr.bf16.gmra.mxu0 %v8819
      %v9598 = vpop.f32.mrf.mxu0
      %v9599 = vadd.f32 %v9438, %v9598
      %v9600 = vpop.f32.mrf.mxu0
      %v9601 = vpop.f32.mrf.mxu0
      %v9602 = vadd.f32 %v9441, %v9601
      %v9603 = vpop.f32.mrf.mxu0
      %9604 = vmatprep.mubr.bf16.mxu0 0
      %9605 = vmatmul.mubr.bf16.gmra.mxu0 %v8824
      %v9606 = vpop.f32.mrf.mxu0
      %v9607 = vadd.f32 %v9446, %v9606
      %v9608 = vpop.f32.mrf.mxu0
      %v9609 = vpop.f32.mrf.mxu0
      %v9610 = vadd.f32 %v9449, %v9609
      %v9611 = vpop.f32.mrf.mxu0
      %9612 = vmatprep.mubr.bf16.mxu0 0
      %9613 = vmatmul.mubr.bf16.gmra.mxu0 %v8829
      %v9614 = vpop.f32.mrf.mxu0
      %v9615 = vadd.f32 %v9454, %v9614
      %v9616 = vpop.f32.mrf.mxu0
      %v9617 = vpop.f32.mrf.mxu0
      %v9618 = vadd.f32 %v9457, %v9617
      %v9619 = vpop.f32.mrf.mxu0
      %9620 = vmatprep.mubr.bf16.mxu0 0
      %9621 = vmatmul.mubr.bf16.gmra.mxu0 %v8834
      %v9622 = vpop.f32.mrf.mxu0
      %v9623 = vadd.f32 %v9462, %v9622
      %v9624 = vpop.f32.mrf.mxu0
      %v9625 = vpop.f32.mrf.mxu0
      %v9626 = vadd.f32 %v9465, %v9625
      %v9627 = vpop.f32.mrf.mxu0
      %9628 = vmatprep.mubr.bf16.mxu0 0
      %9629 = vmatmul.mubr.bf16.gmra.mxu0 %v8839
      %v9630 = vpop.f32.mrf.mxu0
      %v9631 = vadd.f32 %v9470, %v9630
      %v9632 = vpop.f32.mrf.mxu0
      %v9633 = vpop.f32.mrf.mxu0
      %v9634 = vadd.f32 %v9473, %v9633
      %v9635 = vpop.f32.mrf.mxu0
      %9636 = vmatprep.mubr.bf16.mxu0 0
      %9637 = vmatmul.mubr.bf16.gmra.mxu0 %v8844
      %v9638 = vpop.f32.mrf.mxu0
      %v9639 = vadd.f32 %v9478, %v9638
      %v9640 = vpop.f32.mrf.mxu0
      %v9641 = vpop.f32.mrf.mxu0
      %v9642 = vadd.f32 %v9481, %v9641
      %v9643 = vpop.f32.mrf.mxu0
      %9644 = vmatprep.mubr.bf16.mxu0 0
      %9645 = vmatmul.mubr.bf16.gmra.mxu0 %v8849
      %v9646 = vpop.f32.mrf.mxu0
      %v9647 = vadd.f32 %v9486, %v9646
      %v9648 = vpop.f32.mrf.mxu0
      %v9649 = vpop.f32.mrf.mxu0
      %v9650 = vadd.f32 %v9489, %v9649
      %v9651 = vpop.f32.mrf.mxu0
      %9652 = vdwg.mxu0
      %9653 = vst.msk [vmem:[#allocation4] sm:$0xff] %vm1063, %v9527
      %9654 = vst.msk [vmem:[#allocation4 + $0x8] sm:$0xff] %vm1063, %v9530
      %9655 = vst.msk [vmem:[#allocation4 + $0x10] sm:$0xff] %vm1063, %v9535
      %9656 = vst.msk [vmem:[#allocation4 + $0x18] sm:$0xff] %vm1063, %v9538
      %9657 = vst.msk [vmem:[#allocation4 + $0x20] sm:$0xff] %vm1063, %v9543
      %9658 = vst.msk [vmem:[#allocation4 + $0x28] sm:$0xff] %vm1063, %v9546
      %9659 = vst.msk [vmem:[#allocation4 + $0x30] sm:$0xff] %vm1063, %v9551
      %9660 = vst.msk [vmem:[#allocation4 + $0x38] sm:$0xff] %vm1063, %v9554
      %9661 = vst.msk [vmem:[#allocation4 + $0x40] sm:$0xff] %vm1063, %v9559
      %9662 = vst.msk [vmem:[#allocation4 + $0x48] sm:$0xff] %vm1063, %v9562
      %9663 = vst.msk [vmem:[#allocation4 + $0x50] sm:$0xff] %vm1063, %v9567
      %9664 = vst.msk [vmem:[#allocation4 + $0x58] sm:$0xff] %vm1063, %v9570
      %9665 = vst.msk [vmem:[#allocation4 + $0x60] sm:$0xff] %vm1063, %v9575
      %9666 = vst.msk [vmem:[#allocation4 + $0x68] sm:$0xff] %vm1063, %v9578
      %9667 = vst.msk [vmem:[#allocation4 + $0x70] sm:$0xff] %vm1063, %v9583
      %9668 = vst.msk [vmem:[#allocation4 + $0x78] sm:$0xff] %vm1063, %v9586
      %9669 = vst.msk [vmem:[#allocation4 + $0x80] sm:$0xff] %vm1063, %v9591
      %9670 = vst.msk [vmem:[#allocation4 + $0x88] sm:$0xff] %vm1063, %v9594
      %9671 = vst.msk [vmem:[#allocation4 + $0x90] sm:$0xff] %vm1063, %v9599
      %9672 = vst.msk [vmem:[#allocation4 + $0x98] sm:$0xff] %vm1063, %v9602
      %9673 = vst.msk [vmem:[#allocation4 + $0xa0] sm:$0xff] %vm1063, %v9607
      %9674 = vst.msk [vmem:[#allocation4 + $0xa8] sm:$0xff] %vm1063, %v9610
      %9675 = vst.msk [vmem:[#allocation4 + $0xb0] sm:$0xff] %vm1063, %v9615
      %9676 = vst.msk [vmem:[#allocation4 + $0xb8] sm:$0xff] %vm1063, %v9618
      %9677 = vst.msk [vmem:[#allocation4 + $0xc0] sm:$0xff] %vm1063, %v9623
      %9678 = vst.msk [vmem:[#allocation4 + $0xc8] sm:$0xff] %vm1063, %v9626
      %9679 = vst.msk [vmem:[#allocation4 + $0xd0] sm:$0xff] %vm1063, %v9631
      %9680 = vst.msk [vmem:[#allocation4 + $0xd8] sm:$0xff] %vm1063, %v9634
      %9681 = vst.msk [vmem:[#allocation4 + $0xe0] sm:$0xff] %vm1063, %v9639
      %9682 = vst.msk [vmem:[#allocation4 + $0xe8] sm:$0xff] %vm1063, %v9642
      %9683 = vst.msk [vmem:[#allocation4 + $0xf0] sm:$0xff] %vm1063, %v9647
      %9684 = vst.msk [vmem:[#allocation4 + $0xf8] sm:$0xff] %vm1063, %v9650
      %v9685 = vld [vmem:[%s5] sm:$0x1]
      %v9686 = vld [vmem:[%s6] sm:$0x1]
      %v9687 = vld [vmem:[#allocation4] sm:$0xff]
      %v9688 = vld [vmem:[#allocation4 + $0x8] sm:$0xff]
      %v9689 = vld [vmem:[#allocation4 + $0x10] sm:$0xff]
      %v9690 = vld [vmem:[#allocation4 + $0x18] sm:$0xff]
      %v9691 = vld [vmem:[#allocation4 + $0x20] sm:$0xff]
      %v9692 = vld [vmem:[#allocation4 + $0x28] sm:$0xff]
      %v9693 = vld [vmem:[#allocation4 + $0x30] sm:$0xff]
      %v9694 = vld [vmem:[#allocation4 + $0x38] sm:$0xff]
      %v9695 = vld [vmem:[#allocation4 + $0x40] sm:$0xff]
      %v9696 = vld [vmem:[#allocation4 + $0x48] sm:$0xff]
      %v9697 = vld [vmem:[#allocation4 + $0x50] sm:$0xff]
      %v9698 = vld [vmem:[#allocation4 + $0x58] sm:$0xff]
      %v9699 = vld [vmem:[#allocation4 + $0x60] sm:$0xff]
      %v9700 = vld [vmem:[#allocation4 + $0x68] sm:$0xff]
      %v9701 = vld [vmem:[#allocation4 + $0x70] sm:$0xff]
      %v9702 = vld [vmem:[#allocation4 + $0x78] sm:$0xff]
      %v9703 = vld [vmem:[#allocation4 + $0x80] sm:$0xff]
      %v9704 = vld [vmem:[#allocation4 + $0x88] sm:$0xff]
      %v9705 = vld [vmem:[#allocation4 + $0x90] sm:$0xff]
      %v9706 = vld [vmem:[#allocation4 + $0x98] sm:$0xff]
      %v9707 = vld [vmem:[#allocation4 + $0xa0] sm:$0xff]
      %v9708 = vld [vmem:[#allocation4 + $0xa8] sm:$0xff]
      %v9709 = vld [vmem:[#allocation4 + $0xb0] sm:$0xff]
      %v9710 = vld [vmem:[#allocation4 + $0xb8] sm:$0xff]
      %v9711 = vld [vmem:[#allocation4 + $0xc0] sm:$0xff]
      %v9712 = vld [vmem:[#allocation4 + $0xc8] sm:$0xff]
      %v9713 = vld [vmem:[#allocation4 + $0xd0] sm:$0xff]
      %v9714 = vld [vmem:[#allocation4 + $0xd8] sm:$0xff]
      %v9715 = vld [vmem:[#allocation4 + $0xe0] sm:$0xff]
      %v9716 = vld [vmem:[#allocation4 + $0xe8] sm:$0xff]
      %v9717 = vld [vmem:[#allocation4 + $0xf0] sm:$0xff]
      %v9718 = vld [vmem:[#allocation4 + $0xf8] sm:$0xff]
      %v9719 = vsel %vm1063, %v9687, 0.0
      %v9720 = vsel %vm1063, %v9688, 0.0
      %v9721 = vadd.f32 %v9719, %v9720
      %v9722 = vsel %vm1063, %v9689, 0.0
      %v9723 = vadd.f32 %v9721, %v9722
      %v9724 = vsel %vm1063, %v9690, 0.0
      %v9725 = vadd.f32 %v9723, %v9724
      %v9726 = vsel %vm1063, %v9691, 0.0
      %v9727 = vadd.f32 %v9725, %v9726
      %v9728 = vsel %vm1063, %v9692, 0.0
      %v9729 = vadd.f32 %v9727, %v9728
      %v9730 = vsel %vm1063, %v9693, 0.0
      %v9731 = vadd.f32 %v9729, %v9730
      %v9732 = vsel %vm1063, %v9694, 0.0
      %v9733 = vadd.f32 %v9731, %v9732
      %v9734 = vsel %vm1063, %v9695, 0.0
      %v9735 = vadd.f32 %v9733, %v9734
      %v9736 = vsel %vm1063, %v9696, 0.0
      %v9737 = vadd.f32 %v9735, %v9736
      %v9738 = vsel %vm1063, %v9697, 0.0
      %v9739 = vadd.f32 %v9737, %v9738
      %v9740 = vsel %vm1063, %v9698, 0.0
      %v9741 = vadd.f32 %v9739, %v9740
      %v9742 = vsel %vm1063, %v9699, 0.0
      %v9743 = vadd.f32 %v9741, %v9742
      %v9744 = vsel %vm1063, %v9700, 0.0
      %v9745 = vadd.f32 %v9743, %v9744
      %v9746 = vsel %vm1063, %v9701, 0.0
      %v9747 = vadd.f32 %v9745, %v9746
      %v9748 = vsel %vm1063, %v9702, 0.0
      %v9749 = vadd.f32 %v9747, %v9748
      %v9750 = vsel %vm1063, %v9703, 0.0
      %v9751 = vadd.f32 %v9749, %v9750
      %v9752 = vsel %vm1063, %v9704, 0.0
      %v9753 = vadd.f32 %v9751, %v9752
      %v9754 = vsel %vm1063, %v9705, 0.0
      %v9755 = vadd.f32 %v9753, %v9754
      %v9756 = vsel %vm1063, %v9706, 0.0
      %v9757 = vadd.f32 %v9755, %v9756
      %v9758 = vsel %vm1063, %v9707, 0.0
      %v9759 = vadd.f32 %v9757, %v9758
      %v9760 = vsel %vm1063, %v9708, 0.0
      %v9761 = vadd.f32 %v9759, %v9760
      %v9762 = vsel %vm1063, %v9709, 0.0
      %v9763 = vadd.f32 %v9761, %v9762
      %v9764 = vsel %vm1063, %v9710, 0.0
      %v9765 = vadd.f32 %v9763, %v9764
      %v9766 = vsel %vm1063, %v9711, 0.0
      %v9767 = vadd.f32 %v9765, %v9766
      %v9768 = vsel %vm1063, %v9712, 0.0
      %v9769 = vadd.f32 %v9767, %v9768
      %v9770 = vsel %vm1063, %v9713, 0.0
      %v9771 = vadd.f32 %v9769, %v9770
      %v9772 = vsel %vm1063, %v9714, 0.0
      %v9773 = vadd.f32 %v9771, %v9772
      %v9774 = vsel %vm1063, %v9715, 0.0
      %v9775 = vadd.f32 %v9773, %v9774
      %v9776 = vsel %vm1063, %v9716, 0.0
      %v9777 = vadd.f32 %v9775, %v9776
      %v9778 = vsel %vm1063, %v9717, 0.0
      %v9779 = vadd.f32 %v9777, %v9778
      %v9780 = vsel %vm1063, %v9718, 0.0
      %v9781 = vadd.f32 %v9779, %v9780
      %v9782 = vrot.slane %v9781, 4
      %v9783 = vadd.f32 %v9781, %v9782
      %v9784 = vrot.slane %v9783, 2
      %v9785 = vadd.f32 %v9783, %v9784
      %v9786 = vrot.slane %v9785, 1
      %v9787 = vadd.f32 %v9785, %v9786
      %v9788 = vmul.f32 %v9787, 0.00390625
      %v9789 = vmul.f32 %v9687, %v9687
      %v9790 = vmul.f32 %v9688, %v9688
      %v9791 = vmul.f32 %v9689, %v9689
      %v9792 = vmul.f32 %v9690, %v9690
      %v9793 = vmul.f32 %v9691, %v9691
      %v9794 = vmul.f32 %v9692, %v9692
      %v9795 = vmul.f32 %v9693, %v9693
      %v9796 = vmul.f32 %v9694, %v9694
      %v9797 = vmul.f32 %v9695, %v9695
      %v9798 = vmul.f32 %v9696, %v9696
      %v9799 = vmul.f32 %v9697, %v9697
      %v9800 = vmul.f32 %v9698, %v9698
      %v9801 = vmul.f32 %v9699, %v9699
      %v9802 = vmul.f32 %v9700, %v9700
      %v9803 = vmul.f32 %v9701, %v9701
      %v9804 = vmul.f32 %v9702, %v9702
      %v9805 = vmul.f32 %v9703, %v9703
      %v9806 = vmul.f32 %v9704, %v9704
      %v9807 = vmul.f32 %v9705, %v9705
      %v9808 = vmul.f32 %v9706, %v9706
      %v9809 = vmul.f32 %v9707, %v9707
      %v9810 = vmul.f32 %v9708, %v9708
      %v9811 = vmul.f32 %v9709, %v9709
      %v9812 = vmul.f32 %v9710, %v9710
      %v9813 = vmul.f32 %v9711, %v9711
      %v9814 = vmul.f32 %v9712, %v9712
      %v9815 = vmul.f32 %v9713, %v9713
      %v9816 = vmul.f32 %v9714, %v9714
      %v9817 = vmul.f32 %v9715, %v9715
      %v9818 = vmul.f32 %v9716, %v9716
      %v9819 = vmul.f32 %v9717, %v9717
      %v9820 = vmul.f32 %v9718, %v9718
      %v9821 = vsel %vm1063, %v9789, 0.0
      %v9822 = vsel %vm1063, %v9790, 0.0
      %v9823 = vadd.f32 %v9821, %v9822
      %v9824 = vsel %vm1063, %v9791, 0.0
      %v9825 = vadd.f32 %v9823, %v9824
      %v9826 = vsel %vm1063, %v9792, 0.0
      %v9827 = vadd.f32 %v9825, %v9826
      %v9828 = vsel %vm1063, %v9793, 0.0
      %v9829 = vadd.f32 %v9827, %v9828
      %v9830 = vsel %vm1063, %v9794, 0.0
      %v9831 = vadd.f32 %v9829, %v9830
      %v9832 = vsel %vm1063, %v9795, 0.0
      %v9833 = vadd.f32 %v9831, %v9832
      %v9834 = vsel %vm1063, %v9796, 0.0
      %v9835 = vadd.f32 %v9833, %v9834
      %v9836 = vsel %vm1063, %v9797, 0.0
      %v9837 = vadd.f32 %v9835, %v9836
      %v9838 = vsel %vm1063, %v9798, 0.0
      %v9839 = vadd.f32 %v9837, %v9838
      %v9840 = vsel %vm1063, %v9799, 0.0
      %v9841 = vadd.f32 %v9839, %v9840
      %v9842 = vsel %vm1063, %v9800, 0.0
      %v9843 = vadd.f32 %v9841, %v9842
      %v9844 = vsel %vm1063, %v9801, 0.0
      %v9845 = vadd.f32 %v9843, %v9844
      %v9846 = vsel %vm1063, %v9802, 0.0
      %v9847 = vadd.f32 %v9845, %v9846
      %v9848 = vsel %vm1063, %v9803, 0.0
      %v9849 = vadd.f32 %v9847, %v9848
      %v9850 = vsel %vm1063, %v9804, 0.0
      %v9851 = vadd.f32 %v9849, %v9850
      %v9852 = vsel %vm1063, %v9805, 0.0
      %v9853 = vadd.f32 %v9851, %v9852
      %v9854 = vsel %vm1063, %v9806, 0.0
      %v9855 = vadd.f32 %v9853, %v9854
      %v9856 = vsel %vm1063, %v9807, 0.0
      %v9857 = vadd.f32 %v9855, %v9856
      %v9858 = vsel %vm1063, %v9808, 0.0
      %v9859 = vadd.f32 %v9857, %v9858
      %v9860 = vsel %vm1063, %v9809, 0.0
      %v9861 = vadd.f32 %v9859, %v9860
      %v9862 = vsel %vm1063, %v9810, 0.0
      %v9863 = vadd.f32 %v9861, %v9862
      %v9864 = vsel %vm1063, %v9811, 0.0
      %v9865 = vadd.f32 %v9863, %v9864
      %v9866 = vsel %vm1063, %v9812, 0.0
      %v9867 = vadd.f32 %v9865, %v9866
      %v9868 = vsel %vm1063, %v9813, 0.0
      %v9869 = vadd.f32 %v9867, %v9868
      %v9870 = vsel %vm1063, %v9814, 0.0
      %v9871 = vadd.f32 %v9869, %v9870
      %v9872 = vsel %vm1063, %v9815, 0.0
      %v9873 = vadd.f32 %v9871, %v9872
      %v9874 = vsel %vm1063, %v9816, 0.0
      %v9875 = vadd.f32 %v9873, %v9874
      %v9876 = vsel %vm1063, %v9817, 0.0
      %v9877 = vadd.f32 %v9875, %v9876
      %v9878 = vsel %vm1063, %v9818, 0.0
      %v9879 = vadd.f32 %v9877, %v9878
      %v9880 = vsel %vm1063, %v9819, 0.0
      %v9881 = vadd.f32 %v9879, %v9880
      %v9882 = vsel %vm1063, %v9820, 0.0
      %v9883 = vadd.f32 %v9881, %v9882
      %v9884 = vrot.slane %v9883, 4
      %v9885 = vadd.f32 %v9883, %v9884
      %v9886 = vrot.slane %v9885, 2
      %v9887 = vadd.f32 %v9885, %v9886
      %v9888 = vrot.slane %v9887, 1
      %v9889 = vadd.f32 %v9887, %v9888
      %v9890 = vmul.f32 %v9889, 0.00390625
      %v9891 = vmul.f32 %v9788, %v9788
      %v9892 = vsub.f32 %v9890, %v9891
      %v9893 = vmax.f32 %v9892, 0.0
      %v9894 = vadd.f32 %v9893, 1e-05
      %v9895 = vrsqrt.pop %v9894
      %v9896 = vmul.f32 %v9685, %v9895
      %v9897 = vmul.f32 %v9788, %v9896
      %v9898 = vsub.f32 %v9686, %v9897
      %v9899 = vadd.f32 %v9897, %v9898
      %v9900 = vld [vmem:[%s7] sm:$0xf]
      %v9901 = vlaneseq
      %v9902 = vshrl.u32 %v9901, 7
      %v9903 = vsub.s32 0, %v9902
      %v9904 = vrot.slane %v9899, %v9903
      %v9905 = vmul.f32 %v9904, %v9900
      %v9906 = vsel %vm334, %v9905, 0.0
      %9907 = vadd.xlane.f32.xlu0 %v9906
      %v9908 = vpop.xlane.xlu0 %9907
      %v9909 = vmax.f32 %v9908, 0.0
      %v9910 = vld [vmem:[%s8] sm:$0xf]
      %v9911 = vmul.f32 %v9909, %v9910
      %v9912 = vsel %vm334, %v9911, 0.0
      %v9913 = vrot.slane %v9912, 4
      %v9914 = vadd.f32 %v9912, %v9913
      %v9915 = vrot.slane %v9914, 2
      %v9916 = vadd.f32 %v9914, %v9915
      %v9917 = vrot.slane %v9916, 1
      %v9918 = vadd.f32 %v9916, %v9917
      %v9919 = vxor.u32 %v9918, 2147483648
      %v9920 = vmul.f32 %v9919, 1.442695
      %v9921 = vpow.pop %v9920
      %v9922 = vadd.f32 %v9921, 1.0
      %v9923 = vrcp.pop %v9922
      %v9924 = vmul.f32 1.0, %v9923
      %v9925 = vmul.f32 %v9896, %v9924
      %v9927 = vlaneseq
      %v9928 = vshrl.u32 %v9927, 7
      %v9929 = vsub.s32 0, %v9928
      %v9930 = vrot.slane %v9925, %v9929
      %v9932 = vmul.f32 %v9687, %v9930
      %v9933 = vmul.f32 %v9688, %v9930
      %v9934 = vmul.f32 %v9689, %v9930
      %v9935 = vmul.f32 %v9690, %v9930
      %v9936 = vmul.f32 %v9691, %v9930
      %v9937 = vmul.f32 %v9692, %v9930
      %v9938 = vmul.f32 %v9693, %v9930
      %v9939 = vmul.f32 %v9694, %v9930
      %v9940 = vmul.f32 %v9695, %v9930
      %v9941 = vmul.f32 %v9696, %v9930
      %v9942 = vmul.f32 %v9697, %v9930
      %v9943 = vmul.f32 %v9698, %v9930
      %v9944 = vmul.f32 %v9699, %v9930
      %v9945 = vmul.f32 %v9700, %v9930
      %v9946 = vmul.f32 %v9701, %v9930
      %v9947 = vmul.f32 %v9702, %v9930
      %v9948 = vmul.f32 %v9703, %v9930
      %v9949 = vmul.f32 %v9704, %v9930
      %v9950 = vmul.f32 %v9705, %v9930
      %v9951 = vmul.f32 %v9706, %v9930
      %v9952 = vmul.f32 %v9707, %v9930
      %v9953 = vmul.f32 %v9708, %v9930
      %v9954 = vmul.f32 %v9709, %v9930
      %v9955 = vmul.f32 %v9710, %v9930
      %v9956 = vmul.f32 %v9711, %v9930
      %v9957 = vmul.f32 %v9712, %v9930
      %v9958 = vmul.f32 %v9713, %v9930
      %v9959 = vmul.f32 %v9714, %v9930
      %v9960 = vmul.f32 %v9715, %v9930
      %v9961 = vmul.f32 %v9716, %v9930
      %v9962 = vmul.f32 %v9717, %v9930
      %v9963 = vmul.f32 %v9718, %v9930
      %v9964 = vmul.f32 %v9898, %v9924
      %v9966 = vlaneseq
      %v9967 = vshrl.u32 %v9966, 7
      %v9968 = vsub.s32 0, %v9967
      %v9969 = vrot.slane %v9964, %v9968
      %v9971 = vadd.f32 %v9932, %v9969
      %v9972 = vadd.f32 %v9933, %v9969
      %v9973 = vadd.f32 %v9934, %v9969
      %v9974 = vadd.f32 %v9935, %v9969
      %v9975 = vadd.f32 %v9936, %v9969
      %v9976 = vadd.f32 %v9937, %v9969
      %v9977 = vadd.f32 %v9938, %v9969
      %v9978 = vadd.f32 %v9939, %v9969
      %v9979 = vadd.f32 %v9940, %v9969
      %v9980 = vadd.f32 %v9941, %v9969
      %v9981 = vadd.f32 %v9942, %v9969
      %v9982 = vadd.f32 %v9943, %v9969
      %v9983 = vadd.f32 %v9944, %v9969
      %v9984 = vadd.f32 %v9945, %v9969
      %v9985 = vadd.f32 %v9946, %v9969
      %v9986 = vadd.f32 %v9947, %v9969
      %v9987 = vadd.f32 %v9948, %v9969
      %v9988 = vadd.f32 %v9949, %v9969
      %v9989 = vadd.f32 %v9950, %v9969
      %v9990 = vadd.f32 %v9951, %v9969
      %v9991 = vadd.f32 %v9952, %v9969
      %v9992 = vadd.f32 %v9953, %v9969
      %v9993 = vadd.f32 %v9954, %v9969
      %v9994 = vadd.f32 %v9955, %v9969
      %v9995 = vadd.f32 %v9956, %v9969
      %v9996 = vadd.f32 %v9957, %v9969
      %v9997 = vadd.f32 %v9958, %v9969
      %v9998 = vadd.f32 %v9959, %v9969
      %v9999 = vadd.f32 %v9960, %v9969
      %v10000 = vadd.f32 %v9961, %v9969
      %v10001 = vadd.f32 %v9962, %v9969
      %v10002 = vadd.f32 %v9963, %v9969
      %v10003 = vld [vmem:[%s327] sm:$0xff]
      %v10004 = vld [vmem:[%s327 + $0x8] sm:$0xff]
      %v10005 = vld [vmem:[%s327 + $0x10] sm:$0xff]
      %v10006 = vld [vmem:[%s327 + $0x18] sm:$0xff]
      %v10007 = vld [vmem:[%s327 + $0x20] sm:$0xff]
      %v10008 = vld [vmem:[%s327 + $0x28] sm:$0xff]
      %v10009 = vld [vmem:[%s327 + $0x30] sm:$0xff]
      %v10010 = vld [vmem:[%s327 + $0x38] sm:$0xff]
      %v10011 = vld [vmem:[%s327 + $0x40] sm:$0xff]
      %v10012 = vld [vmem:[%s327 + $0x48] sm:$0xff]
      %v10013 = vld [vmem:[%s327 + $0x50] sm:$0xff]
      %v10014 = vld [vmem:[%s327 + $0x58] sm:$0xff]
      %v10015 = vld [vmem:[%s327 + $0x60] sm:$0xff]
      %v10016 = vld [vmem:[%s327 + $0x68] sm:$0xff]
      %v10017 = vld [vmem:[%s327 + $0x70] sm:$0xff]
      %v10018 = vld [vmem:[%s327 + $0x78] sm:$0xff]
      %v10019 = vld [vmem:[%s327 + $0x80] sm:$0xff]
      %v10020 = vld [vmem:[%s327 + $0x88] sm:$0xff]
      %v10021 = vld [vmem:[%s327 + $0x90] sm:$0xff]
      %v10022 = vld [vmem:[%s327 + $0x98] sm:$0xff]
      %v10023 = vld [vmem:[%s327 + $0xa0] sm:$0xff]
      %v10024 = vld [vmem:[%s327 + $0xa8] sm:$0xff]
      %v10025 = vld [vmem:[%s327 + $0xb0] sm:$0xff]
      %v10026 = vld [vmem:[%s327 + $0xb8] sm:$0xff]
      %v10027 = vld [vmem:[%s327 + $0xc0] sm:$0xff]
      %v10028 = vld [vmem:[%s327 + $0xc8] sm:$0xff]
      %v10029 = vld [vmem:[%s327 + $0xd0] sm:$0xff]
      %v10030 = vld [vmem:[%s327 + $0xd8] sm:$0xff]
      %v10031 = vld [vmem:[%s327 + $0xe0] sm:$0xff]
      %v10032 = vld [vmem:[%s327 + $0xe8] sm:$0xff]
      %v10033 = vld [vmem:[%s327 + $0xf0] sm:$0xff]
      %v10034 = vld [vmem:[%s327 + $0xf8] sm:$0xff]
      %v10035 = vadd.f32 %v9971, %v10003
      %v10036 = vadd.f32 %v9972, %v10004
      %v10037 = vadd.f32 %v9973, %v10005
      %v10038 = vadd.f32 %v9974, %v10006
      %v10039 = vadd.f32 %v9975, %v10007
      %v10040 = vadd.f32 %v9976, %v10008
      %v10041 = vadd.f32 %v9977, %v10009
      %v10042 = vadd.f32 %v9978, %v10010
      %v10043 = vadd.f32 %v9979, %v10011
      %v10044 = vadd.f32 %v9980, %v10012
      %v10045 = vadd.f32 %v9981, %v10013
      %v10046 = vadd.f32 %v9982, %v10014
      %v10047 = vadd.f32 %v9983, %v10015
      %v10048 = vadd.f32 %v9984, %v10016
      %v10049 = vadd.f32 %v9985, %v10017
      %v10050 = vadd.f32 %v9986, %v10018
      %v10051 = vadd.f32 %v9987, %v10019
      %v10052 = vadd.f32 %v9988, %v10020
      %v10053 = vadd.f32 %v9989, %v10021
      %v10054 = vadd.f32 %v9990, %v10022
      %v10055 = vadd.f32 %v9991, %v10023
      %v10056 = vadd.f32 %v9992, %v10024
      %v10057 = vadd.f32 %v9993, %v10025
      %v10058 = vadd.f32 %v9994, %v10026
      %v10059 = vadd.f32 %v9995, %v10027
      %v10060 = vadd.f32 %v9996, %v10028
      %v10061 = vadd.f32 %v9997, %v10029
      %v10062 = vadd.f32 %v9998, %v10030
      %v10063 = vadd.f32 %v9999, %v10031
      %v10064 = vadd.f32 %v10000, %v10032
      %v10065 = vadd.f32 %v10001, %v10033
      %v10066 = vadd.f32 %v10002, %v10034
      %10067 = vst.msk [vmem:[%s332] sm:$0xff] %vm1063, %v10035
      %10068 = vst.msk [vmem:[%s332 + $0x8] sm:$0xff] %vm1063, %v10036
      %10069 = vst.msk [vmem:[%s332 + $0x10] sm:$0xff] %vm1063, %v10037
      %10070 = vst.msk [vmem:[%s332 + $0x18] sm:$0xff] %vm1063, %v10038
      %10071 = vst.msk [vmem:[%s332 + $0x20] sm:$0xff] %vm1063, %v10039
      %10072 = vst.msk [vmem:[%s332 + $0x28] sm:$0xff] %vm1063, %v10040
      %10073 = vst.msk [vmem:[%s332 + $0x30] sm:$0xff] %vm1063, %v10041
      %10074 = vst.msk [vmem:[%s332 + $0x38] sm:$0xff] %vm1063, %v10042
      %10075 = vst.msk [vmem:[%s332 + $0x40] sm:$0xff] %vm1063, %v10043
      %10076 = vst.msk [vmem:[%s332 + $0x48] sm:$0xff] %vm1063, %v10044
      %10077 = vst.msk [vmem:[%s332 + $0x50] sm:$0xff] %vm1063, %v10045
      %10078 = vst.msk [vmem:[%s332 + $0x58] sm:$0xff] %vm1063, %v10046
      %10079 = vst.msk [vmem:[%s332 + $0x60] sm:$0xff] %vm1063, %v10047
      %10080 = vst.msk [vmem:[%s332 + $0x68] sm:$0xff] %vm1063, %v10048
      %10081 = vst.msk [vmem:[%s332 + $0x70] sm:$0xff] %vm1063, %v10049
      %10082 = vst.msk [vmem:[%s332 + $0x78] sm:$0xff] %vm1063, %v10050
      %10083 = vst.msk [vmem:[%s332 + $0x80] sm:$0xff] %vm1063, %v10051
      %10084 = vst.msk [vmem:[%s332 + $0x88] sm:$0xff] %vm1063, %v10052
      %10085 = vst.msk [vmem:[%s332 + $0x90] sm:$0xff] %vm1063, %v10053
      %10086 = vst.msk [vmem:[%s332 + $0x98] sm:$0xff] %vm1063, %v10054
      %10087 = vst.msk [vmem:[%s332 + $0xa0] sm:$0xff] %vm1063, %v10055
      %10088 = vst.msk [vmem:[%s332 + $0xa8] sm:$0xff] %vm1063, %v10056
      %10089 = vst.msk [vmem:[%s332 + $0xb0] sm:$0xff] %vm1063, %v10057
      %10090 = vst.msk [vmem:[%s332 + $0xb8] sm:$0xff] %vm1063, %v10058
      %10091 = vst.msk [vmem:[%s332 + $0xc0] sm:$0xff] %vm1063, %v10059
      %10092 = vst.msk [vmem:[%s332 + $0xc8] sm:$0xff] %vm1063, %v10060
      %10093 = vst.msk [vmem:[%s332 + $0xd0] sm:$0xff] %vm1063, %v10061
      %10094 = vst.msk [vmem:[%s332 + $0xd8] sm:$0xff] %vm1063, %v10062
      %10095 = vst.msk [vmem:[%s332 + $0xe0] sm:$0xff] %vm1063, %v10063
      %10096 = vst.msk [vmem:[%s332 + $0xe8] sm:$0xff] %vm1063, %v10064
      %10097 = vst.msk [vmem:[%s332 + $0xf0] sm:$0xff] %vm1063, %v10065
      %10098 = vst.msk [vmem:[%s332 + $0xf8] sm:$0xff] %vm1063, %v10066
      %p10099 = scmp.lt.s32.totalorder %s20, 1
      %s10100 = scalar_select %p10099, %s20, 1
      %s10101 = smul.addr %s10100, 32
      %s10102 = smul.addr %s10101, 8
      %s10103 = scalar_lea.vmem %s9, %s10102
      // Predicated region
      $region57: #{tpu_custom_call.1} parent=55 // pred_check
        %p10104 = pneg %p232
      $region58: #{tpu_custom_call.1} parent=55 // pred_check_branch
        %10106 = sbr.rel (%p10104) target = $region60
      $region59: #{tpu_custom_call.1} parent=55 // pred_region
        _
      $region60: #{tpu_custom_call.1} parent=55 // pred_fallthru
        _
    $region56: #{tpu_custom_call.1} parent=5 // pred_fallthru
      _
    %p10107 = scmp.le.s32.totalorder 2, %s15
    // Predicated region
    $region61: #{tpu_custom_call.1} parent=5 // pred_check
      %p10108 = pneg %p10107
    $region62: #{tpu_custom_call.1} parent=5 // pred_check_branch
      %10110 = sbr.rel (%p10108) target = $region64
    $region63: #{tpu_custom_call.1} parent=5 // pred_region
      %s10111 = ssub.s32 %s15, 2
      // Predicated region
      $region65: #{tpu_custom_call.1} parent=63 // pred_check
        %p10112 = pneg %p238
      $region66: #{tpu_custom_call.1} parent=63 // pred_check_branch
        %10114 = sbr.rel (%p10112) target = $region68
      $region67: #{tpu_custom_call.1} parent=63 // pred_region
        %p10115 = scmp.lt.s32.totalorder %s21, 1
        %s10116 = scalar_select %p10115, %s21, 1
        %s10117 = smul.addr %s10116, 32
        %s10118 = smul.addr %s10117, 8
        %s10119 = scalar_lea.vmem %s9, %s10118
      $region68: #{tpu_custom_call.1} parent=63 // pred_fallthru
        _
    $region64: #{tpu_custom_call.1} parent=5 // pred_fallthru
      _
  $region6: #{tpu_custom_call.1} parent=0 // loop_footer
    %s19 = sadd.s32 1, %s15
  $region7: #{tpu_custom_call.1} parent=0 // loop_footer_branch
    %14 = sbr.rel target = $region3
  $region8: #{tpu_custom_call.1} parent=0 // loop_exit
    _

</llo_original>
